<compile_context>
chip_gen: v5e
topology: v5e:2x2
jax: 0.10.0
libtpu: 0.0.40
codegen_flags: <defaults>
</compile_context>

<pallas_src>
import functools

import jax
import jax.numpy as jnp
from jax import lax
from jax.experimental import pallas as pl
from jax.experimental.pallas import tpu as pltpu


def _linear_dropout_kernel(seed_ref, x_ref, w_ref, b_ref, o_ref,
                           *, p: float, training: bool):
    # x_ref: (TM, K) bf16   w_ref: (N, K) bf16 (native [out, in] layout)
    # b_ref: (1, N)  f32    o_ref: (TM, N) f32
    # Contract last dims of both operands: y = x @ W^T, f32 accumulation.
    y = lax.dot_general(
        x_ref[...], w_ref[...],
        dimension_numbers=(((1,), (1,)), ((), ())),
        preferred_element_type=jnp.float32)
    y = y + b_ref[...]

    if training and p > 0.0:
        if p >= 1.0:                      # degenerate: drop everything
            y = jnp.zeros_like(y)
        else:
            # Per-tile PRNG stream; non-additive mixing so (seed, tile+1)
            # never collides with (seed+1, tile).
            pltpu.prng_seed(seed_ref[0]
                            + pl.program_id(0) * jnp.int32(1640531527))
            bits = pltpu.prng_random_bits(y.shape)           # uint32
            threshold = jnp.uint32(min(int(p * float(2**32)), 2**32 - 1))
            keep = bits >= threshold                         # P(keep) = 1 - p
            y = jnp.where(keep, y * (1.0 / (1.0 - p)), 0.0)

    o_ref[...] = y.astype(o_ref.dtype)


def _tensorcores_per_chip() -> int:
    """Best-effort TC count: v7x has 2 TensorCores/chip; v5e/v6e have 1."""
    try:
        kind = jax.devices()[0].device_kind.lower()
        if "v7" in kind or "7x" in kind:
            return 2
    except Exception:
        pass
    return 1


def linear_dropout(x, w, b, *, p=0.1, training=False, seed=0, tm=None,
                   compute_dtype=jnp.bfloat16):
    """x: [B, S, K], w: [N, K] (nn.Linear layout), b: [N] -> [B, S, N]."""
    B, S, K = x.shape
    N = w.shape[0]
    M = B * S
    out_dtype = x.dtype

    # The whole problem fits VMEM with huge headroom, so: single grid step on
    # single-TC chips; an even 2-way "parallel" split on v7x (2 TCs/chip).
    if tm is None:
        if _tensorcores_per_chip() >= 2 and M % 16 == 0:
            tm = M // 2
        else:
            tm = M
    assert M % tm == 0, "B*S must be a multiple of the row tile"

    # bf16 operands for the MXU; f32 accumulate happens inside the kernel.
    # (In a real model the weights/activations would already live in bf16.)
    x2d = x.reshape(M, K).astype(compute_dtype)
    w_c = w.astype(compute_dtype)
    b2d = b.reshape(1, N).astype(jnp.float32)
    seed_arr = jnp.array([seed], dtype=jnp.int32)

    kernel = functools.partial(_linear_dropout_kernel, p=p, training=training)

    isz = jnp.dtype(compute_dtype).itemsize
    cost = pl.CostEstimate(
        flops=2 * M * K * N,
        transcendentals=0,
        bytes_accessed=(M * K * isz + N * K * isz + N * 4
                        + M * N * jnp.dtype(out_dtype).itemsize))

    out2d = pl.pallas_call(
        kernel,
        out_shape=jax.ShapeDtypeStruct((M, N), out_dtype),
        grid_spec=pltpu.PrefetchScalarGridSpec(
            num_scalar_prefetch=1,
            grid=(M // tm,),
            in_specs=[
                pl.BlockSpec((tm, K), lambda i, seed: (i, 0)),
                pl.BlockSpec((N, K), lambda i, seed: (0, 0)),   # W resident
                pl.BlockSpec((1, N), lambda i, seed: (0, 0)),   # bias resident
            ],
            out_specs=pl.BlockSpec((tm, N), lambda i, seed: (i, 0)),
        ),
        compiler_params=pltpu.CompilerParams(
            dimension_semantics=("parallel",)),
        cost_estimate=cost,
    )(seed_arr, x2d, w_c, b2d)

    return out2d.reshape(B, S, N)


if __name__ == "__main__":
    key = jax.random.PRNGKey(0)
    kx, kw, kb = jax.random.split(key, 3)

    B, S, H = 1, 384, 768  # matches M: Linear(768 -> 768) on [1, 384, 768]
    x = jax.random.normal(kx, (B, S, H), dtype=jnp.float32)

    # PyTorch-like uniform init, weight kept in nn.Linear [out, in] layout.
    bound = 1.0 / (H ** 0.5)
    w = jax.random.uniform(kw, (H, H), minval=-bound, maxval=bound,
                           dtype=jnp.float32)
    b = jax.random.uniform(kb, (H,), minval=-bound, maxval=bound,
                           dtype=jnp.float32)

    # Eval-mode dropout is the identity; set training=True to exercise the
    # in-kernel stochastic mask (inverted dropout, p=0.1).
    out = linear_dropout(x, w, b, p=0.1, training=False, seed=0)
    jax.block_until_ready(out)
    assert out.shape == (B, S, H)

    # Reference with the same bf16 compute / f32 accumulate.
    ref_bf16 = (jnp.dot(x.reshape(-1, H).astype(jnp.bfloat16),
                        w.astype(jnp.bfloat16).T,
                        preferred_element_type=jnp.float32)
                + b).reshape(B, S, H)
    assert jnp.allclose(out, ref_bf16, atol=1e-2, rtol=1e-2)

    # Loose sanity check against the full-f32 reference.
    ref_f32 = x @ w.T + b
    assert jnp.allclose(out, ref_f32, atol=5e-2, rtol=5e-2)

    print("KERNEL_OK")
</pallas_src>

<mosaic_0001>
module attributes {stable_mosaic.version = 11 : i64} {
  func.func @_linear_dropout_kernel(%arg0: i32, %arg1: memref<1xi32, #tpu.memory_space<smem>>, %arg2: memref<384x768xbf16, #tpu.memory_space<vmem>>, %arg3: memref<768x768xbf16, #tpu.memory_space<vmem>>, %arg4: memref<1x768xf32, #tpu.memory_space<vmem>>, %arg5: memref<384x768xf32, #tpu.memory_space<vmem>>) attributes {dimension_semantics = [#tpu.dimension_semantics<parallel>], iteration_bounds = array<i64: 1>, scalar_prefetch = 1 : i64, scratch_operands = 0 : i64, tpu.core_type = #tpu.core_type<tc>, window_params = [{transform_indices = @transform_0, window_bounds = array<i64: 384, 768>}, {pipeline_mode = #tpu.pipeline_mode<synchronous>, transform_indices = @transform_1, window_bounds = array<i64: 768, 768>}, {pipeline_mode = #tpu.pipeline_mode<synchronous>, transform_indices = @transform_2, window_bounds = array<i64: 1, 768>}, {transform_indices = @transform_3, window_bounds = array<i64: 384, 768>}]} {
    %c0 = arith.constant 0 : index
    %c0_0 = arith.constant 0 : index
    %0 = vector.load %arg2[%c0, %c0_0] : memref<384x768xbf16, #tpu.memory_space<vmem>>, vector<384x768xbf16>
    %c0_1 = arith.constant 0 : index
    %c0_2 = arith.constant 0 : index
    %1 = vector.load %arg3[%c0_1, %c0_2] : memref<768x768xbf16, #tpu.memory_space<vmem>>, vector<768x768xbf16>
    %cst = arith.constant dense<0.000000e+00> : vector<384x768xf32>
    %2 = tpu.matmul %0, %1, %cst {dimension_numbers = #tpu.dot_dimension_numbers<[1], [1], [0], [0], [0, 0, 1, 0], [], []>} : vector<384x768xbf16>, vector<768x768xbf16>, vector<384x768xf32> -> vector<384x768xf32>
    %c0_3 = arith.constant 0 : index
    %c0_4 = arith.constant 0 : index
    %3 = vector.load %arg4[%c0_3, %c0_4] : memref<1x768xf32, #tpu.memory_space<vmem>>, vector<1x768xf32>
    %4 = vector.broadcast %3 : vector<1x768xf32> to vector<384x768xf32>
    %5 = arith.addf %2, %4 : vector<384x768xf32>
    %c0_5 = arith.constant 0 : index
    %c0_6 = arith.constant 0 : index
    %6 = vector.load %arg5[%c0_5, %c0_6] : memref<384x768xf32, #tpu.memory_space<vmem>>, vector<384x768xf32>
    tpu.vector_store %arg5[%c0_5, %c0_6], %5 {strides = array<i32>} : memref<384x768xf32, #tpu.memory_space<vmem>>, vector<384x768xf32>,
    return
  }
  func.func @transform_0(%arg0: i32, %arg1: memref<1xi32, #tpu.memory_space<smem>>) -> (i32, i32) {
    %c0_i32 = arith.constant 0 : i32
    %c0_i32_0 = arith.constant 0 : i32
    return %arg0, %c0_i32 : i32, i32
  }
  func.func @transform_1(%arg0: i32, %arg1: memref<1xi32, #tpu.memory_space<smem>>) -> (i32, i32) {
    %c0_i32 = arith.constant 0 : i32
    %c0_i32_0 = arith.constant 0 : i32
    %c0_i32_1 = arith.constant 0 : i32
    return %c0_i32, %c0_i32_0 : i32, i32
  }
  func.func @transform_2(%arg0: i32, %arg1: memref<1xi32, #tpu.memory_space<smem>>) -> (i32, i32) {
    %c0_i32 = arith.constant 0 : i32
    %c0_i32_0 = arith.constant 0 : i32
    %c0_i32_1 = arith.constant 0 : i32
    return %c0_i32, %c0_i32_0 : i32, i32
  }
  func.func @transform_3(%arg0: i32, %arg1: memref<1xi32, #tpu.memory_space<smem>>) -> (i32, i32) {
    %c0_i32 = arith.constant 0 : i32
    %c0_i32_0 = arith.constant 0 : i32
    return %arg0, %c0_i32 : i32, i32
  }
}

</mosaic_0001>

<llo_original>
// kernel: tpu_custom_call.1
$region0: #{tpu_custom_call.1}
  #allocation0 [shape = 'u32[]', space=smem, size = 0x4, offset = 0x4, fixed_abs, tag = 'smem constant byte address 0x4 - core index']
  #allocation1 [shape = 'u32[72,128]{1,0:T(1,128)}', space=vmem, size = 0x9000, scoped, tag = 'internal scratch']
  #allocation2 [shape = 's32[1]{0}', space=sflag, size = 0x4, scoped, tag = 'scoped memory for tpu_custom_call.1']
  #allocation3 [shape = 's32[1]{0:T(128)S(6)}', space=smem, size = 0x200, scoped, tag = 'prefetched SMEM operand 0']
  %s0 = inlined_call_operand.<no memory space> [shape: s32[1], index: 0, kind: input, shape index: {}]
  %s1 = inlined_call_operand.hbm [shape: bf16[384,768], index: 1, kind: input, shape index: {}]
  %s2 = inlined_call_operand.hbm [shape: bf16[768,768], index: 2, kind: input, shape index: {}]
  %s3 = inlined_call_operand.hbm [shape: f32[1,768], index: 3, kind: input, shape index: {}]
  %s4 = inlined_call_operand.hbm [shape: f32[384,768], index: 4, kind: output, shape index: {}]
  %s5 = sld [smem:[#allocation0]]
  $region34: #{tpu_custom_call.1} parent=0
    _
  %s7 = ssub.s32 1, %s5
  %s8 = scalar_select 0, %s7, %s5
  %9 = sst [smem:[#allocation3]] %s0
  $region1: #{tpu_custom_call.1} parent=0
    #allocation4 [shape = 'u8[589824]{0}', space=vmem, size = 0x90000, scoped, tag = 'input window, operand 1, single buffered']
    #allocation5 [shape = 's32[1]{0}', space=sflag, size = 0x4, scoped, tag = 'scoped memory for tpu_custom_call.1']
    #allocation6 [shape = 's32[1]{0}', space=sflag, size = 0x4, scoped, tag = 'scoped memory for tpu_custom_call.1']
    #allocation7 [shape = 'u8[1179648]{0}', space=vmem, size = 0x120000, scoped, tag = 'input window, operand 2, single buffered']
    #allocation8 [shape = 's32[1]{0}', space=sflag, size = 0x4, scoped, tag = 'scoped memory for tpu_custom_call.1']
    #allocation9 [shape = 'u8[3072]{0}', space=vmem, size = 0xc00, scoped, tag = 'input window, operand 3, single buffered']
    #allocation10 [shape = 'u8[1179648]{0}', space=vmem, size = 0x120000, scoped, tag = 'output window, operand 0, single buffered']
    %10 = vsyncpa [#allocation5], 0
    %11 = vsyncpa [#allocation8], 0
    %12 = vsyncpa [#allocation6], 0
    // Predicated region
    $region2: #{tpu_custom_call.1} parent=1 // pred_check
      _
    $region3: #{tpu_custom_call.1} parent=1 // pred_check_branch
      %14 = sbr.rel (0) target = $region5
    $region4: #{tpu_custom_call.1} parent=1 // pred_region
      %16 = vsyncadd [#allocation5], 0
      %s17 = sshll.u32 %s1, 4
      %s18 = int_to_ptr.hbm [resolvable:$true] %s17
      %s19 = sshll.u32 [#allocation4], 4
      %s20 = int_to_ptr.vmem [resolvable:$true] %s19
      %25 = dma.hbm_to_vmem [thread:$0]  %s18, 18432, %s20, [#allocation5], 384, 384, 24
    $region5: #{tpu_custom_call.1} parent=1 // pred_fallthru
      _
    // Predicated region
    $region6: #{tpu_custom_call.1} parent=1 // pred_check
      _
    $region7: #{tpu_custom_call.1} parent=1 // pred_check_branch
      %27 = sbr.rel (0) target = $region9
    $region8: #{tpu_custom_call.1} parent=1 // pred_region
      %29 = vsyncadd [#allocation8], 0
      %s30 = sshll.u32 %s2, 4
      %s31 = int_to_ptr.hbm [resolvable:$true] %s30
      %s32 = sshll.u32 [#allocation7], 4
      %s33 = int_to_ptr.vmem [resolvable:$true] %s32
      %38 = dma.hbm_to_vmem [thread:$0]  %s31, 36864, %s33, [#allocation8], 384, 384, 24
    $region9: #{tpu_custom_call.1} parent=1 // pred_fallthru
      _
    // Predicated region
    $region10: #{tpu_custom_call.1} parent=1 // pred_check
      _
    $region11: #{tpu_custom_call.1} parent=1 // pred_check_branch
      %40 = sbr.rel (0) target = $region13
    $region12: #{tpu_custom_call.1} parent=1 // pred_region
      %42 = vsyncadd [#allocation8], 0
      %s44 = sshll.u32 %s3, 4
      %s45 = int_to_ptr.hbm [resolvable:$true] %s44
      %s46 = sshll.u32 [#allocation9], 4
      %s47 = int_to_ptr.vmem [resolvable:$true] %s46
      %49 = dma.hbm_to_vmem [thread:$0]  %s45, 96, %s47, [#allocation8]
    $region13: #{tpu_custom_call.1} parent=1 // pred_fallthru
      _
    // Predicated region
    $region14: #{tpu_custom_call.1} parent=1 // pred_check
      _
    $region15: #{tpu_custom_call.1} parent=1 // pred_check_branch
      %51 = sbr.rel (0) target = $region17
    $region16: #{tpu_custom_call.1} parent=1 // pred_region
      %53 = dma.done [#allocation5], 18432
    $region17: #{tpu_custom_call.1} parent=1 // pred_fallthru
      _
    // Predicated region
    $region18: #{tpu_custom_call.1} parent=1 // pred_check
      _
    $region19: #{tpu_custom_call.1} parent=1 // pred_check_branch
      %55 = sbr.rel (0) target = $region21
    $region20: #{tpu_custom_call.1} parent=1 // pred_region
      %57 = dma.done [#allocation8], 36864
    $region21: #{tpu_custom_call.1} parent=1 // pred_fallthru
      _
    // Predicated region
    $region22: #{tpu_custom_call.1} parent=1 // pred_check
      _
    $region23: #{tpu_custom_call.1} parent=1 // pred_check_branch
      %59 = sbr.rel (0) target = $region25
    $region24: #{tpu_custom_call.1} parent=1 // pred_region
      %61 = dma.done [#allocation8], 96
    $region25: #{tpu_custom_call.1} parent=1 // pred_fallthru
      _
    %v62 = vld [vmem:[#allocation4] sm:$0xff]
    %v63 = vld [vmem:[#allocation4 + $0x8] sm:$0xff]
    %v64 = vld [vmem:[#allocation4 + $0x10] sm:$0xff]
    %v65 = vld [vmem:[#allocation4 + $0x18] sm:$0xff]
    %v66 = vld [vmem:[#allocation4 + $0x20] sm:$0xff]
    %v67 = vld [vmem:[#allocation4 + $0x28] sm:$0xff]
    %v68 = vld [vmem:[#allocation4 + $0x30] sm:$0xff]
    %v69 = vld [vmem:[#allocation4 + $0x38] sm:$0xff]
    %v70 = vld [vmem:[#allocation4 + $0x40] sm:$0xff]
    %v71 = vld [vmem:[#allocation4 + $0x48] sm:$0xff]
    %v72 = vld [vmem:[#allocation4 + $0x50] sm:$0xff]
    %v73 = vld [vmem:[#allocation4 + $0x58] sm:$0xff]
    %v74 = vld [vmem:[#allocation4 + $0x60] sm:$0xff]
    %v75 = vld [vmem:[#allocation4 + $0x68] sm:$0xff]
    %v76 = vld [vmem:[#allocation4 + $0x70] sm:$0xff]
    %v77 = vld [vmem:[#allocation4 + $0x78] sm:$0xff]
    %v78 = vld [vmem:[#allocation4 + $0x80] sm:$0xff]
    %v79 = vld [vmem:[#allocation4 + $0x88] sm:$0xff]
    %v80 = vld [vmem:[#allocation4 + $0x90] sm:$0xff]
    %v81 = vld [vmem:[#allocation4 + $0x98] sm:$0xff]
    %v82 = vld [vmem:[#allocation4 + $0xa0] sm:$0xff]
    %v83 = vld [vmem:[#allocation4 + $0xa8] sm:$0xff]
    %v84 = vld [vmem:[#allocation4 + $0xb0] sm:$0xff]
    %v85 = vld [vmem:[#allocation4 + $0xb8] sm:$0xff]
    %v86 = vld [vmem:[#allocation4 + $0xc0] sm:$0xff]
    %v87 = vld [vmem:[#allocation4 + $0xc8] sm:$0xff]
    %v88 = vld [vmem:[#allocation4 + $0xd0] sm:$0xff]
    %v89 = vld [vmem:[#allocation4 + $0xd8] sm:$0xff]
    %v90 = vld [vmem:[#allocation4 + $0xe0] sm:$0xff]
    %v91 = vld [vmem:[#allocation4 + $0xe8] sm:$0xff]
    %v92 = vld [vmem:[#allocation4 + $0xf0] sm:$0xff]
    %v93 = vld [vmem:[#allocation4 + $0xf8] sm:$0xff]
    %v94 = vld [vmem:[#allocation4 + $0x100] sm:$0xff]
    %v95 = vld [vmem:[#allocation4 + $0x108] sm:$0xff]
    %v96 = vld [vmem:[#allocation4 + $0x110] sm:$0xff]
    %v97 = vld [vmem:[#allocation4 + $0x118] sm:$0xff]
    %v98 = vld [vmem:[#allocation4 + $0x120] sm:$0xff]
    %v99 = vld [vmem:[#allocation4 + $0x128] sm:$0xff]
    %v100 = vld [vmem:[#allocation4 + $0x130] sm:$0xff]
    %v101 = vld [vmem:[#allocation4 + $0x138] sm:$0xff]
    %v102 = vld [vmem:[#allocation4 + $0x140] sm:$0xff]
    %v103 = vld [vmem:[#allocation4 + $0x148] sm:$0xff]
    %v104 = vld [vmem:[#allocation4 + $0x150] sm:$0xff]
    %v105 = vld [vmem:[#allocation4 + $0x158] sm:$0xff]
    %v106 = vld [vmem:[#allocation4 + $0x160] sm:$0xff]
    %v107 = vld [vmem:[#allocation4 + $0x168] sm:$0xff]
    %v108 = vld [vmem:[#allocation4 + $0x170] sm:$0xff]
    %v109 = vld [vmem:[#allocation4 + $0x178] sm:$0xff]
    %v110 = vld [vmem:[#allocation4 + $0x180] sm:$0xff]
    %v111 = vld [vmem:[#allocation4 + $0x188] sm:$0xff]
    %v112 = vld [vmem:[#allocation4 + $0x190] sm:$0xff]
    %v113 = vld [vmem:[#allocation4 + $0x198] sm:$0xff]
    %v114 = vld [vmem:[#allocation4 + $0x1a0] sm:$0xff]
    %v115 = vld [vmem:[#allocation4 + $0x1a8] sm:$0xff]
    %v116 = vld [vmem:[#allocation4 + $0x1b0] sm:$0xff]
    %v117 = vld [vmem:[#allocation4 + $0x1b8] sm:$0xff]
    %v118 = vld [vmem:[#allocation4 + $0x1c0] sm:$0xff]
    %v119 = vld [vmem:[#allocation4 + $0x1c8] sm:$0xff]
    %v120 = vld [vmem:[#allocation4 + $0x1d0] sm:$0xff]
    %v121 = vld [vmem:[#allocation4 + $0x1d8] sm:$0xff]
    %v122 = vld [vmem:[#allocation4 + $0x1e0] sm:$0xff]
    %v123 = vld [vmem:[#allocation4 + $0x1e8] sm:$0xff]
    %v124 = vld [vmem:[#allocation4 + $0x1f0] sm:$0xff]
    %v125 = vld [vmem:[#allocation4 + $0x1f8] sm:$0xff]
    %v126 = vld [vmem:[#allocation4 + $0x200] sm:$0xff]
    %v127 = vld [vmem:[#allocation4 + $0x208] sm:$0xff]
    %v128 = vld [vmem:[#allocation4 + $0x210] sm:$0xff]
    %v129 = vld [vmem:[#allocation4 + $0x218] sm:$0xff]
    %v130 = vld [vmem:[#allocation4 + $0x220] sm:$0xff]
    %v131 = vld [vmem:[#allocation4 + $0x228] sm:$0xff]
    %v132 = vld [vmem:[#allocation4 + $0x230] sm:$0xff]
    %v133 = vld [vmem:[#allocation4 + $0x238] sm:$0xff]
    %v134 = vld [vmem:[#allocation4 + $0x240] sm:$0xff]
    %v135 = vld [vmem:[#allocation4 + $0x248] sm:$0xff]
    %v136 = vld [vmem:[#allocation4 + $0x250] sm:$0xff]
    %v137 = vld [vmem:[#allocation4 + $0x258] sm:$0xff]
    %v138 = vld [vmem:[#allocation4 + $0x260] sm:$0xff]
    %v139 = vld [vmem:[#allocation4 + $0x268] sm:$0xff]
    %v140 = vld [vmem:[#allocation4 + $0x270] sm:$0xff]
    %v141 = vld [vmem:[#allocation4 + $0x278] sm:$0xff]
    %v142 = vld [vmem:[#allocation4 + $0x280] sm:$0xff]
    %v143 = vld [vmem:[#allocation4 + $0x288] sm:$0xff]
    %v144 = vld [vmem:[#allocation4 + $0x290] sm:$0xff]
    %v145 = vld [vmem:[#allocation4 + $0x298] sm:$0xff]
    %v146 = vld [vmem:[#allocation4 + $0x2a0] sm:$0xff]
    %v147 = vld [vmem:[#allocation4 + $0x2a8] sm:$0xff]
    %v148 = vld [vmem:[#allocation4 + $0x2b0] sm:$0xff]
    %v149 = vld [vmem:[#allocation4 + $0x2b8] sm:$0xff]
    %v150 = vld [vmem:[#allocation4 + $0x2c0] sm:$0xff]
    %v151 = vld [vmem:[#allocation4 + $0x2c8] sm:$0xff]
    %v152 = vld [vmem:[#allocation4 + $0x2d0] sm:$0xff]
    %v153 = vld [vmem:[#allocation4 + $0x2d8] sm:$0xff]
    %v154 = vld [vmem:[#allocation4 + $0x2e0] sm:$0xff]
    %v155 = vld [vmem:[#allocation4 + $0x2e8] sm:$0xff]
    %v156 = vld [vmem:[#allocation4 + $0x2f0] sm:$0xff]
    %v157 = vld [vmem:[#allocation4 + $0x2f8] sm:$0xff]
    %v158 = vld [vmem:[#allocation4 + $0x300] sm:$0xff]
    %v159 = vld [vmem:[#allocation4 + $0x308] sm:$0xff]
    %v160 = vld [vmem:[#allocation4 + $0x310] sm:$0xff]
    %v161 = vld [vmem:[#allocation4 + $0x318] sm:$0xff]
    %v162 = vld [vmem:[#allocation4 + $0x320] sm:$0xff]
    %v163 = vld [vmem:[#allocation4 + $0x328] sm:$0xff]
    %v164 = vld [vmem:[#allocation4 + $0x330] sm:$0xff]
    %v165 = vld [vmem:[#allocation4 + $0x338] sm:$0xff]
    %v166 = vld [vmem:[#allocation4 + $0x340] sm:$0xff]
    %v167 = vld [vmem:[#allocation4 + $0x348] sm:$0xff]
    %v168 = vld [vmem:[#allocation4 + $0x350] sm:$0xff]
    %v169 = vld [vmem:[#allocation4 + $0x358] sm:$0xff]
    %v170 = vld [vmem:[#allocation4 + $0x360] sm:$0xff]
    %v171 = vld [vmem:[#allocation4 + $0x368] sm:$0xff]
    %v172 = vld [vmem:[#allocation4 + $0x370] sm:$0xff]
    %v173 = vld [vmem:[#allocation4 + $0x378] sm:$0xff]
    %v174 = vld [vmem:[#allocation4 + $0x380] sm:$0xff]
    %v175 = vld [vmem:[#allocation4 + $0x388] sm:$0xff]
    %v176 = vld [vmem:[#allocation4 + $0x390] sm:$0xff]
    %v177 = vld [vmem:[#allocation4 + $0x398] sm:$0xff]
    %v178 = vld [vmem:[#allocation4 + $0x3a0] sm:$0xff]
    %v179 = vld [vmem:[#allocation4 + $0x3a8] sm:$0xff]
    %v180 = vld [vmem:[#allocation4 + $0x3b0] sm:$0xff]
    %v181 = vld [vmem:[#allocation4 + $0x3b8] sm:$0xff]
    %v182 = vld [vmem:[#allocation4 + $0x3c0] sm:$0xff]
    %v183 = vld [vmem:[#allocation4 + $0x3c8] sm:$0xff]
    %v184 = vld [vmem:[#allocation4 + $0x3d0] sm:$0xff]
    %v185 = vld [vmem:[#allocation4 + $0x3d8] sm:$0xff]
    %v186 = vld [vmem:[#allocation4 + $0x3e0] sm:$0xff]
    %v187 = vld [vmem:[#allocation4 + $0x3e8] sm:$0xff]
    %v188 = vld [vmem:[#allocation4 + $0x3f0] sm:$0xff]
    %v189 = vld [vmem:[#allocation4 + $0x3f8] sm:$0xff]
    %v190 = vld [vmem:[#allocation4 + $0x400] sm:$0xff]
    %v191 = vld [vmem:[#allocation4 + $0x408] sm:$0xff]
    %v192 = vld [vmem:[#allocation4 + $0x410] sm:$0xff]
    %v193 = vld [vmem:[#allocation4 + $0x418] sm:$0xff]
    %v194 = vld [vmem:[#allocation4 + $0x420] sm:$0xff]
    %v195 = vld [vmem:[#allocation4 + $0x428] sm:$0xff]
    %v196 = vld [vmem:[#allocation4 + $0x430] sm:$0xff]
    %v197 = vld [vmem:[#allocation4 + $0x438] sm:$0xff]
    %v198 = vld [vmem:[#allocation4 + $0x440] sm:$0xff]
    %v199 = vld [vmem:[#allocation4 + $0x448] sm:$0xff]
    %v200 = vld [vmem:[#allocation4 + $0x450] sm:$0xff]
    %v201 = vld [vmem:[#allocation4 + $0x458] sm:$0xff]
    %v202 = vld [vmem:[#allocation4 + $0x460] sm:$0xff]
    %v203 = vld [vmem:[#allocation4 + $0x468] sm:$0xff]
    %v204 = vld [vmem:[#allocation4 + $0x470] sm:$0xff]
    %v205 = vld [vmem:[#allocation4 + $0x478] sm:$0xff]
    %v206 = vld [vmem:[#allocation7] sm:$0xff]
    %v207 = vld [vmem:[#allocation7 + $0x8] sm:$0xff]
    %v208 = vld [vmem:[#allocation7 + $0x10] sm:$0xff]
    %v209 = vld [vmem:[#allocation7 + $0x18] sm:$0xff]
    %v210 = vld [vmem:[#allocation7 + $0x20] sm:$0xff]
    %v211 = vld [vmem:[#allocation7 + $0x28] sm:$0xff]
    %v212 = vld [vmem:[#allocation7 + $0x30] sm:$0xff]
    %v213 = vld [vmem:[#allocation7 + $0x38] sm:$0xff]
    %v214 = vld [vmem:[#allocation7 + $0x40] sm:$0xff]
    %v215 = vld [vmem:[#allocation7 + $0x48] sm:$0xff]
    %v216 = vld [vmem:[#allocation7 + $0x50] sm:$0xff]
    %v217 = vld [vmem:[#allocation7 + $0x58] sm:$0xff]
    %v218 = vld [vmem:[#allocation7 + $0x60] sm:$0xff]
    %v219 = vld [vmem:[#allocation7 + $0x68] sm:$0xff]
    %v220 = vld [vmem:[#allocation7 + $0x70] sm:$0xff]
    %v221 = vld [vmem:[#allocation7 + $0x78] sm:$0xff]
    %v222 = vld [vmem:[#allocation7 + $0x80] sm:$0xff]
    %v223 = vld [vmem:[#allocation7 + $0x88] sm:$0xff]
    %v224 = vld [vmem:[#allocation7 + $0x90] sm:$0xff]
    %v225 = vld [vmem:[#allocation7 + $0x98] sm:$0xff]
    %v226 = vld [vmem:[#allocation7 + $0xa0] sm:$0xff]
    %v227 = vld [vmem:[#allocation7 + $0xa8] sm:$0xff]
    %v228 = vld [vmem:[#allocation7 + $0xb0] sm:$0xff]
    %v229 = vld [vmem:[#allocation7 + $0xb8] sm:$0xff]
    %v230 = vld [vmem:[#allocation7 + $0xc0] sm:$0xff]
    %v231 = vld [vmem:[#allocation7 + $0xc8] sm:$0xff]
    %v232 = vld [vmem:[#allocation7 + $0xd0] sm:$0xff]
    %v233 = vld [vmem:[#allocation7 + $0xd8] sm:$0xff]
    %v234 = vld [vmem:[#allocation7 + $0xe0] sm:$0xff]
    %v235 = vld [vmem:[#allocation7 + $0xe8] sm:$0xff]
    %v236 = vld [vmem:[#allocation7 + $0xf0] sm:$0xff]
    %v237 = vld [vmem:[#allocation7 + $0xf8] sm:$0xff]
    %v238 = vld [vmem:[#allocation7 + $0x100] sm:$0xff]
    %v239 = vld [vmem:[#allocation7 + $0x108] sm:$0xff]
    %v240 = vld [vmem:[#allocation7 + $0x110] sm:$0xff]
    %v241 = vld [vmem:[#allocation7 + $0x118] sm:$0xff]
    %v242 = vld [vmem:[#allocation7 + $0x120] sm:$0xff]
    %v243 = vld [vmem:[#allocation7 + $0x128] sm:$0xff]
    %v244 = vld [vmem:[#allocation7 + $0x130] sm:$0xff]
    %v245 = vld [vmem:[#allocation7 + $0x138] sm:$0xff]
    %v246 = vld [vmem:[#allocation7 + $0x140] sm:$0xff]
    %v247 = vld [vmem:[#allocation7 + $0x148] sm:$0xff]
    %v248 = vld [vmem:[#allocation7 + $0x150] sm:$0xff]
    %v249 = vld [vmem:[#allocation7 + $0x158] sm:$0xff]
    %v250 = vld [vmem:[#allocation7 + $0x160] sm:$0xff]
    %v251 = vld [vmem:[#allocation7 + $0x168] sm:$0xff]
    %v252 = vld [vmem:[#allocation7 + $0x170] sm:$0xff]
    %v253 = vld [vmem:[#allocation7 + $0x178] sm:$0xff]
    %v254 = vld [vmem:[#allocation7 + $0x180] sm:$0xff]
    %v255 = vld [vmem:[#allocation7 + $0x188] sm:$0xff]
    %v256 = vld [vmem:[#allocation7 + $0x190] sm:$0xff]
    %v257 = vld [vmem:[#allocation7 + $0x198] sm:$0xff]
    %v258 = vld [vmem:[#allocation7 + $0x1a0] sm:$0xff]
    %v259 = vld [vmem:[#allocation7 + $0x1a8] sm:$0xff]
    %v260 = vld [vmem:[#allocation7 + $0x1b0] sm:$0xff]
    %v261 = vld [vmem:[#allocation7 + $0x1b8] sm:$0xff]
    %v262 = vld [vmem:[#allocation7 + $0x1c0] sm:$0xff]
    %v263 = vld [vmem:[#allocation7 + $0x1c8] sm:$0xff]
    %v264 = vld [vmem:[#allocation7 + $0x1d0] sm:$0xff]
    %v265 = vld [vmem:[#allocation7 + $0x1d8] sm:$0xff]
    %v266 = vld [vmem:[#allocation7 + $0x1e0] sm:$0xff]
    %v267 = vld [vmem:[#allocation7 + $0x1e8] sm:$0xff]
    %v268 = vld [vmem:[#allocation7 + $0x1f0] sm:$0xff]
    %v269 = vld [vmem:[#allocation7 + $0x1f8] sm:$0xff]
    %v270 = vld [vmem:[#allocation7 + $0x200] sm:$0xff]
    %v271 = vld [vmem:[#allocation7 + $0x208] sm:$0xff]
    %v272 = vld [vmem:[#allocation7 + $0x210] sm:$0xff]
    %v273 = vld [vmem:[#allocation7 + $0x218] sm:$0xff]
    %v274 = vld [vmem:[#allocation7 + $0x220] sm:$0xff]
    %v275 = vld [vmem:[#allocation7 + $0x228] sm:$0xff]
    %v276 = vld [vmem:[#allocation7 + $0x230] sm:$0xff]
    %v277 = vld [vmem:[#allocation7 + $0x238] sm:$0xff]
    %v278 = vld [vmem:[#allocation7 + $0x240] sm:$0xff]
    %v279 = vld [vmem:[#allocation7 + $0x248] sm:$0xff]
    %v280 = vld [vmem:[#allocation7 + $0x250] sm:$0xff]
    %v281 = vld [vmem:[#allocation7 + $0x258] sm:$0xff]
    %v282 = vld [vmem:[#allocation7 + $0x260] sm:$0xff]
    %v283 = vld [vmem:[#allocation7 + $0x268] sm:$0xff]
    %v284 = vld [vmem:[#allocation7 + $0x270] sm:$0xff]
    %v285 = vld [vmem:[#allocation7 + $0x278] sm:$0xff]
    %v286 = vld [vmem:[#allocation7 + $0x280] sm:$0xff]
    %v287 = vld [vmem:[#allocation7 + $0x288] sm:$0xff]
    %v288 = vld [vmem:[#allocation7 + $0x290] sm:$0xff]
    %v289 = vld [vmem:[#allocation7 + $0x298] sm:$0xff]
    %v290 = vld [vmem:[#allocation7 + $0x2a0] sm:$0xff]
    %v291 = vld [vmem:[#allocation7 + $0x2a8] sm:$0xff]
    %v292 = vld [vmem:[#allocation7 + $0x2b0] sm:$0xff]
    %v293 = vld [vmem:[#allocation7 + $0x2b8] sm:$0xff]
    %v294 = vld [vmem:[#allocation7 + $0x2c0] sm:$0xff]
    %v295 = vld [vmem:[#allocation7 + $0x2c8] sm:$0xff]
    %v296 = vld [vmem:[#allocation7 + $0x2d0] sm:$0xff]
    %v297 = vld [vmem:[#allocation7 + $0x2d8] sm:$0xff]
    %v298 = vld [vmem:[#allocation7 + $0x2e0] sm:$0xff]
    %v299 = vld [vmem:[#allocation7 + $0x2e8] sm:$0xff]
    %v300 = vld [vmem:[#allocation7 + $0x2f0] sm:$0xff]
    %v301 = vld [vmem:[#allocation7 + $0x2f8] sm:$0xff]
    %v302 = vld [vmem:[#allocation7 + $0x300] sm:$0xff]
    %v303 = vld [vmem:[#allocation7 + $0x308] sm:$0xff]
    %v304 = vld [vmem:[#allocation7 + $0x310] sm:$0xff]
    %v305 = vld [vmem:[#allocation7 + $0x318] sm:$0xff]
    %v306 = vld [vmem:[#allocation7 + $0x320] sm:$0xff]
    %v307 = vld [vmem:[#allocation7 + $0x328] sm:$0xff]
    %v308 = vld [vmem:[#allocation7 + $0x330] sm:$0xff]
    %v309 = vld [vmem:[#allocation7 + $0x338] sm:$0xff]
    %v310 = vld [vmem:[#allocation7 + $0x340] sm:$0xff]
    %v311 = vld [vmem:[#allocation7 + $0x348] sm:$0xff]
    %v312 = vld [vmem:[#allocation7 + $0x350] sm:$0xff]
    %v313 = vld [vmem:[#allocation7 + $0x358] sm:$0xff]
    %v314 = vld [vmem:[#allocation7 + $0x360] sm:$0xff]
    %v315 = vld [vmem:[#allocation7 + $0x368] sm:$0xff]
    %v316 = vld [vmem:[#allocation7 + $0x370] sm:$0xff]
    %v317 = vld [vmem:[#allocation7 + $0x378] sm:$0xff]
    %v318 = vld [vmem:[#allocation7 + $0x380] sm:$0xff]
    %v319 = vld [vmem:[#allocation7 + $0x388] sm:$0xff]
    %v320 = vld [vmem:[#allocation7 + $0x390] sm:$0xff]
    %v321 = vld [vmem:[#allocation7 + $0x398] sm:$0xff]
    %v322 = vld [vmem:[#allocation7 + $0x3a0] sm:$0xff]
    %v323 = vld [vmem:[#allocation7 + $0x3a8] sm:$0xff]
    %v324 = vld [vmem:[#allocation7 + $0x3b0] sm:$0xff]
    %v325 = vld [vmem:[#allocation7 + $0x3b8] sm:$0xff]
    %v326 = vld [vmem:[#allocation7 + $0x3c0] sm:$0xff]
    %v327 = vld [vmem:[#allocation7 + $0x3c8] sm:$0xff]
    %v328 = vld [vmem:[#allocation7 + $0x3d0] sm:$0xff]
    %v329 = vld [vmem:[#allocation7 + $0x3d8] sm:$0xff]
    %v330 = vld [vmem:[#allocation7 + $0x3e0] sm:$0xff]
    %v331 = vld [vmem:[#allocation7 + $0x3e8] sm:$0xff]
    %v332 = vld [vmem:[#allocation7 + $0x3f0] sm:$0xff]
    %v333 = vld [vmem:[#allocation7 + $0x3f8] sm:$0xff]
    %v334 = vld [vmem:[#allocation7 + $0x400] sm:$0xff]
    %v335 = vld [vmem:[#allocation7 + $0x408] sm:$0xff]
    %v336 = vld [vmem:[#allocation7 + $0x410] sm:$0xff]
    %v337 = vld [vmem:[#allocation7 + $0x418] sm:$0xff]
    %v338 = vld [vmem:[#allocation7 + $0x420] sm:$0xff]
    %v339 = vld [vmem:[#allocation7 + $0x428] sm:$0xff]
    %v340 = vld [vmem:[#allocation7 + $0x430] sm:$0xff]
    %v341 = vld [vmem:[#allocation7 + $0x438] sm:$0xff]
    %v342 = vld [vmem:[#allocation7 + $0x440] sm:$0xff]
    %v343 = vld [vmem:[#allocation7 + $0x448] sm:$0xff]
    %v344 = vld [vmem:[#allocation7 + $0x450] sm:$0xff]
    %v345 = vld [vmem:[#allocation7 + $0x458] sm:$0xff]
    %v346 = vld [vmem:[#allocation7 + $0x460] sm:$0xff]
    %v347 = vld [vmem:[#allocation7 + $0x468] sm:$0xff]
    %v348 = vld [vmem:[#allocation7 + $0x470] sm:$0xff]
    %v349 = vld [vmem:[#allocation7 + $0x478] sm:$0xff]
    %v350 = vld [vmem:[#allocation7 + $0x480] sm:$0xff]
    %v351 = vld [vmem:[#allocation7 + $0x488] sm:$0xff]
    %v352 = vld [vmem:[#allocation7 + $0x490] sm:$0xff]
    %v353 = vld [vmem:[#allocation7 + $0x498] sm:$0xff]
    %v354 = vld [vmem:[#allocation7 + $0x4a0] sm:$0xff]
    %v355 = vld [vmem:[#allocation7 + $0x4a8] sm:$0xff]
    %v356 = vld [vmem:[#allocation7 + $0x4b0] sm:$0xff]
    %v357 = vld [vmem:[#allocation7 + $0x4b8] sm:$0xff]
    %v358 = vld [vmem:[#allocation7 + $0x4c0] sm:$0xff]
    %v359 = vld [vmem:[#allocation7 + $0x4c8] sm:$0xff]
    %v360 = vld [vmem:[#allocation7 + $0x4d0] sm:$0xff]
    %v361 = vld [vmem:[#allocation7 + $0x4d8] sm:$0xff]
    %v362 = vld [vmem:[#allocation7 + $0x4e0] sm:$0xff]
    %v363 = vld [vmem:[#allocation7 + $0x4e8] sm:$0xff]
    %v364 = vld [vmem:[#allocation7 + $0x4f0] sm:$0xff]
    %v365 = vld [vmem:[#allocation7 + $0x4f8] sm:$0xff]
    %v366 = vld [vmem:[#allocation7 + $0x500] sm:$0xff]
    %v367 = vld [vmem:[#allocation7 + $0x508] sm:$0xff]
    %v368 = vld [vmem:[#allocation7 + $0x510] sm:$0xff]
    %v369 = vld [vmem:[#allocation7 + $0x518] sm:$0xff]
    %v370 = vld [vmem:[#allocation7 + $0x520] sm:$0xff]
    %v371 = vld [vmem:[#allocation7 + $0x528] sm:$0xff]
    %v372 = vld [vmem:[#allocation7 + $0x530] sm:$0xff]
    %v373 = vld [vmem:[#allocation7 + $0x538] sm:$0xff]
    %v374 = vld [vmem:[#allocation7 + $0x540] sm:$0xff]
    %v375 = vld [vmem:[#allocation7 + $0x548] sm:$0xff]
    %v376 = vld [vmem:[#allocation7 + $0x550] sm:$0xff]
    %v377 = vld [vmem:[#allocation7 + $0x558] sm:$0xff]
    %v378 = vld [vmem:[#allocation7 + $0x560] sm:$0xff]
    %v379 = vld [vmem:[#allocation7 + $0x568] sm:$0xff]
    %v380 = vld [vmem:[#allocation7 + $0x570] sm:$0xff]
    %v381 = vld [vmem:[#allocation7 + $0x578] sm:$0xff]
    %v382 = vld [vmem:[#allocation7 + $0x580] sm:$0xff]
    %v383 = vld [vmem:[#allocation7 + $0x588] sm:$0xff]
    %v384 = vld [vmem:[#allocation7 + $0x590] sm:$0xff]
    %v385 = vld [vmem:[#allocation7 + $0x598] sm:$0xff]
    %v386 = vld [vmem:[#allocation7 + $0x5a0] sm:$0xff]
    %v387 = vld [vmem:[#allocation7 + $0x5a8] sm:$0xff]
    %v388 = vld [vmem:[#allocation7 + $0x5b0] sm:$0xff]
    %v389 = vld [vmem:[#allocation7 + $0x5b8] sm:$0xff]
    %v390 = vld [vmem:[#allocation7 + $0x5c0] sm:$0xff]
    %v391 = vld [vmem:[#allocation7 + $0x5c8] sm:$0xff]
    %v392 = vld [vmem:[#allocation7 + $0x5d0] sm:$0xff]
    %v393 = vld [vmem:[#allocation7 + $0x5d8] sm:$0xff]
    %v394 = vld [vmem:[#allocation7 + $0x5e0] sm:$0xff]
    %v395 = vld [vmem:[#allocation7 + $0x5e8] sm:$0xff]
    %v396 = vld [vmem:[#allocation7 + $0x5f0] sm:$0xff]
    %v397 = vld [vmem:[#allocation7 + $0x5f8] sm:$0xff]
    %v398 = vld [vmem:[#allocation7 + $0x600] sm:$0xff]
    %v399 = vld [vmem:[#allocation7 + $0x608] sm:$0xff]
    %v400 = vld [vmem:[#allocation7 + $0x610] sm:$0xff]
    %v401 = vld [vmem:[#allocation7 + $0x618] sm:$0xff]
    %v402 = vld [vmem:[#allocation7 + $0x620] sm:$0xff]
    %v403 = vld [vmem:[#allocation7 + $0x628] sm:$0xff]
    %v404 = vld [vmem:[#allocation7 + $0x630] sm:$0xff]
    %v405 = vld [vmem:[#allocation7 + $0x638] sm:$0xff]
    %v406 = vld [vmem:[#allocation7 + $0x640] sm:$0xff]
    %v407 = vld [vmem:[#allocation7 + $0x648] sm:$0xff]
    %v408 = vld [vmem:[#allocation7 + $0x650] sm:$0xff]
    %v409 = vld [vmem:[#allocation7 + $0x658] sm:$0xff]
    %v410 = vld [vmem:[#allocation7 + $0x660] sm:$0xff]
    %v411 = vld [vmem:[#allocation7 + $0x668] sm:$0xff]
    %v412 = vld [vmem:[#allocation7 + $0x670] sm:$0xff]
    %v413 = vld [vmem:[#allocation7 + $0x678] sm:$0xff]
    %v414 = vld [vmem:[#allocation7 + $0x680] sm:$0xff]
    %v415 = vld [vmem:[#allocation7 + $0x688] sm:$0xff]
    %v416 = vld [vmem:[#allocation7 + $0x690] sm:$0xff]
    %v417 = vld [vmem:[#allocation7 + $0x698] sm:$0xff]
    %v418 = vld [vmem:[#allocation7 + $0x6a0] sm:$0xff]
    %v419 = vld [vmem:[#allocation7 + $0x6a8] sm:$0xff]
    %v420 = vld [vmem:[#allocation7 + $0x6b0] sm:$0xff]
    %v421 = vld [vmem:[#allocation7 + $0x6b8] sm:$0xff]
    %v422 = vld [vmem:[#allocation7 + $0x6c0] sm:$0xff]
    %v423 = vld [vmem:[#allocation7 + $0x6c8] sm:$0xff]
    %v424 = vld [vmem:[#allocation7 + $0x6d0] sm:$0xff]
    %v425 = vld [vmem:[#allocation7 + $0x6d8] sm:$0xff]
    %v426 = vld [vmem:[#allocation7 + $0x6e0] sm:$0xff]
    %v427 = vld [vmem:[#allocation7 + $0x6e8] sm:$0xff]
    %v428 = vld [vmem:[#allocation7 + $0x6f0] sm:$0xff]
    %v429 = vld [vmem:[#allocation7 + $0x6f8] sm:$0xff]
    %v430 = vld [vmem:[#allocation7 + $0x700] sm:$0xff]
    %v431 = vld [vmem:[#allocation7 + $0x708] sm:$0xff]
    %v432 = vld [vmem:[#allocation7 + $0x710] sm:$0xff]
    %v433 = vld [vmem:[#allocation7 + $0x718] sm:$0xff]
    %v434 = vld [vmem:[#allocation7 + $0x720] sm:$0xff]
    %v435 = vld [vmem:[#allocation7 + $0x728] sm:$0xff]
    %v436 = vld [vmem:[#allocation7 + $0x730] sm:$0xff]
    %v437 = vld [vmem:[#allocation7 + $0x738] sm:$0xff]
    %v438 = vld [vmem:[#allocation7 + $0x740] sm:$0xff]
    %v439 = vld [vmem:[#allocation7 + $0x748] sm:$0xff]
    %v440 = vld [vmem:[#allocation7 + $0x750] sm:$0xff]
    %v441 = vld [vmem:[#allocation7 + $0x758] sm:$0xff]
    %v442 = vld [vmem:[#allocation7 + $0x760] sm:$0xff]
    %v443 = vld [vmem:[#allocation7 + $0x768] sm:$0xff]
    %v444 = vld [vmem:[#allocation7 + $0x770] sm:$0xff]
    %v445 = vld [vmem:[#allocation7 + $0x778] sm:$0xff]
    %v446 = vld [vmem:[#allocation7 + $0x780] sm:$0xff]
    %v447 = vld [vmem:[#allocation7 + $0x788] sm:$0xff]
    %v448 = vld [vmem:[#allocation7 + $0x790] sm:$0xff]
    %v449 = vld [vmem:[#allocation7 + $0x798] sm:$0xff]
    %v450 = vld [vmem:[#allocation7 + $0x7a0] sm:$0xff]
    %v451 = vld [vmem:[#allocation7 + $0x7a8] sm:$0xff]
    %v452 = vld [vmem:[#allocation7 + $0x7b0] sm:$0xff]
    %v453 = vld [vmem:[#allocation7 + $0x7b8] sm:$0xff]
    %v454 = vld [vmem:[#allocation7 + $0x7c0] sm:$0xff]
    %v455 = vld [vmem:[#allocation7 + $0x7c8] sm:$0xff]
    %v456 = vld [vmem:[#allocation7 + $0x7d0] sm:$0xff]
    %v457 = vld [vmem:[#allocation7 + $0x7d8] sm:$0xff]
    %v458 = vld [vmem:[#allocation7 + $0x7e0] sm:$0xff]
    %v459 = vld [vmem:[#allocation7 + $0x7e8] sm:$0xff]
    %v460 = vld [vmem:[#allocation7 + $0x7f0] sm:$0xff]
    %v461 = vld [vmem:[#allocation7 + $0x7f8] sm:$0xff]
    %v462 = vld [vmem:[#allocation7 + $0x800] sm:$0xff]
    %v463 = vld [vmem:[#allocation7 + $0x808] sm:$0xff]
    %v464 = vld [vmem:[#allocation7 + $0x810] sm:$0xff]
    %v465 = vld [vmem:[#allocation7 + $0x818] sm:$0xff]
    %v466 = vld [vmem:[#allocation7 + $0x820] sm:$0xff]
    %v467 = vld [vmem:[#allocation7 + $0x828] sm:$0xff]
    %v468 = vld [vmem:[#allocation7 + $0x830] sm:$0xff]
    %v469 = vld [vmem:[#allocation7 + $0x838] sm:$0xff]
    %v470 = vld [vmem:[#allocation7 + $0x840] sm:$0xff]
    %v471 = vld [vmem:[#allocation7 + $0x848] sm:$0xff]
    %v472 = vld [vmem:[#allocation7 + $0x850] sm:$0xff]
    %v473 = vld [vmem:[#allocation7 + $0x858] sm:$0xff]
    %v474 = vld [vmem:[#allocation7 + $0x860] sm:$0xff]
    %v475 = vld [vmem:[#allocation7 + $0x868] sm:$0xff]
    %v476 = vld [vmem:[#allocation7 + $0x870] sm:$0xff]
    %v477 = vld [vmem:[#allocation7 + $0x878] sm:$0xff]
    %v478 = vld [vmem:[#allocation7 + $0x880] sm:$0xff]
    %v479 = vld [vmem:[#allocation7 + $0x888] sm:$0xff]
    %v480 = vld [vmem:[#allocation7 + $0x890] sm:$0xff]
    %v481 = vld [vmem:[#allocation7 + $0x898] sm:$0xff]
    %v482 = vld [vmem:[#allocation7 + $0x8a0] sm:$0xff]
    %v483 = vld [vmem:[#allocation7 + $0x8a8] sm:$0xff]
    %v484 = vld [vmem:[#allocation7 + $0x8b0] sm:$0xff]
    %v485 = vld [vmem:[#allocation7 + $0x8b8] sm:$0xff]
    %v486 = vld [vmem:[#allocation7 + $0x8c0] sm:$0xff]
    %v487 = vld [vmem:[#allocation7 + $0x8c8] sm:$0xff]
    %v488 = vld [vmem:[#allocation7 + $0x8d0] sm:$0xff]
    %v489 = vld [vmem:[#allocation7 + $0x8d8] sm:$0xff]
    %v490 = vld [vmem:[#allocation7 + $0x8e0] sm:$0xff]
    %v491 = vld [vmem:[#allocation7 + $0x8e8] sm:$0xff]
    %v492 = vld [vmem:[#allocation7 + $0x8f0] sm:$0xff]
    %v493 = vld [vmem:[#allocation7 + $0x8f8] sm:$0xff]
    %v494 = vld [vmem:[#allocation9] sm:$0x3f]
    %v496 = vperm.slane %v494, 0
    %v497 = vperm.slane %v494, 1
    %v498 = vperm.slane %v494, 2
    %v499 = vperm.slane %v494, 3
    %v500 = vperm.slane %v494, 4
    %v501 = vperm.slane %v494, 5
    %v652 = vunpack.c.l.b16 %v62
    %v653 = vunpack.c.h.b16 %v62
    %v654 = vunpack.c.l.b16 %v63
    %v655 = vunpack.c.h.b16 %v63
    %v656 = vunpack.c.l.b16 %v64
    %v657 = vunpack.c.h.b16 %v64
    %v658 = vunpack.c.l.b16 %v65
    %v659 = vunpack.c.h.b16 %v65
    %v660 = vunpack.c.l.b16 %v66
    %v661 = vunpack.c.h.b16 %v66
    %v662 = vunpack.c.l.b16 %v67
    %v663 = vunpack.c.h.b16 %v67
    %v664 = vunpack.c.l.b16 %v68
    %v665 = vunpack.c.h.b16 %v68
    %v666 = vunpack.c.l.b16 %v69
    %v667 = vunpack.c.h.b16 %v69
    %v668 = vunpack.c.l.b16 %v70
    %v669 = vunpack.c.h.b16 %v70
    %v670 = vunpack.c.l.b16 %v71
    %v671 = vunpack.c.h.b16 %v71
    %v672 = vunpack.c.l.b16 %v72
    %v673 = vunpack.c.h.b16 %v72
    %v674 = vunpack.c.l.b16 %v73
    %v675 = vunpack.c.h.b16 %v73
    %v676 = vunpack.c.l.b16 %v74
    %v677 = vunpack.c.h.b16 %v74
    %v678 = vunpack.c.l.b16 %v75
    %v679 = vunpack.c.h.b16 %v75
    %v680 = vunpack.c.l.b16 %v76
    %v681 = vunpack.c.h.b16 %v76
    %v682 = vunpack.c.l.b16 %v77
    %v683 = vunpack.c.h.b16 %v77
    %v684 = vunpack.c.l.b16 %v78
    %v685 = vunpack.c.h.b16 %v78
    %v686 = vunpack.c.l.b16 %v79
    %v687 = vunpack.c.h.b16 %v79
    %v688 = vunpack.c.l.b16 %v80
    %v689 = vunpack.c.h.b16 %v80
    %v690 = vunpack.c.l.b16 %v81
    %v691 = vunpack.c.h.b16 %v81
    %v692 = vunpack.c.l.b16 %v82
    %v693 = vunpack.c.h.b16 %v82
    %v694 = vunpack.c.l.b16 %v83
    %v695 = vunpack.c.h.b16 %v83
    %v696 = vunpack.c.l.b16 %v84
    %v697 = vunpack.c.h.b16 %v84
    %v698 = vunpack.c.l.b16 %v85
    %v699 = vunpack.c.h.b16 %v85
    %v700 = vunpack.c.l.b16 %v86
    %v701 = vunpack.c.h.b16 %v86
    %v702 = vunpack.c.l.b16 %v87
    %v703 = vunpack.c.h.b16 %v87
    %v704 = vunpack.c.l.b16 %v88
    %v705 = vunpack.c.h.b16 %v88
    %v706 = vunpack.c.l.b16 %v89
    %v707 = vunpack.c.h.b16 %v89
    %v708 = vunpack.c.l.b16 %v90
    %v709 = vunpack.c.h.b16 %v90
    %v710 = vunpack.c.l.b16 %v91
    %v711 = vunpack.c.h.b16 %v91
    %v712 = vunpack.c.l.b16 %v92
    %v713 = vunpack.c.h.b16 %v92
    %v714 = vunpack.c.l.b16 %v93
    %v715 = vunpack.c.h.b16 %v93
    %v716 = vunpack.c.l.b16 %v94
    %v717 = vunpack.c.h.b16 %v94
    %v718 = vunpack.c.l.b16 %v95
    %v719 = vunpack.c.h.b16 %v95
    %v720 = vunpack.c.l.b16 %v96
    %v721 = vunpack.c.h.b16 %v96
    %v722 = vunpack.c.l.b16 %v97
    %v723 = vunpack.c.h.b16 %v97
    %v724 = vunpack.c.l.b16 %v98
    %v725 = vunpack.c.h.b16 %v98
    %v726 = vunpack.c.l.b16 %v99
    %v727 = vunpack.c.h.b16 %v99
    %v728 = vunpack.c.l.b16 %v100
    %v729 = vunpack.c.h.b16 %v100
    %v730 = vunpack.c.l.b16 %v101
    %v731 = vunpack.c.h.b16 %v101
    %v732 = vunpack.c.l.b16 %v102
    %v733 = vunpack.c.h.b16 %v102
    %v734 = vunpack.c.l.b16 %v103
    %v735 = vunpack.c.h.b16 %v103
    %v736 = vunpack.c.l.b16 %v104
    %v737 = vunpack.c.h.b16 %v104
    %v738 = vunpack.c.l.b16 %v105
    %v739 = vunpack.c.h.b16 %v105
    %v740 = vunpack.c.l.b16 %v106
    %v741 = vunpack.c.h.b16 %v106
    %v742 = vunpack.c.l.b16 %v107
    %v743 = vunpack.c.h.b16 %v107
    %v744 = vunpack.c.l.b16 %v108
    %v745 = vunpack.c.h.b16 %v108
    %v746 = vunpack.c.l.b16 %v109
    %v747 = vunpack.c.h.b16 %v109
    %v748 = vunpack.c.l.b16 %v110
    %v749 = vunpack.c.h.b16 %v110
    %v750 = vunpack.c.l.b16 %v111
    %v751 = vunpack.c.h.b16 %v111
    %v752 = vunpack.c.l.b16 %v112
    %v753 = vunpack.c.h.b16 %v112
    %v754 = vunpack.c.l.b16 %v113
    %v755 = vunpack.c.h.b16 %v113
    %v756 = vunpack.c.l.b16 %v114
    %v757 = vunpack.c.h.b16 %v114
    %v758 = vunpack.c.l.b16 %v115
    %v759 = vunpack.c.h.b16 %v115
    %v760 = vunpack.c.l.b16 %v116
    %v761 = vunpack.c.h.b16 %v116
    %v762 = vunpack.c.l.b16 %v117
    %v763 = vunpack.c.h.b16 %v117
    %v764 = vunpack.c.l.b16 %v118
    %v765 = vunpack.c.h.b16 %v118
    %v766 = vunpack.c.l.b16 %v119
    %v767 = vunpack.c.h.b16 %v119
    %v768 = vunpack.c.l.b16 %v120
    %v769 = vunpack.c.h.b16 %v120
    %v770 = vunpack.c.l.b16 %v121
    %v771 = vunpack.c.h.b16 %v121
    %v772 = vunpack.c.l.b16 %v122
    %v773 = vunpack.c.h.b16 %v122
    %v774 = vunpack.c.l.b16 %v123
    %v775 = vunpack.c.h.b16 %v123
    %v776 = vunpack.c.l.b16 %v124
    %v777 = vunpack.c.h.b16 %v124
    %v778 = vunpack.c.l.b16 %v125
    %v779 = vunpack.c.h.b16 %v125
    %v780 = vunpack.c.l.b16 %v126
    %v781 = vunpack.c.h.b16 %v126
    %v782 = vunpack.c.l.b16 %v127
    %v783 = vunpack.c.h.b16 %v127
    %v784 = vunpack.c.l.b16 %v128
    %v785 = vunpack.c.h.b16 %v128
    %v786 = vunpack.c.l.b16 %v129
    %v787 = vunpack.c.h.b16 %v129
    %v788 = vunpack.c.l.b16 %v130
    %v789 = vunpack.c.h.b16 %v130
    %v790 = vunpack.c.l.b16 %v131
    %v791 = vunpack.c.h.b16 %v131
    %v792 = vunpack.c.l.b16 %v132
    %v793 = vunpack.c.h.b16 %v132
    %v794 = vunpack.c.l.b16 %v133
    %v795 = vunpack.c.h.b16 %v133
    %v796 = vunpack.c.l.b16 %v134
    %v797 = vunpack.c.h.b16 %v134
    %v798 = vunpack.c.l.b16 %v135
    %v799 = vunpack.c.h.b16 %v135
    %v800 = vunpack.c.l.b16 %v136
    %v801 = vunpack.c.h.b16 %v136
    %v802 = vunpack.c.l.b16 %v137
    %v803 = vunpack.c.h.b16 %v137
    %v804 = vunpack.c.l.b16 %v138
    %v805 = vunpack.c.h.b16 %v138
    %v806 = vunpack.c.l.b16 %v139
    %v807 = vunpack.c.h.b16 %v139
    %v808 = vunpack.c.l.b16 %v140
    %v809 = vunpack.c.h.b16 %v140
    %v810 = vunpack.c.l.b16 %v141
    %v811 = vunpack.c.h.b16 %v141
    %v812 = vunpack.c.l.b16 %v142
    %v813 = vunpack.c.h.b16 %v142
    %v814 = vunpack.c.l.b16 %v143
    %v815 = vunpack.c.h.b16 %v143
    %v816 = vunpack.c.l.b16 %v144
    %v817 = vunpack.c.h.b16 %v144
    %v818 = vunpack.c.l.b16 %v145
    %v819 = vunpack.c.h.b16 %v145
    %v820 = vunpack.c.l.b16 %v146
    %v821 = vunpack.c.h.b16 %v146
    %v822 = vunpack.c.l.b16 %v147
    %v823 = vunpack.c.h.b16 %v147
    %v824 = vunpack.c.l.b16 %v148
    %v825 = vunpack.c.h.b16 %v148
    %v826 = vunpack.c.l.b16 %v149
    %v827 = vunpack.c.h.b16 %v149
    %v828 = vunpack.c.l.b16 %v150
    %v829 = vunpack.c.h.b16 %v150
    %v830 = vunpack.c.l.b16 %v151
    %v831 = vunpack.c.h.b16 %v151
    %v832 = vunpack.c.l.b16 %v152
    %v833 = vunpack.c.h.b16 %v152
    %v834 = vunpack.c.l.b16 %v153
    %v835 = vunpack.c.h.b16 %v153
    %v836 = vunpack.c.l.b16 %v154
    %v837 = vunpack.c.h.b16 %v154
    %v838 = vunpack.c.l.b16 %v155
    %v839 = vunpack.c.h.b16 %v155
    %v840 = vunpack.c.l.b16 %v156
    %v841 = vunpack.c.h.b16 %v156
    %v842 = vunpack.c.l.b16 %v157
    %v843 = vunpack.c.h.b16 %v157
    %v844 = vunpack.c.l.b16 %v158
    %v845 = vunpack.c.h.b16 %v158
    %v846 = vunpack.c.l.b16 %v159
    %v847 = vunpack.c.h.b16 %v159
    %v848 = vunpack.c.l.b16 %v160
    %v849 = vunpack.c.h.b16 %v160
    %v850 = vunpack.c.l.b16 %v161
    %v851 = vunpack.c.h.b16 %v161
    %v852 = vunpack.c.l.b16 %v162
    %v853 = vunpack.c.h.b16 %v162
    %v854 = vunpack.c.l.b16 %v163
    %v855 = vunpack.c.h.b16 %v163
    %v856 = vunpack.c.l.b16 %v164
    %v857 = vunpack.c.h.b16 %v164
    %v858 = vunpack.c.l.b16 %v165
    %v859 = vunpack.c.h.b16 %v165
    %v860 = vunpack.c.l.b16 %v166
    %v861 = vunpack.c.h.b16 %v166
    %v862 = vunpack.c.l.b16 %v167
    %v863 = vunpack.c.h.b16 %v167
    %v864 = vunpack.c.l.b16 %v168
    %v865 = vunpack.c.h.b16 %v168
    %v866 = vunpack.c.l.b16 %v169
    %v867 = vunpack.c.h.b16 %v169
    %v868 = vunpack.c.l.b16 %v170
    %v869 = vunpack.c.h.b16 %v170
    %v870 = vunpack.c.l.b16 %v171
    %v871 = vunpack.c.h.b16 %v171
    %v872 = vunpack.c.l.b16 %v172
    %v873 = vunpack.c.h.b16 %v172
    %v874 = vunpack.c.l.b16 %v173
    %v875 = vunpack.c.h.b16 %v173
    %v876 = vunpack.c.l.b16 %v174
    %v877 = vunpack.c.h.b16 %v174
    %v878 = vunpack.c.l.b16 %v175
    %v879 = vunpack.c.h.b16 %v175
    %v880 = vunpack.c.l.b16 %v176
    %v881 = vunpack.c.h.b16 %v176
    %v882 = vunpack.c.l.b16 %v177
    %v883 = vunpack.c.h.b16 %v177
    %v884 = vunpack.c.l.b16 %v178
    %v885 = vunpack.c.h.b16 %v178
    %v886 = vunpack.c.l.b16 %v179
    %v887 = vunpack.c.h.b16 %v179
    %v888 = vunpack.c.l.b16 %v180
    %v889 = vunpack.c.h.b16 %v180
    %v890 = vunpack.c.l.b16 %v181
    %v891 = vunpack.c.h.b16 %v181
    %v892 = vunpack.c.l.b16 %v182
    %v893 = vunpack.c.h.b16 %v182
    %v894 = vunpack.c.l.b16 %v183
    %v895 = vunpack.c.h.b16 %v183
    %v896 = vunpack.c.l.b16 %v184
    %v897 = vunpack.c.h.b16 %v184
    %v898 = vunpack.c.l.b16 %v185
    %v899 = vunpack.c.h.b16 %v185
    %v900 = vunpack.c.l.b16 %v186
    %v901 = vunpack.c.h.b16 %v186
    %v902 = vunpack.c.l.b16 %v187
    %v903 = vunpack.c.h.b16 %v187
    %v904 = vunpack.c.l.b16 %v188
    %v905 = vunpack.c.h.b16 %v188
    %v906 = vunpack.c.l.b16 %v189
    %v907 = vunpack.c.h.b16 %v189
    %v908 = vunpack.c.l.b16 %v190
    %v909 = vunpack.c.h.b16 %v190
    %v910 = vunpack.c.l.b16 %v191
    %v911 = vunpack.c.h.b16 %v191
    %v912 = vunpack.c.l.b16 %v192
    %v913 = vunpack.c.h.b16 %v192
    %v914 = vunpack.c.l.b16 %v193
    %v915 = vunpack.c.h.b16 %v193
    %v916 = vunpack.c.l.b16 %v194
    %v917 = vunpack.c.h.b16 %v194
    %v918 = vunpack.c.l.b16 %v195
    %v919 = vunpack.c.h.b16 %v195
    %v920 = vunpack.c.l.b16 %v196
    %v921 = vunpack.c.h.b16 %v196
    %v922 = vunpack.c.l.b16 %v197
    %v923 = vunpack.c.h.b16 %v197
    %v924 = vunpack.c.l.b16 %v198
    %v925 = vunpack.c.h.b16 %v198
    %v926 = vunpack.c.l.b16 %v199
    %v927 = vunpack.c.h.b16 %v199
    %v928 = vunpack.c.l.b16 %v200
    %v929 = vunpack.c.h.b16 %v200
    %v930 = vunpack.c.l.b16 %v201
    %v931 = vunpack.c.h.b16 %v201
    %v932 = vunpack.c.l.b16 %v202
    %v933 = vunpack.c.h.b16 %v202
    %v934 = vunpack.c.l.b16 %v203
    %v935 = vunpack.c.h.b16 %v203
    %v936 = vunpack.c.l.b16 %v204
    %v937 = vunpack.c.h.b16 %v204
    %v938 = vunpack.c.l.b16 %v205
    %v939 = vunpack.c.h.b16 %v205
    %v940 = vpack.c.b16 %v658, %v652
    %v941 = vpack.c.b16 %v659, %v653
    %v942 = vpack.c.b16 %v660, %v654
    %v943 = vpack.c.b16 %v661, %v655
    %v944 = vpack.c.b16 %v662, %v656
    %v945 = vpack.c.b16 %v663, %v657
    %v946 = vpack.c.b16 %v670, %v664
    %v947 = vpack.c.b16 %v671, %v665
    %v948 = vpack.c.b16 %v672, %v666
    %v949 = vpack.c.b16 %v673, %v667
    %v950 = vpack.c.b16 %v674, %v668
    %v951 = vpack.c.b16 %v675, %v669
    %v952 = vpack.c.b16 %v682, %v676
    %v953 = vpack.c.b16 %v683, %v677
    %v954 = vpack.c.b16 %v684, %v678
    %v955 = vpack.c.b16 %v685, %v679
    %v956 = vpack.c.b16 %v686, %v680
    %v957 = vpack.c.b16 %v687, %v681
    %v958 = vpack.c.b16 %v694, %v688
    %v959 = vpack.c.b16 %v695, %v689
    %v960 = vpack.c.b16 %v696, %v690
    %v961 = vpack.c.b16 %v697, %v691
    %v962 = vpack.c.b16 %v698, %v692
    %v963 = vpack.c.b16 %v699, %v693
    %v964 = vpack.c.b16 %v706, %v700
    %v965 = vpack.c.b16 %v707, %v701
    %v966 = vpack.c.b16 %v708, %v702
    %v967 = vpack.c.b16 %v709, %v703
    %v968 = vpack.c.b16 %v710, %v704
    %v969 = vpack.c.b16 %v711, %v705
    %v970 = vpack.c.b16 %v718, %v712
    %v971 = vpack.c.b16 %v719, %v713
    %v972 = vpack.c.b16 %v720, %v714
    %v973 = vpack.c.b16 %v721, %v715
    %v974 = vpack.c.b16 %v722, %v716
    %v975 = vpack.c.b16 %v723, %v717
    %v976 = vpack.c.b16 %v730, %v724
    %v977 = vpack.c.b16 %v731, %v725
    %v978 = vpack.c.b16 %v732, %v726
    %v979 = vpack.c.b16 %v733, %v727
    %v980 = vpack.c.b16 %v734, %v728
    %v981 = vpack.c.b16 %v735, %v729
    %v982 = vpack.c.b16 %v742, %v736
    %v983 = vpack.c.b16 %v743, %v737
    %v984 = vpack.c.b16 %v744, %v738
    %v985 = vpack.c.b16 %v745, %v739
    %v986 = vpack.c.b16 %v746, %v740
    %v987 = vpack.c.b16 %v747, %v741
    %v988 = vpack.c.b16 %v754, %v748
    %v989 = vpack.c.b16 %v755, %v749
    %v990 = vpack.c.b16 %v756, %v750
    %v991 = vpack.c.b16 %v757, %v751
    %v992 = vpack.c.b16 %v758, %v752
    %v993 = vpack.c.b16 %v759, %v753
    %v994 = vpack.c.b16 %v766, %v760
    %v995 = vpack.c.b16 %v767, %v761
    %v996 = vpack.c.b16 %v768, %v762
    %v997 = vpack.c.b16 %v769, %v763
    %v998 = vpack.c.b16 %v770, %v764
    %v999 = vpack.c.b16 %v771, %v765
    %v1000 = vpack.c.b16 %v778, %v772
    %v1001 = vpack.c.b16 %v779, %v773
    %v1002 = vpack.c.b16 %v780, %v774
    %v1003 = vpack.c.b16 %v781, %v775
    %v1004 = vpack.c.b16 %v782, %v776
    %v1005 = vpack.c.b16 %v783, %v777
    %v1006 = vpack.c.b16 %v790, %v784
    %v1007 = vpack.c.b16 %v791, %v785
    %v1008 = vpack.c.b16 %v792, %v786
    %v1009 = vpack.c.b16 %v793, %v787
    %v1010 = vpack.c.b16 %v794, %v788
    %v1011 = vpack.c.b16 %v795, %v789
    %v1012 = vpack.c.b16 %v802, %v796
    %v1013 = vpack.c.b16 %v803, %v797
    %v1014 = vpack.c.b16 %v804, %v798
    %v1015 = vpack.c.b16 %v805, %v799
    %v1016 = vpack.c.b16 %v806, %v800
    %v1017 = vpack.c.b16 %v807, %v801
    %v1018 = vpack.c.b16 %v814, %v808
    %v1019 = vpack.c.b16 %v815, %v809
    %v1020 = vpack.c.b16 %v816, %v810
    %v1021 = vpack.c.b16 %v817, %v811
    %v1022 = vpack.c.b16 %v818, %v812
    %v1023 = vpack.c.b16 %v819, %v813
    %v1024 = vpack.c.b16 %v826, %v820
    %v1025 = vpack.c.b16 %v827, %v821
    %v1026 = vpack.c.b16 %v828, %v822
    %v1027 = vpack.c.b16 %v829, %v823
    %v1028 = vpack.c.b16 %v830, %v824
    %v1029 = vpack.c.b16 %v831, %v825
    %v1030 = vpack.c.b16 %v838, %v832
    %v1031 = vpack.c.b16 %v839, %v833
    %v1032 = vpack.c.b16 %v840, %v834
    %v1033 = vpack.c.b16 %v841, %v835
    %v1034 = vpack.c.b16 %v842, %v836
    %v1035 = vpack.c.b16 %v843, %v837
    %v1036 = vpack.c.b16 %v850, %v844
    %v1037 = vpack.c.b16 %v851, %v845
    %v1038 = vpack.c.b16 %v852, %v846
    %v1039 = vpack.c.b16 %v853, %v847
    %v1040 = vpack.c.b16 %v854, %v848
    %v1041 = vpack.c.b16 %v855, %v849
    %v1042 = vpack.c.b16 %v862, %v856
    %v1043 = vpack.c.b16 %v863, %v857
    %v1044 = vpack.c.b16 %v864, %v858
    %v1045 = vpack.c.b16 %v865, %v859
    %v1046 = vpack.c.b16 %v866, %v860
    %v1047 = vpack.c.b16 %v867, %v861
    %v1048 = vpack.c.b16 %v874, %v868
    %v1049 = vpack.c.b16 %v875, %v869
    %v1050 = vpack.c.b16 %v876, %v870
    %v1051 = vpack.c.b16 %v877, %v871
    %v1052 = vpack.c.b16 %v878, %v872
    %v1053 = vpack.c.b16 %v879, %v873
    %v1054 = vpack.c.b16 %v886, %v880
    %v1055 = vpack.c.b16 %v887, %v881
    %v1056 = vpack.c.b16 %v888, %v882
    %v1057 = vpack.c.b16 %v889, %v883
    %v1058 = vpack.c.b16 %v890, %v884
    %v1059 = vpack.c.b16 %v891, %v885
    %v1060 = vpack.c.b16 %v898, %v892
    %v1061 = vpack.c.b16 %v899, %v893
    %v1062 = vpack.c.b16 %v900, %v894
    %v1063 = vpack.c.b16 %v901, %v895
    %v1064 = vpack.c.b16 %v902, %v896
    %v1065 = vpack.c.b16 %v903, %v897
    %v1066 = vpack.c.b16 %v910, %v904
    %v1067 = vpack.c.b16 %v911, %v905
    %v1068 = vpack.c.b16 %v912, %v906
    %v1069 = vpack.c.b16 %v913, %v907
    %v1070 = vpack.c.b16 %v914, %v908
    %v1071 = vpack.c.b16 %v915, %v909
    %v1072 = vpack.c.b16 %v922, %v916
    %v1073 = vpack.c.b16 %v923, %v917
    %v1074 = vpack.c.b16 %v924, %v918
    %v1075 = vpack.c.b16 %v925, %v919
    %v1076 = vpack.c.b16 %v926, %v920
    %v1077 = vpack.c.b16 %v927, %v921
    %v1078 = vpack.c.b16 %v934, %v928
    %v1079 = vpack.c.b16 %v935, %v929
    %v1080 = vpack.c.b16 %v936, %v930
    %v1081 = vpack.c.b16 %v937, %v931
    %v1082 = vpack.c.b16 %v938, %v932
    %v1083 = vpack.c.b16 %v939, %v933
    %v1516 = vunpack.c.l.b16 %v206
    %v1517 = vunpack.c.h.b16 %v206
    %v1518 = vunpack.c.l.b16 %v207
    %v1519 = vunpack.c.h.b16 %v207
    %v1520 = vunpack.c.l.b16 %v208
    %v1521 = vunpack.c.h.b16 %v208
    %v1522 = vunpack.c.l.b16 %v209
    %v1523 = vunpack.c.h.b16 %v209
    %v1524 = vunpack.c.l.b16 %v210
    %v1525 = vunpack.c.h.b16 %v210
    %v1526 = vunpack.c.l.b16 %v211
    %v1527 = vunpack.c.h.b16 %v211
    %v1528 = vunpack.c.l.b16 %v212
    %v1529 = vunpack.c.h.b16 %v212
    %v1530 = vunpack.c.l.b16 %v213
    %v1531 = vunpack.c.h.b16 %v213
    %v1532 = vunpack.c.l.b16 %v214
    %v1533 = vunpack.c.h.b16 %v214
    %v1534 = vunpack.c.l.b16 %v215
    %v1535 = vunpack.c.h.b16 %v215
    %v1536 = vunpack.c.l.b16 %v216
    %v1537 = vunpack.c.h.b16 %v216
    %v1538 = vunpack.c.l.b16 %v217
    %v1539 = vunpack.c.h.b16 %v217
    %v1540 = vunpack.c.l.b16 %v218
    %v1541 = vunpack.c.h.b16 %v218
    %v1542 = vunpack.c.l.b16 %v219
    %v1543 = vunpack.c.h.b16 %v219
    %v1544 = vunpack.c.l.b16 %v220
    %v1545 = vunpack.c.h.b16 %v220
    %v1546 = vunpack.c.l.b16 %v221
    %v1547 = vunpack.c.h.b16 %v221
    %v1548 = vunpack.c.l.b16 %v222
    %v1549 = vunpack.c.h.b16 %v222
    %v1550 = vunpack.c.l.b16 %v223
    %v1551 = vunpack.c.h.b16 %v223
    %v1552 = vunpack.c.l.b16 %v224
    %v1553 = vunpack.c.h.b16 %v224
    %v1554 = vunpack.c.l.b16 %v225
    %v1555 = vunpack.c.h.b16 %v225
    %v1556 = vunpack.c.l.b16 %v226
    %v1557 = vunpack.c.h.b16 %v226
    %v1558 = vunpack.c.l.b16 %v227
    %v1559 = vunpack.c.h.b16 %v227
    %v1560 = vunpack.c.l.b16 %v228
    %v1561 = vunpack.c.h.b16 %v228
    %v1562 = vunpack.c.l.b16 %v229
    %v1563 = vunpack.c.h.b16 %v229
    %v1564 = vunpack.c.l.b16 %v230
    %v1565 = vunpack.c.h.b16 %v230
    %v1566 = vunpack.c.l.b16 %v231
    %v1567 = vunpack.c.h.b16 %v231
    %v1568 = vunpack.c.l.b16 %v232
    %v1569 = vunpack.c.h.b16 %v232
    %v1570 = vunpack.c.l.b16 %v233
    %v1571 = vunpack.c.h.b16 %v233
    %v1572 = vunpack.c.l.b16 %v234
    %v1573 = vunpack.c.h.b16 %v234
    %v1574 = vunpack.c.l.b16 %v235
    %v1575 = vunpack.c.h.b16 %v235
    %v1576 = vunpack.c.l.b16 %v236
    %v1577 = vunpack.c.h.b16 %v236
    %v1578 = vunpack.c.l.b16 %v237
    %v1579 = vunpack.c.h.b16 %v237
    %v1580 = vunpack.c.l.b16 %v238
    %v1581 = vunpack.c.h.b16 %v238
    %v1582 = vunpack.c.l.b16 %v239
    %v1583 = vunpack.c.h.b16 %v239
    %v1584 = vunpack.c.l.b16 %v240
    %v1585 = vunpack.c.h.b16 %v240
    %v1586 = vunpack.c.l.b16 %v241
    %v1587 = vunpack.c.h.b16 %v241
    %v1588 = vunpack.c.l.b16 %v242
    %v1589 = vunpack.c.h.b16 %v242
    %v1590 = vunpack.c.l.b16 %v243
    %v1591 = vunpack.c.h.b16 %v243
    %v1592 = vunpack.c.l.b16 %v244
    %v1593 = vunpack.c.h.b16 %v244
    %v1594 = vunpack.c.l.b16 %v245
    %v1595 = vunpack.c.h.b16 %v245
    %v1596 = vunpack.c.l.b16 %v246
    %v1597 = vunpack.c.h.b16 %v246
    %v1598 = vunpack.c.l.b16 %v247
    %v1599 = vunpack.c.h.b16 %v247
    %v1600 = vunpack.c.l.b16 %v248
    %v1601 = vunpack.c.h.b16 %v248
    %v1602 = vunpack.c.l.b16 %v249
    %v1603 = vunpack.c.h.b16 %v249
    %v1604 = vunpack.c.l.b16 %v250
    %v1605 = vunpack.c.h.b16 %v250
    %v1606 = vunpack.c.l.b16 %v251
    %v1607 = vunpack.c.h.b16 %v251
    %v1608 = vunpack.c.l.b16 %v252
    %v1609 = vunpack.c.h.b16 %v252
    %v1610 = vunpack.c.l.b16 %v253
    %v1611 = vunpack.c.h.b16 %v253
    %v1612 = vunpack.c.l.b16 %v254
    %v1613 = vunpack.c.h.b16 %v254
    %v1614 = vunpack.c.l.b16 %v255
    %v1615 = vunpack.c.h.b16 %v255
    %v1616 = vunpack.c.l.b16 %v256
    %v1617 = vunpack.c.h.b16 %v256
    %v1618 = vunpack.c.l.b16 %v257
    %v1619 = vunpack.c.h.b16 %v257
    %v1620 = vunpack.c.l.b16 %v258
    %v1621 = vunpack.c.h.b16 %v258
    %v1622 = vunpack.c.l.b16 %v259
    %v1623 = vunpack.c.h.b16 %v259
    %v1624 = vunpack.c.l.b16 %v260
    %v1625 = vunpack.c.h.b16 %v260
    %v1626 = vunpack.c.l.b16 %v261
    %v1627 = vunpack.c.h.b16 %v261
    %v1628 = vunpack.c.l.b16 %v262
    %v1629 = vunpack.c.h.b16 %v262
    %v1630 = vunpack.c.l.b16 %v263
    %v1631 = vunpack.c.h.b16 %v263
    %v1632 = vunpack.c.l.b16 %v264
    %v1633 = vunpack.c.h.b16 %v264
    %v1634 = vunpack.c.l.b16 %v265
    %v1635 = vunpack.c.h.b16 %v265
    %v1636 = vunpack.c.l.b16 %v266
    %v1637 = vunpack.c.h.b16 %v266
    %v1638 = vunpack.c.l.b16 %v267
    %v1639 = vunpack.c.h.b16 %v267
    %v1640 = vunpack.c.l.b16 %v268
    %v1641 = vunpack.c.h.b16 %v268
    %v1642 = vunpack.c.l.b16 %v269
    %v1643 = vunpack.c.h.b16 %v269
    %v1644 = vunpack.c.l.b16 %v270
    %v1645 = vunpack.c.h.b16 %v270
    %v1646 = vunpack.c.l.b16 %v271
    %v1647 = vunpack.c.h.b16 %v271
    %v1648 = vunpack.c.l.b16 %v272
    %v1649 = vunpack.c.h.b16 %v272
    %v1650 = vunpack.c.l.b16 %v273
    %v1651 = vunpack.c.h.b16 %v273
    %v1652 = vunpack.c.l.b16 %v274
    %v1653 = vunpack.c.h.b16 %v274
    %v1654 = vunpack.c.l.b16 %v275
    %v1655 = vunpack.c.h.b16 %v275
    %v1656 = vunpack.c.l.b16 %v276
    %v1657 = vunpack.c.h.b16 %v276
    %v1658 = vunpack.c.l.b16 %v277
    %v1659 = vunpack.c.h.b16 %v277
    %v1660 = vunpack.c.l.b16 %v278
    %v1661 = vunpack.c.h.b16 %v278
    %v1662 = vunpack.c.l.b16 %v279
    %v1663 = vunpack.c.h.b16 %v279
    %v1664 = vunpack.c.l.b16 %v280
    %v1665 = vunpack.c.h.b16 %v280
    %v1666 = vunpack.c.l.b16 %v281
    %v1667 = vunpack.c.h.b16 %v281
    %v1668 = vunpack.c.l.b16 %v282
    %v1669 = vunpack.c.h.b16 %v282
    %v1670 = vunpack.c.l.b16 %v283
    %v1671 = vunpack.c.h.b16 %v283
    %v1672 = vunpack.c.l.b16 %v284
    %v1673 = vunpack.c.h.b16 %v284
    %v1674 = vunpack.c.l.b16 %v285
    %v1675 = vunpack.c.h.b16 %v285
    %v1676 = vunpack.c.l.b16 %v286
    %v1677 = vunpack.c.h.b16 %v286
    %v1678 = vunpack.c.l.b16 %v287
    %v1679 = vunpack.c.h.b16 %v287
    %v1680 = vunpack.c.l.b16 %v288
    %v1681 = vunpack.c.h.b16 %v288
    %v1682 = vunpack.c.l.b16 %v289
    %v1683 = vunpack.c.h.b16 %v289
    %v1684 = vunpack.c.l.b16 %v290
    %v1685 = vunpack.c.h.b16 %v290
    %v1686 = vunpack.c.l.b16 %v291
    %v1687 = vunpack.c.h.b16 %v291
    %v1688 = vunpack.c.l.b16 %v292
    %v1689 = vunpack.c.h.b16 %v292
    %v1690 = vunpack.c.l.b16 %v293
    %v1691 = vunpack.c.h.b16 %v293
    %v1692 = vunpack.c.l.b16 %v294
    %v1693 = vunpack.c.h.b16 %v294
    %v1694 = vunpack.c.l.b16 %v295
    %v1695 = vunpack.c.h.b16 %v295
    %v1696 = vunpack.c.l.b16 %v296
    %v1697 = vunpack.c.h.b16 %v296
    %v1698 = vunpack.c.l.b16 %v297
    %v1699 = vunpack.c.h.b16 %v297
    %v1700 = vunpack.c.l.b16 %v298
    %v1701 = vunpack.c.h.b16 %v298
    %v1702 = vunpack.c.l.b16 %v299
    %v1703 = vunpack.c.h.b16 %v299
    %v1704 = vunpack.c.l.b16 %v300
    %v1705 = vunpack.c.h.b16 %v300
    %v1706 = vunpack.c.l.b16 %v301
    %v1707 = vunpack.c.h.b16 %v301
    %v1708 = vunpack.c.l.b16 %v302
    %v1709 = vunpack.c.h.b16 %v302
    %v1710 = vunpack.c.l.b16 %v303
    %v1711 = vunpack.c.h.b16 %v303
    %v1712 = vunpack.c.l.b16 %v304
    %v1713 = vunpack.c.h.b16 %v304
    %v1714 = vunpack.c.l.b16 %v305
    %v1715 = vunpack.c.h.b16 %v305
    %v1716 = vunpack.c.l.b16 %v306
    %v1717 = vunpack.c.h.b16 %v306
    %v1718 = vunpack.c.l.b16 %v307
    %v1719 = vunpack.c.h.b16 %v307
    %v1720 = vunpack.c.l.b16 %v308
    %v1721 = vunpack.c.h.b16 %v308
    %v1722 = vunpack.c.l.b16 %v309
    %v1723 = vunpack.c.h.b16 %v309
    %v1724 = vunpack.c.l.b16 %v310
    %v1725 = vunpack.c.h.b16 %v310
    %v1726 = vunpack.c.l.b16 %v311
    %v1727 = vunpack.c.h.b16 %v311
    %v1728 = vunpack.c.l.b16 %v312
    %v1729 = vunpack.c.h.b16 %v312
    %v1730 = vunpack.c.l.b16 %v313
    %v1731 = vunpack.c.h.b16 %v313
    %v1732 = vunpack.c.l.b16 %v314
    %v1733 = vunpack.c.h.b16 %v314
    %v1734 = vunpack.c.l.b16 %v315
    %v1735 = vunpack.c.h.b16 %v315
    %v1736 = vunpack.c.l.b16 %v316
    %v1737 = vunpack.c.h.b16 %v316
    %v1738 = vunpack.c.l.b16 %v317
    %v1739 = vunpack.c.h.b16 %v317
    %v1740 = vunpack.c.l.b16 %v318
    %v1741 = vunpack.c.h.b16 %v318
    %v1742 = vunpack.c.l.b16 %v319
    %v1743 = vunpack.c.h.b16 %v319
    %v1744 = vunpack.c.l.b16 %v320
    %v1745 = vunpack.c.h.b16 %v320
    %v1746 = vunpack.c.l.b16 %v321
    %v1747 = vunpack.c.h.b16 %v321
    %v1748 = vunpack.c.l.b16 %v322
    %v1749 = vunpack.c.h.b16 %v322
    %v1750 = vunpack.c.l.b16 %v323
    %v1751 = vunpack.c.h.b16 %v323
    %v1752 = vunpack.c.l.b16 %v324
    %v1753 = vunpack.c.h.b16 %v324
    %v1754 = vunpack.c.l.b16 %v325
    %v1755 = vunpack.c.h.b16 %v325
    %v1756 = vunpack.c.l.b16 %v326
    %v1757 = vunpack.c.h.b16 %v326
    %v1758 = vunpack.c.l.b16 %v327
    %v1759 = vunpack.c.h.b16 %v327
    %v1760 = vunpack.c.l.b16 %v328
    %v1761 = vunpack.c.h.b16 %v328
    %v1762 = vunpack.c.l.b16 %v329
    %v1763 = vunpack.c.h.b16 %v329
    %v1764 = vunpack.c.l.b16 %v330
    %v1765 = vunpack.c.h.b16 %v330
    %v1766 = vunpack.c.l.b16 %v331
    %v1767 = vunpack.c.h.b16 %v331
    %v1768 = vunpack.c.l.b16 %v332
    %v1769 = vunpack.c.h.b16 %v332
    %v1770 = vunpack.c.l.b16 %v333
    %v1771 = vunpack.c.h.b16 %v333
    %v1772 = vunpack.c.l.b16 %v334
    %v1773 = vunpack.c.h.b16 %v334
    %v1774 = vunpack.c.l.b16 %v335
    %v1775 = vunpack.c.h.b16 %v335
    %v1776 = vunpack.c.l.b16 %v336
    %v1777 = vunpack.c.h.b16 %v336
    %v1778 = vunpack.c.l.b16 %v337
    %v1779 = vunpack.c.h.b16 %v337
    %v1780 = vunpack.c.l.b16 %v338
    %v1781 = vunpack.c.h.b16 %v338
    %v1782 = vunpack.c.l.b16 %v339
    %v1783 = vunpack.c.h.b16 %v339
    %v1784 = vunpack.c.l.b16 %v340
    %v1785 = vunpack.c.h.b16 %v340
    %v1786 = vunpack.c.l.b16 %v341
    %v1787 = vunpack.c.h.b16 %v341
    %v1788 = vunpack.c.l.b16 %v342
    %v1789 = vunpack.c.h.b16 %v342
    %v1790 = vunpack.c.l.b16 %v343
    %v1791 = vunpack.c.h.b16 %v343
    %v1792 = vunpack.c.l.b16 %v344
    %v1793 = vunpack.c.h.b16 %v344
    %v1794 = vunpack.c.l.b16 %v345
    %v1795 = vunpack.c.h.b16 %v345
    %v1796 = vunpack.c.l.b16 %v346
    %v1797 = vunpack.c.h.b16 %v346
    %v1798 = vunpack.c.l.b16 %v347
    %v1799 = vunpack.c.h.b16 %v347
    %v1800 = vunpack.c.l.b16 %v348
    %v1801 = vunpack.c.h.b16 %v348
    %v1802 = vunpack.c.l.b16 %v349
    %v1803 = vunpack.c.h.b16 %v349
    %v1804 = vunpack.c.l.b16 %v350
    %v1805 = vunpack.c.h.b16 %v350
    %v1806 = vunpack.c.l.b16 %v351
    %v1807 = vunpack.c.h.b16 %v351
    %v1808 = vunpack.c.l.b16 %v352
    %v1809 = vunpack.c.h.b16 %v352
    %v1810 = vunpack.c.l.b16 %v353
    %v1811 = vunpack.c.h.b16 %v353
    %v1812 = vunpack.c.l.b16 %v354
    %v1813 = vunpack.c.h.b16 %v354
    %v1814 = vunpack.c.l.b16 %v355
    %v1815 = vunpack.c.h.b16 %v355
    %v1816 = vunpack.c.l.b16 %v356
    %v1817 = vunpack.c.h.b16 %v356
    %v1818 = vunpack.c.l.b16 %v357
    %v1819 = vunpack.c.h.b16 %v357
    %v1820 = vunpack.c.l.b16 %v358
    %v1821 = vunpack.c.h.b16 %v358
    %v1822 = vunpack.c.l.b16 %v359
    %v1823 = vunpack.c.h.b16 %v359
    %v1824 = vunpack.c.l.b16 %v360
    %v1825 = vunpack.c.h.b16 %v360
    %v1826 = vunpack.c.l.b16 %v361
    %v1827 = vunpack.c.h.b16 %v361
    %v1828 = vunpack.c.l.b16 %v362
    %v1829 = vunpack.c.h.b16 %v362
    %v1830 = vunpack.c.l.b16 %v363
    %v1831 = vunpack.c.h.b16 %v363
    %v1832 = vunpack.c.l.b16 %v364
    %v1833 = vunpack.c.h.b16 %v364
    %v1834 = vunpack.c.l.b16 %v365
    %v1835 = vunpack.c.h.b16 %v365
    %v1836 = vunpack.c.l.b16 %v366
    %v1837 = vunpack.c.h.b16 %v366
    %v1838 = vunpack.c.l.b16 %v367
    %v1839 = vunpack.c.h.b16 %v367
    %v1840 = vunpack.c.l.b16 %v368
    %v1841 = vunpack.c.h.b16 %v368
    %v1842 = vunpack.c.l.b16 %v369
    %v1843 = vunpack.c.h.b16 %v369
    %v1844 = vunpack.c.l.b16 %v370
    %v1845 = vunpack.c.h.b16 %v370
    %v1846 = vunpack.c.l.b16 %v371
    %v1847 = vunpack.c.h.b16 %v371
    %v1848 = vunpack.c.l.b16 %v372
    %v1849 = vunpack.c.h.b16 %v372
    %v1850 = vunpack.c.l.b16 %v373
    %v1851 = vunpack.c.h.b16 %v373
    %v1852 = vunpack.c.l.b16 %v374
    %v1853 = vunpack.c.h.b16 %v374
    %v1854 = vunpack.c.l.b16 %v375
    %v1855 = vunpack.c.h.b16 %v375
    %v1856 = vunpack.c.l.b16 %v376
    %v1857 = vunpack.c.h.b16 %v376
    %v1858 = vunpack.c.l.b16 %v377
    %v1859 = vunpack.c.h.b16 %v377
    %v1860 = vunpack.c.l.b16 %v378
    %v1861 = vunpack.c.h.b16 %v378
    %v1862 = vunpack.c.l.b16 %v379
    %v1863 = vunpack.c.h.b16 %v379
    %v1864 = vunpack.c.l.b16 %v380
    %v1865 = vunpack.c.h.b16 %v380
    %v1866 = vunpack.c.l.b16 %v381
    %v1867 = vunpack.c.h.b16 %v381
    %v1868 = vunpack.c.l.b16 %v382
    %v1869 = vunpack.c.h.b16 %v382
    %v1870 = vunpack.c.l.b16 %v383
    %v1871 = vunpack.c.h.b16 %v383
    %v1872 = vunpack.c.l.b16 %v384
    %v1873 = vunpack.c.h.b16 %v384
    %v1874 = vunpack.c.l.b16 %v385
    %v1875 = vunpack.c.h.b16 %v385
    %v1876 = vunpack.c.l.b16 %v386
    %v1877 = vunpack.c.h.b16 %v386
    %v1878 = vunpack.c.l.b16 %v387
    %v1879 = vunpack.c.h.b16 %v387
    %v1880 = vunpack.c.l.b16 %v388
    %v1881 = vunpack.c.h.b16 %v388
    %v1882 = vunpack.c.l.b16 %v389
    %v1883 = vunpack.c.h.b16 %v389
    %v1884 = vunpack.c.l.b16 %v390
    %v1885 = vunpack.c.h.b16 %v390
    %v1886 = vunpack.c.l.b16 %v391
    %v1887 = vunpack.c.h.b16 %v391
    %v1888 = vunpack.c.l.b16 %v392
    %v1889 = vunpack.c.h.b16 %v392
    %v1890 = vunpack.c.l.b16 %v393
    %v1891 = vunpack.c.h.b16 %v393
    %v1892 = vunpack.c.l.b16 %v394
    %v1893 = vunpack.c.h.b16 %v394
    %v1894 = vunpack.c.l.b16 %v395
    %v1895 = vunpack.c.h.b16 %v395
    %v1896 = vunpack.c.l.b16 %v396
    %v1897 = vunpack.c.h.b16 %v396
    %v1898 = vunpack.c.l.b16 %v397
    %v1899 = vunpack.c.h.b16 %v397
    %v1900 = vunpack.c.l.b16 %v398
    %v1901 = vunpack.c.h.b16 %v398
    %v1902 = vunpack.c.l.b16 %v399
    %v1903 = vunpack.c.h.b16 %v399
    %v1904 = vunpack.c.l.b16 %v400
    %v1905 = vunpack.c.h.b16 %v400
    %v1906 = vunpack.c.l.b16 %v401
    %v1907 = vunpack.c.h.b16 %v401
    %v1908 = vunpack.c.l.b16 %v402
    %v1909 = vunpack.c.h.b16 %v402
    %v1910 = vunpack.c.l.b16 %v403
    %v1911 = vunpack.c.h.b16 %v403
    %v1912 = vunpack.c.l.b16 %v404
    %v1913 = vunpack.c.h.b16 %v404
    %v1914 = vunpack.c.l.b16 %v405
    %v1915 = vunpack.c.h.b16 %v405
    %v1916 = vunpack.c.l.b16 %v406
    %v1917 = vunpack.c.h.b16 %v406
    %v1918 = vunpack.c.l.b16 %v407
    %v1919 = vunpack.c.h.b16 %v407
    %v1920 = vunpack.c.l.b16 %v408
    %v1921 = vunpack.c.h.b16 %v408
    %v1922 = vunpack.c.l.b16 %v409
    %v1923 = vunpack.c.h.b16 %v409
    %v1924 = vunpack.c.l.b16 %v410
    %v1925 = vunpack.c.h.b16 %v410
    %v1926 = vunpack.c.l.b16 %v411
    %v1927 = vunpack.c.h.b16 %v411
    %v1928 = vunpack.c.l.b16 %v412
    %v1929 = vunpack.c.h.b16 %v412
    %v1930 = vunpack.c.l.b16 %v413
    %v1931 = vunpack.c.h.b16 %v413
    %v1932 = vunpack.c.l.b16 %v414
    %v1933 = vunpack.c.h.b16 %v414
    %v1934 = vunpack.c.l.b16 %v415
    %v1935 = vunpack.c.h.b16 %v415
    %v1936 = vunpack.c.l.b16 %v416
    %v1937 = vunpack.c.h.b16 %v416
    %v1938 = vunpack.c.l.b16 %v417
    %v1939 = vunpack.c.h.b16 %v417
    %v1940 = vunpack.c.l.b16 %v418
    %v1941 = vunpack.c.h.b16 %v418
    %v1942 = vunpack.c.l.b16 %v419
    %v1943 = vunpack.c.h.b16 %v419
    %v1944 = vunpack.c.l.b16 %v420
    %v1945 = vunpack.c.h.b16 %v420
    %v1946 = vunpack.c.l.b16 %v421
    %v1947 = vunpack.c.h.b16 %v421
    %v1948 = vunpack.c.l.b16 %v422
    %v1949 = vunpack.c.h.b16 %v422
    %v1950 = vunpack.c.l.b16 %v423
    %v1951 = vunpack.c.h.b16 %v423
    %v1952 = vunpack.c.l.b16 %v424
    %v1953 = vunpack.c.h.b16 %v424
    %v1954 = vunpack.c.l.b16 %v425
    %v1955 = vunpack.c.h.b16 %v425
    %v1956 = vunpack.c.l.b16 %v426
    %v1957 = vunpack.c.h.b16 %v426
    %v1958 = vunpack.c.l.b16 %v427
    %v1959 = vunpack.c.h.b16 %v427
    %v1960 = vunpack.c.l.b16 %v428
    %v1961 = vunpack.c.h.b16 %v428
    %v1962 = vunpack.c.l.b16 %v429
    %v1963 = vunpack.c.h.b16 %v429
    %v1964 = vunpack.c.l.b16 %v430
    %v1965 = vunpack.c.h.b16 %v430
    %v1966 = vunpack.c.l.b16 %v431
    %v1967 = vunpack.c.h.b16 %v431
    %v1968 = vunpack.c.l.b16 %v432
    %v1969 = vunpack.c.h.b16 %v432
    %v1970 = vunpack.c.l.b16 %v433
    %v1971 = vunpack.c.h.b16 %v433
    %v1972 = vunpack.c.l.b16 %v434
    %v1973 = vunpack.c.h.b16 %v434
    %v1974 = vunpack.c.l.b16 %v435
    %v1975 = vunpack.c.h.b16 %v435
    %v1976 = vunpack.c.l.b16 %v436
    %v1977 = vunpack.c.h.b16 %v436
    %v1978 = vunpack.c.l.b16 %v437
    %v1979 = vunpack.c.h.b16 %v437
    %v1980 = vunpack.c.l.b16 %v438
    %v1981 = vunpack.c.h.b16 %v438
    %v1982 = vunpack.c.l.b16 %v439
    %v1983 = vunpack.c.h.b16 %v439
    %v1984 = vunpack.c.l.b16 %v440
    %v1985 = vunpack.c.h.b16 %v440
    %v1986 = vunpack.c.l.b16 %v441
    %v1987 = vunpack.c.h.b16 %v441
    %v1988 = vunpack.c.l.b16 %v442
    %v1989 = vunpack.c.h.b16 %v442
    %v1990 = vunpack.c.l.b16 %v443
    %v1991 = vunpack.c.h.b16 %v443
    %v1992 = vunpack.c.l.b16 %v444
    %v1993 = vunpack.c.h.b16 %v444
    %v1994 = vunpack.c.l.b16 %v445
    %v1995 = vunpack.c.h.b16 %v445
    %v1996 = vunpack.c.l.b16 %v446
    %v1997 = vunpack.c.h.b16 %v446
    %v1998 = vunpack.c.l.b16 %v447
    %v1999 = vunpack.c.h.b16 %v447
    %v2000 = vunpack.c.l.b16 %v448
    %v2001 = vunpack.c.h.b16 %v448
    %v2002 = vunpack.c.l.b16 %v449
    %v2003 = vunpack.c.h.b16 %v449
    %v2004 = vunpack.c.l.b16 %v450
    %v2005 = vunpack.c.h.b16 %v450
    %v2006 = vunpack.c.l.b16 %v451
    %v2007 = vunpack.c.h.b16 %v451
    %v2008 = vunpack.c.l.b16 %v452
    %v2009 = vunpack.c.h.b16 %v452
    %v2010 = vunpack.c.l.b16 %v453
    %v2011 = vunpack.c.h.b16 %v453
    %v2012 = vunpack.c.l.b16 %v454
    %v2013 = vunpack.c.h.b16 %v454
    %v2014 = vunpack.c.l.b16 %v455
    %v2015 = vunpack.c.h.b16 %v455
    %v2016 = vunpack.c.l.b16 %v456
    %v2017 = vunpack.c.h.b16 %v456
    %v2018 = vunpack.c.l.b16 %v457
    %v2019 = vunpack.c.h.b16 %v457
    %v2020 = vunpack.c.l.b16 %v458
    %v2021 = vunpack.c.h.b16 %v458
    %v2022 = vunpack.c.l.b16 %v459
    %v2023 = vunpack.c.h.b16 %v459
    %v2024 = vunpack.c.l.b16 %v460
    %v2025 = vunpack.c.h.b16 %v460
    %v2026 = vunpack.c.l.b16 %v461
    %v2027 = vunpack.c.h.b16 %v461
    %v2028 = vunpack.c.l.b16 %v462
    %v2029 = vunpack.c.h.b16 %v462
    %v2030 = vunpack.c.l.b16 %v463
    %v2031 = vunpack.c.h.b16 %v463
    %v2032 = vunpack.c.l.b16 %v464
    %v2033 = vunpack.c.h.b16 %v464
    %v2034 = vunpack.c.l.b16 %v465
    %v2035 = vunpack.c.h.b16 %v465
    %v2036 = vunpack.c.l.b16 %v466
    %v2037 = vunpack.c.h.b16 %v466
    %v2038 = vunpack.c.l.b16 %v467
    %v2039 = vunpack.c.h.b16 %v467
    %v2040 = vunpack.c.l.b16 %v468
    %v2041 = vunpack.c.h.b16 %v468
    %v2042 = vunpack.c.l.b16 %v469
    %v2043 = vunpack.c.h.b16 %v469
    %v2044 = vunpack.c.l.b16 %v470
    %v2045 = vunpack.c.h.b16 %v470
    %v2046 = vunpack.c.l.b16 %v471
    %v2047 = vunpack.c.h.b16 %v471
    %v2048 = vunpack.c.l.b16 %v472
    %v2049 = vunpack.c.h.b16 %v472
    %v2050 = vunpack.c.l.b16 %v473
    %v2051 = vunpack.c.h.b16 %v473
    %v2052 = vunpack.c.l.b16 %v474
    %v2053 = vunpack.c.h.b16 %v474
    %v2054 = vunpack.c.l.b16 %v475
    %v2055 = vunpack.c.h.b16 %v475
    %v2056 = vunpack.c.l.b16 %v476
    %v2057 = vunpack.c.h.b16 %v476
    %v2058 = vunpack.c.l.b16 %v477
    %v2059 = vunpack.c.h.b16 %v477
    %v2060 = vunpack.c.l.b16 %v478
    %v2061 = vunpack.c.h.b16 %v478
    %v2062 = vunpack.c.l.b16 %v479
    %v2063 = vunpack.c.h.b16 %v479
    %v2064 = vunpack.c.l.b16 %v480
    %v2065 = vunpack.c.h.b16 %v480
    %v2066 = vunpack.c.l.b16 %v481
    %v2067 = vunpack.c.h.b16 %v481
    %v2068 = vunpack.c.l.b16 %v482
    %v2069 = vunpack.c.h.b16 %v482
    %v2070 = vunpack.c.l.b16 %v483
    %v2071 = vunpack.c.h.b16 %v483
    %v2072 = vunpack.c.l.b16 %v484
    %v2073 = vunpack.c.h.b16 %v484
    %v2074 = vunpack.c.l.b16 %v485
    %v2075 = vunpack.c.h.b16 %v485
    %v2076 = vunpack.c.l.b16 %v486
    %v2077 = vunpack.c.h.b16 %v486
    %v2078 = vunpack.c.l.b16 %v487
    %v2079 = vunpack.c.h.b16 %v487
    %v2080 = vunpack.c.l.b16 %v488
    %v2081 = vunpack.c.h.b16 %v488
    %v2082 = vunpack.c.l.b16 %v489
    %v2083 = vunpack.c.h.b16 %v489
    %v2084 = vunpack.c.l.b16 %v490
    %v2085 = vunpack.c.h.b16 %v490
    %v2086 = vunpack.c.l.b16 %v491
    %v2087 = vunpack.c.h.b16 %v491
    %v2088 = vunpack.c.l.b16 %v492
    %v2089 = vunpack.c.h.b16 %v492
    %v2090 = vunpack.c.l.b16 %v493
    %v2091 = vunpack.c.h.b16 %v493
    %v2092 = vpack.c.b16 %v1522, %v1516
    %v2093 = vpack.c.b16 %v1523, %v1517
    %v2094 = vpack.c.b16 %v1524, %v1518
    %v2095 = vpack.c.b16 %v1525, %v1519
    %v2096 = vpack.c.b16 %v1526, %v1520
    %v2097 = vpack.c.b16 %v1527, %v1521
    %v2098 = vpack.c.b16 %v1534, %v1528
    %v2099 = vpack.c.b16 %v1535, %v1529
    %v2100 = vpack.c.b16 %v1536, %v1530
    %v2101 = vpack.c.b16 %v1537, %v1531
    %v2102 = vpack.c.b16 %v1538, %v1532
    %v2103 = vpack.c.b16 %v1539, %v1533
    %v2104 = vpack.c.b16 %v1546, %v1540
    %v2105 = vpack.c.b16 %v1547, %v1541
    %v2106 = vpack.c.b16 %v1548, %v1542
    %v2107 = vpack.c.b16 %v1549, %v1543
    %v2108 = vpack.c.b16 %v1550, %v1544
    %v2109 = vpack.c.b16 %v1551, %v1545
    %v2110 = vpack.c.b16 %v1558, %v1552
    %v2111 = vpack.c.b16 %v1559, %v1553
    %v2112 = vpack.c.b16 %v1560, %v1554
    %v2113 = vpack.c.b16 %v1561, %v1555
    %v2114 = vpack.c.b16 %v1562, %v1556
    %v2115 = vpack.c.b16 %v1563, %v1557
    %v2116 = vpack.c.b16 %v1570, %v1564
    %v2117 = vpack.c.b16 %v1571, %v1565
    %v2118 = vpack.c.b16 %v1572, %v1566
    %v2119 = vpack.c.b16 %v1573, %v1567
    %v2120 = vpack.c.b16 %v1574, %v1568
    %v2121 = vpack.c.b16 %v1575, %v1569
    %v2122 = vpack.c.b16 %v1582, %v1576
    %v2123 = vpack.c.b16 %v1583, %v1577
    %v2124 = vpack.c.b16 %v1584, %v1578
    %v2125 = vpack.c.b16 %v1585, %v1579
    %v2126 = vpack.c.b16 %v1586, %v1580
    %v2127 = vpack.c.b16 %v1587, %v1581
    %v2128 = vpack.c.b16 %v1594, %v1588
    %v2129 = vpack.c.b16 %v1595, %v1589
    %v2130 = vpack.c.b16 %v1596, %v1590
    %v2131 = vpack.c.b16 %v1597, %v1591
    %v2132 = vpack.c.b16 %v1598, %v1592
    %v2133 = vpack.c.b16 %v1599, %v1593
    %v2134 = vpack.c.b16 %v1606, %v1600
    %v2135 = vpack.c.b16 %v1607, %v1601
    %v2136 = vpack.c.b16 %v1608, %v1602
    %v2137 = vpack.c.b16 %v1609, %v1603
    %v2138 = vpack.c.b16 %v1610, %v1604
    %v2139 = vpack.c.b16 %v1611, %v1605
    %v2140 = vpack.c.b16 %v1618, %v1612
    %v2141 = vpack.c.b16 %v1619, %v1613
    %v2142 = vpack.c.b16 %v1620, %v1614
    %v2143 = vpack.c.b16 %v1621, %v1615
    %v2144 = vpack.c.b16 %v1622, %v1616
    %v2145 = vpack.c.b16 %v1623, %v1617
    %v2146 = vpack.c.b16 %v1630, %v1624
    %v2147 = vpack.c.b16 %v1631, %v1625
    %v2148 = vpack.c.b16 %v1632, %v1626
    %v2149 = vpack.c.b16 %v1633, %v1627
    %v2150 = vpack.c.b16 %v1634, %v1628
    %v2151 = vpack.c.b16 %v1635, %v1629
    %v2152 = vpack.c.b16 %v1642, %v1636
    %v2153 = vpack.c.b16 %v1643, %v1637
    %v2154 = vpack.c.b16 %v1644, %v1638
    %v2155 = vpack.c.b16 %v1645, %v1639
    %v2156 = vpack.c.b16 %v1646, %v1640
    %v2157 = vpack.c.b16 %v1647, %v1641
    %v2158 = vpack.c.b16 %v1654, %v1648
    %v2159 = vpack.c.b16 %v1655, %v1649
    %v2160 = vpack.c.b16 %v1656, %v1650
    %v2161 = vpack.c.b16 %v1657, %v1651
    %v2162 = vpack.c.b16 %v1658, %v1652
    %v2163 = vpack.c.b16 %v1659, %v1653
    %v2164 = vpack.c.b16 %v1666, %v1660
    %v2165 = vpack.c.b16 %v1667, %v1661
    %v2166 = vpack.c.b16 %v1668, %v1662
    %v2167 = vpack.c.b16 %v1669, %v1663
    %v2168 = vpack.c.b16 %v1670, %v1664
    %v2169 = vpack.c.b16 %v1671, %v1665
    %v2170 = vpack.c.b16 %v1678, %v1672
    %v2171 = vpack.c.b16 %v1679, %v1673
    %v2172 = vpack.c.b16 %v1680, %v1674
    %v2173 = vpack.c.b16 %v1681, %v1675
    %v2174 = vpack.c.b16 %v1682, %v1676
    %v2175 = vpack.c.b16 %v1683, %v1677
    %v2176 = vpack.c.b16 %v1690, %v1684
    %v2177 = vpack.c.b16 %v1691, %v1685
    %v2178 = vpack.c.b16 %v1692, %v1686
    %v2179 = vpack.c.b16 %v1693, %v1687
    %v2180 = vpack.c.b16 %v1694, %v1688
    %v2181 = vpack.c.b16 %v1695, %v1689
    %v2182 = vpack.c.b16 %v1702, %v1696
    %v2183 = vpack.c.b16 %v1703, %v1697
    %v2184 = vpack.c.b16 %v1704, %v1698
    %v2185 = vpack.c.b16 %v1705, %v1699
    %v2186 = vpack.c.b16 %v1706, %v1700
    %v2187 = vpack.c.b16 %v1707, %v1701
    %v2188 = vpack.c.b16 %v1714, %v1708
    %v2189 = vpack.c.b16 %v1715, %v1709
    %v2190 = vpack.c.b16 %v1716, %v1710
    %v2191 = vpack.c.b16 %v1717, %v1711
    %v2192 = vpack.c.b16 %v1718, %v1712
    %v2193 = vpack.c.b16 %v1719, %v1713
    %v2194 = vpack.c.b16 %v1726, %v1720
    %v2195 = vpack.c.b16 %v1727, %v1721
    %v2196 = vpack.c.b16 %v1728, %v1722
    %v2197 = vpack.c.b16 %v1729, %v1723
    %v2198 = vpack.c.b16 %v1730, %v1724
    %v2199 = vpack.c.b16 %v1731, %v1725
    %v2200 = vpack.c.b16 %v1738, %v1732
    %v2201 = vpack.c.b16 %v1739, %v1733
    %v2202 = vpack.c.b16 %v1740, %v1734
    %v2203 = vpack.c.b16 %v1741, %v1735
    %v2204 = vpack.c.b16 %v1742, %v1736
    %v2205 = vpack.c.b16 %v1743, %v1737
    %v2206 = vpack.c.b16 %v1750, %v1744
    %v2207 = vpack.c.b16 %v1751, %v1745
    %v2208 = vpack.c.b16 %v1752, %v1746
    %v2209 = vpack.c.b16 %v1753, %v1747
    %v2210 = vpack.c.b16 %v1754, %v1748
    %v2211 = vpack.c.b16 %v1755, %v1749
    %v2212 = vpack.c.b16 %v1762, %v1756
    %v2213 = vpack.c.b16 %v1763, %v1757
    %v2214 = vpack.c.b16 %v1764, %v1758
    %v2215 = vpack.c.b16 %v1765, %v1759
    %v2216 = vpack.c.b16 %v1766, %v1760
    %v2217 = vpack.c.b16 %v1767, %v1761
    %v2218 = vpack.c.b16 %v1774, %v1768
    %v2219 = vpack.c.b16 %v1775, %v1769
    %v2220 = vpack.c.b16 %v1776, %v1770
    %v2221 = vpack.c.b16 %v1777, %v1771
    %v2222 = vpack.c.b16 %v1778, %v1772
    %v2223 = vpack.c.b16 %v1779, %v1773
    %v2224 = vpack.c.b16 %v1786, %v1780
    %v2225 = vpack.c.b16 %v1787, %v1781
    %v2226 = vpack.c.b16 %v1788, %v1782
    %v2227 = vpack.c.b16 %v1789, %v1783
    %v2228 = vpack.c.b16 %v1790, %v1784
    %v2229 = vpack.c.b16 %v1791, %v1785
    %v2230 = vpack.c.b16 %v1798, %v1792
    %v2231 = vpack.c.b16 %v1799, %v1793
    %v2232 = vpack.c.b16 %v1800, %v1794
    %v2233 = vpack.c.b16 %v1801, %v1795
    %v2234 = vpack.c.b16 %v1802, %v1796
    %v2235 = vpack.c.b16 %v1803, %v1797
    %v2236 = vpack.c.b16 %v1810, %v1804
    %v2237 = vpack.c.b16 %v1811, %v1805
    %v2238 = vpack.c.b16 %v1812, %v1806
    %v2239 = vpack.c.b16 %v1813, %v1807
    %v2240 = vpack.c.b16 %v1814, %v1808
    %v2241 = vpack.c.b16 %v1815, %v1809
    %v2242 = vpack.c.b16 %v1822, %v1816
    %v2243 = vpack.c.b16 %v1823, %v1817
    %v2244 = vpack.c.b16 %v1824, %v1818
    %v2245 = vpack.c.b16 %v1825, %v1819
    %v2246 = vpack.c.b16 %v1826, %v1820
    %v2247 = vpack.c.b16 %v1827, %v1821
    %v2248 = vpack.c.b16 %v1834, %v1828
    %v2249 = vpack.c.b16 %v1835, %v1829
    %v2250 = vpack.c.b16 %v1836, %v1830
    %v2251 = vpack.c.b16 %v1837, %v1831
    %v2252 = vpack.c.b16 %v1838, %v1832
    %v2253 = vpack.c.b16 %v1839, %v1833
    %v2254 = vpack.c.b16 %v1846, %v1840
    %v2255 = vpack.c.b16 %v1847, %v1841
    %v2256 = vpack.c.b16 %v1848, %v1842
    %v2257 = vpack.c.b16 %v1849, %v1843
    %v2258 = vpack.c.b16 %v1850, %v1844
    %v2259 = vpack.c.b16 %v1851, %v1845
    %v2260 = vpack.c.b16 %v1858, %v1852
    %v2261 = vpack.c.b16 %v1859, %v1853
    %v2262 = vpack.c.b16 %v1860, %v1854
    %v2263 = vpack.c.b16 %v1861, %v1855
    %v2264 = vpack.c.b16 %v1862, %v1856
    %v2265 = vpack.c.b16 %v1863, %v1857
    %v2266 = vpack.c.b16 %v1870, %v1864
    %v2267 = vpack.c.b16 %v1871, %v1865
    %v2268 = vpack.c.b16 %v1872, %v1866
    %v2269 = vpack.c.b16 %v1873, %v1867
    %v2270 = vpack.c.b16 %v1874, %v1868
    %v2271 = vpack.c.b16 %v1875, %v1869
    %v2272 = vpack.c.b16 %v1882, %v1876
    %v2273 = vpack.c.b16 %v1883, %v1877
    %v2274 = vpack.c.b16 %v1884, %v1878
    %v2275 = vpack.c.b16 %v1885, %v1879
    %v2276 = vpack.c.b16 %v1886, %v1880
    %v2277 = vpack.c.b16 %v1887, %v1881
    %v2278 = vpack.c.b16 %v1894, %v1888
    %v2279 = vpack.c.b16 %v1895, %v1889
    %v2280 = vpack.c.b16 %v1896, %v1890
    %v2281 = vpack.c.b16 %v1897, %v1891
    %v2282 = vpack.c.b16 %v1898, %v1892
    %v2283 = vpack.c.b16 %v1899, %v1893
    %v2284 = vpack.c.b16 %v1906, %v1900
    %v2285 = vpack.c.b16 %v1907, %v1901
    %v2286 = vpack.c.b16 %v1908, %v1902
    %v2287 = vpack.c.b16 %v1909, %v1903
    %v2288 = vpack.c.b16 %v1910, %v1904
    %v2289 = vpack.c.b16 %v1911, %v1905
    %v2290 = vpack.c.b16 %v1918, %v1912
    %v2291 = vpack.c.b16 %v1919, %v1913
    %v2292 = vpack.c.b16 %v1920, %v1914
    %v2293 = vpack.c.b16 %v1921, %v1915
    %v2294 = vpack.c.b16 %v1922, %v1916
    %v2295 = vpack.c.b16 %v1923, %v1917
    %v2296 = vpack.c.b16 %v1930, %v1924
    %v2297 = vpack.c.b16 %v1931, %v1925
    %v2298 = vpack.c.b16 %v1932, %v1926
    %v2299 = vpack.c.b16 %v1933, %v1927
    %v2300 = vpack.c.b16 %v1934, %v1928
    %v2301 = vpack.c.b16 %v1935, %v1929
    %v2302 = vpack.c.b16 %v1942, %v1936
    %v2303 = vpack.c.b16 %v1943, %v1937
    %v2304 = vpack.c.b16 %v1944, %v1938
    %v2305 = vpack.c.b16 %v1945, %v1939
    %v2306 = vpack.c.b16 %v1946, %v1940
    %v2307 = vpack.c.b16 %v1947, %v1941
    %v2308 = vpack.c.b16 %v1954, %v1948
    %v2309 = vpack.c.b16 %v1955, %v1949
    %v2310 = vpack.c.b16 %v1956, %v1950
    %v2311 = vpack.c.b16 %v1957, %v1951
    %v2312 = vpack.c.b16 %v1958, %v1952
    %v2313 = vpack.c.b16 %v1959, %v1953
    %v2314 = vpack.c.b16 %v1966, %v1960
    %v2315 = vpack.c.b16 %v1967, %v1961
    %v2316 = vpack.c.b16 %v1968, %v1962
    %v2317 = vpack.c.b16 %v1969, %v1963
    %v2318 = vpack.c.b16 %v1970, %v1964
    %v2319 = vpack.c.b16 %v1971, %v1965
    %v2320 = vpack.c.b16 %v1978, %v1972
    %v2321 = vpack.c.b16 %v1979, %v1973
    %v2322 = vpack.c.b16 %v1980, %v1974
    %v2323 = vpack.c.b16 %v1981, %v1975
    %v2324 = vpack.c.b16 %v1982, %v1976
    %v2325 = vpack.c.b16 %v1983, %v1977
    %v2326 = vpack.c.b16 %v1990, %v1984
    %v2327 = vpack.c.b16 %v1991, %v1985
    %v2328 = vpack.c.b16 %v1992, %v1986
    %v2329 = vpack.c.b16 %v1993, %v1987
    %v2330 = vpack.c.b16 %v1994, %v1988
    %v2331 = vpack.c.b16 %v1995, %v1989
    %v2332 = vpack.c.b16 %v2002, %v1996
    %v2333 = vpack.c.b16 %v2003, %v1997
    %v2334 = vpack.c.b16 %v2004, %v1998
    %v2335 = vpack.c.b16 %v2005, %v1999
    %v2336 = vpack.c.b16 %v2006, %v2000
    %v2337 = vpack.c.b16 %v2007, %v2001
    %v2338 = vpack.c.b16 %v2014, %v2008
    %v2339 = vpack.c.b16 %v2015, %v2009
    %v2340 = vpack.c.b16 %v2016, %v2010
    %v2341 = vpack.c.b16 %v2017, %v2011
    %v2342 = vpack.c.b16 %v2018, %v2012
    %v2343 = vpack.c.b16 %v2019, %v2013
    %v2344 = vpack.c.b16 %v2026, %v2020
    %v2345 = vpack.c.b16 %v2027, %v2021
    %v2346 = vpack.c.b16 %v2028, %v2022
    %v2347 = vpack.c.b16 %v2029, %v2023
    %v2348 = vpack.c.b16 %v2030, %v2024
    %v2349 = vpack.c.b16 %v2031, %v2025
    %v2350 = vpack.c.b16 %v2038, %v2032
    %v2351 = vpack.c.b16 %v2039, %v2033
    %v2352 = vpack.c.b16 %v2040, %v2034
    %v2353 = vpack.c.b16 %v2041, %v2035
    %v2354 = vpack.c.b16 %v2042, %v2036
    %v2355 = vpack.c.b16 %v2043, %v2037
    %v2356 = vpack.c.b16 %v2050, %v2044
    %v2357 = vpack.c.b16 %v2051, %v2045
    %v2358 = vpack.c.b16 %v2052, %v2046
    %v2359 = vpack.c.b16 %v2053, %v2047
    %v2360 = vpack.c.b16 %v2054, %v2048
    %v2361 = vpack.c.b16 %v2055, %v2049
    %v2362 = vpack.c.b16 %v2062, %v2056
    %v2363 = vpack.c.b16 %v2063, %v2057
    %v2364 = vpack.c.b16 %v2064, %v2058
    %v2365 = vpack.c.b16 %v2065, %v2059
    %v2366 = vpack.c.b16 %v2066, %v2060
    %v2367 = vpack.c.b16 %v2067, %v2061
    %v2368 = vpack.c.b16 %v2074, %v2068
    %v2369 = vpack.c.b16 %v2075, %v2069
    %v2370 = vpack.c.b16 %v2076, %v2070
    %v2371 = vpack.c.b16 %v2077, %v2071
    %v2372 = vpack.c.b16 %v2078, %v2072
    %v2373 = vpack.c.b16 %v2079, %v2073
    %v2374 = vpack.c.b16 %v2086, %v2080
    %v2375 = vpack.c.b16 %v2087, %v2081
    %v2376 = vpack.c.b16 %v2088, %v2082
    %v2377 = vpack.c.b16 %v2089, %v2083
    %v2378 = vpack.c.b16 %v2090, %v2084
    %v2379 = vpack.c.b16 %v2091, %v2085
    %2668 = vmatpush.bf16.xpose.msra.mxu0 %v2134
    %2669 = vmatpush.bf16.xpose.msra.mxu0 %v2128
    %2670 = vmatpush.bf16.xpose.msra.mxu0 %v2122
    %2671 = vmatpush.bf16.xpose.msra.mxu0 %v2116
    %2672 = vmatpush.bf16.xpose.msra.mxu0 %v2110
    %2673 = vmatpush.bf16.xpose.msra.mxu0 %v2104
    %2674 = vmatpush.bf16.xpose.msra.mxu0 %v2098
    %2675 = vmatpush.bf16.xpose.msra.mxu0 %v2092
    %2676 = vmatmul.bf16.gmra.mxu0 %v940
    %v2677 = vpop.f32.mrf.mxu0
    %v2678 = vadd.f32 %v496, %v2677
    %v2679 = vpop.f32.mrf.mxu0
    %v2680 = vadd.f32 %v496, %v2679
    %2681 = vmatmul.bf16.gmra.mxu0 %v946
    %v2682 = vpop.f32.mrf.mxu0
    %v2683 = vadd.f32 %v496, %v2682
    %v2684 = vpop.f32.mrf.mxu0
    %v2685 = vadd.f32 %v496, %v2684
    %2686 = vmatmul.bf16.gmra.mxu0 %v952
    %v2687 = vpop.f32.mrf.mxu0
    %v2688 = vadd.f32 %v496, %v2687
    %v2689 = vpop.f32.mrf.mxu0
    %v2690 = vadd.f32 %v496, %v2689
    %2691 = vmatmul.bf16.gmra.mxu0 %v958
    %v2692 = vpop.f32.mrf.mxu0
    %v2693 = vadd.f32 %v496, %v2692
    %v2694 = vpop.f32.mrf.mxu0
    %v2695 = vadd.f32 %v496, %v2694
    %2696 = vmatmul.bf16.gmra.mxu0 %v964
    %v2697 = vpop.f32.mrf.mxu0
    %v2698 = vadd.f32 %v496, %v2697
    %v2699 = vpop.f32.mrf.mxu0
    %v2700 = vadd.f32 %v496, %v2699
    %2701 = vmatmul.bf16.gmra.mxu0 %v970
    %v2702 = vpop.f32.mrf.mxu0
    %v2703 = vadd.f32 %v496, %v2702
    %v2704 = vpop.f32.mrf.mxu0
    %v2705 = vadd.f32 %v496, %v2704
    %2706 = vmatmul.bf16.gmra.mxu0 %v976
    %v2707 = vpop.f32.mrf.mxu0
    %v2708 = vadd.f32 %v496, %v2707
    %v2709 = vpop.f32.mrf.mxu0
    %v2710 = vadd.f32 %v496, %v2709
    %2711 = vmatmul.bf16.gmra.mxu0 %v982
    %v2712 = vpop.f32.mrf.mxu0
    %v2713 = vadd.f32 %v496, %v2712
    %v2714 = vpop.f32.mrf.mxu0
    %v2715 = vadd.f32 %v496, %v2714
    %2716 = vmatmul.bf16.gmra.mxu0 %v988
    %v2717 = vpop.f32.mrf.mxu0
    %v2718 = vadd.f32 %v496, %v2717
    %v2719 = vpop.f32.mrf.mxu0
    %v2720 = vadd.f32 %v496, %v2719
    %2721 = vmatmul.bf16.gmra.mxu0 %v994
    %v2722 = vpop.f32.mrf.mxu0
    %v2723 = vadd.f32 %v496, %v2722
    %v2724 = vpop.f32.mrf.mxu0
    %v2725 = vadd.f32 %v496, %v2724
    %2726 = vmatmul.bf16.gmra.mxu0 %v1000
    %v2727 = vpop.f32.mrf.mxu0
    %v2728 = vadd.f32 %v496, %v2727
    %v2729 = vpop.f32.mrf.mxu0
    %v2730 = vadd.f32 %v496, %v2729
    %2731 = vmatmul.bf16.gmra.mxu0 %v1006
    %v2732 = vpop.f32.mrf.mxu0
    %v2733 = vadd.f32 %v496, %v2732
    %v2734 = vpop.f32.mrf.mxu0
    %v2735 = vadd.f32 %v496, %v2734
    %2736 = vmatmul.bf16.gmra.mxu0 %v1012
    %v2737 = vpop.f32.mrf.mxu0
    %v2738 = vadd.f32 %v496, %v2737
    %v2739 = vpop.f32.mrf.mxu0
    %v2740 = vadd.f32 %v496, %v2739
    %2741 = vmatmul.bf16.gmra.mxu0 %v1018
    %v2742 = vpop.f32.mrf.mxu0
    %v2743 = vadd.f32 %v496, %v2742
    %v2744 = vpop.f32.mrf.mxu0
    %v2745 = vadd.f32 %v496, %v2744
    %2746 = vmatmul.bf16.gmra.mxu0 %v1024
    %v2747 = vpop.f32.mrf.mxu0
    %v2748 = vadd.f32 %v496, %v2747
    %v2749 = vpop.f32.mrf.mxu0
    %v2750 = vadd.f32 %v496, %v2749
    %2751 = vmatmul.bf16.gmra.mxu0 %v1030
    %v2752 = vpop.f32.mrf.mxu0
    %v2753 = vadd.f32 %v496, %v2752
    %v2754 = vpop.f32.mrf.mxu0
    %v2755 = vadd.f32 %v496, %v2754
    %2756 = vmatmul.bf16.gmra.mxu0 %v1036
    %v2757 = vpop.f32.mrf.mxu0
    %v2758 = vadd.f32 %v496, %v2757
    %v2759 = vpop.f32.mrf.mxu0
    %v2760 = vadd.f32 %v496, %v2759
    %2761 = vmatmul.bf16.gmra.mxu0 %v1042
    %v2762 = vpop.f32.mrf.mxu0
    %v2763 = vadd.f32 %v496, %v2762
    %v2764 = vpop.f32.mrf.mxu0
    %v2765 = vadd.f32 %v496, %v2764
    %2766 = vmatmul.bf16.gmra.mxu0 %v1048
    %v2767 = vpop.f32.mrf.mxu0
    %v2768 = vadd.f32 %v496, %v2767
    %v2769 = vpop.f32.mrf.mxu0
    %v2770 = vadd.f32 %v496, %v2769
    %2771 = vmatmul.bf16.gmra.mxu0 %v1054
    %v2772 = vpop.f32.mrf.mxu0
    %v2773 = vadd.f32 %v496, %v2772
    %v2774 = vpop.f32.mrf.mxu0
    %v2775 = vadd.f32 %v496, %v2774
    %2776 = vmatmul.bf16.gmra.mxu0 %v1060
    %v2777 = vpop.f32.mrf.mxu0
    %v2778 = vadd.f32 %v496, %v2777
    %v2779 = vpop.f32.mrf.mxu0
    %v2780 = vadd.f32 %v496, %v2779
    %2781 = vmatmul.bf16.gmra.mxu0 %v1066
    %v2782 = vpop.f32.mrf.mxu0
    %v2783 = vadd.f32 %v496, %v2782
    %v2784 = vpop.f32.mrf.mxu0
    %v2785 = vadd.f32 %v496, %v2784
    %2786 = vmatmul.bf16.gmra.mxu0 %v1072
    %v2787 = vpop.f32.mrf.mxu0
    %v2788 = vadd.f32 %v496, %v2787
    %v2789 = vpop.f32.mrf.mxu0
    %v2790 = vadd.f32 %v496, %v2789
    %2791 = vmatmul.bf16.gmra.mxu0 %v1078
    %v2792 = vpop.f32.mrf.mxu0
    %v2793 = vadd.f32 %v496, %v2792
    %v2794 = vpop.f32.mrf.mxu0
    %v2795 = vadd.f32 %v496, %v2794
    %2796 = vdwg.mxu0
    %2797 = vmatpush.bf16.xpose.msra.mxu0 %v2135
    %2798 = vmatpush.bf16.xpose.msra.mxu0 %v2129
    %2799 = vmatpush.bf16.xpose.msra.mxu0 %v2123
    %2800 = vmatpush.bf16.xpose.msra.mxu0 %v2117
    %2801 = vmatpush.bf16.xpose.msra.mxu0 %v2111
    %2802 = vmatpush.bf16.xpose.msra.mxu0 %v2105
    %2803 = vmatpush.bf16.xpose.msra.mxu0 %v2099
    %2804 = vmatpush.bf16.xpose.msra.mxu0 %v2093
    %2805 = vmatmul.bf16.gmra.mxu0 %v941
    %v2806 = vpop.f32.mrf.mxu0
    %v2807 = vadd.f32 %v2678, %v2806
    %v2808 = vpop.f32.mrf.mxu0
    %v2809 = vadd.f32 %v2680, %v2808
    %2810 = vmatmul.bf16.gmra.mxu0 %v947
    %v2811 = vpop.f32.mrf.mxu0
    %v2812 = vadd.f32 %v2683, %v2811
    %v2813 = vpop.f32.mrf.mxu0
    %v2814 = vadd.f32 %v2685, %v2813
    %2815 = vmatmul.bf16.gmra.mxu0 %v953
    %v2816 = vpop.f32.mrf.mxu0
    %v2817 = vadd.f32 %v2688, %v2816
    %v2818 = vpop.f32.mrf.mxu0
    %v2819 = vadd.f32 %v2690, %v2818
    %2820 = vmatmul.bf16.gmra.mxu0 %v959
    %v2821 = vpop.f32.mrf.mxu0
    %v2822 = vadd.f32 %v2693, %v2821
    %v2823 = vpop.f32.mrf.mxu0
    %v2824 = vadd.f32 %v2695, %v2823
    %2825 = vmatmul.bf16.gmra.mxu0 %v965
    %v2826 = vpop.f32.mrf.mxu0
    %v2827 = vadd.f32 %v2698, %v2826
    %v2828 = vpop.f32.mrf.mxu0
    %v2829 = vadd.f32 %v2700, %v2828
    %2830 = vmatmul.bf16.gmra.mxu0 %v971
    %v2831 = vpop.f32.mrf.mxu0
    %v2832 = vadd.f32 %v2703, %v2831
    %v2833 = vpop.f32.mrf.mxu0
    %v2834 = vadd.f32 %v2705, %v2833
    %2835 = vmatmul.bf16.gmra.mxu0 %v977
    %v2836 = vpop.f32.mrf.mxu0
    %v2837 = vadd.f32 %v2708, %v2836
    %v2838 = vpop.f32.mrf.mxu0
    %v2839 = vadd.f32 %v2710, %v2838
    %2840 = vmatmul.bf16.gmra.mxu0 %v983
    %v2841 = vpop.f32.mrf.mxu0
    %v2842 = vadd.f32 %v2713, %v2841
    %v2843 = vpop.f32.mrf.mxu0
    %v2844 = vadd.f32 %v2715, %v2843
    %2845 = vmatmul.bf16.gmra.mxu0 %v989
    %v2846 = vpop.f32.mrf.mxu0
    %v2847 = vadd.f32 %v2718, %v2846
    %v2848 = vpop.f32.mrf.mxu0
    %v2849 = vadd.f32 %v2720, %v2848
    %2850 = vmatmul.bf16.gmra.mxu0 %v995
    %v2851 = vpop.f32.mrf.mxu0
    %v2852 = vadd.f32 %v2723, %v2851
    %v2853 = vpop.f32.mrf.mxu0
    %v2854 = vadd.f32 %v2725, %v2853
    %2855 = vmatmul.bf16.gmra.mxu0 %v1001
    %v2856 = vpop.f32.mrf.mxu0
    %v2857 = vadd.f32 %v2728, %v2856
    %v2858 = vpop.f32.mrf.mxu0
    %v2859 = vadd.f32 %v2730, %v2858
    %2860 = vmatmul.bf16.gmra.mxu0 %v1007
    %v2861 = vpop.f32.mrf.mxu0
    %v2862 = vadd.f32 %v2733, %v2861
    %v2863 = vpop.f32.mrf.mxu0
    %v2864 = vadd.f32 %v2735, %v2863
    %2865 = vmatmul.bf16.gmra.mxu0 %v1013
    %v2866 = vpop.f32.mrf.mxu0
    %v2867 = vadd.f32 %v2738, %v2866
    %v2868 = vpop.f32.mrf.mxu0
    %v2869 = vadd.f32 %v2740, %v2868
    %2870 = vmatmul.bf16.gmra.mxu0 %v1019
    %v2871 = vpop.f32.mrf.mxu0
    %v2872 = vadd.f32 %v2743, %v2871
    %v2873 = vpop.f32.mrf.mxu0
    %v2874 = vadd.f32 %v2745, %v2873
    %2875 = vmatmul.bf16.gmra.mxu0 %v1025
    %v2876 = vpop.f32.mrf.mxu0
    %v2877 = vadd.f32 %v2748, %v2876
    %v2878 = vpop.f32.mrf.mxu0
    %v2879 = vadd.f32 %v2750, %v2878
    %2880 = vmatmul.bf16.gmra.mxu0 %v1031
    %v2881 = vpop.f32.mrf.mxu0
    %v2882 = vadd.f32 %v2753, %v2881
    %v2883 = vpop.f32.mrf.mxu0
    %v2884 = vadd.f32 %v2755, %v2883
    %2885 = vmatmul.bf16.gmra.mxu0 %v1037
    %v2886 = vpop.f32.mrf.mxu0
    %v2887 = vadd.f32 %v2758, %v2886
    %v2888 = vpop.f32.mrf.mxu0
    %v2889 = vadd.f32 %v2760, %v2888
    %2890 = vmatmul.bf16.gmra.mxu0 %v1043
    %v2891 = vpop.f32.mrf.mxu0
    %v2892 = vadd.f32 %v2763, %v2891
    %v2893 = vpop.f32.mrf.mxu0
    %v2894 = vadd.f32 %v2765, %v2893
    %2895 = vmatmul.bf16.gmra.mxu0 %v1049
    %v2896 = vpop.f32.mrf.mxu0
    %v2897 = vadd.f32 %v2768, %v2896
    %v2898 = vpop.f32.mrf.mxu0
    %v2899 = vadd.f32 %v2770, %v2898
    %2900 = vmatmul.bf16.gmra.mxu0 %v1055
    %v2901 = vpop.f32.mrf.mxu0
    %v2902 = vadd.f32 %v2773, %v2901
    %v2903 = vpop.f32.mrf.mxu0
    %v2904 = vadd.f32 %v2775, %v2903
    %2905 = vmatmul.bf16.gmra.mxu0 %v1061
    %v2906 = vpop.f32.mrf.mxu0
    %v2907 = vadd.f32 %v2778, %v2906
    %v2908 = vpop.f32.mrf.mxu0
    %v2909 = vadd.f32 %v2780, %v2908
    %2910 = vmatmul.bf16.gmra.mxu0 %v1067
    %v2911 = vpop.f32.mrf.mxu0
    %v2912 = vadd.f32 %v2783, %v2911
    %v2913 = vpop.f32.mrf.mxu0
    %v2914 = vadd.f32 %v2785, %v2913
    %2915 = vmatmul.bf16.gmra.mxu0 %v1073
    %v2916 = vpop.f32.mrf.mxu0
    %v2917 = vadd.f32 %v2788, %v2916
    %v2918 = vpop.f32.mrf.mxu0
    %v2919 = vadd.f32 %v2790, %v2918
    %2920 = vmatmul.bf16.gmra.mxu0 %v1079
    %v2921 = vpop.f32.mrf.mxu0
    %v2922 = vadd.f32 %v2793, %v2921
    %v2923 = vpop.f32.mrf.mxu0
    %v2924 = vadd.f32 %v2795, %v2923
    %2925 = vdwg.mxu0
    %2926 = vmatpush.bf16.xpose.msra.mxu0 %v2136
    %2927 = vmatpush.bf16.xpose.msra.mxu0 %v2130
    %2928 = vmatpush.bf16.xpose.msra.mxu0 %v2124
    %2929 = vmatpush.bf16.xpose.msra.mxu0 %v2118
    %2930 = vmatpush.bf16.xpose.msra.mxu0 %v2112
    %2931 = vmatpush.bf16.xpose.msra.mxu0 %v2106
    %2932 = vmatpush.bf16.xpose.msra.mxu0 %v2100
    %2933 = vmatpush.bf16.xpose.msra.mxu0 %v2094
    %2934 = vmatmul.bf16.gmra.mxu0 %v942
    %v2935 = vpop.f32.mrf.mxu0
    %v2936 = vadd.f32 %v2807, %v2935
    %v2937 = vpop.f32.mrf.mxu0
    %v2938 = vadd.f32 %v2809, %v2937
    %2939 = vmatmul.bf16.gmra.mxu0 %v948
    %v2940 = vpop.f32.mrf.mxu0
    %v2941 = vadd.f32 %v2812, %v2940
    %v2942 = vpop.f32.mrf.mxu0
    %v2943 = vadd.f32 %v2814, %v2942
    %2944 = vmatmul.bf16.gmra.mxu0 %v954
    %v2945 = vpop.f32.mrf.mxu0
    %v2946 = vadd.f32 %v2817, %v2945
    %v2947 = vpop.f32.mrf.mxu0
    %v2948 = vadd.f32 %v2819, %v2947
    %2949 = vmatmul.bf16.gmra.mxu0 %v960
    %v2950 = vpop.f32.mrf.mxu0
    %v2951 = vadd.f32 %v2822, %v2950
    %v2952 = vpop.f32.mrf.mxu0
    %v2953 = vadd.f32 %v2824, %v2952
    %2954 = vmatmul.bf16.gmra.mxu0 %v966
    %v2955 = vpop.f32.mrf.mxu0
    %v2956 = vadd.f32 %v2827, %v2955
    %v2957 = vpop.f32.mrf.mxu0
    %v2958 = vadd.f32 %v2829, %v2957
    %2959 = vmatmul.bf16.gmra.mxu0 %v972
    %v2960 = vpop.f32.mrf.mxu0
    %v2961 = vadd.f32 %v2832, %v2960
    %v2962 = vpop.f32.mrf.mxu0
    %v2963 = vadd.f32 %v2834, %v2962
    %2964 = vmatmul.bf16.gmra.mxu0 %v978
    %v2965 = vpop.f32.mrf.mxu0
    %v2966 = vadd.f32 %v2837, %v2965
    %v2967 = vpop.f32.mrf.mxu0
    %v2968 = vadd.f32 %v2839, %v2967
    %2969 = vmatmul.bf16.gmra.mxu0 %v984
    %v2970 = vpop.f32.mrf.mxu0
    %v2971 = vadd.f32 %v2842, %v2970
    %v2972 = vpop.f32.mrf.mxu0
    %v2973 = vadd.f32 %v2844, %v2972
    %2974 = vmatmul.bf16.gmra.mxu0 %v990
    %v2975 = vpop.f32.mrf.mxu0
    %v2976 = vadd.f32 %v2847, %v2975
    %v2977 = vpop.f32.mrf.mxu0
    %v2978 = vadd.f32 %v2849, %v2977
    %2979 = vmatmul.bf16.gmra.mxu0 %v996
    %v2980 = vpop.f32.mrf.mxu0
    %v2981 = vadd.f32 %v2852, %v2980
    %v2982 = vpop.f32.mrf.mxu0
    %v2983 = vadd.f32 %v2854, %v2982
    %2984 = vmatmul.bf16.gmra.mxu0 %v1002
    %v2985 = vpop.f32.mrf.mxu0
    %v2986 = vadd.f32 %v2857, %v2985
    %v2987 = vpop.f32.mrf.mxu0
    %v2988 = vadd.f32 %v2859, %v2987
    %2989 = vmatmul.bf16.gmra.mxu0 %v1008
    %v2990 = vpop.f32.mrf.mxu0
    %v2991 = vadd.f32 %v2862, %v2990
    %v2992 = vpop.f32.mrf.mxu0
    %v2993 = vadd.f32 %v2864, %v2992
    %2994 = vmatmul.bf16.gmra.mxu0 %v1014
    %v2995 = vpop.f32.mrf.mxu0
    %v2996 = vadd.f32 %v2867, %v2995
    %v2997 = vpop.f32.mrf.mxu0
    %v2998 = vadd.f32 %v2869, %v2997
    %2999 = vmatmul.bf16.gmra.mxu0 %v1020
    %v3000 = vpop.f32.mrf.mxu0
    %v3001 = vadd.f32 %v2872, %v3000
    %v3002 = vpop.f32.mrf.mxu0
    %v3003 = vadd.f32 %v2874, %v3002
    %3004 = vmatmul.bf16.gmra.mxu0 %v1026
    %v3005 = vpop.f32.mrf.mxu0
    %v3006 = vadd.f32 %v2877, %v3005
    %v3007 = vpop.f32.mrf.mxu0
    %v3008 = vadd.f32 %v2879, %v3007
    %3009 = vmatmul.bf16.gmra.mxu0 %v1032
    %v3010 = vpop.f32.mrf.mxu0
    %v3011 = vadd.f32 %v2882, %v3010
    %v3012 = vpop.f32.mrf.mxu0
    %v3013 = vadd.f32 %v2884, %v3012
    %3014 = vmatmul.bf16.gmra.mxu0 %v1038
    %v3015 = vpop.f32.mrf.mxu0
    %v3016 = vadd.f32 %v2887, %v3015
    %v3017 = vpop.f32.mrf.mxu0
    %v3018 = vadd.f32 %v2889, %v3017
    %3019 = vmatmul.bf16.gmra.mxu0 %v1044
    %v3020 = vpop.f32.mrf.mxu0
    %v3021 = vadd.f32 %v2892, %v3020
    %v3022 = vpop.f32.mrf.mxu0
    %v3023 = vadd.f32 %v2894, %v3022
    %3024 = vmatmul.bf16.gmra.mxu0 %v1050
    %v3025 = vpop.f32.mrf.mxu0
    %v3026 = vadd.f32 %v2897, %v3025
    %v3027 = vpop.f32.mrf.mxu0
    %v3028 = vadd.f32 %v2899, %v3027
    %3029 = vmatmul.bf16.gmra.mxu0 %v1056
    %v3030 = vpop.f32.mrf.mxu0
    %v3031 = vadd.f32 %v2902, %v3030
    %v3032 = vpop.f32.mrf.mxu0
    %v3033 = vadd.f32 %v2904, %v3032
    %3034 = vmatmul.bf16.gmra.mxu0 %v1062
    %v3035 = vpop.f32.mrf.mxu0
    %v3036 = vadd.f32 %v2907, %v3035
    %v3037 = vpop.f32.mrf.mxu0
    %v3038 = vadd.f32 %v2909, %v3037
    %3039 = vmatmul.bf16.gmra.mxu0 %v1068
    %v3040 = vpop.f32.mrf.mxu0
    %v3041 = vadd.f32 %v2912, %v3040
    %v3042 = vpop.f32.mrf.mxu0
    %v3043 = vadd.f32 %v2914, %v3042
    %3044 = vmatmul.bf16.gmra.mxu0 %v1074
    %v3045 = vpop.f32.mrf.mxu0
    %v3046 = vadd.f32 %v2917, %v3045
    %v3047 = vpop.f32.mrf.mxu0
    %v3048 = vadd.f32 %v2919, %v3047
    %3049 = vmatmul.bf16.gmra.mxu0 %v1080
    %v3050 = vpop.f32.mrf.mxu0
    %v3051 = vadd.f32 %v2922, %v3050
    %v3052 = vpop.f32.mrf.mxu0
    %v3053 = vadd.f32 %v2924, %v3052
    %3054 = vdwg.mxu0
    %3055 = vmatpush.bf16.xpose.msra.mxu0 %v2137
    %3056 = vmatpush.bf16.xpose.msra.mxu0 %v2131
    %3057 = vmatpush.bf16.xpose.msra.mxu0 %v2125
    %3058 = vmatpush.bf16.xpose.msra.mxu0 %v2119
    %3059 = vmatpush.bf16.xpose.msra.mxu0 %v2113
    %3060 = vmatpush.bf16.xpose.msra.mxu0 %v2107
    %3061 = vmatpush.bf16.xpose.msra.mxu0 %v2101
    %3062 = vmatpush.bf16.xpose.msra.mxu0 %v2095
    %3063 = vmatmul.bf16.gmra.mxu0 %v943
    %v3064 = vpop.f32.mrf.mxu0
    %v3065 = vadd.f32 %v2936, %v3064
    %v3066 = vpop.f32.mrf.mxu0
    %v3067 = vadd.f32 %v2938, %v3066
    %3068 = vmatmul.bf16.gmra.mxu0 %v949
    %v3069 = vpop.f32.mrf.mxu0
    %v3070 = vadd.f32 %v2941, %v3069
    %v3071 = vpop.f32.mrf.mxu0
    %v3072 = vadd.f32 %v2943, %v3071
    %3073 = vmatmul.bf16.gmra.mxu0 %v955
    %v3074 = vpop.f32.mrf.mxu0
    %v3075 = vadd.f32 %v2946, %v3074
    %v3076 = vpop.f32.mrf.mxu0
    %v3077 = vadd.f32 %v2948, %v3076
    %3078 = vmatmul.bf16.gmra.mxu0 %v961
    %v3079 = vpop.f32.mrf.mxu0
    %v3080 = vadd.f32 %v2951, %v3079
    %v3081 = vpop.f32.mrf.mxu0
    %v3082 = vadd.f32 %v2953, %v3081
    %3083 = vmatmul.bf16.gmra.mxu0 %v967
    %v3084 = vpop.f32.mrf.mxu0
    %v3085 = vadd.f32 %v2956, %v3084
    %v3086 = vpop.f32.mrf.mxu0
    %v3087 = vadd.f32 %v2958, %v3086
    %3088 = vmatmul.bf16.gmra.mxu0 %v973
    %v3089 = vpop.f32.mrf.mxu0
    %v3090 = vadd.f32 %v2961, %v3089
    %v3091 = vpop.f32.mrf.mxu0
    %v3092 = vadd.f32 %v2963, %v3091
    %3093 = vmatmul.bf16.gmra.mxu0 %v979
    %v3094 = vpop.f32.mrf.mxu0
    %v3095 = vadd.f32 %v2966, %v3094
    %v3096 = vpop.f32.mrf.mxu0
    %v3097 = vadd.f32 %v2968, %v3096
    %3098 = vmatmul.bf16.gmra.mxu0 %v985
    %v3099 = vpop.f32.mrf.mxu0
    %v3100 = vadd.f32 %v2971, %v3099
    %v3101 = vpop.f32.mrf.mxu0
    %v3102 = vadd.f32 %v2973, %v3101
    %3103 = vmatmul.bf16.gmra.mxu0 %v991
    %v3104 = vpop.f32.mrf.mxu0
    %v3105 = vadd.f32 %v2976, %v3104
    %v3106 = vpop.f32.mrf.mxu0
    %v3107 = vadd.f32 %v2978, %v3106
    %3108 = vmatmul.bf16.gmra.mxu0 %v997
    %v3109 = vpop.f32.mrf.mxu0
    %v3110 = vadd.f32 %v2981, %v3109
    %v3111 = vpop.f32.mrf.mxu0
    %v3112 = vadd.f32 %v2983, %v3111
    %3113 = vmatmul.bf16.gmra.mxu0 %v1003
    %v3114 = vpop.f32.mrf.mxu0
    %v3115 = vadd.f32 %v2986, %v3114
    %v3116 = vpop.f32.mrf.mxu0
    %v3117 = vadd.f32 %v2988, %v3116
    %3118 = vmatmul.bf16.gmra.mxu0 %v1009
    %v3119 = vpop.f32.mrf.mxu0
    %v3120 = vadd.f32 %v2991, %v3119
    %v3121 = vpop.f32.mrf.mxu0
    %v3122 = vadd.f32 %v2993, %v3121
    %3123 = vmatmul.bf16.gmra.mxu0 %v1015
    %v3124 = vpop.f32.mrf.mxu0
    %v3125 = vadd.f32 %v2996, %v3124
    %v3126 = vpop.f32.mrf.mxu0
    %v3127 = vadd.f32 %v2998, %v3126
    %3128 = vmatmul.bf16.gmra.mxu0 %v1021
    %v3129 = vpop.f32.mrf.mxu0
    %v3130 = vadd.f32 %v3001, %v3129
    %v3131 = vpop.f32.mrf.mxu0
    %v3132 = vadd.f32 %v3003, %v3131
    %3133 = vmatmul.bf16.gmra.mxu0 %v1027
    %v3134 = vpop.f32.mrf.mxu0
    %v3135 = vadd.f32 %v3006, %v3134
    %v3136 = vpop.f32.mrf.mxu0
    %v3137 = vadd.f32 %v3008, %v3136
    %3138 = vmatmul.bf16.gmra.mxu0 %v1033
    %v3139 = vpop.f32.mrf.mxu0
    %v3140 = vadd.f32 %v3011, %v3139
    %v3141 = vpop.f32.mrf.mxu0
    %v3142 = vadd.f32 %v3013, %v3141
    %3143 = vmatmul.bf16.gmra.mxu0 %v1039
    %v3144 = vpop.f32.mrf.mxu0
    %v3145 = vadd.f32 %v3016, %v3144
    %v3146 = vpop.f32.mrf.mxu0
    %v3147 = vadd.f32 %v3018, %v3146
    %3148 = vmatmul.bf16.gmra.mxu0 %v1045
    %v3149 = vpop.f32.mrf.mxu0
    %v3150 = vadd.f32 %v3021, %v3149
    %v3151 = vpop.f32.mrf.mxu0
    %v3152 = vadd.f32 %v3023, %v3151
    %3153 = vmatmul.bf16.gmra.mxu0 %v1051
    %v3154 = vpop.f32.mrf.mxu0
    %v3155 = vadd.f32 %v3026, %v3154
    %v3156 = vpop.f32.mrf.mxu0
    %v3157 = vadd.f32 %v3028, %v3156
    %3158 = vmatmul.bf16.gmra.mxu0 %v1057
    %v3159 = vpop.f32.mrf.mxu0
    %v3160 = vadd.f32 %v3031, %v3159
    %v3161 = vpop.f32.mrf.mxu0
    %v3162 = vadd.f32 %v3033, %v3161
    %3163 = vmatmul.bf16.gmra.mxu0 %v1063
    %v3164 = vpop.f32.mrf.mxu0
    %v3165 = vadd.f32 %v3036, %v3164
    %v3166 = vpop.f32.mrf.mxu0
    %v3167 = vadd.f32 %v3038, %v3166
    %3168 = vmatmul.bf16.gmra.mxu0 %v1069
    %v3169 = vpop.f32.mrf.mxu0
    %v3170 = vadd.f32 %v3041, %v3169
    %v3171 = vpop.f32.mrf.mxu0
    %v3172 = vadd.f32 %v3043, %v3171
    %3173 = vmatmul.bf16.gmra.mxu0 %v1075
    %v3174 = vpop.f32.mrf.mxu0
    %v3175 = vadd.f32 %v3046, %v3174
    %v3176 = vpop.f32.mrf.mxu0
    %v3177 = vadd.f32 %v3048, %v3176
    %3178 = vmatmul.bf16.gmra.mxu0 %v1081
    %v3179 = vpop.f32.mrf.mxu0
    %v3180 = vadd.f32 %v3051, %v3179
    %v3181 = vpop.f32.mrf.mxu0
    %v3182 = vadd.f32 %v3053, %v3181
    %3183 = vdwg.mxu0
    %3184 = vmatpush.bf16.xpose.msra.mxu0 %v2138
    %3185 = vmatpush.bf16.xpose.msra.mxu0 %v2132
    %3186 = vmatpush.bf16.xpose.msra.mxu0 %v2126
    %3187 = vmatpush.bf16.xpose.msra.mxu0 %v2120
    %3188 = vmatpush.bf16.xpose.msra.mxu0 %v2114
    %3189 = vmatpush.bf16.xpose.msra.mxu0 %v2108
    %3190 = vmatpush.bf16.xpose.msra.mxu0 %v2102
    %3191 = vmatpush.bf16.xpose.msra.mxu0 %v2096
    %3192 = vmatmul.bf16.gmra.mxu0 %v944
    %v3193 = vpop.f32.mrf.mxu0
    %v3194 = vadd.f32 %v3065, %v3193
    %v3195 = vpop.f32.mrf.mxu0
    %v3196 = vadd.f32 %v3067, %v3195
    %3197 = vmatmul.bf16.gmra.mxu0 %v950
    %v3198 = vpop.f32.mrf.mxu0
    %v3199 = vadd.f32 %v3070, %v3198
    %v3200 = vpop.f32.mrf.mxu0
    %v3201 = vadd.f32 %v3072, %v3200
    %3202 = vmatmul.bf16.gmra.mxu0 %v956
    %v3203 = vpop.f32.mrf.mxu0
    %v3204 = vadd.f32 %v3075, %v3203
    %v3205 = vpop.f32.mrf.mxu0
    %v3206 = vadd.f32 %v3077, %v3205
    %3207 = vmatmul.bf16.gmra.mxu0 %v962
    %v3208 = vpop.f32.mrf.mxu0
    %v3209 = vadd.f32 %v3080, %v3208
    %v3210 = vpop.f32.mrf.mxu0
    %v3211 = vadd.f32 %v3082, %v3210
    %3212 = vmatmul.bf16.gmra.mxu0 %v968
    %v3213 = vpop.f32.mrf.mxu0
    %v3214 = vadd.f32 %v3085, %v3213
    %v3215 = vpop.f32.mrf.mxu0
    %v3216 = vadd.f32 %v3087, %v3215
    %3217 = vmatmul.bf16.gmra.mxu0 %v974
    %v3218 = vpop.f32.mrf.mxu0
    %v3219 = vadd.f32 %v3090, %v3218
    %v3220 = vpop.f32.mrf.mxu0
    %v3221 = vadd.f32 %v3092, %v3220
    %3222 = vmatmul.bf16.gmra.mxu0 %v980
    %v3223 = vpop.f32.mrf.mxu0
    %v3224 = vadd.f32 %v3095, %v3223
    %v3225 = vpop.f32.mrf.mxu0
    %v3226 = vadd.f32 %v3097, %v3225
    %3227 = vmatmul.bf16.gmra.mxu0 %v986
    %v3228 = vpop.f32.mrf.mxu0
    %v3229 = vadd.f32 %v3100, %v3228
    %v3230 = vpop.f32.mrf.mxu0
    %v3231 = vadd.f32 %v3102, %v3230
    %3232 = vmatmul.bf16.gmra.mxu0 %v992
    %v3233 = vpop.f32.mrf.mxu0
    %v3234 = vadd.f32 %v3105, %v3233
    %v3235 = vpop.f32.mrf.mxu0
    %v3236 = vadd.f32 %v3107, %v3235
    %3237 = vmatmul.bf16.gmra.mxu0 %v998
    %v3238 = vpop.f32.mrf.mxu0
    %v3239 = vadd.f32 %v3110, %v3238
    %v3240 = vpop.f32.mrf.mxu0
    %v3241 = vadd.f32 %v3112, %v3240
    %3242 = vmatmul.bf16.gmra.mxu0 %v1004
    %v3243 = vpop.f32.mrf.mxu0
    %v3244 = vadd.f32 %v3115, %v3243
    %v3245 = vpop.f32.mrf.mxu0
    %v3246 = vadd.f32 %v3117, %v3245
    %3247 = vmatmul.bf16.gmra.mxu0 %v1010
    %v3248 = vpop.f32.mrf.mxu0
    %v3249 = vadd.f32 %v3120, %v3248
    %v3250 = vpop.f32.mrf.mxu0
    %v3251 = vadd.f32 %v3122, %v3250
    %3252 = vmatmul.bf16.gmra.mxu0 %v1016
    %v3253 = vpop.f32.mrf.mxu0
    %v3254 = vadd.f32 %v3125, %v3253
    %v3255 = vpop.f32.mrf.mxu0
    %v3256 = vadd.f32 %v3127, %v3255
    %3257 = vmatmul.bf16.gmra.mxu0 %v1022
    %v3258 = vpop.f32.mrf.mxu0
    %v3259 = vadd.f32 %v3130, %v3258
    %v3260 = vpop.f32.mrf.mxu0
    %v3261 = vadd.f32 %v3132, %v3260
    %3262 = vmatmul.bf16.gmra.mxu0 %v1028
    %v3263 = vpop.f32.mrf.mxu0
    %v3264 = vadd.f32 %v3135, %v3263
    %v3265 = vpop.f32.mrf.mxu0
    %v3266 = vadd.f32 %v3137, %v3265
    %3267 = vmatmul.bf16.gmra.mxu0 %v1034
    %v3268 = vpop.f32.mrf.mxu0
    %v3269 = vadd.f32 %v3140, %v3268
    %v3270 = vpop.f32.mrf.mxu0
    %v3271 = vadd.f32 %v3142, %v3270
    %3272 = vmatmul.bf16.gmra.mxu0 %v1040
    %v3273 = vpop.f32.mrf.mxu0
    %v3274 = vadd.f32 %v3145, %v3273
    %v3275 = vpop.f32.mrf.mxu0
    %v3276 = vadd.f32 %v3147, %v3275
    %3277 = vmatmul.bf16.gmra.mxu0 %v1046
    %v3278 = vpop.f32.mrf.mxu0
    %v3279 = vadd.f32 %v3150, %v3278
    %v3280 = vpop.f32.mrf.mxu0
    %v3281 = vadd.f32 %v3152, %v3280
    %3282 = vmatmul.bf16.gmra.mxu0 %v1052
    %v3283 = vpop.f32.mrf.mxu0
    %v3284 = vadd.f32 %v3155, %v3283
    %v3285 = vpop.f32.mrf.mxu0
    %v3286 = vadd.f32 %v3157, %v3285
    %3287 = vmatmul.bf16.gmra.mxu0 %v1058
    %v3288 = vpop.f32.mrf.mxu0
    %v3289 = vadd.f32 %v3160, %v3288
    %v3290 = vpop.f32.mrf.mxu0
    %v3291 = vadd.f32 %v3162, %v3290
    %3292 = vmatmul.bf16.gmra.mxu0 %v1064
    %v3293 = vpop.f32.mrf.mxu0
    %v3294 = vadd.f32 %v3165, %v3293
    %v3295 = vpop.f32.mrf.mxu0
    %v3296 = vadd.f32 %v3167, %v3295
    %3297 = vmatmul.bf16.gmra.mxu0 %v1070
    %v3298 = vpop.f32.mrf.mxu0
    %v3299 = vadd.f32 %v3170, %v3298
    %v3300 = vpop.f32.mrf.mxu0
    %v3301 = vadd.f32 %v3172, %v3300
    %3302 = vmatmul.bf16.gmra.mxu0 %v1076
    %v3303 = vpop.f32.mrf.mxu0
    %v3304 = vadd.f32 %v3175, %v3303
    %v3305 = vpop.f32.mrf.mxu0
    %v3306 = vadd.f32 %v3177, %v3305
    %3307 = vmatmul.bf16.gmra.mxu0 %v1082
    %v3308 = vpop.f32.mrf.mxu0
    %v3309 = vadd.f32 %v3180, %v3308
    %v3310 = vpop.f32.mrf.mxu0
    %v3311 = vadd.f32 %v3182, %v3310
    %3312 = vdwg.mxu0
    %3313 = vmatpush.bf16.xpose.msra.mxu0 %v2139
    %3314 = vmatpush.bf16.xpose.msra.mxu0 %v2133
    %3315 = vmatpush.bf16.xpose.msra.mxu0 %v2127
    %3316 = vmatpush.bf16.xpose.msra.mxu0 %v2121
    %3317 = vmatpush.bf16.xpose.msra.mxu0 %v2115
    %3318 = vmatpush.bf16.xpose.msra.mxu0 %v2109
    %3319 = vmatpush.bf16.xpose.msra.mxu0 %v2103
    %3320 = vmatpush.bf16.xpose.msra.mxu0 %v2097
    %3321 = vmatmul.bf16.gmra.mxu0 %v945
    %v3322 = vpop.f32.mrf.mxu0
    %v3323 = vadd.f32 %v3194, %v3322
    %v3324 = vpop.f32.mrf.mxu0
    %v3325 = vadd.f32 %v3196, %v3324
    %3326 = vmatmul.bf16.gmra.mxu0 %v951
    %v3327 = vpop.f32.mrf.mxu0
    %v3328 = vadd.f32 %v3199, %v3327
    %v3329 = vpop.f32.mrf.mxu0
    %v3330 = vadd.f32 %v3201, %v3329
    %3331 = vmatmul.bf16.gmra.mxu0 %v957
    %v3332 = vpop.f32.mrf.mxu0
    %v3333 = vadd.f32 %v3204, %v3332
    %v3334 = vpop.f32.mrf.mxu0
    %v3335 = vadd.f32 %v3206, %v3334
    %3336 = vmatmul.bf16.gmra.mxu0 %v963
    %v3337 = vpop.f32.mrf.mxu0
    %v3338 = vadd.f32 %v3209, %v3337
    %v3339 = vpop.f32.mrf.mxu0
    %v3340 = vadd.f32 %v3211, %v3339
    %3341 = vmatmul.bf16.gmra.mxu0 %v969
    %v3342 = vpop.f32.mrf.mxu0
    %v3343 = vadd.f32 %v3214, %v3342
    %v3344 = vpop.f32.mrf.mxu0
    %v3345 = vadd.f32 %v3216, %v3344
    %3346 = vmatmul.bf16.gmra.mxu0 %v975
    %v3347 = vpop.f32.mrf.mxu0
    %v3348 = vadd.f32 %v3219, %v3347
    %v3349 = vpop.f32.mrf.mxu0
    %v3350 = vadd.f32 %v3221, %v3349
    %3351 = vmatmul.bf16.gmra.mxu0 %v981
    %v3352 = vpop.f32.mrf.mxu0
    %v3353 = vadd.f32 %v3224, %v3352
    %v3354 = vpop.f32.mrf.mxu0
    %v3355 = vadd.f32 %v3226, %v3354
    %3356 = vmatmul.bf16.gmra.mxu0 %v987
    %v3357 = vpop.f32.mrf.mxu0
    %v3358 = vadd.f32 %v3229, %v3357
    %v3359 = vpop.f32.mrf.mxu0
    %v3360 = vadd.f32 %v3231, %v3359
    %3361 = vmatmul.bf16.gmra.mxu0 %v993
    %v3362 = vpop.f32.mrf.mxu0
    %v3363 = vadd.f32 %v3234, %v3362
    %v3364 = vpop.f32.mrf.mxu0
    %v3365 = vadd.f32 %v3236, %v3364
    %3366 = vmatmul.bf16.gmra.mxu0 %v999
    %v3367 = vpop.f32.mrf.mxu0
    %v3368 = vadd.f32 %v3239, %v3367
    %v3369 = vpop.f32.mrf.mxu0
    %v3370 = vadd.f32 %v3241, %v3369
    %3371 = vmatmul.bf16.gmra.mxu0 %v1005
    %v3372 = vpop.f32.mrf.mxu0
    %v3373 = vadd.f32 %v3244, %v3372
    %v3374 = vpop.f32.mrf.mxu0
    %v3375 = vadd.f32 %v3246, %v3374
    %3376 = vmatmul.bf16.gmra.mxu0 %v1011
    %v3377 = vpop.f32.mrf.mxu0
    %v3378 = vadd.f32 %v3249, %v3377
    %v3379 = vpop.f32.mrf.mxu0
    %v3380 = vadd.f32 %v3251, %v3379
    %3381 = vmatmul.bf16.gmra.mxu0 %v1017
    %v3382 = vpop.f32.mrf.mxu0
    %v3383 = vadd.f32 %v3254, %v3382
    %v3384 = vpop.f32.mrf.mxu0
    %v3385 = vadd.f32 %v3256, %v3384
    %3386 = vmatmul.bf16.gmra.mxu0 %v1023
    %v3387 = vpop.f32.mrf.mxu0
    %v3388 = vadd.f32 %v3259, %v3387
    %v3389 = vpop.f32.mrf.mxu0
    %v3390 = vadd.f32 %v3261, %v3389
    %3391 = vmatmul.bf16.gmra.mxu0 %v1029
    %v3392 = vpop.f32.mrf.mxu0
    %v3393 = vadd.f32 %v3264, %v3392
    %v3394 = vpop.f32.mrf.mxu0
    %v3395 = vadd.f32 %v3266, %v3394
    %3396 = vmatmul.bf16.gmra.mxu0 %v1035
    %v3397 = vpop.f32.mrf.mxu0
    %v3398 = vadd.f32 %v3269, %v3397
    %v3399 = vpop.f32.mrf.mxu0
    %v3400 = vadd.f32 %v3271, %v3399
    %3401 = vmatmul.bf16.gmra.mxu0 %v1041
    %v3402 = vpop.f32.mrf.mxu0
    %v3403 = vadd.f32 %v3274, %v3402
    %v3404 = vpop.f32.mrf.mxu0
    %v3405 = vadd.f32 %v3276, %v3404
    %3406 = vmatmul.bf16.gmra.mxu0 %v1047
    %v3407 = vpop.f32.mrf.mxu0
    %v3408 = vadd.f32 %v3279, %v3407
    %v3409 = vpop.f32.mrf.mxu0
    %v3410 = vadd.f32 %v3281, %v3409
    %3411 = vmatmul.bf16.gmra.mxu0 %v1053
    %v3412 = vpop.f32.mrf.mxu0
    %v3413 = vadd.f32 %v3284, %v3412
    %v3414 = vpop.f32.mrf.mxu0
    %v3415 = vadd.f32 %v3286, %v3414
    %3416 = vmatmul.bf16.gmra.mxu0 %v1059
    %v3417 = vpop.f32.mrf.mxu0
    %v3418 = vadd.f32 %v3289, %v3417
    %v3419 = vpop.f32.mrf.mxu0
    %v3420 = vadd.f32 %v3291, %v3419
    %3421 = vmatmul.bf16.gmra.mxu0 %v1065
    %v3422 = vpop.f32.mrf.mxu0
    %v3423 = vadd.f32 %v3294, %v3422
    %v3424 = vpop.f32.mrf.mxu0
    %v3425 = vadd.f32 %v3296, %v3424
    %3426 = vmatmul.bf16.gmra.mxu0 %v1071
    %v3427 = vpop.f32.mrf.mxu0
    %v3428 = vadd.f32 %v3299, %v3427
    %v3429 = vpop.f32.mrf.mxu0
    %v3430 = vadd.f32 %v3301, %v3429
    %3431 = vmatmul.bf16.gmra.mxu0 %v1077
    %v3432 = vpop.f32.mrf.mxu0
    %v3433 = vadd.f32 %v3304, %v3432
    %v3434 = vpop.f32.mrf.mxu0
    %v3435 = vadd.f32 %v3306, %v3434
    %3436 = vmatmul.bf16.gmra.mxu0 %v1083
    %v3437 = vpop.f32.mrf.mxu0
    %v3438 = vadd.f32 %v3309, %v3437
    %v3439 = vpop.f32.mrf.mxu0
    %v3440 = vadd.f32 %v3311, %v3439
    %3441 = vdwg.mxu0
    %3442 = vmatpush.bf16.xpose.msra.mxu0 %v2182
    %3443 = vmatpush.bf16.xpose.msra.mxu0 %v2176
    %3444 = vmatpush.bf16.xpose.msra.mxu0 %v2170
    %3445 = vmatpush.bf16.xpose.msra.mxu0 %v2164
    %3446 = vmatpush.bf16.xpose.msra.mxu0 %v2158
    %3447 = vmatpush.bf16.xpose.msra.mxu0 %v2152
    %3448 = vmatpush.bf16.xpose.msra.mxu0 %v2146
    %3449 = vmatpush.bf16.xpose.msra.mxu0 %v2140
    %3450 = vmatmul.bf16.gmra.mxu0 %v940
    %v3451 = vpop.f32.mrf.mxu0
    %v3452 = vadd.f32 %v497, %v3451
    %v3453 = vpop.f32.mrf.mxu0
    %v3454 = vadd.f32 %v497, %v3453
    %3455 = vmatmul.bf16.gmra.mxu0 %v946
    %v3456 = vpop.f32.mrf.mxu0
    %v3457 = vadd.f32 %v497, %v3456
    %v3458 = vpop.f32.mrf.mxu0
    %v3459 = vadd.f32 %v497, %v3458
    %3460 = vmatmul.bf16.gmra.mxu0 %v952
    %v3461 = vpop.f32.mrf.mxu0
    %v3462 = vadd.f32 %v497, %v3461
    %v3463 = vpop.f32.mrf.mxu0
    %v3464 = vadd.f32 %v497, %v3463
    %3465 = vmatmul.bf16.gmra.mxu0 %v958
    %v3466 = vpop.f32.mrf.mxu0
    %v3467 = vadd.f32 %v497, %v3466
    %v3468 = vpop.f32.mrf.mxu0
    %v3469 = vadd.f32 %v497, %v3468
    %3470 = vmatmul.bf16.gmra.mxu0 %v964
    %v3471 = vpop.f32.mrf.mxu0
    %v3472 = vadd.f32 %v497, %v3471
    %v3473 = vpop.f32.mrf.mxu0
    %v3474 = vadd.f32 %v497, %v3473
    %3475 = vmatmul.bf16.gmra.mxu0 %v970
    %v3476 = vpop.f32.mrf.mxu0
    %v3477 = vadd.f32 %v497, %v3476
    %v3478 = vpop.f32.mrf.mxu0
    %v3479 = vadd.f32 %v497, %v3478
    %3480 = vmatmul.bf16.gmra.mxu0 %v976
    %v3481 = vpop.f32.mrf.mxu0
    %v3482 = vadd.f32 %v497, %v3481
    %v3483 = vpop.f32.mrf.mxu0
    %v3484 = vadd.f32 %v497, %v3483
    %3485 = vmatmul.bf16.gmra.mxu0 %v982
    %v3486 = vpop.f32.mrf.mxu0
    %v3487 = vadd.f32 %v497, %v3486
    %v3488 = vpop.f32.mrf.mxu0
    %v3489 = vadd.f32 %v497, %v3488
    %3490 = vmatmul.bf16.gmra.mxu0 %v988
    %v3491 = vpop.f32.mrf.mxu0
    %v3492 = vadd.f32 %v497, %v3491
    %v3493 = vpop.f32.mrf.mxu0
    %v3494 = vadd.f32 %v497, %v3493
    %3495 = vmatmul.bf16.gmra.mxu0 %v994
    %v3496 = vpop.f32.mrf.mxu0
    %v3497 = vadd.f32 %v497, %v3496
    %v3498 = vpop.f32.mrf.mxu0
    %v3499 = vadd.f32 %v497, %v3498
    %3500 = vmatmul.bf16.gmra.mxu0 %v1000
    %v3501 = vpop.f32.mrf.mxu0
    %v3502 = vadd.f32 %v497, %v3501
    %v3503 = vpop.f32.mrf.mxu0
    %v3504 = vadd.f32 %v497, %v3503
    %3505 = vmatmul.bf16.gmra.mxu0 %v1006
    %v3506 = vpop.f32.mrf.mxu0
    %v3507 = vadd.f32 %v497, %v3506
    %v3508 = vpop.f32.mrf.mxu0
    %v3509 = vadd.f32 %v497, %v3508
    %3510 = vmatmul.bf16.gmra.mxu0 %v1012
    %v3511 = vpop.f32.mrf.mxu0
    %v3512 = vadd.f32 %v497, %v3511
    %v3513 = vpop.f32.mrf.mxu0
    %v3514 = vadd.f32 %v497, %v3513
    %3515 = vmatmul.bf16.gmra.mxu0 %v1018
    %v3516 = vpop.f32.mrf.mxu0
    %v3517 = vadd.f32 %v497, %v3516
    %v3518 = vpop.f32.mrf.mxu0
    %v3519 = vadd.f32 %v497, %v3518
    %3520 = vmatmul.bf16.gmra.mxu0 %v1024
    %v3521 = vpop.f32.mrf.mxu0
    %v3522 = vadd.f32 %v497, %v3521
    %v3523 = vpop.f32.mrf.mxu0
    %v3524 = vadd.f32 %v497, %v3523
    %3525 = vmatmul.bf16.gmra.mxu0 %v1030
    %v3526 = vpop.f32.mrf.mxu0
    %v3527 = vadd.f32 %v497, %v3526
    %v3528 = vpop.f32.mrf.mxu0
    %v3529 = vadd.f32 %v497, %v3528
    %3530 = vmatmul.bf16.gmra.mxu0 %v1036
    %v3531 = vpop.f32.mrf.mxu0
    %v3532 = vadd.f32 %v497, %v3531
    %v3533 = vpop.f32.mrf.mxu0
    %v3534 = vadd.f32 %v497, %v3533
    %3535 = vmatmul.bf16.gmra.mxu0 %v1042
    %v3536 = vpop.f32.mrf.mxu0
    %v3537 = vadd.f32 %v497, %v3536
    %v3538 = vpop.f32.mrf.mxu0
    %v3539 = vadd.f32 %v497, %v3538
    %3540 = vmatmul.bf16.gmra.mxu0 %v1048
    %v3541 = vpop.f32.mrf.mxu0
    %v3542 = vadd.f32 %v497, %v3541
    %v3543 = vpop.f32.mrf.mxu0
    %v3544 = vadd.f32 %v497, %v3543
    %3545 = vmatmul.bf16.gmra.mxu0 %v1054
    %v3546 = vpop.f32.mrf.mxu0
    %v3547 = vadd.f32 %v497, %v3546
    %v3548 = vpop.f32.mrf.mxu0
    %v3549 = vadd.f32 %v497, %v3548
    %3550 = vmatmul.bf16.gmra.mxu0 %v1060
    %v3551 = vpop.f32.mrf.mxu0
    %v3552 = vadd.f32 %v497, %v3551
    %v3553 = vpop.f32.mrf.mxu0
    %v3554 = vadd.f32 %v497, %v3553
    %3555 = vmatmul.bf16.gmra.mxu0 %v1066
    %v3556 = vpop.f32.mrf.mxu0
    %v3557 = vadd.f32 %v497, %v3556
    %v3558 = vpop.f32.mrf.mxu0
    %v3559 = vadd.f32 %v497, %v3558
    %3560 = vmatmul.bf16.gmra.mxu0 %v1072
    %v3561 = vpop.f32.mrf.mxu0
    %v3562 = vadd.f32 %v497, %v3561
    %v3563 = vpop.f32.mrf.mxu0
    %v3564 = vadd.f32 %v497, %v3563
    %3565 = vmatmul.bf16.gmra.mxu0 %v1078
    %v3566 = vpop.f32.mrf.mxu0
    %v3567 = vadd.f32 %v497, %v3566
    %v3568 = vpop.f32.mrf.mxu0
    %v3569 = vadd.f32 %v497, %v3568
    %3570 = vdwg.mxu0
    %3571 = vmatpush.bf16.xpose.msra.mxu0 %v2183
    %3572 = vmatpush.bf16.xpose.msra.mxu0 %v2177
    %3573 = vmatpush.bf16.xpose.msra.mxu0 %v2171
    %3574 = vmatpush.bf16.xpose.msra.mxu0 %v2165
    %3575 = vmatpush.bf16.xpose.msra.mxu0 %v2159
    %3576 = vmatpush.bf16.xpose.msra.mxu0 %v2153
    %3577 = vmatpush.bf16.xpose.msra.mxu0 %v2147
    %3578 = vmatpush.bf16.xpose.msra.mxu0 %v2141
    %3579 = vmatmul.bf16.gmra.mxu0 %v941
    %v3580 = vpop.f32.mrf.mxu0
    %v3581 = vadd.f32 %v3452, %v3580
    %v3582 = vpop.f32.mrf.mxu0
    %v3583 = vadd.f32 %v3454, %v3582
    %3584 = vmatmul.bf16.gmra.mxu0 %v947
    %v3585 = vpop.f32.mrf.mxu0
    %v3586 = vadd.f32 %v3457, %v3585
    %v3587 = vpop.f32.mrf.mxu0
    %v3588 = vadd.f32 %v3459, %v3587
    %3589 = vmatmul.bf16.gmra.mxu0 %v953
    %v3590 = vpop.f32.mrf.mxu0
    %v3591 = vadd.f32 %v3462, %v3590
    %v3592 = vpop.f32.mrf.mxu0
    %v3593 = vadd.f32 %v3464, %v3592
    %3594 = vmatmul.bf16.gmra.mxu0 %v959
    %v3595 = vpop.f32.mrf.mxu0
    %v3596 = vadd.f32 %v3467, %v3595
    %v3597 = vpop.f32.mrf.mxu0
    %v3598 = vadd.f32 %v3469, %v3597
    %3599 = vmatmul.bf16.gmra.mxu0 %v965
    %v3600 = vpop.f32.mrf.mxu0
    %v3601 = vadd.f32 %v3472, %v3600
    %v3602 = vpop.f32.mrf.mxu0
    %v3603 = vadd.f32 %v3474, %v3602
    %3604 = vmatmul.bf16.gmra.mxu0 %v971
    %v3605 = vpop.f32.mrf.mxu0
    %v3606 = vadd.f32 %v3477, %v3605
    %v3607 = vpop.f32.mrf.mxu0
    %v3608 = vadd.f32 %v3479, %v3607
    %3609 = vmatmul.bf16.gmra.mxu0 %v977
    %v3610 = vpop.f32.mrf.mxu0
    %v3611 = vadd.f32 %v3482, %v3610
    %v3612 = vpop.f32.mrf.mxu0
    %v3613 = vadd.f32 %v3484, %v3612
    %3614 = vmatmul.bf16.gmra.mxu0 %v983
    %v3615 = vpop.f32.mrf.mxu0
    %v3616 = vadd.f32 %v3487, %v3615
    %v3617 = vpop.f32.mrf.mxu0
    %v3618 = vadd.f32 %v3489, %v3617
    %3619 = vmatmul.bf16.gmra.mxu0 %v989
    %v3620 = vpop.f32.mrf.mxu0
    %v3621 = vadd.f32 %v3492, %v3620
    %v3622 = vpop.f32.mrf.mxu0
    %v3623 = vadd.f32 %v3494, %v3622
    %3624 = vmatmul.bf16.gmra.mxu0 %v995
    %v3625 = vpop.f32.mrf.mxu0
    %v3626 = vadd.f32 %v3497, %v3625
    %v3627 = vpop.f32.mrf.mxu0
    %v3628 = vadd.f32 %v3499, %v3627
    %3629 = vmatmul.bf16.gmra.mxu0 %v1001
    %v3630 = vpop.f32.mrf.mxu0
    %v3631 = vadd.f32 %v3502, %v3630
    %v3632 = vpop.f32.mrf.mxu0
    %v3633 = vadd.f32 %v3504, %v3632
    %3634 = vmatmul.bf16.gmra.mxu0 %v1007
    %v3635 = vpop.f32.mrf.mxu0
    %v3636 = vadd.f32 %v3507, %v3635
    %v3637 = vpop.f32.mrf.mxu0
    %v3638 = vadd.f32 %v3509, %v3637
    %3639 = vmatmul.bf16.gmra.mxu0 %v1013
    %v3640 = vpop.f32.mrf.mxu0
    %v3641 = vadd.f32 %v3512, %v3640
    %v3642 = vpop.f32.mrf.mxu0
    %v3643 = vadd.f32 %v3514, %v3642
    %3644 = vmatmul.bf16.gmra.mxu0 %v1019
    %v3645 = vpop.f32.mrf.mxu0
    %v3646 = vadd.f32 %v3517, %v3645
    %v3647 = vpop.f32.mrf.mxu0
    %v3648 = vadd.f32 %v3519, %v3647
    %3649 = vmatmul.bf16.gmra.mxu0 %v1025
    %v3650 = vpop.f32.mrf.mxu0
    %v3651 = vadd.f32 %v3522, %v3650
    %v3652 = vpop.f32.mrf.mxu0
    %v3653 = vadd.f32 %v3524, %v3652
    %3654 = vmatmul.bf16.gmra.mxu0 %v1031
    %v3655 = vpop.f32.mrf.mxu0
    %v3656 = vadd.f32 %v3527, %v3655
    %v3657 = vpop.f32.mrf.mxu0
    %v3658 = vadd.f32 %v3529, %v3657
    %3659 = vmatmul.bf16.gmra.mxu0 %v1037
    %v3660 = vpop.f32.mrf.mxu0
    %v3661 = vadd.f32 %v3532, %v3660
    %v3662 = vpop.f32.mrf.mxu0
    %v3663 = vadd.f32 %v3534, %v3662
    %3664 = vmatmul.bf16.gmra.mxu0 %v1043
    %v3665 = vpop.f32.mrf.mxu0
    %v3666 = vadd.f32 %v3537, %v3665
    %v3667 = vpop.f32.mrf.mxu0
    %v3668 = vadd.f32 %v3539, %v3667
    %3669 = vmatmul.bf16.gmra.mxu0 %v1049
    %v3670 = vpop.f32.mrf.mxu0
    %v3671 = vadd.f32 %v3542, %v3670
    %v3672 = vpop.f32.mrf.mxu0
    %v3673 = vadd.f32 %v3544, %v3672
    %3674 = vmatmul.bf16.gmra.mxu0 %v1055
    %v3675 = vpop.f32.mrf.mxu0
    %v3676 = vadd.f32 %v3547, %v3675
    %v3677 = vpop.f32.mrf.mxu0
    %v3678 = vadd.f32 %v3549, %v3677
    %3679 = vmatmul.bf16.gmra.mxu0 %v1061
    %v3680 = vpop.f32.mrf.mxu0
    %v3681 = vadd.f32 %v3552, %v3680
    %v3682 = vpop.f32.mrf.mxu0
    %v3683 = vadd.f32 %v3554, %v3682
    %3684 = vmatmul.bf16.gmra.mxu0 %v1067
    %v3685 = vpop.f32.mrf.mxu0
    %v3686 = vadd.f32 %v3557, %v3685
    %v3687 = vpop.f32.mrf.mxu0
    %v3688 = vadd.f32 %v3559, %v3687
    %3689 = vmatmul.bf16.gmra.mxu0 %v1073
    %v3690 = vpop.f32.mrf.mxu0
    %v3691 = vadd.f32 %v3562, %v3690
    %v3692 = vpop.f32.mrf.mxu0
    %v3693 = vadd.f32 %v3564, %v3692
    %3694 = vmatmul.bf16.gmra.mxu0 %v1079
    %v3695 = vpop.f32.mrf.mxu0
    %v3696 = vadd.f32 %v3567, %v3695
    %v3697 = vpop.f32.mrf.mxu0
    %v3698 = vadd.f32 %v3569, %v3697
    %3699 = vdwg.mxu0
    %3700 = vmatpush.bf16.xpose.msra.mxu0 %v2184
    %3701 = vmatpush.bf16.xpose.msra.mxu0 %v2178
    %3702 = vmatpush.bf16.xpose.msra.mxu0 %v2172
    %3703 = vmatpush.bf16.xpose.msra.mxu0 %v2166
    %3704 = vmatpush.bf16.xpose.msra.mxu0 %v2160
    %3705 = vmatpush.bf16.xpose.msra.mxu0 %v2154
    %3706 = vmatpush.bf16.xpose.msra.mxu0 %v2148
    %3707 = vmatpush.bf16.xpose.msra.mxu0 %v2142
    %3708 = vmatmul.bf16.gmra.mxu0 %v942
    %v3709 = vpop.f32.mrf.mxu0
    %v3710 = vadd.f32 %v3581, %v3709
    %v3711 = vpop.f32.mrf.mxu0
    %v3712 = vadd.f32 %v3583, %v3711
    %3713 = vmatmul.bf16.gmra.mxu0 %v948
    %v3714 = vpop.f32.mrf.mxu0
    %v3715 = vadd.f32 %v3586, %v3714
    %v3716 = vpop.f32.mrf.mxu0
    %v3717 = vadd.f32 %v3588, %v3716
    %3718 = vmatmul.bf16.gmra.mxu0 %v954
    %v3719 = vpop.f32.mrf.mxu0
    %v3720 = vadd.f32 %v3591, %v3719
    %v3721 = vpop.f32.mrf.mxu0
    %v3722 = vadd.f32 %v3593, %v3721
    %3723 = vmatmul.bf16.gmra.mxu0 %v960
    %v3724 = vpop.f32.mrf.mxu0
    %v3725 = vadd.f32 %v3596, %v3724
    %v3726 = vpop.f32.mrf.mxu0
    %v3727 = vadd.f32 %v3598, %v3726
    %3728 = vmatmul.bf16.gmra.mxu0 %v966
    %v3729 = vpop.f32.mrf.mxu0
    %v3730 = vadd.f32 %v3601, %v3729
    %v3731 = vpop.f32.mrf.mxu0
    %v3732 = vadd.f32 %v3603, %v3731
    %3733 = vmatmul.bf16.gmra.mxu0 %v972
    %v3734 = vpop.f32.mrf.mxu0
    %v3735 = vadd.f32 %v3606, %v3734
    %v3736 = vpop.f32.mrf.mxu0
    %v3737 = vadd.f32 %v3608, %v3736
    %3738 = vmatmul.bf16.gmra.mxu0 %v978
    %v3739 = vpop.f32.mrf.mxu0
    %v3740 = vadd.f32 %v3611, %v3739
    %v3741 = vpop.f32.mrf.mxu0
    %v3742 = vadd.f32 %v3613, %v3741
    %3743 = vmatmul.bf16.gmra.mxu0 %v984
    %v3744 = vpop.f32.mrf.mxu0
    %v3745 = vadd.f32 %v3616, %v3744
    %v3746 = vpop.f32.mrf.mxu0
    %v3747 = vadd.f32 %v3618, %v3746
    %3748 = vmatmul.bf16.gmra.mxu0 %v990
    %v3749 = vpop.f32.mrf.mxu0
    %v3750 = vadd.f32 %v3621, %v3749
    %v3751 = vpop.f32.mrf.mxu0
    %v3752 = vadd.f32 %v3623, %v3751
    %3753 = vmatmul.bf16.gmra.mxu0 %v996
    %v3754 = vpop.f32.mrf.mxu0
    %v3755 = vadd.f32 %v3626, %v3754
    %v3756 = vpop.f32.mrf.mxu0
    %v3757 = vadd.f32 %v3628, %v3756
    %3758 = vmatmul.bf16.gmra.mxu0 %v1002
    %v3759 = vpop.f32.mrf.mxu0
    %v3760 = vadd.f32 %v3631, %v3759
    %v3761 = vpop.f32.mrf.mxu0
    %v3762 = vadd.f32 %v3633, %v3761
    %3763 = vmatmul.bf16.gmra.mxu0 %v1008
    %v3764 = vpop.f32.mrf.mxu0
    %v3765 = vadd.f32 %v3636, %v3764
    %v3766 = vpop.f32.mrf.mxu0
    %v3767 = vadd.f32 %v3638, %v3766
    %3768 = vmatmul.bf16.gmra.mxu0 %v1014
    %v3769 = vpop.f32.mrf.mxu0
    %v3770 = vadd.f32 %v3641, %v3769
    %v3771 = vpop.f32.mrf.mxu0
    %v3772 = vadd.f32 %v3643, %v3771
    %3773 = vmatmul.bf16.gmra.mxu0 %v1020
    %v3774 = vpop.f32.mrf.mxu0
    %v3775 = vadd.f32 %v3646, %v3774
    %v3776 = vpop.f32.mrf.mxu0
    %v3777 = vadd.f32 %v3648, %v3776
    %3778 = vmatmul.bf16.gmra.mxu0 %v1026
    %v3779 = vpop.f32.mrf.mxu0
    %v3780 = vadd.f32 %v3651, %v3779
    %v3781 = vpop.f32.mrf.mxu0
    %v3782 = vadd.f32 %v3653, %v3781
    %3783 = vmatmul.bf16.gmra.mxu0 %v1032
    %v3784 = vpop.f32.mrf.mxu0
    %v3785 = vadd.f32 %v3656, %v3784
    %v3786 = vpop.f32.mrf.mxu0
    %v3787 = vadd.f32 %v3658, %v3786
    %3788 = vmatmul.bf16.gmra.mxu0 %v1038
    %v3789 = vpop.f32.mrf.mxu0
    %v3790 = vadd.f32 %v3661, %v3789
    %v3791 = vpop.f32.mrf.mxu0
    %v3792 = vadd.f32 %v3663, %v3791
    %3793 = vmatmul.bf16.gmra.mxu0 %v1044
    %v3794 = vpop.f32.mrf.mxu0
    %v3795 = vadd.f32 %v3666, %v3794
    %v3796 = vpop.f32.mrf.mxu0
    %v3797 = vadd.f32 %v3668, %v3796
    %3798 = vmatmul.bf16.gmra.mxu0 %v1050
    %v3799 = vpop.f32.mrf.mxu0
    %v3800 = vadd.f32 %v3671, %v3799
    %v3801 = vpop.f32.mrf.mxu0
    %v3802 = vadd.f32 %v3673, %v3801
    %3803 = vmatmul.bf16.gmra.mxu0 %v1056
    %v3804 = vpop.f32.mrf.mxu0
    %v3805 = vadd.f32 %v3676, %v3804
    %v3806 = vpop.f32.mrf.mxu0
    %v3807 = vadd.f32 %v3678, %v3806
    %3808 = vmatmul.bf16.gmra.mxu0 %v1062
    %v3809 = vpop.f32.mrf.mxu0
    %v3810 = vadd.f32 %v3681, %v3809
    %v3811 = vpop.f32.mrf.mxu0
    %v3812 = vadd.f32 %v3683, %v3811
    %3813 = vmatmul.bf16.gmra.mxu0 %v1068
    %v3814 = vpop.f32.mrf.mxu0
    %v3815 = vadd.f32 %v3686, %v3814
    %v3816 = vpop.f32.mrf.mxu0
    %v3817 = vadd.f32 %v3688, %v3816
    %3818 = vmatmul.bf16.gmra.mxu0 %v1074
    %v3819 = vpop.f32.mrf.mxu0
    %v3820 = vadd.f32 %v3691, %v3819
    %v3821 = vpop.f32.mrf.mxu0
    %v3822 = vadd.f32 %v3693, %v3821
    %3823 = vmatmul.bf16.gmra.mxu0 %v1080
    %v3824 = vpop.f32.mrf.mxu0
    %v3825 = vadd.f32 %v3696, %v3824
    %v3826 = vpop.f32.mrf.mxu0
    %v3827 = vadd.f32 %v3698, %v3826
    %3828 = vdwg.mxu0
    %3829 = vmatpush.bf16.xpose.msra.mxu0 %v2185
    %3830 = vmatpush.bf16.xpose.msra.mxu0 %v2179
    %3831 = vmatpush.bf16.xpose.msra.mxu0 %v2173
    %3832 = vmatpush.bf16.xpose.msra.mxu0 %v2167
    %3833 = vmatpush.bf16.xpose.msra.mxu0 %v2161
    %3834 = vmatpush.bf16.xpose.msra.mxu0 %v2155
    %3835 = vmatpush.bf16.xpose.msra.mxu0 %v2149
    %3836 = vmatpush.bf16.xpose.msra.mxu0 %v2143
    %3837 = vmatmul.bf16.gmra.mxu0 %v943
    %v3838 = vpop.f32.mrf.mxu0
    %v3839 = vadd.f32 %v3710, %v3838
    %v3840 = vpop.f32.mrf.mxu0
    %v3841 = vadd.f32 %v3712, %v3840
    %3842 = vmatmul.bf16.gmra.mxu0 %v949
    %v3843 = vpop.f32.mrf.mxu0
    %v3844 = vadd.f32 %v3715, %v3843
    %v3845 = vpop.f32.mrf.mxu0
    %v3846 = vadd.f32 %v3717, %v3845
    %3847 = vmatmul.bf16.gmra.mxu0 %v955
    %v3848 = vpop.f32.mrf.mxu0
    %v3849 = vadd.f32 %v3720, %v3848
    %v3850 = vpop.f32.mrf.mxu0
    %v3851 = vadd.f32 %v3722, %v3850
    %3852 = vmatmul.bf16.gmra.mxu0 %v961
    %v3853 = vpop.f32.mrf.mxu0
    %v3854 = vadd.f32 %v3725, %v3853
    %v3855 = vpop.f32.mrf.mxu0
    %v3856 = vadd.f32 %v3727, %v3855
    %3857 = vmatmul.bf16.gmra.mxu0 %v967
    %v3858 = vpop.f32.mrf.mxu0
    %v3859 = vadd.f32 %v3730, %v3858
    %v3860 = vpop.f32.mrf.mxu0
    %v3861 = vadd.f32 %v3732, %v3860
    %3862 = vmatmul.bf16.gmra.mxu0 %v973
    %v3863 = vpop.f32.mrf.mxu0
    %v3864 = vadd.f32 %v3735, %v3863
    %v3865 = vpop.f32.mrf.mxu0
    %v3866 = vadd.f32 %v3737, %v3865
    %3867 = vmatmul.bf16.gmra.mxu0 %v979
    %v3868 = vpop.f32.mrf.mxu0
    %v3869 = vadd.f32 %v3740, %v3868
    %v3870 = vpop.f32.mrf.mxu0
    %v3871 = vadd.f32 %v3742, %v3870
    %3872 = vmatmul.bf16.gmra.mxu0 %v985
    %v3873 = vpop.f32.mrf.mxu0
    %v3874 = vadd.f32 %v3745, %v3873
    %v3875 = vpop.f32.mrf.mxu0
    %v3876 = vadd.f32 %v3747, %v3875
    %3877 = vmatmul.bf16.gmra.mxu0 %v991
    %v3878 = vpop.f32.mrf.mxu0
    %v3879 = vadd.f32 %v3750, %v3878
    %v3880 = vpop.f32.mrf.mxu0
    %v3881 = vadd.f32 %v3752, %v3880
    %3882 = vmatmul.bf16.gmra.mxu0 %v997
    %v3883 = vpop.f32.mrf.mxu0
    %v3884 = vadd.f32 %v3755, %v3883
    %v3885 = vpop.f32.mrf.mxu0
    %v3886 = vadd.f32 %v3757, %v3885
    %3887 = vmatmul.bf16.gmra.mxu0 %v1003
    %v3888 = vpop.f32.mrf.mxu0
    %v3889 = vadd.f32 %v3760, %v3888
    %v3890 = vpop.f32.mrf.mxu0
    %v3891 = vadd.f32 %v3762, %v3890
    %3892 = vmatmul.bf16.gmra.mxu0 %v1009
    %v3893 = vpop.f32.mrf.mxu0
    %v3894 = vadd.f32 %v3765, %v3893
    %v3895 = vpop.f32.mrf.mxu0
    %v3896 = vadd.f32 %v3767, %v3895
    %3897 = vmatmul.bf16.gmra.mxu0 %v1015
    %v3898 = vpop.f32.mrf.mxu0
    %v3899 = vadd.f32 %v3770, %v3898
    %v3900 = vpop.f32.mrf.mxu0
    %v3901 = vadd.f32 %v3772, %v3900
    %3902 = vmatmul.bf16.gmra.mxu0 %v1021
    %v3903 = vpop.f32.mrf.mxu0
    %v3904 = vadd.f32 %v3775, %v3903
    %v3905 = vpop.f32.mrf.mxu0
    %v3906 = vadd.f32 %v3777, %v3905
    %3907 = vmatmul.bf16.gmra.mxu0 %v1027
    %v3908 = vpop.f32.mrf.mxu0
    %v3909 = vadd.f32 %v3780, %v3908
    %v3910 = vpop.f32.mrf.mxu0
    %v3911 = vadd.f32 %v3782, %v3910
    %3912 = vmatmul.bf16.gmra.mxu0 %v1033
    %v3913 = vpop.f32.mrf.mxu0
    %v3914 = vadd.f32 %v3785, %v3913
    %v3915 = vpop.f32.mrf.mxu0
    %v3916 = vadd.f32 %v3787, %v3915
    %3917 = vmatmul.bf16.gmra.mxu0 %v1039
    %v3918 = vpop.f32.mrf.mxu0
    %v3919 = vadd.f32 %v3790, %v3918
    %v3920 = vpop.f32.mrf.mxu0
    %v3921 = vadd.f32 %v3792, %v3920
    %3922 = vmatmul.bf16.gmra.mxu0 %v1045
    %v3923 = vpop.f32.mrf.mxu0
    %v3924 = vadd.f32 %v3795, %v3923
    %v3925 = vpop.f32.mrf.mxu0
    %v3926 = vadd.f32 %v3797, %v3925
    %3927 = vmatmul.bf16.gmra.mxu0 %v1051
    %v3928 = vpop.f32.mrf.mxu0
    %v3929 = vadd.f32 %v3800, %v3928
    %v3930 = vpop.f32.mrf.mxu0
    %v3931 = vadd.f32 %v3802, %v3930
    %3932 = vmatmul.bf16.gmra.mxu0 %v1057
    %v3933 = vpop.f32.mrf.mxu0
    %v3934 = vadd.f32 %v3805, %v3933
    %v3935 = vpop.f32.mrf.mxu0
    %v3936 = vadd.f32 %v3807, %v3935
    %3937 = vmatmul.bf16.gmra.mxu0 %v1063
    %v3938 = vpop.f32.mrf.mxu0
    %v3939 = vadd.f32 %v3810, %v3938
    %v3940 = vpop.f32.mrf.mxu0
    %v3941 = vadd.f32 %v3812, %v3940
    %3942 = vmatmul.bf16.gmra.mxu0 %v1069
    %v3943 = vpop.f32.mrf.mxu0
    %v3944 = vadd.f32 %v3815, %v3943
    %v3945 = vpop.f32.mrf.mxu0
    %v3946 = vadd.f32 %v3817, %v3945
    %3947 = vmatmul.bf16.gmra.mxu0 %v1075
    %v3948 = vpop.f32.mrf.mxu0
    %v3949 = vadd.f32 %v3820, %v3948
    %v3950 = vpop.f32.mrf.mxu0
    %v3951 = vadd.f32 %v3822, %v3950
    %3952 = vmatmul.bf16.gmra.mxu0 %v1081
    %v3953 = vpop.f32.mrf.mxu0
    %v3954 = vadd.f32 %v3825, %v3953
    %v3955 = vpop.f32.mrf.mxu0
    %v3956 = vadd.f32 %v3827, %v3955
    %3957 = vdwg.mxu0
    %3958 = vmatpush.bf16.xpose.msra.mxu0 %v2186
    %3959 = vmatpush.bf16.xpose.msra.mxu0 %v2180
    %3960 = vmatpush.bf16.xpose.msra.mxu0 %v2174
    %3961 = vmatpush.bf16.xpose.msra.mxu0 %v2168
    %3962 = vmatpush.bf16.xpose.msra.mxu0 %v2162
    %3963 = vmatpush.bf16.xpose.msra.mxu0 %v2156
    %3964 = vmatpush.bf16.xpose.msra.mxu0 %v2150
    %3965 = vmatpush.bf16.xpose.msra.mxu0 %v2144
    %3966 = vmatmul.bf16.gmra.mxu0 %v944
    %v3967 = vpop.f32.mrf.mxu0
    %v3968 = vadd.f32 %v3839, %v3967
    %v3969 = vpop.f32.mrf.mxu0
    %v3970 = vadd.f32 %v3841, %v3969
    %3971 = vmatmul.bf16.gmra.mxu0 %v950
    %v3972 = vpop.f32.mrf.mxu0
    %v3973 = vadd.f32 %v3844, %v3972
    %v3974 = vpop.f32.mrf.mxu0
    %v3975 = vadd.f32 %v3846, %v3974
    %3976 = vmatmul.bf16.gmra.mxu0 %v956
    %v3977 = vpop.f32.mrf.mxu0
    %v3978 = vadd.f32 %v3849, %v3977
    %v3979 = vpop.f32.mrf.mxu0
    %v3980 = vadd.f32 %v3851, %v3979
    %3981 = vmatmul.bf16.gmra.mxu0 %v962
    %v3982 = vpop.f32.mrf.mxu0
    %v3983 = vadd.f32 %v3854, %v3982
    %v3984 = vpop.f32.mrf.mxu0
    %v3985 = vadd.f32 %v3856, %v3984
    %3986 = vmatmul.bf16.gmra.mxu0 %v968
    %v3987 = vpop.f32.mrf.mxu0
    %v3988 = vadd.f32 %v3859, %v3987
    %v3989 = vpop.f32.mrf.mxu0
    %v3990 = vadd.f32 %v3861, %v3989
    %3991 = vmatmul.bf16.gmra.mxu0 %v974
    %v3992 = vpop.f32.mrf.mxu0
    %v3993 = vadd.f32 %v3864, %v3992
    %v3994 = vpop.f32.mrf.mxu0
    %v3995 = vadd.f32 %v3866, %v3994
    %3996 = vmatmul.bf16.gmra.mxu0 %v980
    %v3997 = vpop.f32.mrf.mxu0
    %v3998 = vadd.f32 %v3869, %v3997
    %v3999 = vpop.f32.mrf.mxu0
    %v4000 = vadd.f32 %v3871, %v3999
    %4001 = vmatmul.bf16.gmra.mxu0 %v986
    %v4002 = vpop.f32.mrf.mxu0
    %v4003 = vadd.f32 %v3874, %v4002
    %v4004 = vpop.f32.mrf.mxu0
    %v4005 = vadd.f32 %v3876, %v4004
    %4006 = vmatmul.bf16.gmra.mxu0 %v992
    %v4007 = vpop.f32.mrf.mxu0
    %v4008 = vadd.f32 %v3879, %v4007
    %v4009 = vpop.f32.mrf.mxu0
    %v4010 = vadd.f32 %v3881, %v4009
    %4011 = vmatmul.bf16.gmra.mxu0 %v998
    %v4012 = vpop.f32.mrf.mxu0
    %v4013 = vadd.f32 %v3884, %v4012
    %v4014 = vpop.f32.mrf.mxu0
    %v4015 = vadd.f32 %v3886, %v4014
    %4016 = vmatmul.bf16.gmra.mxu0 %v1004
    %v4017 = vpop.f32.mrf.mxu0
    %v4018 = vadd.f32 %v3889, %v4017
    %v4019 = vpop.f32.mrf.mxu0
    %v4020 = vadd.f32 %v3891, %v4019
    %4021 = vmatmul.bf16.gmra.mxu0 %v1010
    %v4022 = vpop.f32.mrf.mxu0
    %v4023 = vadd.f32 %v3894, %v4022
    %v4024 = vpop.f32.mrf.mxu0
    %v4025 = vadd.f32 %v3896, %v4024
    %4026 = vmatmul.bf16.gmra.mxu0 %v1016
    %v4027 = vpop.f32.mrf.mxu0
    %v4028 = vadd.f32 %v3899, %v4027
    %v4029 = vpop.f32.mrf.mxu0
    %v4030 = vadd.f32 %v3901, %v4029
    %4031 = vmatmul.bf16.gmra.mxu0 %v1022
    %v4032 = vpop.f32.mrf.mxu0
    %v4033 = vadd.f32 %v3904, %v4032
    %v4034 = vpop.f32.mrf.mxu0
    %v4035 = vadd.f32 %v3906, %v4034
    %4036 = vmatmul.bf16.gmra.mxu0 %v1028
    %v4037 = vpop.f32.mrf.mxu0
    %v4038 = vadd.f32 %v3909, %v4037
    %v4039 = vpop.f32.mrf.mxu0
    %v4040 = vadd.f32 %v3911, %v4039
    %4041 = vmatmul.bf16.gmra.mxu0 %v1034
    %v4042 = vpop.f32.mrf.mxu0
    %v4043 = vadd.f32 %v3914, %v4042
    %v4044 = vpop.f32.mrf.mxu0
    %v4045 = vadd.f32 %v3916, %v4044
    %4046 = vmatmul.bf16.gmra.mxu0 %v1040
    %v4047 = vpop.f32.mrf.mxu0
    %v4048 = vadd.f32 %v3919, %v4047
    %v4049 = vpop.f32.mrf.mxu0
    %v4050 = vadd.f32 %v3921, %v4049
    %4051 = vmatmul.bf16.gmra.mxu0 %v1046
    %v4052 = vpop.f32.mrf.mxu0
    %v4053 = vadd.f32 %v3924, %v4052
    %v4054 = vpop.f32.mrf.mxu0
    %v4055 = vadd.f32 %v3926, %v4054
    %4056 = vmatmul.bf16.gmra.mxu0 %v1052
    %v4057 = vpop.f32.mrf.mxu0
    %v4058 = vadd.f32 %v3929, %v4057
    %v4059 = vpop.f32.mrf.mxu0
    %v4060 = vadd.f32 %v3931, %v4059
    %4061 = vmatmul.bf16.gmra.mxu0 %v1058
    %v4062 = vpop.f32.mrf.mxu0
    %v4063 = vadd.f32 %v3934, %v4062
    %v4064 = vpop.f32.mrf.mxu0
    %v4065 = vadd.f32 %v3936, %v4064
    %4066 = vmatmul.bf16.gmra.mxu0 %v1064
    %v4067 = vpop.f32.mrf.mxu0
    %v4068 = vadd.f32 %v3939, %v4067
    %v4069 = vpop.f32.mrf.mxu0
    %v4070 = vadd.f32 %v3941, %v4069
    %4071 = vmatmul.bf16.gmra.mxu0 %v1070
    %v4072 = vpop.f32.mrf.mxu0
    %v4073 = vadd.f32 %v3944, %v4072
    %v4074 = vpop.f32.mrf.mxu0
    %v4075 = vadd.f32 %v3946, %v4074
    %4076 = vmatmul.bf16.gmra.mxu0 %v1076
    %v4077 = vpop.f32.mrf.mxu0
    %v4078 = vadd.f32 %v3949, %v4077
    %v4079 = vpop.f32.mrf.mxu0
    %v4080 = vadd.f32 %v3951, %v4079
    %4081 = vmatmul.bf16.gmra.mxu0 %v1082
    %v4082 = vpop.f32.mrf.mxu0
    %v4083 = vadd.f32 %v3954, %v4082
    %v4084 = vpop.f32.mrf.mxu0
    %v4085 = vadd.f32 %v3956, %v4084
    %4086 = vdwg.mxu0
    %4087 = vmatpush.bf16.xpose.msra.mxu0 %v2187
    %4088 = vmatpush.bf16.xpose.msra.mxu0 %v2181
    %4089 = vmatpush.bf16.xpose.msra.mxu0 %v2175
    %4090 = vmatpush.bf16.xpose.msra.mxu0 %v2169
    %4091 = vmatpush.bf16.xpose.msra.mxu0 %v2163
    %4092 = vmatpush.bf16.xpose.msra.mxu0 %v2157
    %4093 = vmatpush.bf16.xpose.msra.mxu0 %v2151
    %4094 = vmatpush.bf16.xpose.msra.mxu0 %v2145
    %4095 = vmatmul.bf16.gmra.mxu0 %v945
    %v4096 = vpop.f32.mrf.mxu0
    %v4097 = vadd.f32 %v3968, %v4096
    %v4098 = vpop.f32.mrf.mxu0
    %v4099 = vadd.f32 %v3970, %v4098
    %4100 = vmatmul.bf16.gmra.mxu0 %v951
    %v4101 = vpop.f32.mrf.mxu0
    %v4102 = vadd.f32 %v3973, %v4101
    %v4103 = vpop.f32.mrf.mxu0
    %v4104 = vadd.f32 %v3975, %v4103
    %4105 = vmatmul.bf16.gmra.mxu0 %v957
    %v4106 = vpop.f32.mrf.mxu0
    %v4107 = vadd.f32 %v3978, %v4106
    %v4108 = vpop.f32.mrf.mxu0
    %v4109 = vadd.f32 %v3980, %v4108
    %4110 = vmatmul.bf16.gmra.mxu0 %v963
    %v4111 = vpop.f32.mrf.mxu0
    %v4112 = vadd.f32 %v3983, %v4111
    %v4113 = vpop.f32.mrf.mxu0
    %v4114 = vadd.f32 %v3985, %v4113
    %4115 = vmatmul.bf16.gmra.mxu0 %v969
    %v4116 = vpop.f32.mrf.mxu0
    %v4117 = vadd.f32 %v3988, %v4116
    %v4118 = vpop.f32.mrf.mxu0
    %v4119 = vadd.f32 %v3990, %v4118
    %4120 = vmatmul.bf16.gmra.mxu0 %v975
    %v4121 = vpop.f32.mrf.mxu0
    %v4122 = vadd.f32 %v3993, %v4121
    %v4123 = vpop.f32.mrf.mxu0
    %v4124 = vadd.f32 %v3995, %v4123
    %4125 = vmatmul.bf16.gmra.mxu0 %v981
    %v4126 = vpop.f32.mrf.mxu0
    %v4127 = vadd.f32 %v3998, %v4126
    %v4128 = vpop.f32.mrf.mxu0
    %v4129 = vadd.f32 %v4000, %v4128
    %4130 = vmatmul.bf16.gmra.mxu0 %v987
    %v4131 = vpop.f32.mrf.mxu0
    %v4132 = vadd.f32 %v4003, %v4131
    %v4133 = vpop.f32.mrf.mxu0
    %v4134 = vadd.f32 %v4005, %v4133
    %4135 = vmatmul.bf16.gmra.mxu0 %v993
    %v4136 = vpop.f32.mrf.mxu0
    %v4137 = vadd.f32 %v4008, %v4136
    %v4138 = vpop.f32.mrf.mxu0
    %v4139 = vadd.f32 %v4010, %v4138
    %4140 = vmatmul.bf16.gmra.mxu0 %v999
    %v4141 = vpop.f32.mrf.mxu0
    %v4142 = vadd.f32 %v4013, %v4141
    %v4143 = vpop.f32.mrf.mxu0
    %v4144 = vadd.f32 %v4015, %v4143
    %4145 = vmatmul.bf16.gmra.mxu0 %v1005
    %v4146 = vpop.f32.mrf.mxu0
    %v4147 = vadd.f32 %v4018, %v4146
    %v4148 = vpop.f32.mrf.mxu0
    %v4149 = vadd.f32 %v4020, %v4148
    %4150 = vmatmul.bf16.gmra.mxu0 %v1011
    %v4151 = vpop.f32.mrf.mxu0
    %v4152 = vadd.f32 %v4023, %v4151
    %v4153 = vpop.f32.mrf.mxu0
    %v4154 = vadd.f32 %v4025, %v4153
    %4155 = vmatmul.bf16.gmra.mxu0 %v1017
    %v4156 = vpop.f32.mrf.mxu0
    %v4157 = vadd.f32 %v4028, %v4156
    %v4158 = vpop.f32.mrf.mxu0
    %v4159 = vadd.f32 %v4030, %v4158
    %4160 = vmatmul.bf16.gmra.mxu0 %v1023
    %v4161 = vpop.f32.mrf.mxu0
    %v4162 = vadd.f32 %v4033, %v4161
    %v4163 = vpop.f32.mrf.mxu0
    %v4164 = vadd.f32 %v4035, %v4163
    %4165 = vmatmul.bf16.gmra.mxu0 %v1029
    %v4166 = vpop.f32.mrf.mxu0
    %v4167 = vadd.f32 %v4038, %v4166
    %v4168 = vpop.f32.mrf.mxu0
    %v4169 = vadd.f32 %v4040, %v4168
    %4170 = vmatmul.bf16.gmra.mxu0 %v1035
    %v4171 = vpop.f32.mrf.mxu0
    %v4172 = vadd.f32 %v4043, %v4171
    %v4173 = vpop.f32.mrf.mxu0
    %v4174 = vadd.f32 %v4045, %v4173
    %4175 = vmatmul.bf16.gmra.mxu0 %v1041
    %v4176 = vpop.f32.mrf.mxu0
    %v4177 = vadd.f32 %v4048, %v4176
    %v4178 = vpop.f32.mrf.mxu0
    %v4179 = vadd.f32 %v4050, %v4178
    %4180 = vmatmul.bf16.gmra.mxu0 %v1047
    %v4181 = vpop.f32.mrf.mxu0
    %v4182 = vadd.f32 %v4053, %v4181
    %v4183 = vpop.f32.mrf.mxu0
    %v4184 = vadd.f32 %v4055, %v4183
    %4185 = vmatmul.bf16.gmra.mxu0 %v1053
    %v4186 = vpop.f32.mrf.mxu0
    %v4187 = vadd.f32 %v4058, %v4186
    %v4188 = vpop.f32.mrf.mxu0
    %v4189 = vadd.f32 %v4060, %v4188
    %4190 = vmatmul.bf16.gmra.mxu0 %v1059
    %v4191 = vpop.f32.mrf.mxu0
    %v4192 = vadd.f32 %v4063, %v4191
    %v4193 = vpop.f32.mrf.mxu0
    %v4194 = vadd.f32 %v4065, %v4193
    %4195 = vmatmul.bf16.gmra.mxu0 %v1065
    %v4196 = vpop.f32.mrf.mxu0
    %v4197 = vadd.f32 %v4068, %v4196
    %v4198 = vpop.f32.mrf.mxu0
    %v4199 = vadd.f32 %v4070, %v4198
    %4200 = vmatmul.bf16.gmra.mxu0 %v1071
    %v4201 = vpop.f32.mrf.mxu0
    %v4202 = vadd.f32 %v4073, %v4201
    %v4203 = vpop.f32.mrf.mxu0
    %v4204 = vadd.f32 %v4075, %v4203
    %4205 = vmatmul.bf16.gmra.mxu0 %v1077
    %v4206 = vpop.f32.mrf.mxu0
    %v4207 = vadd.f32 %v4078, %v4206
    %v4208 = vpop.f32.mrf.mxu0
    %v4209 = vadd.f32 %v4080, %v4208
    %4210 = vmatmul.bf16.gmra.mxu0 %v1083
    %v4211 = vpop.f32.mrf.mxu0
    %v4212 = vadd.f32 %v4083, %v4211
    %v4213 = vpop.f32.mrf.mxu0
    %v4214 = vadd.f32 %v4085, %v4213
    %4215 = vdwg.mxu0
    %4216 = vmatpush.bf16.xpose.msra.mxu0 %v2230
    %4217 = vmatpush.bf16.xpose.msra.mxu0 %v2224
    %4218 = vmatpush.bf16.xpose.msra.mxu0 %v2218
    %4219 = vmatpush.bf16.xpose.msra.mxu0 %v2212
    %4220 = vmatpush.bf16.xpose.msra.mxu0 %v2206
    %4221 = vmatpush.bf16.xpose.msra.mxu0 %v2200
    %4222 = vmatpush.bf16.xpose.msra.mxu0 %v2194
    %4223 = vmatpush.bf16.xpose.msra.mxu0 %v2188
    %4224 = vmatmul.bf16.gmra.mxu0 %v940
    %v4225 = vpop.f32.mrf.mxu0
    %v4226 = vadd.f32 %v498, %v4225
    %v4227 = vpop.f32.mrf.mxu0
    %v4228 = vadd.f32 %v498, %v4227
    %4229 = vmatmul.bf16.gmra.mxu0 %v946
    %v4230 = vpop.f32.mrf.mxu0
    %v4231 = vadd.f32 %v498, %v4230
    %v4232 = vpop.f32.mrf.mxu0
    %v4233 = vadd.f32 %v498, %v4232
    %4234 = vmatmul.bf16.gmra.mxu0 %v952
    %v4235 = vpop.f32.mrf.mxu0
    %v4236 = vadd.f32 %v498, %v4235
    %v4237 = vpop.f32.mrf.mxu0
    %v4238 = vadd.f32 %v498, %v4237
    %4239 = vmatmul.bf16.gmra.mxu0 %v958
    %v4240 = vpop.f32.mrf.mxu0
    %v4241 = vadd.f32 %v498, %v4240
    %v4242 = vpop.f32.mrf.mxu0
    %v4243 = vadd.f32 %v498, %v4242
    %4244 = vmatmul.bf16.gmra.mxu0 %v964
    %v4245 = vpop.f32.mrf.mxu0
    %v4246 = vadd.f32 %v498, %v4245
    %v4247 = vpop.f32.mrf.mxu0
    %v4248 = vadd.f32 %v498, %v4247
    %4249 = vmatmul.bf16.gmra.mxu0 %v970
    %v4250 = vpop.f32.mrf.mxu0
    %v4251 = vadd.f32 %v498, %v4250
    %v4252 = vpop.f32.mrf.mxu0
    %v4253 = vadd.f32 %v498, %v4252
    %4254 = vmatmul.bf16.gmra.mxu0 %v976
    %v4255 = vpop.f32.mrf.mxu0
    %v4256 = vadd.f32 %v498, %v4255
    %v4257 = vpop.f32.mrf.mxu0
    %v4258 = vadd.f32 %v498, %v4257
    %4259 = vmatmul.bf16.gmra.mxu0 %v982
    %v4260 = vpop.f32.mrf.mxu0
    %v4261 = vadd.f32 %v498, %v4260
    %v4262 = vpop.f32.mrf.mxu0
    %v4263 = vadd.f32 %v498, %v4262
    %4264 = vmatmul.bf16.gmra.mxu0 %v988
    %v4265 = vpop.f32.mrf.mxu0
    %v4266 = vadd.f32 %v498, %v4265
    %v4267 = vpop.f32.mrf.mxu0
    %v4268 = vadd.f32 %v498, %v4267
    %4269 = vmatmul.bf16.gmra.mxu0 %v994
    %v4270 = vpop.f32.mrf.mxu0
    %v4271 = vadd.f32 %v498, %v4270
    %v4272 = vpop.f32.mrf.mxu0
    %v4273 = vadd.f32 %v498, %v4272
    %4274 = vmatmul.bf16.gmra.mxu0 %v1000
    %v4275 = vpop.f32.mrf.mxu0
    %v4276 = vadd.f32 %v498, %v4275
    %v4277 = vpop.f32.mrf.mxu0
    %v4278 = vadd.f32 %v498, %v4277
    %4279 = vmatmul.bf16.gmra.mxu0 %v1006
    %v4280 = vpop.f32.mrf.mxu0
    %v4281 = vadd.f32 %v498, %v4280
    %v4282 = vpop.f32.mrf.mxu0
    %v4283 = vadd.f32 %v498, %v4282
    %4284 = vmatmul.bf16.gmra.mxu0 %v1012
    %v4285 = vpop.f32.mrf.mxu0
    %v4286 = vadd.f32 %v498, %v4285
    %v4287 = vpop.f32.mrf.mxu0
    %v4288 = vadd.f32 %v498, %v4287
    %4289 = vmatmul.bf16.gmra.mxu0 %v1018
    %v4290 = vpop.f32.mrf.mxu0
    %v4291 = vadd.f32 %v498, %v4290
    %v4292 = vpop.f32.mrf.mxu0
    %v4293 = vadd.f32 %v498, %v4292
    %4294 = vmatmul.bf16.gmra.mxu0 %v1024
    %v4295 = vpop.f32.mrf.mxu0
    %v4296 = vadd.f32 %v498, %v4295
    %v4297 = vpop.f32.mrf.mxu0
    %v4298 = vadd.f32 %v498, %v4297
    %4299 = vmatmul.bf16.gmra.mxu0 %v1030
    %v4300 = vpop.f32.mrf.mxu0
    %v4301 = vadd.f32 %v498, %v4300
    %v4302 = vpop.f32.mrf.mxu0
    %v4303 = vadd.f32 %v498, %v4302
    %4304 = vmatmul.bf16.gmra.mxu0 %v1036
    %v4305 = vpop.f32.mrf.mxu0
    %v4306 = vadd.f32 %v498, %v4305
    %v4307 = vpop.f32.mrf.mxu0
    %v4308 = vadd.f32 %v498, %v4307
    %4309 = vmatmul.bf16.gmra.mxu0 %v1042
    %v4310 = vpop.f32.mrf.mxu0
    %v4311 = vadd.f32 %v498, %v4310
    %v4312 = vpop.f32.mrf.mxu0
    %v4313 = vadd.f32 %v498, %v4312
    %4314 = vmatmul.bf16.gmra.mxu0 %v1048
    %v4315 = vpop.f32.mrf.mxu0
    %v4316 = vadd.f32 %v498, %v4315
    %v4317 = vpop.f32.mrf.mxu0
    %v4318 = vadd.f32 %v498, %v4317
    %4319 = vmatmul.bf16.gmra.mxu0 %v1054
    %v4320 = vpop.f32.mrf.mxu0
    %v4321 = vadd.f32 %v498, %v4320
    %v4322 = vpop.f32.mrf.mxu0
    %v4323 = vadd.f32 %v498, %v4322
    %4324 = vmatmul.bf16.gmra.mxu0 %v1060
    %v4325 = vpop.f32.mrf.mxu0
    %v4326 = vadd.f32 %v498, %v4325
    %v4327 = vpop.f32.mrf.mxu0
    %v4328 = vadd.f32 %v498, %v4327
    %4329 = vmatmul.bf16.gmra.mxu0 %v1066
    %v4330 = vpop.f32.mrf.mxu0
    %v4331 = vadd.f32 %v498, %v4330
    %v4332 = vpop.f32.mrf.mxu0
    %v4333 = vadd.f32 %v498, %v4332
    %4334 = vmatmul.bf16.gmra.mxu0 %v1072
    %v4335 = vpop.f32.mrf.mxu0
    %v4336 = vadd.f32 %v498, %v4335
    %v4337 = vpop.f32.mrf.mxu0
    %v4338 = vadd.f32 %v498, %v4337
    %4339 = vmatmul.bf16.gmra.mxu0 %v1078
    %v4340 = vpop.f32.mrf.mxu0
    %v4341 = vadd.f32 %v498, %v4340
    %v4342 = vpop.f32.mrf.mxu0
    %v4343 = vadd.f32 %v498, %v4342
    %4344 = vdwg.mxu0
    %4345 = vmatpush.bf16.xpose.msra.mxu0 %v2231
    %4346 = vmatpush.bf16.xpose.msra.mxu0 %v2225
    %4347 = vmatpush.bf16.xpose.msra.mxu0 %v2219
    %4348 = vmatpush.bf16.xpose.msra.mxu0 %v2213
    %4349 = vmatpush.bf16.xpose.msra.mxu0 %v2207
    %4350 = vmatpush.bf16.xpose.msra.mxu0 %v2201
    %4351 = vmatpush.bf16.xpose.msra.mxu0 %v2195
    %4352 = vmatpush.bf16.xpose.msra.mxu0 %v2189
    %4353 = vmatmul.bf16.gmra.mxu0 %v941
    %v4354 = vpop.f32.mrf.mxu0
    %v4355 = vadd.f32 %v4226, %v4354
    %v4356 = vpop.f32.mrf.mxu0
    %v4357 = vadd.f32 %v4228, %v4356
    %4358 = vmatmul.bf16.gmra.mxu0 %v947
    %v4359 = vpop.f32.mrf.mxu0
    %v4360 = vadd.f32 %v4231, %v4359
    %v4361 = vpop.f32.mrf.mxu0
    %v4362 = vadd.f32 %v4233, %v4361
    %4363 = vmatmul.bf16.gmra.mxu0 %v953
    %v4364 = vpop.f32.mrf.mxu0
    %v4365 = vadd.f32 %v4236, %v4364
    %v4366 = vpop.f32.mrf.mxu0
    %v4367 = vadd.f32 %v4238, %v4366
    %4368 = vmatmul.bf16.gmra.mxu0 %v959
    %v4369 = vpop.f32.mrf.mxu0
    %v4370 = vadd.f32 %v4241, %v4369
    %v4371 = vpop.f32.mrf.mxu0
    %v4372 = vadd.f32 %v4243, %v4371
    %4373 = vmatmul.bf16.gmra.mxu0 %v965
    %v4374 = vpop.f32.mrf.mxu0
    %v4375 = vadd.f32 %v4246, %v4374
    %v4376 = vpop.f32.mrf.mxu0
    %v4377 = vadd.f32 %v4248, %v4376
    %4378 = vmatmul.bf16.gmra.mxu0 %v971
    %v4379 = vpop.f32.mrf.mxu0
    %v4380 = vadd.f32 %v4251, %v4379
    %v4381 = vpop.f32.mrf.mxu0
    %v4382 = vadd.f32 %v4253, %v4381
    %4383 = vmatmul.bf16.gmra.mxu0 %v977
    %v4384 = vpop.f32.mrf.mxu0
    %v4385 = vadd.f32 %v4256, %v4384
    %v4386 = vpop.f32.mrf.mxu0
    %v4387 = vadd.f32 %v4258, %v4386
    %4388 = vmatmul.bf16.gmra.mxu0 %v983
    %v4389 = vpop.f32.mrf.mxu0
    %v4390 = vadd.f32 %v4261, %v4389
    %v4391 = vpop.f32.mrf.mxu0
    %v4392 = vadd.f32 %v4263, %v4391
    %4393 = vmatmul.bf16.gmra.mxu0 %v989
    %v4394 = vpop.f32.mrf.mxu0
    %v4395 = vadd.f32 %v4266, %v4394
    %v4396 = vpop.f32.mrf.mxu0
    %v4397 = vadd.f32 %v4268, %v4396
    %4398 = vmatmul.bf16.gmra.mxu0 %v995
    %v4399 = vpop.f32.mrf.mxu0
    %v4400 = vadd.f32 %v4271, %v4399
    %v4401 = vpop.f32.mrf.mxu0
    %v4402 = vadd.f32 %v4273, %v4401
    %4403 = vmatmul.bf16.gmra.mxu0 %v1001
    %v4404 = vpop.f32.mrf.mxu0
    %v4405 = vadd.f32 %v4276, %v4404
    %v4406 = vpop.f32.mrf.mxu0
    %v4407 = vadd.f32 %v4278, %v4406
    %4408 = vmatmul.bf16.gmra.mxu0 %v1007
    %v4409 = vpop.f32.mrf.mxu0
    %v4410 = vadd.f32 %v4281, %v4409
    %v4411 = vpop.f32.mrf.mxu0
    %v4412 = vadd.f32 %v4283, %v4411
    %4413 = vmatmul.bf16.gmra.mxu0 %v1013
    %v4414 = vpop.f32.mrf.mxu0
    %v4415 = vadd.f32 %v4286, %v4414
    %v4416 = vpop.f32.mrf.mxu0
    %v4417 = vadd.f32 %v4288, %v4416
    %4418 = vmatmul.bf16.gmra.mxu0 %v1019
    %v4419 = vpop.f32.mrf.mxu0
    %v4420 = vadd.f32 %v4291, %v4419
    %v4421 = vpop.f32.mrf.mxu0
    %v4422 = vadd.f32 %v4293, %v4421
    %4423 = vmatmul.bf16.gmra.mxu0 %v1025
    %v4424 = vpop.f32.mrf.mxu0
    %v4425 = vadd.f32 %v4296, %v4424
    %v4426 = vpop.f32.mrf.mxu0
    %v4427 = vadd.f32 %v4298, %v4426
    %4428 = vmatmul.bf16.gmra.mxu0 %v1031
    %v4429 = vpop.f32.mrf.mxu0
    %v4430 = vadd.f32 %v4301, %v4429
    %v4431 = vpop.f32.mrf.mxu0
    %v4432 = vadd.f32 %v4303, %v4431
    %4433 = vmatmul.bf16.gmra.mxu0 %v1037
    %v4434 = vpop.f32.mrf.mxu0
    %v4435 = vadd.f32 %v4306, %v4434
    %v4436 = vpop.f32.mrf.mxu0
    %v4437 = vadd.f32 %v4308, %v4436
    %4438 = vmatmul.bf16.gmra.mxu0 %v1043
    %v4439 = vpop.f32.mrf.mxu0
    %v4440 = vadd.f32 %v4311, %v4439
    %v4441 = vpop.f32.mrf.mxu0
    %v4442 = vadd.f32 %v4313, %v4441
    %4443 = vmatmul.bf16.gmra.mxu0 %v1049
    %v4444 = vpop.f32.mrf.mxu0
    %v4445 = vadd.f32 %v4316, %v4444
    %v4446 = vpop.f32.mrf.mxu0
    %v4447 = vadd.f32 %v4318, %v4446
    %4448 = vmatmul.bf16.gmra.mxu0 %v1055
    %v4449 = vpop.f32.mrf.mxu0
    %v4450 = vadd.f32 %v4321, %v4449
    %v4451 = vpop.f32.mrf.mxu0
    %v4452 = vadd.f32 %v4323, %v4451
    %4453 = vmatmul.bf16.gmra.mxu0 %v1061
    %v4454 = vpop.f32.mrf.mxu0
    %v4455 = vadd.f32 %v4326, %v4454
    %v4456 = vpop.f32.mrf.mxu0
    %v4457 = vadd.f32 %v4328, %v4456
    %4458 = vmatmul.bf16.gmra.mxu0 %v1067
    %v4459 = vpop.f32.mrf.mxu0
    %v4460 = vadd.f32 %v4331, %v4459
    %v4461 = vpop.f32.mrf.mxu0
    %v4462 = vadd.f32 %v4333, %v4461
    %4463 = vmatmul.bf16.gmra.mxu0 %v1073
    %v4464 = vpop.f32.mrf.mxu0
    %v4465 = vadd.f32 %v4336, %v4464
    %v4466 = vpop.f32.mrf.mxu0
    %v4467 = vadd.f32 %v4338, %v4466
    %4468 = vmatmul.bf16.gmra.mxu0 %v1079
    %v4469 = vpop.f32.mrf.mxu0
    %v4470 = vadd.f32 %v4341, %v4469
    %v4471 = vpop.f32.mrf.mxu0
    %v4472 = vadd.f32 %v4343, %v4471
    %4473 = vdwg.mxu0
    %4474 = vmatpush.bf16.xpose.msra.mxu0 %v2232
    %4475 = vmatpush.bf16.xpose.msra.mxu0 %v2226
    %4476 = vmatpush.bf16.xpose.msra.mxu0 %v2220
    %4477 = vmatpush.bf16.xpose.msra.mxu0 %v2214
    %4478 = vmatpush.bf16.xpose.msra.mxu0 %v2208
    %4479 = vmatpush.bf16.xpose.msra.mxu0 %v2202
    %4480 = vmatpush.bf16.xpose.msra.mxu0 %v2196
    %4481 = vmatpush.bf16.xpose.msra.mxu0 %v2190
    %4482 = vmatmul.bf16.gmra.mxu0 %v942
    %v4483 = vpop.f32.mrf.mxu0
    %v4484 = vadd.f32 %v4355, %v4483
    %v4485 = vpop.f32.mrf.mxu0
    %v4486 = vadd.f32 %v4357, %v4485
    %4487 = vmatmul.bf16.gmra.mxu0 %v948
    %v4488 = vpop.f32.mrf.mxu0
    %v4489 = vadd.f32 %v4360, %v4488
    %v4490 = vpop.f32.mrf.mxu0
    %v4491 = vadd.f32 %v4362, %v4490
    %4492 = vmatmul.bf16.gmra.mxu0 %v954
    %v4493 = vpop.f32.mrf.mxu0
    %v4494 = vadd.f32 %v4365, %v4493
    %v4495 = vpop.f32.mrf.mxu0
    %v4496 = vadd.f32 %v4367, %v4495
    %4497 = vmatmul.bf16.gmra.mxu0 %v960
    %v4498 = vpop.f32.mrf.mxu0
    %v4499 = vadd.f32 %v4370, %v4498
    %v4500 = vpop.f32.mrf.mxu0
    %v4501 = vadd.f32 %v4372, %v4500
    %4502 = vmatmul.bf16.gmra.mxu0 %v966
    %v4503 = vpop.f32.mrf.mxu0
    %v4504 = vadd.f32 %v4375, %v4503
    %v4505 = vpop.f32.mrf.mxu0
    %v4506 = vadd.f32 %v4377, %v4505
    %4507 = vmatmul.bf16.gmra.mxu0 %v972
    %v4508 = vpop.f32.mrf.mxu0
    %v4509 = vadd.f32 %v4380, %v4508
    %v4510 = vpop.f32.mrf.mxu0
    %v4511 = vadd.f32 %v4382, %v4510
    %4512 = vmatmul.bf16.gmra.mxu0 %v978
    %v4513 = vpop.f32.mrf.mxu0
    %v4514 = vadd.f32 %v4385, %v4513
    %v4515 = vpop.f32.mrf.mxu0
    %v4516 = vadd.f32 %v4387, %v4515
    %4517 = vmatmul.bf16.gmra.mxu0 %v984
    %v4518 = vpop.f32.mrf.mxu0
    %v4519 = vadd.f32 %v4390, %v4518
    %v4520 = vpop.f32.mrf.mxu0
    %v4521 = vadd.f32 %v4392, %v4520
    %4522 = vmatmul.bf16.gmra.mxu0 %v990
    %v4523 = vpop.f32.mrf.mxu0
    %v4524 = vadd.f32 %v4395, %v4523
    %v4525 = vpop.f32.mrf.mxu0
    %v4526 = vadd.f32 %v4397, %v4525
    %4527 = vmatmul.bf16.gmra.mxu0 %v996
    %v4528 = vpop.f32.mrf.mxu0
    %v4529 = vadd.f32 %v4400, %v4528
    %v4530 = vpop.f32.mrf.mxu0
    %v4531 = vadd.f32 %v4402, %v4530
    %4532 = vmatmul.bf16.gmra.mxu0 %v1002
    %v4533 = vpop.f32.mrf.mxu0
    %v4534 = vadd.f32 %v4405, %v4533
    %v4535 = vpop.f32.mrf.mxu0
    %v4536 = vadd.f32 %v4407, %v4535
    %4537 = vmatmul.bf16.gmra.mxu0 %v1008
    %v4538 = vpop.f32.mrf.mxu0
    %v4539 = vadd.f32 %v4410, %v4538
    %v4540 = vpop.f32.mrf.mxu0
    %v4541 = vadd.f32 %v4412, %v4540
    %4542 = vmatmul.bf16.gmra.mxu0 %v1014
    %v4543 = vpop.f32.mrf.mxu0
    %v4544 = vadd.f32 %v4415, %v4543
    %v4545 = vpop.f32.mrf.mxu0
    %v4546 = vadd.f32 %v4417, %v4545
    %4547 = vmatmul.bf16.gmra.mxu0 %v1020
    %v4548 = vpop.f32.mrf.mxu0
    %v4549 = vadd.f32 %v4420, %v4548
    %v4550 = vpop.f32.mrf.mxu0
    %v4551 = vadd.f32 %v4422, %v4550
    %4552 = vmatmul.bf16.gmra.mxu0 %v1026
    %v4553 = vpop.f32.mrf.mxu0
    %v4554 = vadd.f32 %v4425, %v4553
    %v4555 = vpop.f32.mrf.mxu0
    %v4556 = vadd.f32 %v4427, %v4555
    %4557 = vmatmul.bf16.gmra.mxu0 %v1032
    %v4558 = vpop.f32.mrf.mxu0
    %v4559 = vadd.f32 %v4430, %v4558
    %v4560 = vpop.f32.mrf.mxu0
    %v4561 = vadd.f32 %v4432, %v4560
    %4562 = vmatmul.bf16.gmra.mxu0 %v1038
    %v4563 = vpop.f32.mrf.mxu0
    %v4564 = vadd.f32 %v4435, %v4563
    %v4565 = vpop.f32.mrf.mxu0
    %v4566 = vadd.f32 %v4437, %v4565
    %4567 = vmatmul.bf16.gmra.mxu0 %v1044
    %v4568 = vpop.f32.mrf.mxu0
    %v4569 = vadd.f32 %v4440, %v4568
    %v4570 = vpop.f32.mrf.mxu0
    %v4571 = vadd.f32 %v4442, %v4570
    %4572 = vmatmul.bf16.gmra.mxu0 %v1050
    %v4573 = vpop.f32.mrf.mxu0
    %v4574 = vadd.f32 %v4445, %v4573
    %v4575 = vpop.f32.mrf.mxu0
    %v4576 = vadd.f32 %v4447, %v4575
    %4577 = vmatmul.bf16.gmra.mxu0 %v1056
    %v4578 = vpop.f32.mrf.mxu0
    %v4579 = vadd.f32 %v4450, %v4578
    %v4580 = vpop.f32.mrf.mxu0
    %v4581 = vadd.f32 %v4452, %v4580
    %4582 = vmatmul.bf16.gmra.mxu0 %v1062
    %v4583 = vpop.f32.mrf.mxu0
    %v4584 = vadd.f32 %v4455, %v4583
    %v4585 = vpop.f32.mrf.mxu0
    %v4586 = vadd.f32 %v4457, %v4585
    %4587 = vmatmul.bf16.gmra.mxu0 %v1068
    %v4588 = vpop.f32.mrf.mxu0
    %v4589 = vadd.f32 %v4460, %v4588
    %v4590 = vpop.f32.mrf.mxu0
    %v4591 = vadd.f32 %v4462, %v4590
    %4592 = vmatmul.bf16.gmra.mxu0 %v1074
    %v4593 = vpop.f32.mrf.mxu0
    %v4594 = vadd.f32 %v4465, %v4593
    %v4595 = vpop.f32.mrf.mxu0
    %v4596 = vadd.f32 %v4467, %v4595
    %4597 = vmatmul.bf16.gmra.mxu0 %v1080
    %v4598 = vpop.f32.mrf.mxu0
    %v4599 = vadd.f32 %v4470, %v4598
    %v4600 = vpop.f32.mrf.mxu0
    %v4601 = vadd.f32 %v4472, %v4600
    %4602 = vdwg.mxu0
    %4603 = vmatpush.bf16.xpose.msra.mxu0 %v2233
    %4604 = vmatpush.bf16.xpose.msra.mxu0 %v2227
    %4605 = vmatpush.bf16.xpose.msra.mxu0 %v2221
    %4606 = vmatpush.bf16.xpose.msra.mxu0 %v2215
    %4607 = vmatpush.bf16.xpose.msra.mxu0 %v2209
    %4608 = vmatpush.bf16.xpose.msra.mxu0 %v2203
    %4609 = vmatpush.bf16.xpose.msra.mxu0 %v2197
    %4610 = vmatpush.bf16.xpose.msra.mxu0 %v2191
    %4611 = vmatmul.bf16.gmra.mxu0 %v943
    %v4612 = vpop.f32.mrf.mxu0
    %v4613 = vadd.f32 %v4484, %v4612
    %v4614 = vpop.f32.mrf.mxu0
    %v4615 = vadd.f32 %v4486, %v4614
    %4616 = vmatmul.bf16.gmra.mxu0 %v949
    %v4617 = vpop.f32.mrf.mxu0
    %v4618 = vadd.f32 %v4489, %v4617
    %v4619 = vpop.f32.mrf.mxu0
    %v4620 = vadd.f32 %v4491, %v4619
    %4621 = vmatmul.bf16.gmra.mxu0 %v955
    %v4622 = vpop.f32.mrf.mxu0
    %v4623 = vadd.f32 %v4494, %v4622
    %v4624 = vpop.f32.mrf.mxu0
    %v4625 = vadd.f32 %v4496, %v4624
    %4626 = vmatmul.bf16.gmra.mxu0 %v961
    %v4627 = vpop.f32.mrf.mxu0
    %v4628 = vadd.f32 %v4499, %v4627
    %v4629 = vpop.f32.mrf.mxu0
    %v4630 = vadd.f32 %v4501, %v4629
    %4631 = vmatmul.bf16.gmra.mxu0 %v967
    %v4632 = vpop.f32.mrf.mxu0
    %v4633 = vadd.f32 %v4504, %v4632
    %v4634 = vpop.f32.mrf.mxu0
    %v4635 = vadd.f32 %v4506, %v4634
    %4636 = vmatmul.bf16.gmra.mxu0 %v973
    %v4637 = vpop.f32.mrf.mxu0
    %v4638 = vadd.f32 %v4509, %v4637
    %v4639 = vpop.f32.mrf.mxu0
    %v4640 = vadd.f32 %v4511, %v4639
    %4641 = vmatmul.bf16.gmra.mxu0 %v979
    %v4642 = vpop.f32.mrf.mxu0
    %v4643 = vadd.f32 %v4514, %v4642
    %v4644 = vpop.f32.mrf.mxu0
    %v4645 = vadd.f32 %v4516, %v4644
    %4646 = vmatmul.bf16.gmra.mxu0 %v985
    %v4647 = vpop.f32.mrf.mxu0
    %v4648 = vadd.f32 %v4519, %v4647
    %v4649 = vpop.f32.mrf.mxu0
    %v4650 = vadd.f32 %v4521, %v4649
    %4651 = vmatmul.bf16.gmra.mxu0 %v991
    %v4652 = vpop.f32.mrf.mxu0
    %v4653 = vadd.f32 %v4524, %v4652
    %v4654 = vpop.f32.mrf.mxu0
    %v4655 = vadd.f32 %v4526, %v4654
    %4656 = vmatmul.bf16.gmra.mxu0 %v997
    %v4657 = vpop.f32.mrf.mxu0
    %v4658 = vadd.f32 %v4529, %v4657
    %v4659 = vpop.f32.mrf.mxu0
    %v4660 = vadd.f32 %v4531, %v4659
    %4661 = vmatmul.bf16.gmra.mxu0 %v1003
    %v4662 = vpop.f32.mrf.mxu0
    %v4663 = vadd.f32 %v4534, %v4662
    %v4664 = vpop.f32.mrf.mxu0
    %v4665 = vadd.f32 %v4536, %v4664
    %4666 = vmatmul.bf16.gmra.mxu0 %v1009
    %v4667 = vpop.f32.mrf.mxu0
    %v4668 = vadd.f32 %v4539, %v4667
    %v4669 = vpop.f32.mrf.mxu0
    %v4670 = vadd.f32 %v4541, %v4669
    %4671 = vmatmul.bf16.gmra.mxu0 %v1015
    %v4672 = vpop.f32.mrf.mxu0
    %v4673 = vadd.f32 %v4544, %v4672
    %v4674 = vpop.f32.mrf.mxu0
    %v4675 = vadd.f32 %v4546, %v4674
    %4676 = vmatmul.bf16.gmra.mxu0 %v1021
    %v4677 = vpop.f32.mrf.mxu0
    %v4678 = vadd.f32 %v4549, %v4677
    %v4679 = vpop.f32.mrf.mxu0
    %v4680 = vadd.f32 %v4551, %v4679
    %4681 = vmatmul.bf16.gmra.mxu0 %v1027
    %v4682 = vpop.f32.mrf.mxu0
    %v4683 = vadd.f32 %v4554, %v4682
    %v4684 = vpop.f32.mrf.mxu0
    %v4685 = vadd.f32 %v4556, %v4684
    %4686 = vmatmul.bf16.gmra.mxu0 %v1033
    %v4687 = vpop.f32.mrf.mxu0
    %v4688 = vadd.f32 %v4559, %v4687
    %v4689 = vpop.f32.mrf.mxu0
    %v4690 = vadd.f32 %v4561, %v4689
    %4691 = vmatmul.bf16.gmra.mxu0 %v1039
    %v4692 = vpop.f32.mrf.mxu0
    %v4693 = vadd.f32 %v4564, %v4692
    %v4694 = vpop.f32.mrf.mxu0
    %v4695 = vadd.f32 %v4566, %v4694
    %4696 = vmatmul.bf16.gmra.mxu0 %v1045
    %v4697 = vpop.f32.mrf.mxu0
    %v4698 = vadd.f32 %v4569, %v4697
    %v4699 = vpop.f32.mrf.mxu0
    %v4700 = vadd.f32 %v4571, %v4699
    %4701 = vmatmul.bf16.gmra.mxu0 %v1051
    %v4702 = vpop.f32.mrf.mxu0
    %v4703 = vadd.f32 %v4574, %v4702
    %v4704 = vpop.f32.mrf.mxu0
    %v4705 = vadd.f32 %v4576, %v4704
    %4706 = vmatmul.bf16.gmra.mxu0 %v1057
    %v4707 = vpop.f32.mrf.mxu0
    %v4708 = vadd.f32 %v4579, %v4707
    %v4709 = vpop.f32.mrf.mxu0
    %v4710 = vadd.f32 %v4581, %v4709
    %4711 = vmatmul.bf16.gmra.mxu0 %v1063
    %v4712 = vpop.f32.mrf.mxu0
    %v4713 = vadd.f32 %v4584, %v4712
    %v4714 = vpop.f32.mrf.mxu0
    %v4715 = vadd.f32 %v4586, %v4714
    %4716 = vmatmul.bf16.gmra.mxu0 %v1069
    %v4717 = vpop.f32.mrf.mxu0
    %v4718 = vadd.f32 %v4589, %v4717
    %v4719 = vpop.f32.mrf.mxu0
    %v4720 = vadd.f32 %v4591, %v4719
    %4721 = vmatmul.bf16.gmra.mxu0 %v1075
    %v4722 = vpop.f32.mrf.mxu0
    %v4723 = vadd.f32 %v4594, %v4722
    %v4724 = vpop.f32.mrf.mxu0
    %v4725 = vadd.f32 %v4596, %v4724
    %4726 = vmatmul.bf16.gmra.mxu0 %v1081
    %v4727 = vpop.f32.mrf.mxu0
    %v4728 = vadd.f32 %v4599, %v4727
    %v4729 = vpop.f32.mrf.mxu0
    %v4730 = vadd.f32 %v4601, %v4729
    %4731 = vdwg.mxu0
    %4732 = vmatpush.bf16.xpose.msra.mxu0 %v2234
    %4733 = vmatpush.bf16.xpose.msra.mxu0 %v2228
    %4734 = vmatpush.bf16.xpose.msra.mxu0 %v2222
    %4735 = vmatpush.bf16.xpose.msra.mxu0 %v2216
    %4736 = vmatpush.bf16.xpose.msra.mxu0 %v2210
    %4737 = vmatpush.bf16.xpose.msra.mxu0 %v2204
    %4738 = vmatpush.bf16.xpose.msra.mxu0 %v2198
    %4739 = vmatpush.bf16.xpose.msra.mxu0 %v2192
    %4740 = vmatmul.bf16.gmra.mxu0 %v944
    %v4741 = vpop.f32.mrf.mxu0
    %v4742 = vadd.f32 %v4613, %v4741
    %v4743 = vpop.f32.mrf.mxu0
    %v4744 = vadd.f32 %v4615, %v4743
    %4745 = vmatmul.bf16.gmra.mxu0 %v950
    %v4746 = vpop.f32.mrf.mxu0
    %v4747 = vadd.f32 %v4618, %v4746
    %v4748 = vpop.f32.mrf.mxu0
    %v4749 = vadd.f32 %v4620, %v4748
    %4750 = vmatmul.bf16.gmra.mxu0 %v956
    %v4751 = vpop.f32.mrf.mxu0
    %v4752 = vadd.f32 %v4623, %v4751
    %v4753 = vpop.f32.mrf.mxu0
    %v4754 = vadd.f32 %v4625, %v4753
    %4755 = vmatmul.bf16.gmra.mxu0 %v962
    %v4756 = vpop.f32.mrf.mxu0
    %v4757 = vadd.f32 %v4628, %v4756
    %v4758 = vpop.f32.mrf.mxu0
    %v4759 = vadd.f32 %v4630, %v4758
    %4760 = vmatmul.bf16.gmra.mxu0 %v968
    %v4761 = vpop.f32.mrf.mxu0
    %v4762 = vadd.f32 %v4633, %v4761
    %v4763 = vpop.f32.mrf.mxu0
    %v4764 = vadd.f32 %v4635, %v4763
    %4765 = vmatmul.bf16.gmra.mxu0 %v974
    %v4766 = vpop.f32.mrf.mxu0
    %v4767 = vadd.f32 %v4638, %v4766
    %v4768 = vpop.f32.mrf.mxu0
    %v4769 = vadd.f32 %v4640, %v4768
    %4770 = vmatmul.bf16.gmra.mxu0 %v980
    %v4771 = vpop.f32.mrf.mxu0
    %v4772 = vadd.f32 %v4643, %v4771
    %v4773 = vpop.f32.mrf.mxu0
    %v4774 = vadd.f32 %v4645, %v4773
    %4775 = vmatmul.bf16.gmra.mxu0 %v986
    %v4776 = vpop.f32.mrf.mxu0
    %v4777 = vadd.f32 %v4648, %v4776
    %v4778 = vpop.f32.mrf.mxu0
    %v4779 = vadd.f32 %v4650, %v4778
    %4780 = vmatmul.bf16.gmra.mxu0 %v992
    %v4781 = vpop.f32.mrf.mxu0
    %v4782 = vadd.f32 %v4653, %v4781
    %v4783 = vpop.f32.mrf.mxu0
    %v4784 = vadd.f32 %v4655, %v4783
    %4785 = vmatmul.bf16.gmra.mxu0 %v998
    %v4786 = vpop.f32.mrf.mxu0
    %v4787 = vadd.f32 %v4658, %v4786
    %v4788 = vpop.f32.mrf.mxu0
    %v4789 = vadd.f32 %v4660, %v4788
    %4790 = vmatmul.bf16.gmra.mxu0 %v1004
    %v4791 = vpop.f32.mrf.mxu0
    %v4792 = vadd.f32 %v4663, %v4791
    %v4793 = vpop.f32.mrf.mxu0
    %v4794 = vadd.f32 %v4665, %v4793
    %4795 = vmatmul.bf16.gmra.mxu0 %v1010
    %v4796 = vpop.f32.mrf.mxu0
    %v4797 = vadd.f32 %v4668, %v4796
    %v4798 = vpop.f32.mrf.mxu0
    %v4799 = vadd.f32 %v4670, %v4798
    %4800 = vmatmul.bf16.gmra.mxu0 %v1016
    %v4801 = vpop.f32.mrf.mxu0
    %v4802 = vadd.f32 %v4673, %v4801
    %v4803 = vpop.f32.mrf.mxu0
    %v4804 = vadd.f32 %v4675, %v4803
    %4805 = vmatmul.bf16.gmra.mxu0 %v1022
    %v4806 = vpop.f32.mrf.mxu0
    %v4807 = vadd.f32 %v4678, %v4806
    %v4808 = vpop.f32.mrf.mxu0
    %v4809 = vadd.f32 %v4680, %v4808
    %4810 = vmatmul.bf16.gmra.mxu0 %v1028
    %v4811 = vpop.f32.mrf.mxu0
    %v4812 = vadd.f32 %v4683, %v4811
    %v4813 = vpop.f32.mrf.mxu0
    %v4814 = vadd.f32 %v4685, %v4813
    %4815 = vmatmul.bf16.gmra.mxu0 %v1034
    %v4816 = vpop.f32.mrf.mxu0
    %v4817 = vadd.f32 %v4688, %v4816
    %v4818 = vpop.f32.mrf.mxu0
    %v4819 = vadd.f32 %v4690, %v4818
    %4820 = vmatmul.bf16.gmra.mxu0 %v1040
    %v4821 = vpop.f32.mrf.mxu0
    %v4822 = vadd.f32 %v4693, %v4821
    %v4823 = vpop.f32.mrf.mxu0
    %v4824 = vadd.f32 %v4695, %v4823
    %4825 = vmatmul.bf16.gmra.mxu0 %v1046
    %v4826 = vpop.f32.mrf.mxu0
    %v4827 = vadd.f32 %v4698, %v4826
    %v4828 = vpop.f32.mrf.mxu0
    %v4829 = vadd.f32 %v4700, %v4828
    %4830 = vmatmul.bf16.gmra.mxu0 %v1052
    %v4831 = vpop.f32.mrf.mxu0
    %v4832 = vadd.f32 %v4703, %v4831
    %v4833 = vpop.f32.mrf.mxu0
    %v4834 = vadd.f32 %v4705, %v4833
    %4835 = vmatmul.bf16.gmra.mxu0 %v1058
    %v4836 = vpop.f32.mrf.mxu0
    %v4837 = vadd.f32 %v4708, %v4836
    %v4838 = vpop.f32.mrf.mxu0
    %v4839 = vadd.f32 %v4710, %v4838
    %4840 = vmatmul.bf16.gmra.mxu0 %v1064
    %v4841 = vpop.f32.mrf.mxu0
    %v4842 = vadd.f32 %v4713, %v4841
    %v4843 = vpop.f32.mrf.mxu0
    %v4844 = vadd.f32 %v4715, %v4843
    %4845 = vmatmul.bf16.gmra.mxu0 %v1070
    %v4846 = vpop.f32.mrf.mxu0
    %v4847 = vadd.f32 %v4718, %v4846
    %v4848 = vpop.f32.mrf.mxu0
    %v4849 = vadd.f32 %v4720, %v4848
    %4850 = vmatmul.bf16.gmra.mxu0 %v1076
    %v4851 = vpop.f32.mrf.mxu0
    %v4852 = vadd.f32 %v4723, %v4851
    %v4853 = vpop.f32.mrf.mxu0
    %v4854 = vadd.f32 %v4725, %v4853
    %4855 = vmatmul.bf16.gmra.mxu0 %v1082
    %v4856 = vpop.f32.mrf.mxu0
    %v4857 = vadd.f32 %v4728, %v4856
    %v4858 = vpop.f32.mrf.mxu0
    %v4859 = vadd.f32 %v4730, %v4858
    %4860 = vdwg.mxu0
    %4861 = vmatpush.bf16.xpose.msra.mxu0 %v2235
    %4862 = vmatpush.bf16.xpose.msra.mxu0 %v2229
    %4863 = vmatpush.bf16.xpose.msra.mxu0 %v2223
    %4864 = vmatpush.bf16.xpose.msra.mxu0 %v2217
    %4865 = vmatpush.bf16.xpose.msra.mxu0 %v2211
    %4866 = vmatpush.bf16.xpose.msra.mxu0 %v2205
    %4867 = vmatpush.bf16.xpose.msra.mxu0 %v2199
    %4868 = vmatpush.bf16.xpose.msra.mxu0 %v2193
    %4869 = vmatmul.bf16.gmra.mxu0 %v945
    %v4870 = vpop.f32.mrf.mxu0
    %v4871 = vadd.f32 %v4742, %v4870
    %v4872 = vpop.f32.mrf.mxu0
    %v4873 = vadd.f32 %v4744, %v4872
    %4874 = vmatmul.bf16.gmra.mxu0 %v951
    %v4875 = vpop.f32.mrf.mxu0
    %v4876 = vadd.f32 %v4747, %v4875
    %v4877 = vpop.f32.mrf.mxu0
    %v4878 = vadd.f32 %v4749, %v4877
    %4879 = vmatmul.bf16.gmra.mxu0 %v957
    %v4880 = vpop.f32.mrf.mxu0
    %v4881 = vadd.f32 %v4752, %v4880
    %v4882 = vpop.f32.mrf.mxu0
    %v4883 = vadd.f32 %v4754, %v4882
    %4884 = vmatmul.bf16.gmra.mxu0 %v963
    %v4885 = vpop.f32.mrf.mxu0
    %v4886 = vadd.f32 %v4757, %v4885
    %v4887 = vpop.f32.mrf.mxu0
    %v4888 = vadd.f32 %v4759, %v4887
    %4889 = vmatmul.bf16.gmra.mxu0 %v969
    %v4890 = vpop.f32.mrf.mxu0
    %v4891 = vadd.f32 %v4762, %v4890
    %v4892 = vpop.f32.mrf.mxu0
    %v4893 = vadd.f32 %v4764, %v4892
    %4894 = vmatmul.bf16.gmra.mxu0 %v975
    %v4895 = vpop.f32.mrf.mxu0
    %v4896 = vadd.f32 %v4767, %v4895
    %v4897 = vpop.f32.mrf.mxu0
    %v4898 = vadd.f32 %v4769, %v4897
    %4899 = vmatmul.bf16.gmra.mxu0 %v981
    %v4900 = vpop.f32.mrf.mxu0
    %v4901 = vadd.f32 %v4772, %v4900
    %v4902 = vpop.f32.mrf.mxu0
    %v4903 = vadd.f32 %v4774, %v4902
    %4904 = vmatmul.bf16.gmra.mxu0 %v987
    %v4905 = vpop.f32.mrf.mxu0
    %v4906 = vadd.f32 %v4777, %v4905
    %v4907 = vpop.f32.mrf.mxu0
    %v4908 = vadd.f32 %v4779, %v4907
    %4909 = vmatmul.bf16.gmra.mxu0 %v993
    %v4910 = vpop.f32.mrf.mxu0
    %v4911 = vadd.f32 %v4782, %v4910
    %v4912 = vpop.f32.mrf.mxu0
    %v4913 = vadd.f32 %v4784, %v4912
    %4914 = vmatmul.bf16.gmra.mxu0 %v999
    %v4915 = vpop.f32.mrf.mxu0
    %v4916 = vadd.f32 %v4787, %v4915
    %v4917 = vpop.f32.mrf.mxu0
    %v4918 = vadd.f32 %v4789, %v4917
    %4919 = vmatmul.bf16.gmra.mxu0 %v1005
    %v4920 = vpop.f32.mrf.mxu0
    %v4921 = vadd.f32 %v4792, %v4920
    %v4922 = vpop.f32.mrf.mxu0
    %v4923 = vadd.f32 %v4794, %v4922
    %4924 = vmatmul.bf16.gmra.mxu0 %v1011
    %v4925 = vpop.f32.mrf.mxu0
    %v4926 = vadd.f32 %v4797, %v4925
    %v4927 = vpop.f32.mrf.mxu0
    %v4928 = vadd.f32 %v4799, %v4927
    %4929 = vmatmul.bf16.gmra.mxu0 %v1017
    %v4930 = vpop.f32.mrf.mxu0
    %v4931 = vadd.f32 %v4802, %v4930
    %v4932 = vpop.f32.mrf.mxu0
    %v4933 = vadd.f32 %v4804, %v4932
    %4934 = vmatmul.bf16.gmra.mxu0 %v1023
    %v4935 = vpop.f32.mrf.mxu0
    %v4936 = vadd.f32 %v4807, %v4935
    %v4937 = vpop.f32.mrf.mxu0
    %v4938 = vadd.f32 %v4809, %v4937
    %4939 = vmatmul.bf16.gmra.mxu0 %v1029
    %v4940 = vpop.f32.mrf.mxu0
    %v4941 = vadd.f32 %v4812, %v4940
    %v4942 = vpop.f32.mrf.mxu0
    %v4943 = vadd.f32 %v4814, %v4942
    %4944 = vmatmul.bf16.gmra.mxu0 %v1035
    %v4945 = vpop.f32.mrf.mxu0
    %v4946 = vadd.f32 %v4817, %v4945
    %v4947 = vpop.f32.mrf.mxu0
    %v4948 = vadd.f32 %v4819, %v4947
    %4949 = vmatmul.bf16.gmra.mxu0 %v1041
    %v4950 = vpop.f32.mrf.mxu0
    %v4951 = vadd.f32 %v4822, %v4950
    %v4952 = vpop.f32.mrf.mxu0
    %v4953 = vadd.f32 %v4824, %v4952
    %4954 = vmatmul.bf16.gmra.mxu0 %v1047
    %v4955 = vpop.f32.mrf.mxu0
    %v4956 = vadd.f32 %v4827, %v4955
    %v4957 = vpop.f32.mrf.mxu0
    %v4958 = vadd.f32 %v4829, %v4957
    %4959 = vmatmul.bf16.gmra.mxu0 %v1053
    %v4960 = vpop.f32.mrf.mxu0
    %v4961 = vadd.f32 %v4832, %v4960
    %v4962 = vpop.f32.mrf.mxu0
    %v4963 = vadd.f32 %v4834, %v4962
    %4964 = vmatmul.bf16.gmra.mxu0 %v1059
    %v4965 = vpop.f32.mrf.mxu0
    %v4966 = vadd.f32 %v4837, %v4965
    %v4967 = vpop.f32.mrf.mxu0
    %v4968 = vadd.f32 %v4839, %v4967
    %4969 = vmatmul.bf16.gmra.mxu0 %v1065
    %v4970 = vpop.f32.mrf.mxu0
    %v4971 = vadd.f32 %v4842, %v4970
    %v4972 = vpop.f32.mrf.mxu0
    %v4973 = vadd.f32 %v4844, %v4972
    %4974 = vmatmul.bf16.gmra.mxu0 %v1071
    %v4975 = vpop.f32.mrf.mxu0
    %v4976 = vadd.f32 %v4847, %v4975
    %v4977 = vpop.f32.mrf.mxu0
    %v4978 = vadd.f32 %v4849, %v4977
    %4979 = vmatmul.bf16.gmra.mxu0 %v1077
    %v4980 = vpop.f32.mrf.mxu0
    %v4981 = vadd.f32 %v4852, %v4980
    %v4982 = vpop.f32.mrf.mxu0
    %v4983 = vadd.f32 %v4854, %v4982
    %4984 = vmatmul.bf16.gmra.mxu0 %v1083
    %v4985 = vpop.f32.mrf.mxu0
    %v4986 = vadd.f32 %v4857, %v4985
    %v4987 = vpop.f32.mrf.mxu0
    %v4988 = vadd.f32 %v4859, %v4987
    %4989 = vdwg.mxu0
    %4990 = vmatpush.bf16.xpose.msra.mxu0 %v2278
    %4991 = vmatpush.bf16.xpose.msra.mxu0 %v2272
    %4992 = vmatpush.bf16.xpose.msra.mxu0 %v2266
    %4993 = vmatpush.bf16.xpose.msra.mxu0 %v2260
    %4994 = vmatpush.bf16.xpose.msra.mxu0 %v2254
    %4995 = vmatpush.bf16.xpose.msra.mxu0 %v2248
    %4996 = vmatpush.bf16.xpose.msra.mxu0 %v2242
    %4997 = vmatpush.bf16.xpose.msra.mxu0 %v2236
    %4998 = vmatmul.bf16.gmra.mxu0 %v940
    %v4999 = vpop.f32.mrf.mxu0
    %v5000 = vadd.f32 %v499, %v4999
    %v5001 = vpop.f32.mrf.mxu0
    %v5002 = vadd.f32 %v499, %v5001
    %5003 = vmatmul.bf16.gmra.mxu0 %v946
    %v5004 = vpop.f32.mrf.mxu0
    %v5005 = vadd.f32 %v499, %v5004
    %v5006 = vpop.f32.mrf.mxu0
    %v5007 = vadd.f32 %v499, %v5006
    %5008 = vmatmul.bf16.gmra.mxu0 %v952
    %v5009 = vpop.f32.mrf.mxu0
    %v5010 = vadd.f32 %v499, %v5009
    %v5011 = vpop.f32.mrf.mxu0
    %v5012 = vadd.f32 %v499, %v5011
    %5013 = vmatmul.bf16.gmra.mxu0 %v958
    %v5014 = vpop.f32.mrf.mxu0
    %v5015 = vadd.f32 %v499, %v5014
    %v5016 = vpop.f32.mrf.mxu0
    %v5017 = vadd.f32 %v499, %v5016
    %5018 = vmatmul.bf16.gmra.mxu0 %v964
    %v5019 = vpop.f32.mrf.mxu0
    %v5020 = vadd.f32 %v499, %v5019
    %v5021 = vpop.f32.mrf.mxu0
    %v5022 = vadd.f32 %v499, %v5021
    %5023 = vmatmul.bf16.gmra.mxu0 %v970
    %v5024 = vpop.f32.mrf.mxu0
    %v5025 = vadd.f32 %v499, %v5024
    %v5026 = vpop.f32.mrf.mxu0
    %v5027 = vadd.f32 %v499, %v5026
    %5028 = vmatmul.bf16.gmra.mxu0 %v976
    %v5029 = vpop.f32.mrf.mxu0
    %v5030 = vadd.f32 %v499, %v5029
    %v5031 = vpop.f32.mrf.mxu0
    %v5032 = vadd.f32 %v499, %v5031
    %5033 = vmatmul.bf16.gmra.mxu0 %v982
    %v5034 = vpop.f32.mrf.mxu0
    %v5035 = vadd.f32 %v499, %v5034
    %v5036 = vpop.f32.mrf.mxu0
    %v5037 = vadd.f32 %v499, %v5036
    %5038 = vmatmul.bf16.gmra.mxu0 %v988
    %v5039 = vpop.f32.mrf.mxu0
    %v5040 = vadd.f32 %v499, %v5039
    %v5041 = vpop.f32.mrf.mxu0
    %v5042 = vadd.f32 %v499, %v5041
    %5043 = vmatmul.bf16.gmra.mxu0 %v994
    %v5044 = vpop.f32.mrf.mxu0
    %v5045 = vadd.f32 %v499, %v5044
    %v5046 = vpop.f32.mrf.mxu0
    %v5047 = vadd.f32 %v499, %v5046
    %5048 = vmatmul.bf16.gmra.mxu0 %v1000
    %v5049 = vpop.f32.mrf.mxu0
    %v5050 = vadd.f32 %v499, %v5049
    %v5051 = vpop.f32.mrf.mxu0
    %v5052 = vadd.f32 %v499, %v5051
    %5053 = vmatmul.bf16.gmra.mxu0 %v1006
    %v5054 = vpop.f32.mrf.mxu0
    %v5055 = vadd.f32 %v499, %v5054
    %v5056 = vpop.f32.mrf.mxu0
    %v5057 = vadd.f32 %v499, %v5056
    %5058 = vmatmul.bf16.gmra.mxu0 %v1012
    %v5059 = vpop.f32.mrf.mxu0
    %v5060 = vadd.f32 %v499, %v5059
    %v5061 = vpop.f32.mrf.mxu0
    %v5062 = vadd.f32 %v499, %v5061
    %5063 = vmatmul.bf16.gmra.mxu0 %v1018
    %v5064 = vpop.f32.mrf.mxu0
    %v5065 = vadd.f32 %v499, %v5064
    %v5066 = vpop.f32.mrf.mxu0
    %v5067 = vadd.f32 %v499, %v5066
    %5068 = vmatmul.bf16.gmra.mxu0 %v1024
    %v5069 = vpop.f32.mrf.mxu0
    %v5070 = vadd.f32 %v499, %v5069
    %v5071 = vpop.f32.mrf.mxu0
    %v5072 = vadd.f32 %v499, %v5071
    %5073 = vmatmul.bf16.gmra.mxu0 %v1030
    %v5074 = vpop.f32.mrf.mxu0
    %v5075 = vadd.f32 %v499, %v5074
    %v5076 = vpop.f32.mrf.mxu0
    %v5077 = vadd.f32 %v499, %v5076
    %5078 = vmatmul.bf16.gmra.mxu0 %v1036
    %v5079 = vpop.f32.mrf.mxu0
    %v5080 = vadd.f32 %v499, %v5079
    %v5081 = vpop.f32.mrf.mxu0
    %v5082 = vadd.f32 %v499, %v5081
    %5083 = vmatmul.bf16.gmra.mxu0 %v1042
    %v5084 = vpop.f32.mrf.mxu0
    %v5085 = vadd.f32 %v499, %v5084
    %v5086 = vpop.f32.mrf.mxu0
    %v5087 = vadd.f32 %v499, %v5086
    %5088 = vmatmul.bf16.gmra.mxu0 %v1048
    %v5089 = vpop.f32.mrf.mxu0
    %v5090 = vadd.f32 %v499, %v5089
    %v5091 = vpop.f32.mrf.mxu0
    %v5092 = vadd.f32 %v499, %v5091
    %5093 = vmatmul.bf16.gmra.mxu0 %v1054
    %v5094 = vpop.f32.mrf.mxu0
    %v5095 = vadd.f32 %v499, %v5094
    %v5096 = vpop.f32.mrf.mxu0
    %v5097 = vadd.f32 %v499, %v5096
    %5098 = vmatmul.bf16.gmra.mxu0 %v1060
    %v5099 = vpop.f32.mrf.mxu0
    %v5100 = vadd.f32 %v499, %v5099
    %v5101 = vpop.f32.mrf.mxu0
    %v5102 = vadd.f32 %v499, %v5101
    %5103 = vmatmul.bf16.gmra.mxu0 %v1066
    %v5104 = vpop.f32.mrf.mxu0
    %v5105 = vadd.f32 %v499, %v5104
    %v5106 = vpop.f32.mrf.mxu0
    %v5107 = vadd.f32 %v499, %v5106
    %5108 = vmatmul.bf16.gmra.mxu0 %v1072
    %v5109 = vpop.f32.mrf.mxu0
    %v5110 = vadd.f32 %v499, %v5109
    %v5111 = vpop.f32.mrf.mxu0
    %v5112 = vadd.f32 %v499, %v5111
    %5113 = vmatmul.bf16.gmra.mxu0 %v1078
    %v5114 = vpop.f32.mrf.mxu0
    %v5115 = vadd.f32 %v499, %v5114
    %v5116 = vpop.f32.mrf.mxu0
    %v5117 = vadd.f32 %v499, %v5116
    %5118 = vdwg.mxu0
    %5119 = vmatpush.bf16.xpose.msra.mxu0 %v2279
    %5120 = vmatpush.bf16.xpose.msra.mxu0 %v2273
    %5121 = vmatpush.bf16.xpose.msra.mxu0 %v2267
    %5122 = vmatpush.bf16.xpose.msra.mxu0 %v2261
    %5123 = vmatpush.bf16.xpose.msra.mxu0 %v2255
    %5124 = vmatpush.bf16.xpose.msra.mxu0 %v2249
    %5125 = vmatpush.bf16.xpose.msra.mxu0 %v2243
    %5126 = vmatpush.bf16.xpose.msra.mxu0 %v2237
    %5127 = vmatmul.bf16.gmra.mxu0 %v941
    %v5128 = vpop.f32.mrf.mxu0
    %v5129 = vadd.f32 %v5000, %v5128
    %v5130 = vpop.f32.mrf.mxu0
    %v5131 = vadd.f32 %v5002, %v5130
    %5132 = vmatmul.bf16.gmra.mxu0 %v947
    %v5133 = vpop.f32.mrf.mxu0
    %v5134 = vadd.f32 %v5005, %v5133
    %v5135 = vpop.f32.mrf.mxu0
    %v5136 = vadd.f32 %v5007, %v5135
    %5137 = vmatmul.bf16.gmra.mxu0 %v953
    %v5138 = vpop.f32.mrf.mxu0
    %v5139 = vadd.f32 %v5010, %v5138
    %v5140 = vpop.f32.mrf.mxu0
    %v5141 = vadd.f32 %v5012, %v5140
    %5142 = vmatmul.bf16.gmra.mxu0 %v959
    %v5143 = vpop.f32.mrf.mxu0
    %v5144 = vadd.f32 %v5015, %v5143
    %v5145 = vpop.f32.mrf.mxu0
    %v5146 = vadd.f32 %v5017, %v5145
    %5147 = vmatmul.bf16.gmra.mxu0 %v965
    %v5148 = vpop.f32.mrf.mxu0
    %v5149 = vadd.f32 %v5020, %v5148
    %v5150 = vpop.f32.mrf.mxu0
    %v5151 = vadd.f32 %v5022, %v5150
    %5152 = vmatmul.bf16.gmra.mxu0 %v971
    %v5153 = vpop.f32.mrf.mxu0
    %v5154 = vadd.f32 %v5025, %v5153
    %v5155 = vpop.f32.mrf.mxu0
    %v5156 = vadd.f32 %v5027, %v5155
    %5157 = vmatmul.bf16.gmra.mxu0 %v977
    %v5158 = vpop.f32.mrf.mxu0
    %v5159 = vadd.f32 %v5030, %v5158
    %v5160 = vpop.f32.mrf.mxu0
    %v5161 = vadd.f32 %v5032, %v5160
    %5162 = vmatmul.bf16.gmra.mxu0 %v983
    %v5163 = vpop.f32.mrf.mxu0
    %v5164 = vadd.f32 %v5035, %v5163
    %v5165 = vpop.f32.mrf.mxu0
    %v5166 = vadd.f32 %v5037, %v5165
    %5167 = vmatmul.bf16.gmra.mxu0 %v989
    %v5168 = vpop.f32.mrf.mxu0
    %v5169 = vadd.f32 %v5040, %v5168
    %v5170 = vpop.f32.mrf.mxu0
    %v5171 = vadd.f32 %v5042, %v5170
    %5172 = vmatmul.bf16.gmra.mxu0 %v995
    %v5173 = vpop.f32.mrf.mxu0
    %v5174 = vadd.f32 %v5045, %v5173
    %v5175 = vpop.f32.mrf.mxu0
    %v5176 = vadd.f32 %v5047, %v5175
    %5177 = vmatmul.bf16.gmra.mxu0 %v1001
    %v5178 = vpop.f32.mrf.mxu0
    %v5179 = vadd.f32 %v5050, %v5178
    %v5180 = vpop.f32.mrf.mxu0
    %v5181 = vadd.f32 %v5052, %v5180
    %5182 = vmatmul.bf16.gmra.mxu0 %v1007
    %v5183 = vpop.f32.mrf.mxu0
    %v5184 = vadd.f32 %v5055, %v5183
    %v5185 = vpop.f32.mrf.mxu0
    %v5186 = vadd.f32 %v5057, %v5185
    %5187 = vmatmul.bf16.gmra.mxu0 %v1013
    %v5188 = vpop.f32.mrf.mxu0
    %v5189 = vadd.f32 %v5060, %v5188
    %v5190 = vpop.f32.mrf.mxu0
    %v5191 = vadd.f32 %v5062, %v5190
    %5192 = vmatmul.bf16.gmra.mxu0 %v1019
    %v5193 = vpop.f32.mrf.mxu0
    %v5194 = vadd.f32 %v5065, %v5193
    %v5195 = vpop.f32.mrf.mxu0
    %v5196 = vadd.f32 %v5067, %v5195
    %5197 = vmatmul.bf16.gmra.mxu0 %v1025
    %v5198 = vpop.f32.mrf.mxu0
    %v5199 = vadd.f32 %v5070, %v5198
    %v5200 = vpop.f32.mrf.mxu0
    %v5201 = vadd.f32 %v5072, %v5200
    %5202 = vmatmul.bf16.gmra.mxu0 %v1031
    %v5203 = vpop.f32.mrf.mxu0
    %v5204 = vadd.f32 %v5075, %v5203
    %v5205 = vpop.f32.mrf.mxu0
    %v5206 = vadd.f32 %v5077, %v5205
    %5207 = vmatmul.bf16.gmra.mxu0 %v1037
    %v5208 = vpop.f32.mrf.mxu0
    %v5209 = vadd.f32 %v5080, %v5208
    %v5210 = vpop.f32.mrf.mxu0
    %v5211 = vadd.f32 %v5082, %v5210
    %5212 = vmatmul.bf16.gmra.mxu0 %v1043
    %v5213 = vpop.f32.mrf.mxu0
    %v5214 = vadd.f32 %v5085, %v5213
    %v5215 = vpop.f32.mrf.mxu0
    %v5216 = vadd.f32 %v5087, %v5215
    %5217 = vmatmul.bf16.gmra.mxu0 %v1049
    %v5218 = vpop.f32.mrf.mxu0
    %v5219 = vadd.f32 %v5090, %v5218
    %v5220 = vpop.f32.mrf.mxu0
    %v5221 = vadd.f32 %v5092, %v5220
    %5222 = vmatmul.bf16.gmra.mxu0 %v1055
    %v5223 = vpop.f32.mrf.mxu0
    %v5224 = vadd.f32 %v5095, %v5223
    %v5225 = vpop.f32.mrf.mxu0
    %v5226 = vadd.f32 %v5097, %v5225
    %5227 = vmatmul.bf16.gmra.mxu0 %v1061
    %v5228 = vpop.f32.mrf.mxu0
    %v5229 = vadd.f32 %v5100, %v5228
    %v5230 = vpop.f32.mrf.mxu0
    %v5231 = vadd.f32 %v5102, %v5230
    %5232 = vmatmul.bf16.gmra.mxu0 %v1067
    %v5233 = vpop.f32.mrf.mxu0
    %v5234 = vadd.f32 %v5105, %v5233
    %v5235 = vpop.f32.mrf.mxu0
    %v5236 = vadd.f32 %v5107, %v5235
    %5237 = vmatmul.bf16.gmra.mxu0 %v1073
    %v5238 = vpop.f32.mrf.mxu0
    %v5239 = vadd.f32 %v5110, %v5238
    %v5240 = vpop.f32.mrf.mxu0
    %v5241 = vadd.f32 %v5112, %v5240
    %5242 = vmatmul.bf16.gmra.mxu0 %v1079
    %v5243 = vpop.f32.mrf.mxu0
    %v5244 = vadd.f32 %v5115, %v5243
    %v5245 = vpop.f32.mrf.mxu0
    %v5246 = vadd.f32 %v5117, %v5245
    %5247 = vdwg.mxu0
    %5248 = vmatpush.bf16.xpose.msra.mxu0 %v2280
    %5249 = vmatpush.bf16.xpose.msra.mxu0 %v2274
    %5250 = vmatpush.bf16.xpose.msra.mxu0 %v2268
    %5251 = vmatpush.bf16.xpose.msra.mxu0 %v2262
    %5252 = vmatpush.bf16.xpose.msra.mxu0 %v2256
    %5253 = vmatpush.bf16.xpose.msra.mxu0 %v2250
    %5254 = vmatpush.bf16.xpose.msra.mxu0 %v2244
    %5255 = vmatpush.bf16.xpose.msra.mxu0 %v2238
    %5256 = vmatmul.bf16.gmra.mxu0 %v942
    %v5257 = vpop.f32.mrf.mxu0
    %v5258 = vadd.f32 %v5129, %v5257
    %v5259 = vpop.f32.mrf.mxu0
    %v5260 = vadd.f32 %v5131, %v5259
    %5261 = vmatmul.bf16.gmra.mxu0 %v948
    %v5262 = vpop.f32.mrf.mxu0
    %v5263 = vadd.f32 %v5134, %v5262
    %v5264 = vpop.f32.mrf.mxu0
    %v5265 = vadd.f32 %v5136, %v5264
    %5266 = vmatmul.bf16.gmra.mxu0 %v954
    %v5267 = vpop.f32.mrf.mxu0
    %v5268 = vadd.f32 %v5139, %v5267
    %v5269 = vpop.f32.mrf.mxu0
    %v5270 = vadd.f32 %v5141, %v5269
    %5271 = vmatmul.bf16.gmra.mxu0 %v960
    %v5272 = vpop.f32.mrf.mxu0
    %v5273 = vadd.f32 %v5144, %v5272
    %v5274 = vpop.f32.mrf.mxu0
    %v5275 = vadd.f32 %v5146, %v5274
    %5276 = vmatmul.bf16.gmra.mxu0 %v966
    %v5277 = vpop.f32.mrf.mxu0
    %v5278 = vadd.f32 %v5149, %v5277
    %v5279 = vpop.f32.mrf.mxu0
    %v5280 = vadd.f32 %v5151, %v5279
    %5281 = vmatmul.bf16.gmra.mxu0 %v972
    %v5282 = vpop.f32.mrf.mxu0
    %v5283 = vadd.f32 %v5154, %v5282
    %v5284 = vpop.f32.mrf.mxu0
    %v5285 = vadd.f32 %v5156, %v5284
    %5286 = vmatmul.bf16.gmra.mxu0 %v978
    %v5287 = vpop.f32.mrf.mxu0
    %v5288 = vadd.f32 %v5159, %v5287
    %v5289 = vpop.f32.mrf.mxu0
    %v5290 = vadd.f32 %v5161, %v5289
    %5291 = vmatmul.bf16.gmra.mxu0 %v984
    %v5292 = vpop.f32.mrf.mxu0
    %v5293 = vadd.f32 %v5164, %v5292
    %v5294 = vpop.f32.mrf.mxu0
    %v5295 = vadd.f32 %v5166, %v5294
    %5296 = vmatmul.bf16.gmra.mxu0 %v990
    %v5297 = vpop.f32.mrf.mxu0
    %v5298 = vadd.f32 %v5169, %v5297
    %v5299 = vpop.f32.mrf.mxu0
    %v5300 = vadd.f32 %v5171, %v5299
    %5301 = vmatmul.bf16.gmra.mxu0 %v996
    %v5302 = vpop.f32.mrf.mxu0
    %v5303 = vadd.f32 %v5174, %v5302
    %v5304 = vpop.f32.mrf.mxu0
    %v5305 = vadd.f32 %v5176, %v5304
    %5306 = vmatmul.bf16.gmra.mxu0 %v1002
    %v5307 = vpop.f32.mrf.mxu0
    %v5308 = vadd.f32 %v5179, %v5307
    %v5309 = vpop.f32.mrf.mxu0
    %v5310 = vadd.f32 %v5181, %v5309
    %5311 = vmatmul.bf16.gmra.mxu0 %v1008
    %v5312 = vpop.f32.mrf.mxu0
    %v5313 = vadd.f32 %v5184, %v5312
    %v5314 = vpop.f32.mrf.mxu0
    %v5315 = vadd.f32 %v5186, %v5314
    %5316 = vmatmul.bf16.gmra.mxu0 %v1014
    %v5317 = vpop.f32.mrf.mxu0
    %v5318 = vadd.f32 %v5189, %v5317
    %v5319 = vpop.f32.mrf.mxu0
    %v5320 = vadd.f32 %v5191, %v5319
    %5321 = vmatmul.bf16.gmra.mxu0 %v1020
    %v5322 = vpop.f32.mrf.mxu0
    %v5323 = vadd.f32 %v5194, %v5322
    %v5324 = vpop.f32.mrf.mxu0
    %v5325 = vadd.f32 %v5196, %v5324
    %5326 = vmatmul.bf16.gmra.mxu0 %v1026
    %v5327 = vpop.f32.mrf.mxu0
    %v5328 = vadd.f32 %v5199, %v5327
    %v5329 = vpop.f32.mrf.mxu0
    %v5330 = vadd.f32 %v5201, %v5329
    %5331 = vmatmul.bf16.gmra.mxu0 %v1032
    %v5332 = vpop.f32.mrf.mxu0
    %v5333 = vadd.f32 %v5204, %v5332
    %v5334 = vpop.f32.mrf.mxu0
    %v5335 = vadd.f32 %v5206, %v5334
    %5336 = vmatmul.bf16.gmra.mxu0 %v1038
    %v5337 = vpop.f32.mrf.mxu0
    %v5338 = vadd.f32 %v5209, %v5337
    %v5339 = vpop.f32.mrf.mxu0
    %v5340 = vadd.f32 %v5211, %v5339
    %5341 = vmatmul.bf16.gmra.mxu0 %v1044
    %v5342 = vpop.f32.mrf.mxu0
    %v5343 = vadd.f32 %v5214, %v5342
    %v5344 = vpop.f32.mrf.mxu0
    %v5345 = vadd.f32 %v5216, %v5344
    %5346 = vmatmul.bf16.gmra.mxu0 %v1050
    %v5347 = vpop.f32.mrf.mxu0
    %v5348 = vadd.f32 %v5219, %v5347
    %v5349 = vpop.f32.mrf.mxu0
    %v5350 = vadd.f32 %v5221, %v5349
    %5351 = vmatmul.bf16.gmra.mxu0 %v1056
    %v5352 = vpop.f32.mrf.mxu0
    %v5353 = vadd.f32 %v5224, %v5352
    %v5354 = vpop.f32.mrf.mxu0
    %v5355 = vadd.f32 %v5226, %v5354
    %5356 = vmatmul.bf16.gmra.mxu0 %v1062
    %v5357 = vpop.f32.mrf.mxu0
    %v5358 = vadd.f32 %v5229, %v5357
    %v5359 = vpop.f32.mrf.mxu0
    %v5360 = vadd.f32 %v5231, %v5359
    %5361 = vmatmul.bf16.gmra.mxu0 %v1068
    %v5362 = vpop.f32.mrf.mxu0
    %v5363 = vadd.f32 %v5234, %v5362
    %v5364 = vpop.f32.mrf.mxu0
    %v5365 = vadd.f32 %v5236, %v5364
    %5366 = vmatmul.bf16.gmra.mxu0 %v1074
    %v5367 = vpop.f32.mrf.mxu0
    %v5368 = vadd.f32 %v5239, %v5367
    %v5369 = vpop.f32.mrf.mxu0
    %v5370 = vadd.f32 %v5241, %v5369
    %5371 = vmatmul.bf16.gmra.mxu0 %v1080
    %v5372 = vpop.f32.mrf.mxu0
    %v5373 = vadd.f32 %v5244, %v5372
    %v5374 = vpop.f32.mrf.mxu0
    %v5375 = vadd.f32 %v5246, %v5374
    %5376 = vdwg.mxu0
    %5377 = vmatpush.bf16.xpose.msra.mxu0 %v2281
    %5378 = vmatpush.bf16.xpose.msra.mxu0 %v2275
    %5379 = vmatpush.bf16.xpose.msra.mxu0 %v2269
    %5380 = vmatpush.bf16.xpose.msra.mxu0 %v2263
    %5381 = vmatpush.bf16.xpose.msra.mxu0 %v2257
    %5382 = vmatpush.bf16.xpose.msra.mxu0 %v2251
    %5383 = vmatpush.bf16.xpose.msra.mxu0 %v2245
    %5384 = vmatpush.bf16.xpose.msra.mxu0 %v2239
    %5385 = vmatmul.bf16.gmra.mxu0 %v943
    %v5386 = vpop.f32.mrf.mxu0
    %v5387 = vadd.f32 %v5258, %v5386
    %v5388 = vpop.f32.mrf.mxu0
    %v5389 = vadd.f32 %v5260, %v5388
    %5390 = vmatmul.bf16.gmra.mxu0 %v949
    %v5391 = vpop.f32.mrf.mxu0
    %v5392 = vadd.f32 %v5263, %v5391
    %v5393 = vpop.f32.mrf.mxu0
    %v5394 = vadd.f32 %v5265, %v5393
    %5395 = vmatmul.bf16.gmra.mxu0 %v955
    %v5396 = vpop.f32.mrf.mxu0
    %v5397 = vadd.f32 %v5268, %v5396
    %v5398 = vpop.f32.mrf.mxu0
    %v5399 = vadd.f32 %v5270, %v5398
    %5400 = vmatmul.bf16.gmra.mxu0 %v961
    %v5401 = vpop.f32.mrf.mxu0
    %v5402 = vadd.f32 %v5273, %v5401
    %v5403 = vpop.f32.mrf.mxu0
    %v5404 = vadd.f32 %v5275, %v5403
    %5405 = vmatmul.bf16.gmra.mxu0 %v967
    %v5406 = vpop.f32.mrf.mxu0
    %v5407 = vadd.f32 %v5278, %v5406
    %v5408 = vpop.f32.mrf.mxu0
    %v5409 = vadd.f32 %v5280, %v5408
    %5410 = vmatmul.bf16.gmra.mxu0 %v973
    %v5411 = vpop.f32.mrf.mxu0
    %v5412 = vadd.f32 %v5283, %v5411
    %v5413 = vpop.f32.mrf.mxu0
    %v5414 = vadd.f32 %v5285, %v5413
    %5415 = vmatmul.bf16.gmra.mxu0 %v979
    %v5416 = vpop.f32.mrf.mxu0
    %v5417 = vadd.f32 %v5288, %v5416
    %v5418 = vpop.f32.mrf.mxu0
    %v5419 = vadd.f32 %v5290, %v5418
    %5420 = vmatmul.bf16.gmra.mxu0 %v985
    %v5421 = vpop.f32.mrf.mxu0
    %v5422 = vadd.f32 %v5293, %v5421
    %v5423 = vpop.f32.mrf.mxu0
    %v5424 = vadd.f32 %v5295, %v5423
    %5425 = vmatmul.bf16.gmra.mxu0 %v991
    %v5426 = vpop.f32.mrf.mxu0
    %v5427 = vadd.f32 %v5298, %v5426
    %v5428 = vpop.f32.mrf.mxu0
    %v5429 = vadd.f32 %v5300, %v5428
    %5430 = vmatmul.bf16.gmra.mxu0 %v997
    %v5431 = vpop.f32.mrf.mxu0
    %v5432 = vadd.f32 %v5303, %v5431
    %v5433 = vpop.f32.mrf.mxu0
    %v5434 = vadd.f32 %v5305, %v5433
    %5435 = vmatmul.bf16.gmra.mxu0 %v1003
    %v5436 = vpop.f32.mrf.mxu0
    %v5437 = vadd.f32 %v5308, %v5436
    %v5438 = vpop.f32.mrf.mxu0
    %v5439 = vadd.f32 %v5310, %v5438
    %5440 = vmatmul.bf16.gmra.mxu0 %v1009
    %v5441 = vpop.f32.mrf.mxu0
    %v5442 = vadd.f32 %v5313, %v5441
    %v5443 = vpop.f32.mrf.mxu0
    %v5444 = vadd.f32 %v5315, %v5443
    %5445 = vmatmul.bf16.gmra.mxu0 %v1015
    %v5446 = vpop.f32.mrf.mxu0
    %v5447 = vadd.f32 %v5318, %v5446
    %v5448 = vpop.f32.mrf.mxu0
    %v5449 = vadd.f32 %v5320, %v5448
    %5450 = vmatmul.bf16.gmra.mxu0 %v1021
    %v5451 = vpop.f32.mrf.mxu0
    %v5452 = vadd.f32 %v5323, %v5451
    %v5453 = vpop.f32.mrf.mxu0
    %v5454 = vadd.f32 %v5325, %v5453
    %5455 = vmatmul.bf16.gmra.mxu0 %v1027
    %v5456 = vpop.f32.mrf.mxu0
    %v5457 = vadd.f32 %v5328, %v5456
    %v5458 = vpop.f32.mrf.mxu0
    %v5459 = vadd.f32 %v5330, %v5458
    %5460 = vmatmul.bf16.gmra.mxu0 %v1033
    %v5461 = vpop.f32.mrf.mxu0
    %v5462 = vadd.f32 %v5333, %v5461
    %v5463 = vpop.f32.mrf.mxu0
    %v5464 = vadd.f32 %v5335, %v5463
    %5465 = vmatmul.bf16.gmra.mxu0 %v1039
    %v5466 = vpop.f32.mrf.mxu0
    %v5467 = vadd.f32 %v5338, %v5466
    %v5468 = vpop.f32.mrf.mxu0
    %v5469 = vadd.f32 %v5340, %v5468
    %5470 = vmatmul.bf16.gmra.mxu0 %v1045
    %v5471 = vpop.f32.mrf.mxu0
    %v5472 = vadd.f32 %v5343, %v5471
    %v5473 = vpop.f32.mrf.mxu0
    %v5474 = vadd.f32 %v5345, %v5473
    %5475 = vmatmul.bf16.gmra.mxu0 %v1051
    %v5476 = vpop.f32.mrf.mxu0
    %v5477 = vadd.f32 %v5348, %v5476
    %v5478 = vpop.f32.mrf.mxu0
    %v5479 = vadd.f32 %v5350, %v5478
    %5480 = vmatmul.bf16.gmra.mxu0 %v1057
    %v5481 = vpop.f32.mrf.mxu0
    %v5482 = vadd.f32 %v5353, %v5481
    %v5483 = vpop.f32.mrf.mxu0
    %v5484 = vadd.f32 %v5355, %v5483
    %5485 = vmatmul.bf16.gmra.mxu0 %v1063
    %v5486 = vpop.f32.mrf.mxu0
    %v5487 = vadd.f32 %v5358, %v5486
    %v5488 = vpop.f32.mrf.mxu0
    %v5489 = vadd.f32 %v5360, %v5488
    %5490 = vmatmul.bf16.gmra.mxu0 %v1069
    %v5491 = vpop.f32.mrf.mxu0
    %v5492 = vadd.f32 %v5363, %v5491
    %v5493 = vpop.f32.mrf.mxu0
    %v5494 = vadd.f32 %v5365, %v5493
    %5495 = vmatmul.bf16.gmra.mxu0 %v1075
    %v5496 = vpop.f32.mrf.mxu0
    %v5497 = vadd.f32 %v5368, %v5496
    %v5498 = vpop.f32.mrf.mxu0
    %v5499 = vadd.f32 %v5370, %v5498
    %5500 = vmatmul.bf16.gmra.mxu0 %v1081
    %v5501 = vpop.f32.mrf.mxu0
    %v5502 = vadd.f32 %v5373, %v5501
    %v5503 = vpop.f32.mrf.mxu0
    %v5504 = vadd.f32 %v5375, %v5503
    %5505 = vdwg.mxu0
    %5506 = vmatpush.bf16.xpose.msra.mxu0 %v2282
    %5507 = vmatpush.bf16.xpose.msra.mxu0 %v2276
    %5508 = vmatpush.bf16.xpose.msra.mxu0 %v2270
    %5509 = vmatpush.bf16.xpose.msra.mxu0 %v2264
    %5510 = vmatpush.bf16.xpose.msra.mxu0 %v2258
    %5511 = vmatpush.bf16.xpose.msra.mxu0 %v2252
    %5512 = vmatpush.bf16.xpose.msra.mxu0 %v2246
    %5513 = vmatpush.bf16.xpose.msra.mxu0 %v2240
    %5514 = vmatmul.bf16.gmra.mxu0 %v944
    %v5515 = vpop.f32.mrf.mxu0
    %v5516 = vadd.f32 %v5387, %v5515
    %v5517 = vpop.f32.mrf.mxu0
    %v5518 = vadd.f32 %v5389, %v5517
    %5519 = vmatmul.bf16.gmra.mxu0 %v950
    %v5520 = vpop.f32.mrf.mxu0
    %v5521 = vadd.f32 %v5392, %v5520
    %v5522 = vpop.f32.mrf.mxu0
    %v5523 = vadd.f32 %v5394, %v5522
    %5524 = vmatmul.bf16.gmra.mxu0 %v956
    %v5525 = vpop.f32.mrf.mxu0
    %v5526 = vadd.f32 %v5397, %v5525
    %v5527 = vpop.f32.mrf.mxu0
    %v5528 = vadd.f32 %v5399, %v5527
    %5529 = vmatmul.bf16.gmra.mxu0 %v962
    %v5530 = vpop.f32.mrf.mxu0
    %v5531 = vadd.f32 %v5402, %v5530
    %v5532 = vpop.f32.mrf.mxu0
    %v5533 = vadd.f32 %v5404, %v5532
    %5534 = vmatmul.bf16.gmra.mxu0 %v968
    %v5535 = vpop.f32.mrf.mxu0
    %v5536 = vadd.f32 %v5407, %v5535
    %v5537 = vpop.f32.mrf.mxu0
    %v5538 = vadd.f32 %v5409, %v5537
    %5539 = vmatmul.bf16.gmra.mxu0 %v974
    %v5540 = vpop.f32.mrf.mxu0
    %v5541 = vadd.f32 %v5412, %v5540
    %v5542 = vpop.f32.mrf.mxu0
    %v5543 = vadd.f32 %v5414, %v5542
    %5544 = vmatmul.bf16.gmra.mxu0 %v980
    %v5545 = vpop.f32.mrf.mxu0
    %v5546 = vadd.f32 %v5417, %v5545
    %v5547 = vpop.f32.mrf.mxu0
    %v5548 = vadd.f32 %v5419, %v5547
    %5549 = vmatmul.bf16.gmra.mxu0 %v986
    %v5550 = vpop.f32.mrf.mxu0
    %v5551 = vadd.f32 %v5422, %v5550
    %v5552 = vpop.f32.mrf.mxu0
    %v5553 = vadd.f32 %v5424, %v5552
    %5554 = vmatmul.bf16.gmra.mxu0 %v992
    %v5555 = vpop.f32.mrf.mxu0
    %v5556 = vadd.f32 %v5427, %v5555
    %v5557 = vpop.f32.mrf.mxu0
    %v5558 = vadd.f32 %v5429, %v5557
    %5559 = vmatmul.bf16.gmra.mxu0 %v998
    %v5560 = vpop.f32.mrf.mxu0
    %v5561 = vadd.f32 %v5432, %v5560
    %v5562 = vpop.f32.mrf.mxu0
    %v5563 = vadd.f32 %v5434, %v5562
    %5564 = vmatmul.bf16.gmra.mxu0 %v1004
    %v5565 = vpop.f32.mrf.mxu0
    %v5566 = vadd.f32 %v5437, %v5565
    %v5567 = vpop.f32.mrf.mxu0
    %v5568 = vadd.f32 %v5439, %v5567
    %5569 = vmatmul.bf16.gmra.mxu0 %v1010
    %v5570 = vpop.f32.mrf.mxu0
    %v5571 = vadd.f32 %v5442, %v5570
    %v5572 = vpop.f32.mrf.mxu0
    %v5573 = vadd.f32 %v5444, %v5572
    %5574 = vmatmul.bf16.gmra.mxu0 %v1016
    %v5575 = vpop.f32.mrf.mxu0
    %v5576 = vadd.f32 %v5447, %v5575
    %v5577 = vpop.f32.mrf.mxu0
    %v5578 = vadd.f32 %v5449, %v5577
    %5579 = vmatmul.bf16.gmra.mxu0 %v1022
    %v5580 = vpop.f32.mrf.mxu0
    %v5581 = vadd.f32 %v5452, %v5580
    %v5582 = vpop.f32.mrf.mxu0
    %v5583 = vadd.f32 %v5454, %v5582
    %5584 = vmatmul.bf16.gmra.mxu0 %v1028
    %v5585 = vpop.f32.mrf.mxu0
    %v5586 = vadd.f32 %v5457, %v5585
    %v5587 = vpop.f32.mrf.mxu0
    %v5588 = vadd.f32 %v5459, %v5587
    %5589 = vmatmul.bf16.gmra.mxu0 %v1034
    %v5590 = vpop.f32.mrf.mxu0
    %v5591 = vadd.f32 %v5462, %v5590
    %v5592 = vpop.f32.mrf.mxu0
    %v5593 = vadd.f32 %v5464, %v5592
    %5594 = vmatmul.bf16.gmra.mxu0 %v1040
    %v5595 = vpop.f32.mrf.mxu0
    %v5596 = vadd.f32 %v5467, %v5595
    %v5597 = vpop.f32.mrf.mxu0
    %v5598 = vadd.f32 %v5469, %v5597
    %5599 = vmatmul.bf16.gmra.mxu0 %v1046
    %v5600 = vpop.f32.mrf.mxu0
    %v5601 = vadd.f32 %v5472, %v5600
    %v5602 = vpop.f32.mrf.mxu0
    %v5603 = vadd.f32 %v5474, %v5602
    %5604 = vmatmul.bf16.gmra.mxu0 %v1052
    %v5605 = vpop.f32.mrf.mxu0
    %v5606 = vadd.f32 %v5477, %v5605
    %v5607 = vpop.f32.mrf.mxu0
    %v5608 = vadd.f32 %v5479, %v5607
    %5609 = vmatmul.bf16.gmra.mxu0 %v1058
    %v5610 = vpop.f32.mrf.mxu0
    %v5611 = vadd.f32 %v5482, %v5610
    %v5612 = vpop.f32.mrf.mxu0
    %v5613 = vadd.f32 %v5484, %v5612
    %5614 = vmatmul.bf16.gmra.mxu0 %v1064
    %v5615 = vpop.f32.mrf.mxu0
    %v5616 = vadd.f32 %v5487, %v5615
    %v5617 = vpop.f32.mrf.mxu0
    %v5618 = vadd.f32 %v5489, %v5617
    %5619 = vmatmul.bf16.gmra.mxu0 %v1070
    %v5620 = vpop.f32.mrf.mxu0
    %v5621 = vadd.f32 %v5492, %v5620
    %v5622 = vpop.f32.mrf.mxu0
    %v5623 = vadd.f32 %v5494, %v5622
    %5624 = vmatmul.bf16.gmra.mxu0 %v1076
    %v5625 = vpop.f32.mrf.mxu0
    %v5626 = vadd.f32 %v5497, %v5625
    %v5627 = vpop.f32.mrf.mxu0
    %v5628 = vadd.f32 %v5499, %v5627
    %5629 = vmatmul.bf16.gmra.mxu0 %v1082
    %v5630 = vpop.f32.mrf.mxu0
    %v5631 = vadd.f32 %v5502, %v5630
    %v5632 = vpop.f32.mrf.mxu0
    %v5633 = vadd.f32 %v5504, %v5632
    %5634 = vdwg.mxu0
    %5635 = vmatpush.bf16.xpose.msra.mxu0 %v2283
    %5636 = vmatpush.bf16.xpose.msra.mxu0 %v2277
    %5637 = vmatpush.bf16.xpose.msra.mxu0 %v2271
    %5638 = vmatpush.bf16.xpose.msra.mxu0 %v2265
    %5639 = vmatpush.bf16.xpose.msra.mxu0 %v2259
    %5640 = vmatpush.bf16.xpose.msra.mxu0 %v2253
    %5641 = vmatpush.bf16.xpose.msra.mxu0 %v2247
    %5642 = vmatpush.bf16.xpose.msra.mxu0 %v2241
    %5643 = vmatmul.bf16.gmra.mxu0 %v945
    %v5644 = vpop.f32.mrf.mxu0
    %v5645 = vadd.f32 %v5516, %v5644
    %v5646 = vpop.f32.mrf.mxu0
    %v5647 = vadd.f32 %v5518, %v5646
    %5648 = vmatmul.bf16.gmra.mxu0 %v951
    %v5649 = vpop.f32.mrf.mxu0
    %v5650 = vadd.f32 %v5521, %v5649
    %v5651 = vpop.f32.mrf.mxu0
    %v5652 = vadd.f32 %v5523, %v5651
    %5653 = vmatmul.bf16.gmra.mxu0 %v957
    %v5654 = vpop.f32.mrf.mxu0
    %v5655 = vadd.f32 %v5526, %v5654
    %v5656 = vpop.f32.mrf.mxu0
    %v5657 = vadd.f32 %v5528, %v5656
    %5658 = vmatmul.bf16.gmra.mxu0 %v963
    %v5659 = vpop.f32.mrf.mxu0
    %v5660 = vadd.f32 %v5531, %v5659
    %v5661 = vpop.f32.mrf.mxu0
    %v5662 = vadd.f32 %v5533, %v5661
    %5663 = vmatmul.bf16.gmra.mxu0 %v969
    %v5664 = vpop.f32.mrf.mxu0
    %v5665 = vadd.f32 %v5536, %v5664
    %v5666 = vpop.f32.mrf.mxu0
    %v5667 = vadd.f32 %v5538, %v5666
    %5668 = vmatmul.bf16.gmra.mxu0 %v975
    %v5669 = vpop.f32.mrf.mxu0
    %v5670 = vadd.f32 %v5541, %v5669
    %v5671 = vpop.f32.mrf.mxu0
    %v5672 = vadd.f32 %v5543, %v5671
    %5673 = vmatmul.bf16.gmra.mxu0 %v981
    %v5674 = vpop.f32.mrf.mxu0
    %v5675 = vadd.f32 %v5546, %v5674
    %v5676 = vpop.f32.mrf.mxu0
    %v5677 = vadd.f32 %v5548, %v5676
    %5678 = vmatmul.bf16.gmra.mxu0 %v987
    %v5679 = vpop.f32.mrf.mxu0
    %v5680 = vadd.f32 %v5551, %v5679
    %v5681 = vpop.f32.mrf.mxu0
    %v5682 = vadd.f32 %v5553, %v5681
    %5683 = vmatmul.bf16.gmra.mxu0 %v993
    %v5684 = vpop.f32.mrf.mxu0
    %v5685 = vadd.f32 %v5556, %v5684
    %v5686 = vpop.f32.mrf.mxu0
    %v5687 = vadd.f32 %v5558, %v5686
    %5688 = vmatmul.bf16.gmra.mxu0 %v999
    %v5689 = vpop.f32.mrf.mxu0
    %v5690 = vadd.f32 %v5561, %v5689
    %v5691 = vpop.f32.mrf.mxu0
    %v5692 = vadd.f32 %v5563, %v5691
    %5693 = vmatmul.bf16.gmra.mxu0 %v1005
    %v5694 = vpop.f32.mrf.mxu0
    %v5695 = vadd.f32 %v5566, %v5694
    %v5696 = vpop.f32.mrf.mxu0
    %v5697 = vadd.f32 %v5568, %v5696
    %5698 = vmatmul.bf16.gmra.mxu0 %v1011
    %v5699 = vpop.f32.mrf.mxu0
    %v5700 = vadd.f32 %v5571, %v5699
    %v5701 = vpop.f32.mrf.mxu0
    %v5702 = vadd.f32 %v5573, %v5701
    %5703 = vmatmul.bf16.gmra.mxu0 %v1017
    %v5704 = vpop.f32.mrf.mxu0
    %v5705 = vadd.f32 %v5576, %v5704
    %v5706 = vpop.f32.mrf.mxu0
    %v5707 = vadd.f32 %v5578, %v5706
    %5708 = vmatmul.bf16.gmra.mxu0 %v1023
    %v5709 = vpop.f32.mrf.mxu0
    %v5710 = vadd.f32 %v5581, %v5709
    %v5711 = vpop.f32.mrf.mxu0
    %v5712 = vadd.f32 %v5583, %v5711
    %5713 = vmatmul.bf16.gmra.mxu0 %v1029
    %v5714 = vpop.f32.mrf.mxu0
    %v5715 = vadd.f32 %v5586, %v5714
    %v5716 = vpop.f32.mrf.mxu0
    %v5717 = vadd.f32 %v5588, %v5716
    %5718 = vmatmul.bf16.gmra.mxu0 %v1035
    %v5719 = vpop.f32.mrf.mxu0
    %v5720 = vadd.f32 %v5591, %v5719
    %v5721 = vpop.f32.mrf.mxu0
    %v5722 = vadd.f32 %v5593, %v5721
    %5723 = vmatmul.bf16.gmra.mxu0 %v1041
    %v5724 = vpop.f32.mrf.mxu0
    %v5725 = vadd.f32 %v5596, %v5724
    %v5726 = vpop.f32.mrf.mxu0
    %v5727 = vadd.f32 %v5598, %v5726
    %5728 = vmatmul.bf16.gmra.mxu0 %v1047
    %v5729 = vpop.f32.mrf.mxu0
    %v5730 = vadd.f32 %v5601, %v5729
    %v5731 = vpop.f32.mrf.mxu0
    %v5732 = vadd.f32 %v5603, %v5731
    %5733 = vmatmul.bf16.gmra.mxu0 %v1053
    %v5734 = vpop.f32.mrf.mxu0
    %v5735 = vadd.f32 %v5606, %v5734
    %v5736 = vpop.f32.mrf.mxu0
    %v5737 = vadd.f32 %v5608, %v5736
    %5738 = vmatmul.bf16.gmra.mxu0 %v1059
    %v5739 = vpop.f32.mrf.mxu0
    %v5740 = vadd.f32 %v5611, %v5739
    %v5741 = vpop.f32.mrf.mxu0
    %v5742 = vadd.f32 %v5613, %v5741
    %5743 = vmatmul.bf16.gmra.mxu0 %v1065
    %v5744 = vpop.f32.mrf.mxu0
    %v5745 = vadd.f32 %v5616, %v5744
    %v5746 = vpop.f32.mrf.mxu0
    %v5747 = vadd.f32 %v5618, %v5746
    %5748 = vmatmul.bf16.gmra.mxu0 %v1071
    %v5749 = vpop.f32.mrf.mxu0
    %v5750 = vadd.f32 %v5621, %v5749
    %v5751 = vpop.f32.mrf.mxu0
    %v5752 = vadd.f32 %v5623, %v5751
    %5753 = vmatmul.bf16.gmra.mxu0 %v1077
    %v5754 = vpop.f32.mrf.mxu0
    %v5755 = vadd.f32 %v5626, %v5754
    %v5756 = vpop.f32.mrf.mxu0
    %v5757 = vadd.f32 %v5628, %v5756
    %5758 = vmatmul.bf16.gmra.mxu0 %v1083
    %v5759 = vpop.f32.mrf.mxu0
    %v5760 = vadd.f32 %v5631, %v5759
    %v5761 = vpop.f32.mrf.mxu0
    %v5762 = vadd.f32 %v5633, %v5761
    %5763 = vdwg.mxu0
    %5764 = vmatpush.bf16.xpose.msra.mxu0 %v2326
    %5765 = vmatpush.bf16.xpose.msra.mxu0 %v2320
    %5766 = vmatpush.bf16.xpose.msra.mxu0 %v2314
    %5767 = vmatpush.bf16.xpose.msra.mxu0 %v2308
    %5768 = vmatpush.bf16.xpose.msra.mxu0 %v2302
    %5769 = vmatpush.bf16.xpose.msra.mxu0 %v2296
    %5770 = vmatpush.bf16.xpose.msra.mxu0 %v2290
    %5771 = vmatpush.bf16.xpose.msra.mxu0 %v2284
    %5772 = vmatmul.bf16.gmra.mxu0 %v940
    %v5773 = vpop.f32.mrf.mxu0
    %v5774 = vadd.f32 %v500, %v5773
    %v5775 = vpop.f32.mrf.mxu0
    %v5776 = vadd.f32 %v500, %v5775
    %5777 = vmatmul.bf16.gmra.mxu0 %v946
    %v5778 = vpop.f32.mrf.mxu0
    %v5779 = vadd.f32 %v500, %v5778
    %v5780 = vpop.f32.mrf.mxu0
    %v5781 = vadd.f32 %v500, %v5780
    %5782 = vmatmul.bf16.gmra.mxu0 %v952
    %v5783 = vpop.f32.mrf.mxu0
    %v5784 = vadd.f32 %v500, %v5783
    %v5785 = vpop.f32.mrf.mxu0
    %v5786 = vadd.f32 %v500, %v5785
    %5787 = vmatmul.bf16.gmra.mxu0 %v958
    %v5788 = vpop.f32.mrf.mxu0
    %v5789 = vadd.f32 %v500, %v5788
    %v5790 = vpop.f32.mrf.mxu0
    %v5791 = vadd.f32 %v500, %v5790
    %5792 = vmatmul.bf16.gmra.mxu0 %v964
    %v5793 = vpop.f32.mrf.mxu0
    %v5794 = vadd.f32 %v500, %v5793
    %v5795 = vpop.f32.mrf.mxu0
    %v5796 = vadd.f32 %v500, %v5795
    %5797 = vmatmul.bf16.gmra.mxu0 %v970
    %v5798 = vpop.f32.mrf.mxu0
    %v5799 = vadd.f32 %v500, %v5798
    %v5800 = vpop.f32.mrf.mxu0
    %v5801 = vadd.f32 %v500, %v5800
    %5802 = vmatmul.bf16.gmra.mxu0 %v976
    %v5803 = vpop.f32.mrf.mxu0
    %v5804 = vadd.f32 %v500, %v5803
    %v5805 = vpop.f32.mrf.mxu0
    %v5806 = vadd.f32 %v500, %v5805
    %5807 = vmatmul.bf16.gmra.mxu0 %v982
    %v5808 = vpop.f32.mrf.mxu0
    %v5809 = vadd.f32 %v500, %v5808
    %v5810 = vpop.f32.mrf.mxu0
    %v5811 = vadd.f32 %v500, %v5810
    %5812 = vmatmul.bf16.gmra.mxu0 %v988
    %v5813 = vpop.f32.mrf.mxu0
    %v5814 = vadd.f32 %v500, %v5813
    %v5815 = vpop.f32.mrf.mxu0
    %v5816 = vadd.f32 %v500, %v5815
    %5817 = vmatmul.bf16.gmra.mxu0 %v994
    %v5818 = vpop.f32.mrf.mxu0
    %v5819 = vadd.f32 %v500, %v5818
    %v5820 = vpop.f32.mrf.mxu0
    %v5821 = vadd.f32 %v500, %v5820
    %5822 = vmatmul.bf16.gmra.mxu0 %v1000
    %v5823 = vpop.f32.mrf.mxu0
    %v5824 = vadd.f32 %v500, %v5823
    %v5825 = vpop.f32.mrf.mxu0
    %v5826 = vadd.f32 %v500, %v5825
    %5827 = vmatmul.bf16.gmra.mxu0 %v1006
    %v5828 = vpop.f32.mrf.mxu0
    %v5829 = vadd.f32 %v500, %v5828
    %v5830 = vpop.f32.mrf.mxu0
    %v5831 = vadd.f32 %v500, %v5830
    %5832 = vmatmul.bf16.gmra.mxu0 %v1012
    %v5833 = vpop.f32.mrf.mxu0
    %v5834 = vadd.f32 %v500, %v5833
    %v5835 = vpop.f32.mrf.mxu0
    %v5836 = vadd.f32 %v500, %v5835
    %5837 = vmatmul.bf16.gmra.mxu0 %v1018
    %v5838 = vpop.f32.mrf.mxu0
    %v5839 = vadd.f32 %v500, %v5838
    %v5840 = vpop.f32.mrf.mxu0
    %v5841 = vadd.f32 %v500, %v5840
    %5842 = vmatmul.bf16.gmra.mxu0 %v1024
    %v5843 = vpop.f32.mrf.mxu0
    %v5844 = vadd.f32 %v500, %v5843
    %v5845 = vpop.f32.mrf.mxu0
    %v5846 = vadd.f32 %v500, %v5845
    %5847 = vmatmul.bf16.gmra.mxu0 %v1030
    %v5848 = vpop.f32.mrf.mxu0
    %v5849 = vadd.f32 %v500, %v5848
    %v5850 = vpop.f32.mrf.mxu0
    %v5851 = vadd.f32 %v500, %v5850
    %5852 = vmatmul.bf16.gmra.mxu0 %v1036
    %v5853 = vpop.f32.mrf.mxu0
    %v5854 = vadd.f32 %v500, %v5853
    %v5855 = vpop.f32.mrf.mxu0
    %v5856 = vadd.f32 %v500, %v5855
    %5857 = vmatmul.bf16.gmra.mxu0 %v1042
    %v5858 = vpop.f32.mrf.mxu0
    %v5859 = vadd.f32 %v500, %v5858
    %v5860 = vpop.f32.mrf.mxu0
    %v5861 = vadd.f32 %v500, %v5860
    %5862 = vmatmul.bf16.gmra.mxu0 %v1048
    %v5863 = vpop.f32.mrf.mxu0
    %v5864 = vadd.f32 %v500, %v5863
    %v5865 = vpop.f32.mrf.mxu0
    %v5866 = vadd.f32 %v500, %v5865
    %5867 = vmatmul.bf16.gmra.mxu0 %v1054
    %v5868 = vpop.f32.mrf.mxu0
    %v5869 = vadd.f32 %v500, %v5868
    %v5870 = vpop.f32.mrf.mxu0
    %v5871 = vadd.f32 %v500, %v5870
    %5872 = vmatmul.bf16.gmra.mxu0 %v1060
    %v5873 = vpop.f32.mrf.mxu0
    %v5874 = vadd.f32 %v500, %v5873
    %v5875 = vpop.f32.mrf.mxu0
    %v5876 = vadd.f32 %v500, %v5875
    %5877 = vmatmul.bf16.gmra.mxu0 %v1066
    %v5878 = vpop.f32.mrf.mxu0
    %v5879 = vadd.f32 %v500, %v5878
    %v5880 = vpop.f32.mrf.mxu0
    %v5881 = vadd.f32 %v500, %v5880
    %5882 = vmatmul.bf16.gmra.mxu0 %v1072
    %v5883 = vpop.f32.mrf.mxu0
    %v5884 = vadd.f32 %v500, %v5883
    %v5885 = vpop.f32.mrf.mxu0
    %v5886 = vadd.f32 %v500, %v5885
    %5887 = vmatmul.bf16.gmra.mxu0 %v1078
    %v5888 = vpop.f32.mrf.mxu0
    %v5889 = vadd.f32 %v500, %v5888
    %v5890 = vpop.f32.mrf.mxu0
    %v5891 = vadd.f32 %v500, %v5890
    %5892 = vdwg.mxu0
    %5893 = vmatpush.bf16.xpose.msra.mxu0 %v2327
    %5894 = vmatpush.bf16.xpose.msra.mxu0 %v2321
    %5895 = vmatpush.bf16.xpose.msra.mxu0 %v2315
    %5896 = vmatpush.bf16.xpose.msra.mxu0 %v2309
    %5897 = vmatpush.bf16.xpose.msra.mxu0 %v2303
    %5898 = vmatpush.bf16.xpose.msra.mxu0 %v2297
    %5899 = vmatpush.bf16.xpose.msra.mxu0 %v2291
    %5900 = vmatpush.bf16.xpose.msra.mxu0 %v2285
    %5901 = vmatmul.bf16.gmra.mxu0 %v941
    %v5902 = vpop.f32.mrf.mxu0
    %v5903 = vadd.f32 %v5774, %v5902
    %v5904 = vpop.f32.mrf.mxu0
    %v5905 = vadd.f32 %v5776, %v5904
    %5906 = vmatmul.bf16.gmra.mxu0 %v947
    %v5907 = vpop.f32.mrf.mxu0
    %v5908 = vadd.f32 %v5779, %v5907
    %v5909 = vpop.f32.mrf.mxu0
    %v5910 = vadd.f32 %v5781, %v5909
    %5911 = vmatmul.bf16.gmra.mxu0 %v953
    %v5912 = vpop.f32.mrf.mxu0
    %v5913 = vadd.f32 %v5784, %v5912
    %v5914 = vpop.f32.mrf.mxu0
    %v5915 = vadd.f32 %v5786, %v5914
    %5916 = vmatmul.bf16.gmra.mxu0 %v959
    %v5917 = vpop.f32.mrf.mxu0
    %v5918 = vadd.f32 %v5789, %v5917
    %v5919 = vpop.f32.mrf.mxu0
    %v5920 = vadd.f32 %v5791, %v5919
    %5921 = vmatmul.bf16.gmra.mxu0 %v965
    %v5922 = vpop.f32.mrf.mxu0
    %v5923 = vadd.f32 %v5794, %v5922
    %v5924 = vpop.f32.mrf.mxu0
    %v5925 = vadd.f32 %v5796, %v5924
    %5926 = vmatmul.bf16.gmra.mxu0 %v971
    %v5927 = vpop.f32.mrf.mxu0
    %v5928 = vadd.f32 %v5799, %v5927
    %v5929 = vpop.f32.mrf.mxu0
    %v5930 = vadd.f32 %v5801, %v5929
    %5931 = vmatmul.bf16.gmra.mxu0 %v977
    %v5932 = vpop.f32.mrf.mxu0
    %v5933 = vadd.f32 %v5804, %v5932
    %v5934 = vpop.f32.mrf.mxu0
    %v5935 = vadd.f32 %v5806, %v5934
    %5936 = vmatmul.bf16.gmra.mxu0 %v983
    %v5937 = vpop.f32.mrf.mxu0
    %v5938 = vadd.f32 %v5809, %v5937
    %v5939 = vpop.f32.mrf.mxu0
    %v5940 = vadd.f32 %v5811, %v5939
    %5941 = vmatmul.bf16.gmra.mxu0 %v989
    %v5942 = vpop.f32.mrf.mxu0
    %v5943 = vadd.f32 %v5814, %v5942
    %v5944 = vpop.f32.mrf.mxu0
    %v5945 = vadd.f32 %v5816, %v5944
    %5946 = vmatmul.bf16.gmra.mxu0 %v995
    %v5947 = vpop.f32.mrf.mxu0
    %v5948 = vadd.f32 %v5819, %v5947
    %v5949 = vpop.f32.mrf.mxu0
    %v5950 = vadd.f32 %v5821, %v5949
    %5951 = vmatmul.bf16.gmra.mxu0 %v1001
    %v5952 = vpop.f32.mrf.mxu0
    %v5953 = vadd.f32 %v5824, %v5952
    %v5954 = vpop.f32.mrf.mxu0
    %v5955 = vadd.f32 %v5826, %v5954
    %5956 = vmatmul.bf16.gmra.mxu0 %v1007
    %v5957 = vpop.f32.mrf.mxu0
    %v5958 = vadd.f32 %v5829, %v5957
    %v5959 = vpop.f32.mrf.mxu0
    %v5960 = vadd.f32 %v5831, %v5959
    %5961 = vmatmul.bf16.gmra.mxu0 %v1013
    %v5962 = vpop.f32.mrf.mxu0
    %v5963 = vadd.f32 %v5834, %v5962
    %v5964 = vpop.f32.mrf.mxu0
    %v5965 = vadd.f32 %v5836, %v5964
    %5966 = vmatmul.bf16.gmra.mxu0 %v1019
    %v5967 = vpop.f32.mrf.mxu0
    %v5968 = vadd.f32 %v5839, %v5967
    %v5969 = vpop.f32.mrf.mxu0
    %v5970 = vadd.f32 %v5841, %v5969
    %5971 = vmatmul.bf16.gmra.mxu0 %v1025
    %v5972 = vpop.f32.mrf.mxu0
    %v5973 = vadd.f32 %v5844, %v5972
    %v5974 = vpop.f32.mrf.mxu0
    %v5975 = vadd.f32 %v5846, %v5974
    %5976 = vmatmul.bf16.gmra.mxu0 %v1031
    %v5977 = vpop.f32.mrf.mxu0
    %v5978 = vadd.f32 %v5849, %v5977
    %v5979 = vpop.f32.mrf.mxu0
    %v5980 = vadd.f32 %v5851, %v5979
    %5981 = vmatmul.bf16.gmra.mxu0 %v1037
    %v5982 = vpop.f32.mrf.mxu0
    %v5983 = vadd.f32 %v5854, %v5982
    %v5984 = vpop.f32.mrf.mxu0
    %v5985 = vadd.f32 %v5856, %v5984
    %5986 = vmatmul.bf16.gmra.mxu0 %v1043
    %v5987 = vpop.f32.mrf.mxu0
    %v5988 = vadd.f32 %v5859, %v5987
    %v5989 = vpop.f32.mrf.mxu0
    %v5990 = vadd.f32 %v5861, %v5989
    %5991 = vmatmul.bf16.gmra.mxu0 %v1049
    %v5992 = vpop.f32.mrf.mxu0
    %v5993 = vadd.f32 %v5864, %v5992
    %v5994 = vpop.f32.mrf.mxu0
    %v5995 = vadd.f32 %v5866, %v5994
    %5996 = vmatmul.bf16.gmra.mxu0 %v1055
    %v5997 = vpop.f32.mrf.mxu0
    %v5998 = vadd.f32 %v5869, %v5997
    %v5999 = vpop.f32.mrf.mxu0
    %v6000 = vadd.f32 %v5871, %v5999
    %6001 = vmatmul.bf16.gmra.mxu0 %v1061
    %v6002 = vpop.f32.mrf.mxu0
    %v6003 = vadd.f32 %v5874, %v6002
    %v6004 = vpop.f32.mrf.mxu0
    %v6005 = vadd.f32 %v5876, %v6004
    %6006 = vmatmul.bf16.gmra.mxu0 %v1067
    %v6007 = vpop.f32.mrf.mxu0
    %v6008 = vadd.f32 %v5879, %v6007
    %v6009 = vpop.f32.mrf.mxu0
    %v6010 = vadd.f32 %v5881, %v6009
    %6011 = vmatmul.bf16.gmra.mxu0 %v1073
    %v6012 = vpop.f32.mrf.mxu0
    %v6013 = vadd.f32 %v5884, %v6012
    %v6014 = vpop.f32.mrf.mxu0
    %v6015 = vadd.f32 %v5886, %v6014
    %6016 = vmatmul.bf16.gmra.mxu0 %v1079
    %v6017 = vpop.f32.mrf.mxu0
    %v6018 = vadd.f32 %v5889, %v6017
    %v6019 = vpop.f32.mrf.mxu0
    %v6020 = vadd.f32 %v5891, %v6019
    %6021 = vdwg.mxu0
    %6022 = vmatpush.bf16.xpose.msra.mxu0 %v2328
    %6023 = vmatpush.bf16.xpose.msra.mxu0 %v2322
    %6024 = vmatpush.bf16.xpose.msra.mxu0 %v2316
    %6025 = vmatpush.bf16.xpose.msra.mxu0 %v2310
    %6026 = vmatpush.bf16.xpose.msra.mxu0 %v2304
    %6027 = vmatpush.bf16.xpose.msra.mxu0 %v2298
    %6028 = vmatpush.bf16.xpose.msra.mxu0 %v2292
    %6029 = vmatpush.bf16.xpose.msra.mxu0 %v2286
    %6030 = vmatmul.bf16.gmra.mxu0 %v942
    %v6031 = vpop.f32.mrf.mxu0
    %v6032 = vadd.f32 %v5903, %v6031
    %v6033 = vpop.f32.mrf.mxu0
    %v6034 = vadd.f32 %v5905, %v6033
    %6035 = vmatmul.bf16.gmra.mxu0 %v948
    %v6036 = vpop.f32.mrf.mxu0
    %v6037 = vadd.f32 %v5908, %v6036
    %v6038 = vpop.f32.mrf.mxu0
    %v6039 = vadd.f32 %v5910, %v6038
    %6040 = vmatmul.bf16.gmra.mxu0 %v954
    %v6041 = vpop.f32.mrf.mxu0
    %v6042 = vadd.f32 %v5913, %v6041
    %v6043 = vpop.f32.mrf.mxu0
    %v6044 = vadd.f32 %v5915, %v6043
    %6045 = vmatmul.bf16.gmra.mxu0 %v960
    %v6046 = vpop.f32.mrf.mxu0
    %v6047 = vadd.f32 %v5918, %v6046
    %v6048 = vpop.f32.mrf.mxu0
    %v6049 = vadd.f32 %v5920, %v6048
    %6050 = vmatmul.bf16.gmra.mxu0 %v966
    %v6051 = vpop.f32.mrf.mxu0
    %v6052 = vadd.f32 %v5923, %v6051
    %v6053 = vpop.f32.mrf.mxu0
    %v6054 = vadd.f32 %v5925, %v6053
    %6055 = vmatmul.bf16.gmra.mxu0 %v972
    %v6056 = vpop.f32.mrf.mxu0
    %v6057 = vadd.f32 %v5928, %v6056
    %v6058 = vpop.f32.mrf.mxu0
    %v6059 = vadd.f32 %v5930, %v6058
    %6060 = vmatmul.bf16.gmra.mxu0 %v978
    %v6061 = vpop.f32.mrf.mxu0
    %v6062 = vadd.f32 %v5933, %v6061
    %v6063 = vpop.f32.mrf.mxu0
    %v6064 = vadd.f32 %v5935, %v6063
    %6065 = vmatmul.bf16.gmra.mxu0 %v984
    %v6066 = vpop.f32.mrf.mxu0
    %v6067 = vadd.f32 %v5938, %v6066
    %v6068 = vpop.f32.mrf.mxu0
    %v6069 = vadd.f32 %v5940, %v6068
    %6070 = vmatmul.bf16.gmra.mxu0 %v990
    %v6071 = vpop.f32.mrf.mxu0
    %v6072 = vadd.f32 %v5943, %v6071
    %v6073 = vpop.f32.mrf.mxu0
    %v6074 = vadd.f32 %v5945, %v6073
    %6075 = vmatmul.bf16.gmra.mxu0 %v996
    %v6076 = vpop.f32.mrf.mxu0
    %v6077 = vadd.f32 %v5948, %v6076
    %v6078 = vpop.f32.mrf.mxu0
    %v6079 = vadd.f32 %v5950, %v6078
    %6080 = vmatmul.bf16.gmra.mxu0 %v1002
    %v6081 = vpop.f32.mrf.mxu0
    %v6082 = vadd.f32 %v5953, %v6081
    %v6083 = vpop.f32.mrf.mxu0
    %v6084 = vadd.f32 %v5955, %v6083
    %6085 = vmatmul.bf16.gmra.mxu0 %v1008
    %v6086 = vpop.f32.mrf.mxu0
    %v6087 = vadd.f32 %v5958, %v6086
    %v6088 = vpop.f32.mrf.mxu0
    %v6089 = vadd.f32 %v5960, %v6088
    %6090 = vmatmul.bf16.gmra.mxu0 %v1014
    %v6091 = vpop.f32.mrf.mxu0
    %v6092 = vadd.f32 %v5963, %v6091
    %v6093 = vpop.f32.mrf.mxu0
    %v6094 = vadd.f32 %v5965, %v6093
    %6095 = vmatmul.bf16.gmra.mxu0 %v1020
    %v6096 = vpop.f32.mrf.mxu0
    %v6097 = vadd.f32 %v5968, %v6096
    %v6098 = vpop.f32.mrf.mxu0
    %v6099 = vadd.f32 %v5970, %v6098
    %6100 = vmatmul.bf16.gmra.mxu0 %v1026
    %v6101 = vpop.f32.mrf.mxu0
    %v6102 = vadd.f32 %v5973, %v6101
    %v6103 = vpop.f32.mrf.mxu0
    %v6104 = vadd.f32 %v5975, %v6103
    %6105 = vmatmul.bf16.gmra.mxu0 %v1032
    %v6106 = vpop.f32.mrf.mxu0
    %v6107 = vadd.f32 %v5978, %v6106
    %v6108 = vpop.f32.mrf.mxu0
    %v6109 = vadd.f32 %v5980, %v6108
    %6110 = vmatmul.bf16.gmra.mxu0 %v1038
    %v6111 = vpop.f32.mrf.mxu0
    %v6112 = vadd.f32 %v5983, %v6111
    %v6113 = vpop.f32.mrf.mxu0
    %v6114 = vadd.f32 %v5985, %v6113
    %6115 = vmatmul.bf16.gmra.mxu0 %v1044
    %v6116 = vpop.f32.mrf.mxu0
    %v6117 = vadd.f32 %v5988, %v6116
    %v6118 = vpop.f32.mrf.mxu0
    %v6119 = vadd.f32 %v5990, %v6118
    %6120 = vmatmul.bf16.gmra.mxu0 %v1050
    %v6121 = vpop.f32.mrf.mxu0
    %v6122 = vadd.f32 %v5993, %v6121
    %v6123 = vpop.f32.mrf.mxu0
    %v6124 = vadd.f32 %v5995, %v6123
    %6125 = vmatmul.bf16.gmra.mxu0 %v1056
    %v6126 = vpop.f32.mrf.mxu0
    %v6127 = vadd.f32 %v5998, %v6126
    %v6128 = vpop.f32.mrf.mxu0
    %v6129 = vadd.f32 %v6000, %v6128
    %6130 = vmatmul.bf16.gmra.mxu0 %v1062
    %v6131 = vpop.f32.mrf.mxu0
    %v6132 = vadd.f32 %v6003, %v6131
    %v6133 = vpop.f32.mrf.mxu0
    %v6134 = vadd.f32 %v6005, %v6133
    %6135 = vmatmul.bf16.gmra.mxu0 %v1068
    %v6136 = vpop.f32.mrf.mxu0
    %v6137 = vadd.f32 %v6008, %v6136
    %v6138 = vpop.f32.mrf.mxu0
    %v6139 = vadd.f32 %v6010, %v6138
    %6140 = vmatmul.bf16.gmra.mxu0 %v1074
    %v6141 = vpop.f32.mrf.mxu0
    %v6142 = vadd.f32 %v6013, %v6141
    %v6143 = vpop.f32.mrf.mxu0
    %v6144 = vadd.f32 %v6015, %v6143
    %6145 = vmatmul.bf16.gmra.mxu0 %v1080
    %v6146 = vpop.f32.mrf.mxu0
    %v6147 = vadd.f32 %v6018, %v6146
    %v6148 = vpop.f32.mrf.mxu0
    %v6149 = vadd.f32 %v6020, %v6148
    %6150 = vdwg.mxu0
    %6151 = vmatpush.bf16.xpose.msra.mxu0 %v2329
    %6152 = vmatpush.bf16.xpose.msra.mxu0 %v2323
    %6153 = vmatpush.bf16.xpose.msra.mxu0 %v2317
    %6154 = vmatpush.bf16.xpose.msra.mxu0 %v2311
    %6155 = vmatpush.bf16.xpose.msra.mxu0 %v2305
    %6156 = vmatpush.bf16.xpose.msra.mxu0 %v2299
    %6157 = vmatpush.bf16.xpose.msra.mxu0 %v2293
    %6158 = vmatpush.bf16.xpose.msra.mxu0 %v2287
    %6159 = vmatmul.bf16.gmra.mxu0 %v943
    %v6160 = vpop.f32.mrf.mxu0
    %v6161 = vadd.f32 %v6032, %v6160
    %v6162 = vpop.f32.mrf.mxu0
    %v6163 = vadd.f32 %v6034, %v6162
    %6164 = vmatmul.bf16.gmra.mxu0 %v949
    %v6165 = vpop.f32.mrf.mxu0
    %v6166 = vadd.f32 %v6037, %v6165
    %v6167 = vpop.f32.mrf.mxu0
    %v6168 = vadd.f32 %v6039, %v6167
    %6169 = vmatmul.bf16.gmra.mxu0 %v955
    %v6170 = vpop.f32.mrf.mxu0
    %v6171 = vadd.f32 %v6042, %v6170
    %v6172 = vpop.f32.mrf.mxu0
    %v6173 = vadd.f32 %v6044, %v6172
    %6174 = vmatmul.bf16.gmra.mxu0 %v961
    %v6175 = vpop.f32.mrf.mxu0
    %v6176 = vadd.f32 %v6047, %v6175
    %v6177 = vpop.f32.mrf.mxu0
    %v6178 = vadd.f32 %v6049, %v6177
    %6179 = vmatmul.bf16.gmra.mxu0 %v967
    %v6180 = vpop.f32.mrf.mxu0
    %v6181 = vadd.f32 %v6052, %v6180
    %v6182 = vpop.f32.mrf.mxu0
    %v6183 = vadd.f32 %v6054, %v6182
    %6184 = vmatmul.bf16.gmra.mxu0 %v973
    %v6185 = vpop.f32.mrf.mxu0
    %v6186 = vadd.f32 %v6057, %v6185
    %v6187 = vpop.f32.mrf.mxu0
    %v6188 = vadd.f32 %v6059, %v6187
    %6189 = vmatmul.bf16.gmra.mxu0 %v979
    %v6190 = vpop.f32.mrf.mxu0
    %v6191 = vadd.f32 %v6062, %v6190
    %v6192 = vpop.f32.mrf.mxu0
    %v6193 = vadd.f32 %v6064, %v6192
    %6194 = vmatmul.bf16.gmra.mxu0 %v985
    %v6195 = vpop.f32.mrf.mxu0
    %v6196 = vadd.f32 %v6067, %v6195
    %v6197 = vpop.f32.mrf.mxu0
    %v6198 = vadd.f32 %v6069, %v6197
    %6199 = vmatmul.bf16.gmra.mxu0 %v991
    %v6200 = vpop.f32.mrf.mxu0
    %v6201 = vadd.f32 %v6072, %v6200
    %v6202 = vpop.f32.mrf.mxu0
    %v6203 = vadd.f32 %v6074, %v6202
    %6204 = vmatmul.bf16.gmra.mxu0 %v997
    %v6205 = vpop.f32.mrf.mxu0
    %v6206 = vadd.f32 %v6077, %v6205
    %v6207 = vpop.f32.mrf.mxu0
    %v6208 = vadd.f32 %v6079, %v6207
    %6209 = vmatmul.bf16.gmra.mxu0 %v1003
    %v6210 = vpop.f32.mrf.mxu0
    %v6211 = vadd.f32 %v6082, %v6210
    %v6212 = vpop.f32.mrf.mxu0
    %v6213 = vadd.f32 %v6084, %v6212
    %6214 = vmatmul.bf16.gmra.mxu0 %v1009
    %v6215 = vpop.f32.mrf.mxu0
    %v6216 = vadd.f32 %v6087, %v6215
    %v6217 = vpop.f32.mrf.mxu0
    %v6218 = vadd.f32 %v6089, %v6217
    %6219 = vmatmul.bf16.gmra.mxu0 %v1015
    %v6220 = vpop.f32.mrf.mxu0
    %v6221 = vadd.f32 %v6092, %v6220
    %v6222 = vpop.f32.mrf.mxu0
    %v6223 = vadd.f32 %v6094, %v6222
    %6224 = vmatmul.bf16.gmra.mxu0 %v1021
    %v6225 = vpop.f32.mrf.mxu0
    %v6226 = vadd.f32 %v6097, %v6225
    %v6227 = vpop.f32.mrf.mxu0
    %v6228 = vadd.f32 %v6099, %v6227
    %6229 = vmatmul.bf16.gmra.mxu0 %v1027
    %v6230 = vpop.f32.mrf.mxu0
    %v6231 = vadd.f32 %v6102, %v6230
    %v6232 = vpop.f32.mrf.mxu0
    %v6233 = vadd.f32 %v6104, %v6232
    %6234 = vmatmul.bf16.gmra.mxu0 %v1033
    %v6235 = vpop.f32.mrf.mxu0
    %v6236 = vadd.f32 %v6107, %v6235
    %v6237 = vpop.f32.mrf.mxu0
    %v6238 = vadd.f32 %v6109, %v6237
    %6239 = vmatmul.bf16.gmra.mxu0 %v1039
    %v6240 = vpop.f32.mrf.mxu0
    %v6241 = vadd.f32 %v6112, %v6240
    %v6242 = vpop.f32.mrf.mxu0
    %v6243 = vadd.f32 %v6114, %v6242
    %6244 = vmatmul.bf16.gmra.mxu0 %v1045
    %v6245 = vpop.f32.mrf.mxu0
    %v6246 = vadd.f32 %v6117, %v6245
    %v6247 = vpop.f32.mrf.mxu0
    %v6248 = vadd.f32 %v6119, %v6247
    %6249 = vmatmul.bf16.gmra.mxu0 %v1051
    %v6250 = vpop.f32.mrf.mxu0
    %v6251 = vadd.f32 %v6122, %v6250
    %v6252 = vpop.f32.mrf.mxu0
    %v6253 = vadd.f32 %v6124, %v6252
    %6254 = vmatmul.bf16.gmra.mxu0 %v1057
    %v6255 = vpop.f32.mrf.mxu0
    %v6256 = vadd.f32 %v6127, %v6255
    %v6257 = vpop.f32.mrf.mxu0
    %v6258 = vadd.f32 %v6129, %v6257
    %6259 = vmatmul.bf16.gmra.mxu0 %v1063
    %v6260 = vpop.f32.mrf.mxu0
    %v6261 = vadd.f32 %v6132, %v6260
    %v6262 = vpop.f32.mrf.mxu0
    %v6263 = vadd.f32 %v6134, %v6262
    %6264 = vmatmul.bf16.gmra.mxu0 %v1069
    %v6265 = vpop.f32.mrf.mxu0
    %v6266 = vadd.f32 %v6137, %v6265
    %v6267 = vpop.f32.mrf.mxu0
    %v6268 = vadd.f32 %v6139, %v6267
    %6269 = vmatmul.bf16.gmra.mxu0 %v1075
    %v6270 = vpop.f32.mrf.mxu0
    %v6271 = vadd.f32 %v6142, %v6270
    %v6272 = vpop.f32.mrf.mxu0
    %v6273 = vadd.f32 %v6144, %v6272
    %6274 = vmatmul.bf16.gmra.mxu0 %v1081
    %v6275 = vpop.f32.mrf.mxu0
    %v6276 = vadd.f32 %v6147, %v6275
    %v6277 = vpop.f32.mrf.mxu0
    %v6278 = vadd.f32 %v6149, %v6277
    %6279 = vdwg.mxu0
    %6280 = vmatpush.bf16.xpose.msra.mxu0 %v2330
    %6281 = vmatpush.bf16.xpose.msra.mxu0 %v2324
    %6282 = vmatpush.bf16.xpose.msra.mxu0 %v2318
    %6283 = vmatpush.bf16.xpose.msra.mxu0 %v2312
    %6284 = vmatpush.bf16.xpose.msra.mxu0 %v2306
    %6285 = vmatpush.bf16.xpose.msra.mxu0 %v2300
    %6286 = vmatpush.bf16.xpose.msra.mxu0 %v2294
    %6287 = vmatpush.bf16.xpose.msra.mxu0 %v2288
    %6288 = vmatmul.bf16.gmra.mxu0 %v944
    %v6289 = vpop.f32.mrf.mxu0
    %v6290 = vadd.f32 %v6161, %v6289
    %v6291 = vpop.f32.mrf.mxu0
    %v6292 = vadd.f32 %v6163, %v6291
    %6293 = vmatmul.bf16.gmra.mxu0 %v950
    %v6294 = vpop.f32.mrf.mxu0
    %v6295 = vadd.f32 %v6166, %v6294
    %v6296 = vpop.f32.mrf.mxu0
    %v6297 = vadd.f32 %v6168, %v6296
    %6298 = vmatmul.bf16.gmra.mxu0 %v956
    %v6299 = vpop.f32.mrf.mxu0
    %v6300 = vadd.f32 %v6171, %v6299
    %v6301 = vpop.f32.mrf.mxu0
    %v6302 = vadd.f32 %v6173, %v6301
    %6303 = vmatmul.bf16.gmra.mxu0 %v962
    %v6304 = vpop.f32.mrf.mxu0
    %v6305 = vadd.f32 %v6176, %v6304
    %v6306 = vpop.f32.mrf.mxu0
    %v6307 = vadd.f32 %v6178, %v6306
    %6308 = vmatmul.bf16.gmra.mxu0 %v968
    %v6309 = vpop.f32.mrf.mxu0
    %v6310 = vadd.f32 %v6181, %v6309
    %v6311 = vpop.f32.mrf.mxu0
    %v6312 = vadd.f32 %v6183, %v6311
    %6313 = vmatmul.bf16.gmra.mxu0 %v974
    %v6314 = vpop.f32.mrf.mxu0
    %v6315 = vadd.f32 %v6186, %v6314
    %v6316 = vpop.f32.mrf.mxu0
    %v6317 = vadd.f32 %v6188, %v6316
    %6318 = vmatmul.bf16.gmra.mxu0 %v980
    %v6319 = vpop.f32.mrf.mxu0
    %v6320 = vadd.f32 %v6191, %v6319
    %v6321 = vpop.f32.mrf.mxu0
    %v6322 = vadd.f32 %v6193, %v6321
    %6323 = vmatmul.bf16.gmra.mxu0 %v986
    %v6324 = vpop.f32.mrf.mxu0
    %v6325 = vadd.f32 %v6196, %v6324
    %v6326 = vpop.f32.mrf.mxu0
    %v6327 = vadd.f32 %v6198, %v6326
    %6328 = vmatmul.bf16.gmra.mxu0 %v992
    %v6329 = vpop.f32.mrf.mxu0
    %v6330 = vadd.f32 %v6201, %v6329
    %v6331 = vpop.f32.mrf.mxu0
    %v6332 = vadd.f32 %v6203, %v6331
    %6333 = vmatmul.bf16.gmra.mxu0 %v998
    %v6334 = vpop.f32.mrf.mxu0
    %v6335 = vadd.f32 %v6206, %v6334
    %v6336 = vpop.f32.mrf.mxu0
    %v6337 = vadd.f32 %v6208, %v6336
    %6338 = vmatmul.bf16.gmra.mxu0 %v1004
    %v6339 = vpop.f32.mrf.mxu0
    %v6340 = vadd.f32 %v6211, %v6339
    %v6341 = vpop.f32.mrf.mxu0
    %v6342 = vadd.f32 %v6213, %v6341
    %6343 = vmatmul.bf16.gmra.mxu0 %v1010
    %v6344 = vpop.f32.mrf.mxu0
    %v6345 = vadd.f32 %v6216, %v6344
    %v6346 = vpop.f32.mrf.mxu0
    %v6347 = vadd.f32 %v6218, %v6346
    %6348 = vmatmul.bf16.gmra.mxu0 %v1016
    %v6349 = vpop.f32.mrf.mxu0
    %v6350 = vadd.f32 %v6221, %v6349
    %v6351 = vpop.f32.mrf.mxu0
    %v6352 = vadd.f32 %v6223, %v6351
    %6353 = vmatmul.bf16.gmra.mxu0 %v1022
    %v6354 = vpop.f32.mrf.mxu0
    %v6355 = vadd.f32 %v6226, %v6354
    %v6356 = vpop.f32.mrf.mxu0
    %v6357 = vadd.f32 %v6228, %v6356
    %6358 = vmatmul.bf16.gmra.mxu0 %v1028
    %v6359 = vpop.f32.mrf.mxu0
    %v6360 = vadd.f32 %v6231, %v6359
    %v6361 = vpop.f32.mrf.mxu0
    %v6362 = vadd.f32 %v6233, %v6361
    %6363 = vmatmul.bf16.gmra.mxu0 %v1034
    %v6364 = vpop.f32.mrf.mxu0
    %v6365 = vadd.f32 %v6236, %v6364
    %v6366 = vpop.f32.mrf.mxu0
    %v6367 = vadd.f32 %v6238, %v6366
    %6368 = vmatmul.bf16.gmra.mxu0 %v1040
    %v6369 = vpop.f32.mrf.mxu0
    %v6370 = vadd.f32 %v6241, %v6369
    %v6371 = vpop.f32.mrf.mxu0
    %v6372 = vadd.f32 %v6243, %v6371
    %6373 = vmatmul.bf16.gmra.mxu0 %v1046
    %v6374 = vpop.f32.mrf.mxu0
    %v6375 = vadd.f32 %v6246, %v6374
    %v6376 = vpop.f32.mrf.mxu0
    %v6377 = vadd.f32 %v6248, %v6376
    %6378 = vmatmul.bf16.gmra.mxu0 %v1052
    %v6379 = vpop.f32.mrf.mxu0
    %v6380 = vadd.f32 %v6251, %v6379
    %v6381 = vpop.f32.mrf.mxu0
    %v6382 = vadd.f32 %v6253, %v6381
    %6383 = vmatmul.bf16.gmra.mxu0 %v1058
    %v6384 = vpop.f32.mrf.mxu0
    %v6385 = vadd.f32 %v6256, %v6384
    %v6386 = vpop.f32.mrf.mxu0
    %v6387 = vadd.f32 %v6258, %v6386
    %6388 = vmatmul.bf16.gmra.mxu0 %v1064
    %v6389 = vpop.f32.mrf.mxu0
    %v6390 = vadd.f32 %v6261, %v6389
    %v6391 = vpop.f32.mrf.mxu0
    %v6392 = vadd.f32 %v6263, %v6391
    %6393 = vmatmul.bf16.gmra.mxu0 %v1070
    %v6394 = vpop.f32.mrf.mxu0
    %v6395 = vadd.f32 %v6266, %v6394
    %v6396 = vpop.f32.mrf.mxu0
    %v6397 = vadd.f32 %v6268, %v6396
    %6398 = vmatmul.bf16.gmra.mxu0 %v1076
    %v6399 = vpop.f32.mrf.mxu0
    %v6400 = vadd.f32 %v6271, %v6399
    %v6401 = vpop.f32.mrf.mxu0
    %v6402 = vadd.f32 %v6273, %v6401
    %6403 = vmatmul.bf16.gmra.mxu0 %v1082
    %v6404 = vpop.f32.mrf.mxu0
    %v6405 = vadd.f32 %v6276, %v6404
    %v6406 = vpop.f32.mrf.mxu0
    %v6407 = vadd.f32 %v6278, %v6406
    %6408 = vdwg.mxu0
    %6409 = vmatpush.bf16.xpose.msra.mxu0 %v2331
    %6410 = vmatpush.bf16.xpose.msra.mxu0 %v2325
    %6411 = vmatpush.bf16.xpose.msra.mxu0 %v2319
    %6412 = vmatpush.bf16.xpose.msra.mxu0 %v2313
    %6413 = vmatpush.bf16.xpose.msra.mxu0 %v2307
    %6414 = vmatpush.bf16.xpose.msra.mxu0 %v2301
    %6415 = vmatpush.bf16.xpose.msra.mxu0 %v2295
    %6416 = vmatpush.bf16.xpose.msra.mxu0 %v2289
    %6417 = vmatmul.bf16.gmra.mxu0 %v945
    %v6418 = vpop.f32.mrf.mxu0
    %v6419 = vadd.f32 %v6290, %v6418
    %v6420 = vpop.f32.mrf.mxu0
    %v6421 = vadd.f32 %v6292, %v6420
    %6422 = vmatmul.bf16.gmra.mxu0 %v951
    %v6423 = vpop.f32.mrf.mxu0
    %v6424 = vadd.f32 %v6295, %v6423
    %v6425 = vpop.f32.mrf.mxu0
    %v6426 = vadd.f32 %v6297, %v6425
    %6427 = vmatmul.bf16.gmra.mxu0 %v957
    %v6428 = vpop.f32.mrf.mxu0
    %v6429 = vadd.f32 %v6300, %v6428
    %v6430 = vpop.f32.mrf.mxu0
    %v6431 = vadd.f32 %v6302, %v6430
    %6432 = vmatmul.bf16.gmra.mxu0 %v963
    %v6433 = vpop.f32.mrf.mxu0
    %v6434 = vadd.f32 %v6305, %v6433
    %v6435 = vpop.f32.mrf.mxu0
    %v6436 = vadd.f32 %v6307, %v6435
    %6437 = vmatmul.bf16.gmra.mxu0 %v969
    %v6438 = vpop.f32.mrf.mxu0
    %v6439 = vadd.f32 %v6310, %v6438
    %v6440 = vpop.f32.mrf.mxu0
    %v6441 = vadd.f32 %v6312, %v6440
    %6442 = vmatmul.bf16.gmra.mxu0 %v975
    %v6443 = vpop.f32.mrf.mxu0
    %v6444 = vadd.f32 %v6315, %v6443
    %v6445 = vpop.f32.mrf.mxu0
    %v6446 = vadd.f32 %v6317, %v6445
    %6447 = vmatmul.bf16.gmra.mxu0 %v981
    %v6448 = vpop.f32.mrf.mxu0
    %v6449 = vadd.f32 %v6320, %v6448
    %v6450 = vpop.f32.mrf.mxu0
    %v6451 = vadd.f32 %v6322, %v6450
    %6452 = vmatmul.bf16.gmra.mxu0 %v987
    %v6453 = vpop.f32.mrf.mxu0
    %v6454 = vadd.f32 %v6325, %v6453
    %v6455 = vpop.f32.mrf.mxu0
    %v6456 = vadd.f32 %v6327, %v6455
    %6457 = vmatmul.bf16.gmra.mxu0 %v993
    %v6458 = vpop.f32.mrf.mxu0
    %v6459 = vadd.f32 %v6330, %v6458
    %v6460 = vpop.f32.mrf.mxu0
    %v6461 = vadd.f32 %v6332, %v6460
    %6462 = vmatmul.bf16.gmra.mxu0 %v999
    %v6463 = vpop.f32.mrf.mxu0
    %v6464 = vadd.f32 %v6335, %v6463
    %v6465 = vpop.f32.mrf.mxu0
    %v6466 = vadd.f32 %v6337, %v6465
    %6467 = vmatmul.bf16.gmra.mxu0 %v1005
    %v6468 = vpop.f32.mrf.mxu0
    %v6469 = vadd.f32 %v6340, %v6468
    %v6470 = vpop.f32.mrf.mxu0
    %v6471 = vadd.f32 %v6342, %v6470
    %6472 = vmatmul.bf16.gmra.mxu0 %v1011
    %v6473 = vpop.f32.mrf.mxu0
    %v6474 = vadd.f32 %v6345, %v6473
    %v6475 = vpop.f32.mrf.mxu0
    %v6476 = vadd.f32 %v6347, %v6475
    %6477 = vmatmul.bf16.gmra.mxu0 %v1017
    %v6478 = vpop.f32.mrf.mxu0
    %v6479 = vadd.f32 %v6350, %v6478
    %v6480 = vpop.f32.mrf.mxu0
    %v6481 = vadd.f32 %v6352, %v6480
    %6482 = vmatmul.bf16.gmra.mxu0 %v1023
    %v6483 = vpop.f32.mrf.mxu0
    %v6484 = vadd.f32 %v6355, %v6483
    %v6485 = vpop.f32.mrf.mxu0
    %v6486 = vadd.f32 %v6357, %v6485
    %6487 = vmatmul.bf16.gmra.mxu0 %v1029
    %v6488 = vpop.f32.mrf.mxu0
    %v6489 = vadd.f32 %v6360, %v6488
    %v6490 = vpop.f32.mrf.mxu0
    %v6491 = vadd.f32 %v6362, %v6490
    %6492 = vmatmul.bf16.gmra.mxu0 %v1035
    %v6493 = vpop.f32.mrf.mxu0
    %v6494 = vadd.f32 %v6365, %v6493
    %v6495 = vpop.f32.mrf.mxu0
    %v6496 = vadd.f32 %v6367, %v6495
    %6497 = vmatmul.bf16.gmra.mxu0 %v1041
    %v6498 = vpop.f32.mrf.mxu0
    %v6499 = vadd.f32 %v6370, %v6498
    %v6500 = vpop.f32.mrf.mxu0
    %v6501 = vadd.f32 %v6372, %v6500
    %6502 = vmatmul.bf16.gmra.mxu0 %v1047
    %v6503 = vpop.f32.mrf.mxu0
    %v6504 = vadd.f32 %v6375, %v6503
    %v6505 = vpop.f32.mrf.mxu0
    %v6506 = vadd.f32 %v6377, %v6505
    %6507 = vmatmul.bf16.gmra.mxu0 %v1053
    %v6508 = vpop.f32.mrf.mxu0
    %v6509 = vadd.f32 %v6380, %v6508
    %v6510 = vpop.f32.mrf.mxu0
    %v6511 = vadd.f32 %v6382, %v6510
    %6512 = vmatmul.bf16.gmra.mxu0 %v1059
    %v6513 = vpop.f32.mrf.mxu0
    %v6514 = vadd.f32 %v6385, %v6513
    %v6515 = vpop.f32.mrf.mxu0
    %v6516 = vadd.f32 %v6387, %v6515
    %6517 = vmatmul.bf16.gmra.mxu0 %v1065
    %v6518 = vpop.f32.mrf.mxu0
    %v6519 = vadd.f32 %v6390, %v6518
    %v6520 = vpop.f32.mrf.mxu0
    %v6521 = vadd.f32 %v6392, %v6520
    %6522 = vmatmul.bf16.gmra.mxu0 %v1071
    %v6523 = vpop.f32.mrf.mxu0
    %v6524 = vadd.f32 %v6395, %v6523
    %v6525 = vpop.f32.mrf.mxu0
    %v6526 = vadd.f32 %v6397, %v6525
    %6527 = vmatmul.bf16.gmra.mxu0 %v1077
    %v6528 = vpop.f32.mrf.mxu0
    %v6529 = vadd.f32 %v6400, %v6528
    %v6530 = vpop.f32.mrf.mxu0
    %v6531 = vadd.f32 %v6402, %v6530
    %6532 = vmatmul.bf16.gmra.mxu0 %v1083
    %v6533 = vpop.f32.mrf.mxu0
    %v6534 = vadd.f32 %v6405, %v6533
    %v6535 = vpop.f32.mrf.mxu0
    %v6536 = vadd.f32 %v6407, %v6535
    %6537 = vdwg.mxu0
    %6538 = vmatpush.bf16.xpose.msra.mxu0 %v2374
    %6539 = vmatpush.bf16.xpose.msra.mxu0 %v2368
    %6540 = vmatpush.bf16.xpose.msra.mxu0 %v2362
    %6541 = vmatpush.bf16.xpose.msra.mxu0 %v2356
    %6542 = vmatpush.bf16.xpose.msra.mxu0 %v2350
    %6543 = vmatpush.bf16.xpose.msra.mxu0 %v2344
    %6544 = vmatpush.bf16.xpose.msra.mxu0 %v2338
    %6545 = vmatpush.bf16.xpose.msra.mxu0 %v2332
    %6546 = vmatmul.bf16.gmra.mxu0 %v940
    %v6547 = vpop.f32.mrf.mxu0
    %v6548 = vadd.f32 %v501, %v6547
    %v6549 = vpop.f32.mrf.mxu0
    %v6550 = vadd.f32 %v501, %v6549
    %6551 = vmatmul.bf16.gmra.mxu0 %v946
    %v6552 = vpop.f32.mrf.mxu0
    %v6553 = vadd.f32 %v501, %v6552
    %v6554 = vpop.f32.mrf.mxu0
    %v6555 = vadd.f32 %v501, %v6554
    %6556 = vmatmul.bf16.gmra.mxu0 %v952
    %v6557 = vpop.f32.mrf.mxu0
    %v6558 = vadd.f32 %v501, %v6557
    %v6559 = vpop.f32.mrf.mxu0
    %v6560 = vadd.f32 %v501, %v6559
    %6561 = vmatmul.bf16.gmra.mxu0 %v958
    %v6562 = vpop.f32.mrf.mxu0
    %v6563 = vadd.f32 %v501, %v6562
    %v6564 = vpop.f32.mrf.mxu0
    %v6565 = vadd.f32 %v501, %v6564
    %6566 = vmatmul.bf16.gmra.mxu0 %v964
    %v6567 = vpop.f32.mrf.mxu0
    %v6568 = vadd.f32 %v501, %v6567
    %v6569 = vpop.f32.mrf.mxu0
    %v6570 = vadd.f32 %v501, %v6569
    %6571 = vmatmul.bf16.gmra.mxu0 %v970
    %v6572 = vpop.f32.mrf.mxu0
    %v6573 = vadd.f32 %v501, %v6572
    %v6574 = vpop.f32.mrf.mxu0
    %v6575 = vadd.f32 %v501, %v6574
    %6576 = vmatmul.bf16.gmra.mxu0 %v976
    %v6577 = vpop.f32.mrf.mxu0
    %v6578 = vadd.f32 %v501, %v6577
    %v6579 = vpop.f32.mrf.mxu0
    %v6580 = vadd.f32 %v501, %v6579
    %6581 = vmatmul.bf16.gmra.mxu0 %v982
    %v6582 = vpop.f32.mrf.mxu0
    %v6583 = vadd.f32 %v501, %v6582
    %v6584 = vpop.f32.mrf.mxu0
    %v6585 = vadd.f32 %v501, %v6584
    %6586 = vmatmul.bf16.gmra.mxu0 %v988
    %v6587 = vpop.f32.mrf.mxu0
    %v6588 = vadd.f32 %v501, %v6587
    %v6589 = vpop.f32.mrf.mxu0
    %v6590 = vadd.f32 %v501, %v6589
    %6591 = vmatmul.bf16.gmra.mxu0 %v994
    %v6592 = vpop.f32.mrf.mxu0
    %v6593 = vadd.f32 %v501, %v6592
    %v6594 = vpop.f32.mrf.mxu0
    %v6595 = vadd.f32 %v501, %v6594
    %6596 = vmatmul.bf16.gmra.mxu0 %v1000
    %v6597 = vpop.f32.mrf.mxu0
    %v6598 = vadd.f32 %v501, %v6597
    %v6599 = vpop.f32.mrf.mxu0
    %v6600 = vadd.f32 %v501, %v6599
    %6601 = vmatmul.bf16.gmra.mxu0 %v1006
    %v6602 = vpop.f32.mrf.mxu0
    %v6603 = vadd.f32 %v501, %v6602
    %v6604 = vpop.f32.mrf.mxu0
    %v6605 = vadd.f32 %v501, %v6604
    %6606 = vmatmul.bf16.gmra.mxu0 %v1012
    %v6607 = vpop.f32.mrf.mxu0
    %v6608 = vadd.f32 %v501, %v6607
    %v6609 = vpop.f32.mrf.mxu0
    %v6610 = vadd.f32 %v501, %v6609
    %6611 = vmatmul.bf16.gmra.mxu0 %v1018
    %v6612 = vpop.f32.mrf.mxu0
    %v6613 = vadd.f32 %v501, %v6612
    %v6614 = vpop.f32.mrf.mxu0
    %v6615 = vadd.f32 %v501, %v6614
    %6616 = vmatmul.bf16.gmra.mxu0 %v1024
    %v6617 = vpop.f32.mrf.mxu0
    %v6618 = vadd.f32 %v501, %v6617
    %v6619 = vpop.f32.mrf.mxu0
    %v6620 = vadd.f32 %v501, %v6619
    %6621 = vmatmul.bf16.gmra.mxu0 %v1030
    %v6622 = vpop.f32.mrf.mxu0
    %v6623 = vadd.f32 %v501, %v6622
    %v6624 = vpop.f32.mrf.mxu0
    %v6625 = vadd.f32 %v501, %v6624
    %6626 = vmatmul.bf16.gmra.mxu0 %v1036
    %v6627 = vpop.f32.mrf.mxu0
    %v6628 = vadd.f32 %v501, %v6627
    %v6629 = vpop.f32.mrf.mxu0
    %v6630 = vadd.f32 %v501, %v6629
    %6631 = vmatmul.bf16.gmra.mxu0 %v1042
    %v6632 = vpop.f32.mrf.mxu0
    %v6633 = vadd.f32 %v501, %v6632
    %v6634 = vpop.f32.mrf.mxu0
    %v6635 = vadd.f32 %v501, %v6634
    %6636 = vmatmul.bf16.gmra.mxu0 %v1048
    %v6637 = vpop.f32.mrf.mxu0
    %v6638 = vadd.f32 %v501, %v6637
    %v6639 = vpop.f32.mrf.mxu0
    %v6640 = vadd.f32 %v501, %v6639
    %6641 = vmatmul.bf16.gmra.mxu0 %v1054
    %v6642 = vpop.f32.mrf.mxu0
    %v6643 = vadd.f32 %v501, %v6642
    %v6644 = vpop.f32.mrf.mxu0
    %v6645 = vadd.f32 %v501, %v6644
    %6646 = vmatmul.bf16.gmra.mxu0 %v1060
    %v6647 = vpop.f32.mrf.mxu0
    %v6648 = vadd.f32 %v501, %v6647
    %v6649 = vpop.f32.mrf.mxu0
    %v6650 = vadd.f32 %v501, %v6649
    %6651 = vmatmul.bf16.gmra.mxu0 %v1066
    %v6652 = vpop.f32.mrf.mxu0
    %v6653 = vadd.f32 %v501, %v6652
    %v6654 = vpop.f32.mrf.mxu0
    %v6655 = vadd.f32 %v501, %v6654
    %6656 = vmatmul.bf16.gmra.mxu0 %v1072
    %v6657 = vpop.f32.mrf.mxu0
    %v6658 = vadd.f32 %v501, %v6657
    %v6659 = vpop.f32.mrf.mxu0
    %v6660 = vadd.f32 %v501, %v6659
    %6661 = vmatmul.bf16.gmra.mxu0 %v1078
    %v6662 = vpop.f32.mrf.mxu0
    %v6663 = vadd.f32 %v501, %v6662
    %v6664 = vpop.f32.mrf.mxu0
    %v6665 = vadd.f32 %v501, %v6664
    %6666 = vdwg.mxu0
    %6667 = vmatpush.bf16.xpose.msra.mxu0 %v2375
    %6668 = vmatpush.bf16.xpose.msra.mxu0 %v2369
    %6669 = vmatpush.bf16.xpose.msra.mxu0 %v2363
    %6670 = vmatpush.bf16.xpose.msra.mxu0 %v2357
    %6671 = vmatpush.bf16.xpose.msra.mxu0 %v2351
    %6672 = vmatpush.bf16.xpose.msra.mxu0 %v2345
    %6673 = vmatpush.bf16.xpose.msra.mxu0 %v2339
    %6674 = vmatpush.bf16.xpose.msra.mxu0 %v2333
    %6675 = vmatmul.bf16.gmra.mxu0 %v941
    %v6676 = vpop.f32.mrf.mxu0
    %v6677 = vadd.f32 %v6548, %v6676
    %v6678 = vpop.f32.mrf.mxu0
    %v6679 = vadd.f32 %v6550, %v6678
    %6680 = vmatmul.bf16.gmra.mxu0 %v947
    %v6681 = vpop.f32.mrf.mxu0
    %v6682 = vadd.f32 %v6553, %v6681
    %v6683 = vpop.f32.mrf.mxu0
    %v6684 = vadd.f32 %v6555, %v6683
    %6685 = vmatmul.bf16.gmra.mxu0 %v953
    %v6686 = vpop.f32.mrf.mxu0
    %v6687 = vadd.f32 %v6558, %v6686
    %v6688 = vpop.f32.mrf.mxu0
    %v6689 = vadd.f32 %v6560, %v6688
    %6690 = vmatmul.bf16.gmra.mxu0 %v959
    %v6691 = vpop.f32.mrf.mxu0
    %v6692 = vadd.f32 %v6563, %v6691
    %v6693 = vpop.f32.mrf.mxu0
    %v6694 = vadd.f32 %v6565, %v6693
    %6695 = vmatmul.bf16.gmra.mxu0 %v965
    %v6696 = vpop.f32.mrf.mxu0
    %v6697 = vadd.f32 %v6568, %v6696
    %v6698 = vpop.f32.mrf.mxu0
    %v6699 = vadd.f32 %v6570, %v6698
    %6700 = vmatmul.bf16.gmra.mxu0 %v971
    %v6701 = vpop.f32.mrf.mxu0
    %v6702 = vadd.f32 %v6573, %v6701
    %v6703 = vpop.f32.mrf.mxu0
    %v6704 = vadd.f32 %v6575, %v6703
    %6705 = vmatmul.bf16.gmra.mxu0 %v977
    %v6706 = vpop.f32.mrf.mxu0
    %v6707 = vadd.f32 %v6578, %v6706
    %v6708 = vpop.f32.mrf.mxu0
    %v6709 = vadd.f32 %v6580, %v6708
    %6710 = vmatmul.bf16.gmra.mxu0 %v983
    %v6711 = vpop.f32.mrf.mxu0
    %v6712 = vadd.f32 %v6583, %v6711
    %v6713 = vpop.f32.mrf.mxu0
    %v6714 = vadd.f32 %v6585, %v6713
    %6715 = vmatmul.bf16.gmra.mxu0 %v989
    %v6716 = vpop.f32.mrf.mxu0
    %v6717 = vadd.f32 %v6588, %v6716
    %v6718 = vpop.f32.mrf.mxu0
    %v6719 = vadd.f32 %v6590, %v6718
    %6720 = vmatmul.bf16.gmra.mxu0 %v995
    %v6721 = vpop.f32.mrf.mxu0
    %v6722 = vadd.f32 %v6593, %v6721
    %v6723 = vpop.f32.mrf.mxu0
    %v6724 = vadd.f32 %v6595, %v6723
    %6725 = vmatmul.bf16.gmra.mxu0 %v1001
    %v6726 = vpop.f32.mrf.mxu0
    %v6727 = vadd.f32 %v6598, %v6726
    %v6728 = vpop.f32.mrf.mxu0
    %v6729 = vadd.f32 %v6600, %v6728
    %6730 = vmatmul.bf16.gmra.mxu0 %v1007
    %v6731 = vpop.f32.mrf.mxu0
    %v6732 = vadd.f32 %v6603, %v6731
    %v6733 = vpop.f32.mrf.mxu0
    %v6734 = vadd.f32 %v6605, %v6733
    %6735 = vmatmul.bf16.gmra.mxu0 %v1013
    %v6736 = vpop.f32.mrf.mxu0
    %v6737 = vadd.f32 %v6608, %v6736
    %v6738 = vpop.f32.mrf.mxu0
    %v6739 = vadd.f32 %v6610, %v6738
    %6740 = vmatmul.bf16.gmra.mxu0 %v1019
    %v6741 = vpop.f32.mrf.mxu0
    %v6742 = vadd.f32 %v6613, %v6741
    %v6743 = vpop.f32.mrf.mxu0
    %v6744 = vadd.f32 %v6615, %v6743
    %6745 = vmatmul.bf16.gmra.mxu0 %v1025
    %v6746 = vpop.f32.mrf.mxu0
    %v6747 = vadd.f32 %v6618, %v6746
    %v6748 = vpop.f32.mrf.mxu0
    %v6749 = vadd.f32 %v6620, %v6748
    %6750 = vmatmul.bf16.gmra.mxu0 %v1031
    %v6751 = vpop.f32.mrf.mxu0
    %v6752 = vadd.f32 %v6623, %v6751
    %v6753 = vpop.f32.mrf.mxu0
    %v6754 = vadd.f32 %v6625, %v6753
    %6755 = vmatmul.bf16.gmra.mxu0 %v1037
    %v6756 = vpop.f32.mrf.mxu0
    %v6757 = vadd.f32 %v6628, %v6756
    %v6758 = vpop.f32.mrf.mxu0
    %v6759 = vadd.f32 %v6630, %v6758
    %6760 = vmatmul.bf16.gmra.mxu0 %v1043
    %v6761 = vpop.f32.mrf.mxu0
    %v6762 = vadd.f32 %v6633, %v6761
    %v6763 = vpop.f32.mrf.mxu0
    %v6764 = vadd.f32 %v6635, %v6763
    %6765 = vmatmul.bf16.gmra.mxu0 %v1049
    %v6766 = vpop.f32.mrf.mxu0
    %v6767 = vadd.f32 %v6638, %v6766
    %v6768 = vpop.f32.mrf.mxu0
    %v6769 = vadd.f32 %v6640, %v6768
    %6770 = vmatmul.bf16.gmra.mxu0 %v1055
    %v6771 = vpop.f32.mrf.mxu0
    %v6772 = vadd.f32 %v6643, %v6771
    %v6773 = vpop.f32.mrf.mxu0
    %v6774 = vadd.f32 %v6645, %v6773
    %6775 = vmatmul.bf16.gmra.mxu0 %v1061
    %v6776 = vpop.f32.mrf.mxu0
    %v6777 = vadd.f32 %v6648, %v6776
    %v6778 = vpop.f32.mrf.mxu0
    %v6779 = vadd.f32 %v6650, %v6778
    %6780 = vmatmul.bf16.gmra.mxu0 %v1067
    %v6781 = vpop.f32.mrf.mxu0
    %v6782 = vadd.f32 %v6653, %v6781
    %v6783 = vpop.f32.mrf.mxu0
    %v6784 = vadd.f32 %v6655, %v6783
    %6785 = vmatmul.bf16.gmra.mxu0 %v1073
    %v6786 = vpop.f32.mrf.mxu0
    %v6787 = vadd.f32 %v6658, %v6786
    %v6788 = vpop.f32.mrf.mxu0
    %v6789 = vadd.f32 %v6660, %v6788
    %6790 = vmatmul.bf16.gmra.mxu0 %v1079
    %v6791 = vpop.f32.mrf.mxu0
    %v6792 = vadd.f32 %v6663, %v6791
    %v6793 = vpop.f32.mrf.mxu0
    %v6794 = vadd.f32 %v6665, %v6793
    %6795 = vdwg.mxu0
    %6796 = vmatpush.bf16.xpose.msra.mxu0 %v2376
    %6797 = vmatpush.bf16.xpose.msra.mxu0 %v2370
    %6798 = vmatpush.bf16.xpose.msra.mxu0 %v2364
    %6799 = vmatpush.bf16.xpose.msra.mxu0 %v2358
    %6800 = vmatpush.bf16.xpose.msra.mxu0 %v2352
    %6801 = vmatpush.bf16.xpose.msra.mxu0 %v2346
    %6802 = vmatpush.bf16.xpose.msra.mxu0 %v2340
    %6803 = vmatpush.bf16.xpose.msra.mxu0 %v2334
    %6804 = vmatmul.bf16.gmra.mxu0 %v942
    %v6805 = vpop.f32.mrf.mxu0
    %v6806 = vadd.f32 %v6677, %v6805
    %v6807 = vpop.f32.mrf.mxu0
    %v6808 = vadd.f32 %v6679, %v6807
    %6809 = vmatmul.bf16.gmra.mxu0 %v948
    %v6810 = vpop.f32.mrf.mxu0
    %v6811 = vadd.f32 %v6682, %v6810
    %v6812 = vpop.f32.mrf.mxu0
    %v6813 = vadd.f32 %v6684, %v6812
    %6814 = vmatmul.bf16.gmra.mxu0 %v954
    %v6815 = vpop.f32.mrf.mxu0
    %v6816 = vadd.f32 %v6687, %v6815
    %v6817 = vpop.f32.mrf.mxu0
    %v6818 = vadd.f32 %v6689, %v6817
    %6819 = vmatmul.bf16.gmra.mxu0 %v960
    %v6820 = vpop.f32.mrf.mxu0
    %v6821 = vadd.f32 %v6692, %v6820
    %v6822 = vpop.f32.mrf.mxu0
    %v6823 = vadd.f32 %v6694, %v6822
    %6824 = vmatmul.bf16.gmra.mxu0 %v966
    %v6825 = vpop.f32.mrf.mxu0
    %v6826 = vadd.f32 %v6697, %v6825
    %v6827 = vpop.f32.mrf.mxu0
    %v6828 = vadd.f32 %v6699, %v6827
    %6829 = vmatmul.bf16.gmra.mxu0 %v972
    %v6830 = vpop.f32.mrf.mxu0
    %v6831 = vadd.f32 %v6702, %v6830
    %v6832 = vpop.f32.mrf.mxu0
    %v6833 = vadd.f32 %v6704, %v6832
    %6834 = vmatmul.bf16.gmra.mxu0 %v978
    %v6835 = vpop.f32.mrf.mxu0
    %v6836 = vadd.f32 %v6707, %v6835
    %v6837 = vpop.f32.mrf.mxu0
    %v6838 = vadd.f32 %v6709, %v6837
    %6839 = vmatmul.bf16.gmra.mxu0 %v984
    %v6840 = vpop.f32.mrf.mxu0
    %v6841 = vadd.f32 %v6712, %v6840
    %v6842 = vpop.f32.mrf.mxu0
    %v6843 = vadd.f32 %v6714, %v6842
    %6844 = vmatmul.bf16.gmra.mxu0 %v990
    %v6845 = vpop.f32.mrf.mxu0
    %v6846 = vadd.f32 %v6717, %v6845
    %v6847 = vpop.f32.mrf.mxu0
    %v6848 = vadd.f32 %v6719, %v6847
    %6849 = vmatmul.bf16.gmra.mxu0 %v996
    %v6850 = vpop.f32.mrf.mxu0
    %v6851 = vadd.f32 %v6722, %v6850
    %v6852 = vpop.f32.mrf.mxu0
    %v6853 = vadd.f32 %v6724, %v6852
    %6854 = vmatmul.bf16.gmra.mxu0 %v1002
    %v6855 = vpop.f32.mrf.mxu0
    %v6856 = vadd.f32 %v6727, %v6855
    %v6857 = vpop.f32.mrf.mxu0
    %v6858 = vadd.f32 %v6729, %v6857
    %6859 = vmatmul.bf16.gmra.mxu0 %v1008
    %v6860 = vpop.f32.mrf.mxu0
    %v6861 = vadd.f32 %v6732, %v6860
    %v6862 = vpop.f32.mrf.mxu0
    %v6863 = vadd.f32 %v6734, %v6862
    %6864 = vmatmul.bf16.gmra.mxu0 %v1014
    %v6865 = vpop.f32.mrf.mxu0
    %v6866 = vadd.f32 %v6737, %v6865
    %v6867 = vpop.f32.mrf.mxu0
    %v6868 = vadd.f32 %v6739, %v6867
    %6869 = vmatmul.bf16.gmra.mxu0 %v1020
    %v6870 = vpop.f32.mrf.mxu0
    %v6871 = vadd.f32 %v6742, %v6870
    %v6872 = vpop.f32.mrf.mxu0
    %v6873 = vadd.f32 %v6744, %v6872
    %6874 = vmatmul.bf16.gmra.mxu0 %v1026
    %v6875 = vpop.f32.mrf.mxu0
    %v6876 = vadd.f32 %v6747, %v6875
    %v6877 = vpop.f32.mrf.mxu0
    %v6878 = vadd.f32 %v6749, %v6877
    %6879 = vmatmul.bf16.gmra.mxu0 %v1032
    %v6880 = vpop.f32.mrf.mxu0
    %v6881 = vadd.f32 %v6752, %v6880
    %v6882 = vpop.f32.mrf.mxu0
    %v6883 = vadd.f32 %v6754, %v6882
    %6884 = vmatmul.bf16.gmra.mxu0 %v1038
    %v6885 = vpop.f32.mrf.mxu0
    %v6886 = vadd.f32 %v6757, %v6885
    %v6887 = vpop.f32.mrf.mxu0
    %v6888 = vadd.f32 %v6759, %v6887
    %6889 = vmatmul.bf16.gmra.mxu0 %v1044
    %v6890 = vpop.f32.mrf.mxu0
    %v6891 = vadd.f32 %v6762, %v6890
    %v6892 = vpop.f32.mrf.mxu0
    %v6893 = vadd.f32 %v6764, %v6892
    %6894 = vmatmul.bf16.gmra.mxu0 %v1050
    %v6895 = vpop.f32.mrf.mxu0
    %v6896 = vadd.f32 %v6767, %v6895
    %v6897 = vpop.f32.mrf.mxu0
    %v6898 = vadd.f32 %v6769, %v6897
    %6899 = vmatmul.bf16.gmra.mxu0 %v1056
    %v6900 = vpop.f32.mrf.mxu0
    %v6901 = vadd.f32 %v6772, %v6900
    %v6902 = vpop.f32.mrf.mxu0
    %v6903 = vadd.f32 %v6774, %v6902
    %6904 = vmatmul.bf16.gmra.mxu0 %v1062
    %v6905 = vpop.f32.mrf.mxu0
    %v6906 = vadd.f32 %v6777, %v6905
    %v6907 = vpop.f32.mrf.mxu0
    %v6908 = vadd.f32 %v6779, %v6907
    %6909 = vmatmul.bf16.gmra.mxu0 %v1068
    %v6910 = vpop.f32.mrf.mxu0
    %v6911 = vadd.f32 %v6782, %v6910
    %v6912 = vpop.f32.mrf.mxu0
    %v6913 = vadd.f32 %v6784, %v6912
    %6914 = vmatmul.bf16.gmra.mxu0 %v1074
    %v6915 = vpop.f32.mrf.mxu0
    %v6916 = vadd.f32 %v6787, %v6915
    %v6917 = vpop.f32.mrf.mxu0
    %v6918 = vadd.f32 %v6789, %v6917
    %6919 = vmatmul.bf16.gmra.mxu0 %v1080
    %v6920 = vpop.f32.mrf.mxu0
    %v6921 = vadd.f32 %v6792, %v6920
    %v6922 = vpop.f32.mrf.mxu0
    %v6923 = vadd.f32 %v6794, %v6922
    %6924 = vdwg.mxu0
    %6925 = vmatpush.bf16.xpose.msra.mxu0 %v2377
    %6926 = vmatpush.bf16.xpose.msra.mxu0 %v2371
    %6927 = vmatpush.bf16.xpose.msra.mxu0 %v2365
    %6928 = vmatpush.bf16.xpose.msra.mxu0 %v2359
    %6929 = vmatpush.bf16.xpose.msra.mxu0 %v2353
    %6930 = vmatpush.bf16.xpose.msra.mxu0 %v2347
    %6931 = vmatpush.bf16.xpose.msra.mxu0 %v2341
    %6932 = vmatpush.bf16.xpose.msra.mxu0 %v2335
    %6933 = vmatmul.bf16.gmra.mxu0 %v943
    %v6934 = vpop.f32.mrf.mxu0
    %v6935 = vadd.f32 %v6806, %v6934
    %v6936 = vpop.f32.mrf.mxu0
    %v6937 = vadd.f32 %v6808, %v6936
    %6938 = vmatmul.bf16.gmra.mxu0 %v949
    %v6939 = vpop.f32.mrf.mxu0
    %v6940 = vadd.f32 %v6811, %v6939
    %v6941 = vpop.f32.mrf.mxu0
    %v6942 = vadd.f32 %v6813, %v6941
    %6943 = vmatmul.bf16.gmra.mxu0 %v955
    %v6944 = vpop.f32.mrf.mxu0
    %v6945 = vadd.f32 %v6816, %v6944
    %v6946 = vpop.f32.mrf.mxu0
    %v6947 = vadd.f32 %v6818, %v6946
    %6948 = vmatmul.bf16.gmra.mxu0 %v961
    %v6949 = vpop.f32.mrf.mxu0
    %v6950 = vadd.f32 %v6821, %v6949
    %v6951 = vpop.f32.mrf.mxu0
    %v6952 = vadd.f32 %v6823, %v6951
    %6953 = vmatmul.bf16.gmra.mxu0 %v967
    %v6954 = vpop.f32.mrf.mxu0
    %v6955 = vadd.f32 %v6826, %v6954
    %v6956 = vpop.f32.mrf.mxu0
    %v6957 = vadd.f32 %v6828, %v6956
    %6958 = vmatmul.bf16.gmra.mxu0 %v973
    %v6959 = vpop.f32.mrf.mxu0
    %v6960 = vadd.f32 %v6831, %v6959
    %v6961 = vpop.f32.mrf.mxu0
    %v6962 = vadd.f32 %v6833, %v6961
    %6963 = vmatmul.bf16.gmra.mxu0 %v979
    %v6964 = vpop.f32.mrf.mxu0
    %v6965 = vadd.f32 %v6836, %v6964
    %v6966 = vpop.f32.mrf.mxu0
    %v6967 = vadd.f32 %v6838, %v6966
    %6968 = vmatmul.bf16.gmra.mxu0 %v985
    %v6969 = vpop.f32.mrf.mxu0
    %v6970 = vadd.f32 %v6841, %v6969
    %v6971 = vpop.f32.mrf.mxu0
    %v6972 = vadd.f32 %v6843, %v6971
    %6973 = vmatmul.bf16.gmra.mxu0 %v991
    %v6974 = vpop.f32.mrf.mxu0
    %v6975 = vadd.f32 %v6846, %v6974
    %v6976 = vpop.f32.mrf.mxu0
    %v6977 = vadd.f32 %v6848, %v6976
    %6978 = vmatmul.bf16.gmra.mxu0 %v997
    %v6979 = vpop.f32.mrf.mxu0
    %v6980 = vadd.f32 %v6851, %v6979
    %v6981 = vpop.f32.mrf.mxu0
    %v6982 = vadd.f32 %v6853, %v6981
    %6983 = vmatmul.bf16.gmra.mxu0 %v1003
    %v6984 = vpop.f32.mrf.mxu0
    %v6985 = vadd.f32 %v6856, %v6984
    %v6986 = vpop.f32.mrf.mxu0
    %v6987 = vadd.f32 %v6858, %v6986
    %6988 = vmatmul.bf16.gmra.mxu0 %v1009
    %v6989 = vpop.f32.mrf.mxu0
    %v6990 = vadd.f32 %v6861, %v6989
    %v6991 = vpop.f32.mrf.mxu0
    %v6992 = vadd.f32 %v6863, %v6991
    %6993 = vmatmul.bf16.gmra.mxu0 %v1015
    %v6994 = vpop.f32.mrf.mxu0
    %v6995 = vadd.f32 %v6866, %v6994
    %v6996 = vpop.f32.mrf.mxu0
    %v6997 = vadd.f32 %v6868, %v6996
    %6998 = vmatmul.bf16.gmra.mxu0 %v1021
    %v6999 = vpop.f32.mrf.mxu0
    %v7000 = vadd.f32 %v6871, %v6999
    %v7001 = vpop.f32.mrf.mxu0
    %v7002 = vadd.f32 %v6873, %v7001
    %7003 = vmatmul.bf16.gmra.mxu0 %v1027
    %v7004 = vpop.f32.mrf.mxu0
    %v7005 = vadd.f32 %v6876, %v7004
    %v7006 = vpop.f32.mrf.mxu0
    %v7007 = vadd.f32 %v6878, %v7006
    %7008 = vmatmul.bf16.gmra.mxu0 %v1033
    %v7009 = vpop.f32.mrf.mxu0
    %v7010 = vadd.f32 %v6881, %v7009
    %v7011 = vpop.f32.mrf.mxu0
    %v7012 = vadd.f32 %v6883, %v7011
    %7013 = vmatmul.bf16.gmra.mxu0 %v1039
    %v7014 = vpop.f32.mrf.mxu0
    %v7015 = vadd.f32 %v6886, %v7014
    %v7016 = vpop.f32.mrf.mxu0
    %v7017 = vadd.f32 %v6888, %v7016
    %7018 = vmatmul.bf16.gmra.mxu0 %v1045
    %v7019 = vpop.f32.mrf.mxu0
    %v7020 = vadd.f32 %v6891, %v7019
    %v7021 = vpop.f32.mrf.mxu0
    %v7022 = vadd.f32 %v6893, %v7021
    %7023 = vmatmul.bf16.gmra.mxu0 %v1051
    %v7024 = vpop.f32.mrf.mxu0
    %v7025 = vadd.f32 %v6896, %v7024
    %v7026 = vpop.f32.mrf.mxu0
    %v7027 = vadd.f32 %v6898, %v7026
    %7028 = vmatmul.bf16.gmra.mxu0 %v1057
    %v7029 = vpop.f32.mrf.mxu0
    %v7030 = vadd.f32 %v6901, %v7029
    %v7031 = vpop.f32.mrf.mxu0
    %v7032 = vadd.f32 %v6903, %v7031
    %7033 = vmatmul.bf16.gmra.mxu0 %v1063
    %v7034 = vpop.f32.mrf.mxu0
    %v7035 = vadd.f32 %v6906, %v7034
    %v7036 = vpop.f32.mrf.mxu0
    %v7037 = vadd.f32 %v6908, %v7036
    %7038 = vmatmul.bf16.gmra.mxu0 %v1069
    %v7039 = vpop.f32.mrf.mxu0
    %v7040 = vadd.f32 %v6911, %v7039
    %v7041 = vpop.f32.mrf.mxu0
    %v7042 = vadd.f32 %v6913, %v7041
    %7043 = vmatmul.bf16.gmra.mxu0 %v1075
    %v7044 = vpop.f32.mrf.mxu0
    %v7045 = vadd.f32 %v6916, %v7044
    %v7046 = vpop.f32.mrf.mxu0
    %v7047 = vadd.f32 %v6918, %v7046
    %7048 = vmatmul.bf16.gmra.mxu0 %v1081
    %v7049 = vpop.f32.mrf.mxu0
    %v7050 = vadd.f32 %v6921, %v7049
    %v7051 = vpop.f32.mrf.mxu0
    %v7052 = vadd.f32 %v6923, %v7051
    %7053 = vdwg.mxu0
    %7054 = vmatpush.bf16.xpose.msra.mxu0 %v2378
    %7055 = vmatpush.bf16.xpose.msra.mxu0 %v2372
    %7056 = vmatpush.bf16.xpose.msra.mxu0 %v2366
    %7057 = vmatpush.bf16.xpose.msra.mxu0 %v2360
    %7058 = vmatpush.bf16.xpose.msra.mxu0 %v2354
    %7059 = vmatpush.bf16.xpose.msra.mxu0 %v2348
    %7060 = vmatpush.bf16.xpose.msra.mxu0 %v2342
    %7061 = vmatpush.bf16.xpose.msra.mxu0 %v2336
    %7062 = vmatmul.bf16.gmra.mxu0 %v944
    %v7063 = vpop.f32.mrf.mxu0
    %v7064 = vadd.f32 %v6935, %v7063
    %v7065 = vpop.f32.mrf.mxu0
    %v7066 = vadd.f32 %v6937, %v7065
    %7067 = vmatmul.bf16.gmra.mxu0 %v950
    %v7068 = vpop.f32.mrf.mxu0
    %v7069 = vadd.f32 %v6940, %v7068
    %v7070 = vpop.f32.mrf.mxu0
    %v7071 = vadd.f32 %v6942, %v7070
    %7072 = vmatmul.bf16.gmra.mxu0 %v956
    %v7073 = vpop.f32.mrf.mxu0
    %v7074 = vadd.f32 %v6945, %v7073
    %v7075 = vpop.f32.mrf.mxu0
    %v7076 = vadd.f32 %v6947, %v7075
    %7077 = vmatmul.bf16.gmra.mxu0 %v962
    %v7078 = vpop.f32.mrf.mxu0
    %v7079 = vadd.f32 %v6950, %v7078
    %v7080 = vpop.f32.mrf.mxu0
    %v7081 = vadd.f32 %v6952, %v7080
    %7082 = vmatmul.bf16.gmra.mxu0 %v968
    %v7083 = vpop.f32.mrf.mxu0
    %v7084 = vadd.f32 %v6955, %v7083
    %v7085 = vpop.f32.mrf.mxu0
    %v7086 = vadd.f32 %v6957, %v7085
    %7087 = vmatmul.bf16.gmra.mxu0 %v974
    %v7088 = vpop.f32.mrf.mxu0
    %v7089 = vadd.f32 %v6960, %v7088
    %v7090 = vpop.f32.mrf.mxu0
    %v7091 = vadd.f32 %v6962, %v7090
    %7092 = vmatmul.bf16.gmra.mxu0 %v980
    %v7093 = vpop.f32.mrf.mxu0
    %v7094 = vadd.f32 %v6965, %v7093
    %v7095 = vpop.f32.mrf.mxu0
    %v7096 = vadd.f32 %v6967, %v7095
    %7097 = vmatmul.bf16.gmra.mxu0 %v986
    %v7098 = vpop.f32.mrf.mxu0
    %v7099 = vadd.f32 %v6970, %v7098
    %v7100 = vpop.f32.mrf.mxu0
    %v7101 = vadd.f32 %v6972, %v7100
    %7102 = vmatmul.bf16.gmra.mxu0 %v992
    %v7103 = vpop.f32.mrf.mxu0
    %v7104 = vadd.f32 %v6975, %v7103
    %v7105 = vpop.f32.mrf.mxu0
    %v7106 = vadd.f32 %v6977, %v7105
    %7107 = vmatmul.bf16.gmra.mxu0 %v998
    %v7108 = vpop.f32.mrf.mxu0
    %v7109 = vadd.f32 %v6980, %v7108
    %v7110 = vpop.f32.mrf.mxu0
    %v7111 = vadd.f32 %v6982, %v7110
    %7112 = vmatmul.bf16.gmra.mxu0 %v1004
    %v7113 = vpop.f32.mrf.mxu0
    %v7114 = vadd.f32 %v6985, %v7113
    %v7115 = vpop.f32.mrf.mxu0
    %v7116 = vadd.f32 %v6987, %v7115
    %7117 = vmatmul.bf16.gmra.mxu0 %v1010
    %v7118 = vpop.f32.mrf.mxu0
    %v7119 = vadd.f32 %v6990, %v7118
    %v7120 = vpop.f32.mrf.mxu0
    %v7121 = vadd.f32 %v6992, %v7120
    %7122 = vmatmul.bf16.gmra.mxu0 %v1016
    %v7123 = vpop.f32.mrf.mxu0
    %v7124 = vadd.f32 %v6995, %v7123
    %v7125 = vpop.f32.mrf.mxu0
    %v7126 = vadd.f32 %v6997, %v7125
    %7127 = vmatmul.bf16.gmra.mxu0 %v1022
    %v7128 = vpop.f32.mrf.mxu0
    %v7129 = vadd.f32 %v7000, %v7128
    %v7130 = vpop.f32.mrf.mxu0
    %v7131 = vadd.f32 %v7002, %v7130
    %7132 = vmatmul.bf16.gmra.mxu0 %v1028
    %v7133 = vpop.f32.mrf.mxu0
    %v7134 = vadd.f32 %v7005, %v7133
    %v7135 = vpop.f32.mrf.mxu0
    %v7136 = vadd.f32 %v7007, %v7135
    %7137 = vmatmul.bf16.gmra.mxu0 %v1034
    %v7138 = vpop.f32.mrf.mxu0
    %v7139 = vadd.f32 %v7010, %v7138
    %v7140 = vpop.f32.mrf.mxu0
    %v7141 = vadd.f32 %v7012, %v7140
    %7142 = vmatmul.bf16.gmra.mxu0 %v1040
    %v7143 = vpop.f32.mrf.mxu0
    %v7144 = vadd.f32 %v7015, %v7143
    %v7145 = vpop.f32.mrf.mxu0
    %v7146 = vadd.f32 %v7017, %v7145
    %7147 = vmatmul.bf16.gmra.mxu0 %v1046
    %v7148 = vpop.f32.mrf.mxu0
    %v7149 = vadd.f32 %v7020, %v7148
    %v7150 = vpop.f32.mrf.mxu0
    %v7151 = vadd.f32 %v7022, %v7150
    %7152 = vmatmul.bf16.gmra.mxu0 %v1052
    %v7153 = vpop.f32.mrf.mxu0
    %v7154 = vadd.f32 %v7025, %v7153
    %v7155 = vpop.f32.mrf.mxu0
    %v7156 = vadd.f32 %v7027, %v7155
    %7157 = vmatmul.bf16.gmra.mxu0 %v1058
    %v7158 = vpop.f32.mrf.mxu0
    %v7159 = vadd.f32 %v7030, %v7158
    %v7160 = vpop.f32.mrf.mxu0
    %v7161 = vadd.f32 %v7032, %v7160
    %7162 = vmatmul.bf16.gmra.mxu0 %v1064
    %v7163 = vpop.f32.mrf.mxu0
    %v7164 = vadd.f32 %v7035, %v7163
    %v7165 = vpop.f32.mrf.mxu0
    %v7166 = vadd.f32 %v7037, %v7165
    %7167 = vmatmul.bf16.gmra.mxu0 %v1070
    %v7168 = vpop.f32.mrf.mxu0
    %v7169 = vadd.f32 %v7040, %v7168
    %v7170 = vpop.f32.mrf.mxu0
    %v7171 = vadd.f32 %v7042, %v7170
    %7172 = vmatmul.bf16.gmra.mxu0 %v1076
    %v7173 = vpop.f32.mrf.mxu0
    %v7174 = vadd.f32 %v7045, %v7173
    %v7175 = vpop.f32.mrf.mxu0
    %v7176 = vadd.f32 %v7047, %v7175
    %7177 = vmatmul.bf16.gmra.mxu0 %v1082
    %v7178 = vpop.f32.mrf.mxu0
    %v7179 = vadd.f32 %v7050, %v7178
    %v7180 = vpop.f32.mrf.mxu0
    %v7181 = vadd.f32 %v7052, %v7180
    %7182 = vdwg.mxu0
    %7183 = vmatpush.bf16.xpose.msra.mxu0 %v2379
    %7184 = vmatpush.bf16.xpose.msra.mxu0 %v2373
    %7185 = vmatpush.bf16.xpose.msra.mxu0 %v2367
    %7186 = vmatpush.bf16.xpose.msra.mxu0 %v2361
    %7187 = vmatpush.bf16.xpose.msra.mxu0 %v2355
    %7188 = vmatpush.bf16.xpose.msra.mxu0 %v2349
    %7189 = vmatpush.bf16.xpose.msra.mxu0 %v2343
    %7190 = vmatpush.bf16.xpose.msra.mxu0 %v2337
    %7191 = vmatmul.bf16.gmra.mxu0 %v945
    %v7192 = vpop.f32.mrf.mxu0
    %v7193 = vadd.f32 %v7064, %v7192
    %v7194 = vpop.f32.mrf.mxu0
    %v7195 = vadd.f32 %v7066, %v7194
    %7196 = vmatmul.bf16.gmra.mxu0 %v951
    %v7197 = vpop.f32.mrf.mxu0
    %v7198 = vadd.f32 %v7069, %v7197
    %v7199 = vpop.f32.mrf.mxu0
    %v7200 = vadd.f32 %v7071, %v7199
    %7201 = vmatmul.bf16.gmra.mxu0 %v957
    %v7202 = vpop.f32.mrf.mxu0
    %v7203 = vadd.f32 %v7074, %v7202
    %v7204 = vpop.f32.mrf.mxu0
    %v7205 = vadd.f32 %v7076, %v7204
    %7206 = vmatmul.bf16.gmra.mxu0 %v963
    %v7207 = vpop.f32.mrf.mxu0
    %v7208 = vadd.f32 %v7079, %v7207
    %v7209 = vpop.f32.mrf.mxu0
    %v7210 = vadd.f32 %v7081, %v7209
    %7211 = vmatmul.bf16.gmra.mxu0 %v969
    %v7212 = vpop.f32.mrf.mxu0
    %v7213 = vadd.f32 %v7084, %v7212
    %v7214 = vpop.f32.mrf.mxu0
    %v7215 = vadd.f32 %v7086, %v7214
    %7216 = vmatmul.bf16.gmra.mxu0 %v975
    %v7217 = vpop.f32.mrf.mxu0
    %v7218 = vadd.f32 %v7089, %v7217
    %v7219 = vpop.f32.mrf.mxu0
    %v7220 = vadd.f32 %v7091, %v7219
    %7221 = vmatmul.bf16.gmra.mxu0 %v981
    %v7222 = vpop.f32.mrf.mxu0
    %v7223 = vadd.f32 %v7094, %v7222
    %v7224 = vpop.f32.mrf.mxu0
    %v7225 = vadd.f32 %v7096, %v7224
    %7226 = vmatmul.bf16.gmra.mxu0 %v987
    %v7227 = vpop.f32.mrf.mxu0
    %v7228 = vadd.f32 %v7099, %v7227
    %v7229 = vpop.f32.mrf.mxu0
    %v7230 = vadd.f32 %v7101, %v7229
    %7231 = vmatmul.bf16.gmra.mxu0 %v993
    %v7232 = vpop.f32.mrf.mxu0
    %v7233 = vadd.f32 %v7104, %v7232
    %v7234 = vpop.f32.mrf.mxu0
    %v7235 = vadd.f32 %v7106, %v7234
    %7236 = vmatmul.bf16.gmra.mxu0 %v999
    %v7237 = vpop.f32.mrf.mxu0
    %v7238 = vadd.f32 %v7109, %v7237
    %v7239 = vpop.f32.mrf.mxu0
    %v7240 = vadd.f32 %v7111, %v7239
    %7241 = vmatmul.bf16.gmra.mxu0 %v1005
    %v7242 = vpop.f32.mrf.mxu0
    %v7243 = vadd.f32 %v7114, %v7242
    %v7244 = vpop.f32.mrf.mxu0
    %v7245 = vadd.f32 %v7116, %v7244
    %7246 = vmatmul.bf16.gmra.mxu0 %v1011
    %v7247 = vpop.f32.mrf.mxu0
    %v7248 = vadd.f32 %v7119, %v7247
    %v7249 = vpop.f32.mrf.mxu0
    %v7250 = vadd.f32 %v7121, %v7249
    %7251 = vmatmul.bf16.gmra.mxu0 %v1017
    %v7252 = vpop.f32.mrf.mxu0
    %v7253 = vadd.f32 %v7124, %v7252
    %v7254 = vpop.f32.mrf.mxu0
    %v7255 = vadd.f32 %v7126, %v7254
    %7256 = vmatmul.bf16.gmra.mxu0 %v1023
    %v7257 = vpop.f32.mrf.mxu0
    %v7258 = vadd.f32 %v7129, %v7257
    %v7259 = vpop.f32.mrf.mxu0
    %v7260 = vadd.f32 %v7131, %v7259
    %7261 = vmatmul.bf16.gmra.mxu0 %v1029
    %v7262 = vpop.f32.mrf.mxu0
    %v7263 = vadd.f32 %v7134, %v7262
    %v7264 = vpop.f32.mrf.mxu0
    %v7265 = vadd.f32 %v7136, %v7264
    %7266 = vmatmul.bf16.gmra.mxu0 %v1035
    %v7267 = vpop.f32.mrf.mxu0
    %v7268 = vadd.f32 %v7139, %v7267
    %v7269 = vpop.f32.mrf.mxu0
    %v7270 = vadd.f32 %v7141, %v7269
    %7271 = vmatmul.bf16.gmra.mxu0 %v1041
    %v7272 = vpop.f32.mrf.mxu0
    %v7273 = vadd.f32 %v7144, %v7272
    %v7274 = vpop.f32.mrf.mxu0
    %v7275 = vadd.f32 %v7146, %v7274
    %7276 = vmatmul.bf16.gmra.mxu0 %v1047
    %v7277 = vpop.f32.mrf.mxu0
    %v7278 = vadd.f32 %v7149, %v7277
    %v7279 = vpop.f32.mrf.mxu0
    %v7280 = vadd.f32 %v7151, %v7279
    %7281 = vmatmul.bf16.gmra.mxu0 %v1053
    %v7282 = vpop.f32.mrf.mxu0
    %v7283 = vadd.f32 %v7154, %v7282
    %v7284 = vpop.f32.mrf.mxu0
    %v7285 = vadd.f32 %v7156, %v7284
    %7286 = vmatmul.bf16.gmra.mxu0 %v1059
    %v7287 = vpop.f32.mrf.mxu0
    %v7288 = vadd.f32 %v7159, %v7287
    %v7289 = vpop.f32.mrf.mxu0
    %v7290 = vadd.f32 %v7161, %v7289
    %7291 = vmatmul.bf16.gmra.mxu0 %v1065
    %v7292 = vpop.f32.mrf.mxu0
    %v7293 = vadd.f32 %v7164, %v7292
    %v7294 = vpop.f32.mrf.mxu0
    %v7295 = vadd.f32 %v7166, %v7294
    %7296 = vmatmul.bf16.gmra.mxu0 %v1071
    %v7297 = vpop.f32.mrf.mxu0
    %v7298 = vadd.f32 %v7169, %v7297
    %v7299 = vpop.f32.mrf.mxu0
    %v7300 = vadd.f32 %v7171, %v7299
    %7301 = vmatmul.bf16.gmra.mxu0 %v1077
    %v7302 = vpop.f32.mrf.mxu0
    %v7303 = vadd.f32 %v7174, %v7302
    %v7304 = vpop.f32.mrf.mxu0
    %v7305 = vadd.f32 %v7176, %v7304
    %7306 = vmatmul.bf16.gmra.mxu0 %v1083
    %v7307 = vpop.f32.mrf.mxu0
    %v7308 = vadd.f32 %v7179, %v7307
    %v7309 = vpop.f32.mrf.mxu0
    %v7310 = vadd.f32 %v7181, %v7309
    %7311 = vdwg.mxu0
    %7312 = vst [vmem:[#allocation10] sm:$0xff] %v3323
    %7313 = vst [vmem:[#allocation10 + $0x8] sm:$0xff] %v4097
    %7314 = vst [vmem:[#allocation10 + $0x10] sm:$0xff] %v4871
    %7315 = vst [vmem:[#allocation10 + $0x18] sm:$0xff] %v5645
    %7316 = vst [vmem:[#allocation10 + $0x20] sm:$0xff] %v6419
    %7317 = vst [vmem:[#allocation10 + $0x28] sm:$0xff] %v7193
    %7318 = vst [vmem:[#allocation10 + $0x30] sm:$0xff] %v3325
    %7319 = vst [vmem:[#allocation10 + $0x38] sm:$0xff] %v4099
    %7320 = vst [vmem:[#allocation10 + $0x40] sm:$0xff] %v4873
    %7321 = vst [vmem:[#allocation10 + $0x48] sm:$0xff] %v5647
    %7322 = vst [vmem:[#allocation10 + $0x50] sm:$0xff] %v6421
    %7323 = vst [vmem:[#allocation10 + $0x58] sm:$0xff] %v7195
    %7324 = vst [vmem:[#allocation10 + $0x60] sm:$0xff] %v3328
    %7325 = vst [vmem:[#allocation10 + $0x68] sm:$0xff] %v4102
    %7326 = vst [vmem:[#allocation10 + $0x70] sm:$0xff] %v4876
    %7327 = vst [vmem:[#allocation10 + $0x78] sm:$0xff] %v5650
    %7328 = vst [vmem:[#allocation10 + $0x80] sm:$0xff] %v6424
    %7329 = vst [vmem:[#allocation10 + $0x88] sm:$0xff] %v7198
    %7330 = vst [vmem:[#allocation10 + $0x90] sm:$0xff] %v3330
    %7331 = vst [vmem:[#allocation10 + $0x98] sm:$0xff] %v4104
    %7332 = vst [vmem:[#allocation10 + $0xa0] sm:$0xff] %v4878
    %7333 = vst [vmem:[#allocation10 + $0xa8] sm:$0xff] %v5652
    %7334 = vst [vmem:[#allocation10 + $0xb0] sm:$0xff] %v6426
    %7335 = vst [vmem:[#allocation10 + $0xb8] sm:$0xff] %v7200
    %7336 = vst [vmem:[#allocation10 + $0xc0] sm:$0xff] %v3333
    %7337 = vst [vmem:[#allocation10 + $0xc8] sm:$0xff] %v4107
    %7338 = vst [vmem:[#allocation10 + $0xd0] sm:$0xff] %v4881
    %7339 = vst [vmem:[#allocation10 + $0xd8] sm:$0xff] %v5655
    %7340 = vst [vmem:[#allocation10 + $0xe0] sm:$0xff] %v6429
    %7341 = vst [vmem:[#allocation10 + $0xe8] sm:$0xff] %v7203
    %7342 = vst [vmem:[#allocation10 + $0xf0] sm:$0xff] %v3335
    %7343 = vst [vmem:[#allocation10 + $0xf8] sm:$0xff] %v4109
    %7344 = vst [vmem:[#allocation10 + $0x100] sm:$0xff] %v4883
    %7345 = vst [vmem:[#allocation10 + $0x108] sm:$0xff] %v5657
    %7346 = vst [vmem:[#allocation10 + $0x110] sm:$0xff] %v6431
    %7347 = vst [vmem:[#allocation10 + $0x118] sm:$0xff] %v7205
    %7348 = vst [vmem:[#allocation10 + $0x120] sm:$0xff] %v3338
    %7349 = vst [vmem:[#allocation10 + $0x128] sm:$0xff] %v4112
    %7350 = vst [vmem:[#allocation10 + $0x130] sm:$0xff] %v4886
    %7351 = vst [vmem:[#allocation10 + $0x138] sm:$0xff] %v5660
    %7352 = vst [vmem:[#allocation10 + $0x140] sm:$0xff] %v6434
    %7353 = vst [vmem:[#allocation10 + $0x148] sm:$0xff] %v7208
    %7354 = vst [vmem:[#allocation10 + $0x150] sm:$0xff] %v3340
    %7355 = vst [vmem:[#allocation10 + $0x158] sm:$0xff] %v4114
    %7356 = vst [vmem:[#allocation10 + $0x160] sm:$0xff] %v4888
    %7357 = vst [vmem:[#allocation10 + $0x168] sm:$0xff] %v5662
    %7358 = vst [vmem:[#allocation10 + $0x170] sm:$0xff] %v6436
    %7359 = vst [vmem:[#allocation10 + $0x178] sm:$0xff] %v7210
    %7360 = vst [vmem:[#allocation10 + $0x180] sm:$0xff] %v3343
    %7361 = vst [vmem:[#allocation10 + $0x188] sm:$0xff] %v4117
    %7362 = vst [vmem:[#allocation10 + $0x190] sm:$0xff] %v4891
    %7363 = vst [vmem:[#allocation10 + $0x198] sm:$0xff] %v5665
    %7364 = vst [vmem:[#allocation10 + $0x1a0] sm:$0xff] %v6439
    %7365 = vst [vmem:[#allocation10 + $0x1a8] sm:$0xff] %v7213
    %7366 = vst [vmem:[#allocation10 + $0x1b0] sm:$0xff] %v3345
    %7367 = vst [vmem:[#allocation10 + $0x1b8] sm:$0xff] %v4119
    %7368 = vst [vmem:[#allocation10 + $0x1c0] sm:$0xff] %v4893
    %7369 = vst [vmem:[#allocation10 + $0x1c8] sm:$0xff] %v5667
    %7370 = vst [vmem:[#allocation10 + $0x1d0] sm:$0xff] %v6441
    %7371 = vst [vmem:[#allocation10 + $0x1d8] sm:$0xff] %v7215
    %7372 = vst [vmem:[#allocation10 + $0x1e0] sm:$0xff] %v3348
    %7373 = vst [vmem:[#allocation10 + $0x1e8] sm:$0xff] %v4122
    %7374 = vst [vmem:[#allocation10 + $0x1f0] sm:$0xff] %v4896
    %7375 = vst [vmem:[#allocation10 + $0x1f8] sm:$0xff] %v5670
    %7376 = vst [vmem:[#allocation10 + $0x200] sm:$0xff] %v6444
    %7377 = vst [vmem:[#allocation10 + $0x208] sm:$0xff] %v7218
    %7378 = vst [vmem:[#allocation10 + $0x210] sm:$0xff] %v3350
    %7379 = vst [vmem:[#allocation10 + $0x218] sm:$0xff] %v4124
    %7380 = vst [vmem:[#allocation10 + $0x220] sm:$0xff] %v4898
    %7381 = vst [vmem:[#allocation10 + $0x228] sm:$0xff] %v5672
    %7382 = vst [vmem:[#allocation10 + $0x230] sm:$0xff] %v6446
    %7383 = vst [vmem:[#allocation10 + $0x238] sm:$0xff] %v7220
    %7384 = vst [vmem:[#allocation10 + $0x240] sm:$0xff] %v3353
    %7385 = vst [vmem:[#allocation10 + $0x248] sm:$0xff] %v4127
    %7386 = vst [vmem:[#allocation10 + $0x250] sm:$0xff] %v4901
    %7387 = vst [vmem:[#allocation10 + $0x258] sm:$0xff] %v5675
    %7388 = vst [vmem:[#allocation10 + $0x260] sm:$0xff] %v6449
    %7389 = vst [vmem:[#allocation10 + $0x268] sm:$0xff] %v7223
    %7390 = vst [vmem:[#allocation10 + $0x270] sm:$0xff] %v3355
    %7391 = vst [vmem:[#allocation10 + $0x278] sm:$0xff] %v4129
    %7392 = vst [vmem:[#allocation10 + $0x280] sm:$0xff] %v4903
    %7393 = vst [vmem:[#allocation10 + $0x288] sm:$0xff] %v5677
    %7394 = vst [vmem:[#allocation10 + $0x290] sm:$0xff] %v6451
    %7395 = vst [vmem:[#allocation10 + $0x298] sm:$0xff] %v7225
    %7396 = vst [vmem:[#allocation10 + $0x2a0] sm:$0xff] %v3358
    %7397 = vst [vmem:[#allocation10 + $0x2a8] sm:$0xff] %v4132
    %7398 = vst [vmem:[#allocation10 + $0x2b0] sm:$0xff] %v4906
    %7399 = vst [vmem:[#allocation10 + $0x2b8] sm:$0xff] %v5680
    %7400 = vst [vmem:[#allocation10 + $0x2c0] sm:$0xff] %v6454
    %7401 = vst [vmem:[#allocation10 + $0x2c8] sm:$0xff] %v7228
    %7402 = vst [vmem:[#allocation10 + $0x2d0] sm:$0xff] %v3360
    %7403 = vst [vmem:[#allocation10 + $0x2d8] sm:$0xff] %v4134
    %7404 = vst [vmem:[#allocation10 + $0x2e0] sm:$0xff] %v4908
    %7405 = vst [vmem:[#allocation10 + $0x2e8] sm:$0xff] %v5682
    %7406 = vst [vmem:[#allocation10 + $0x2f0] sm:$0xff] %v6456
    %7407 = vst [vmem:[#allocation10 + $0x2f8] sm:$0xff] %v7230
    %7408 = vst [vmem:[#allocation10 + $0x300] sm:$0xff] %v3363
    %7409 = vst [vmem:[#allocation10 + $0x308] sm:$0xff] %v4137
    %7410 = vst [vmem:[#allocation10 + $0x310] sm:$0xff] %v4911
    %7411 = vst [vmem:[#allocation10 + $0x318] sm:$0xff] %v5685
    %7412 = vst [vmem:[#allocation10 + $0x320] sm:$0xff] %v6459
    %7413 = vst [vmem:[#allocation10 + $0x328] sm:$0xff] %v7233
    %7414 = vst [vmem:[#allocation10 + $0x330] sm:$0xff] %v3365
    %7415 = vst [vmem:[#allocation10 + $0x338] sm:$0xff] %v4139
    %7416 = vst [vmem:[#allocation10 + $0x340] sm:$0xff] %v4913
    %7417 = vst [vmem:[#allocation10 + $0x348] sm:$0xff] %v5687
    %7418 = vst [vmem:[#allocation10 + $0x350] sm:$0xff] %v6461
    %7419 = vst [vmem:[#allocation10 + $0x358] sm:$0xff] %v7235
    %7420 = vst [vmem:[#allocation10 + $0x360] sm:$0xff] %v3368
    %7421 = vst [vmem:[#allocation10 + $0x368] sm:$0xff] %v4142
    %7422 = vst [vmem:[#allocation10 + $0x370] sm:$0xff] %v4916
    %7423 = vst [vmem:[#allocation10 + $0x378] sm:$0xff] %v5690
    %7424 = vst [vmem:[#allocation10 + $0x380] sm:$0xff] %v6464
    %7425 = vst [vmem:[#allocation10 + $0x388] sm:$0xff] %v7238
    %7426 = vst [vmem:[#allocation10 + $0x390] sm:$0xff] %v3370
    %7427 = vst [vmem:[#allocation10 + $0x398] sm:$0xff] %v4144
    %7428 = vst [vmem:[#allocation10 + $0x3a0] sm:$0xff] %v4918
    %7429 = vst [vmem:[#allocation10 + $0x3a8] sm:$0xff] %v5692
    %7430 = vst [vmem:[#allocation10 + $0x3b0] sm:$0xff] %v6466
    %7431 = vst [vmem:[#allocation10 + $0x3b8] sm:$0xff] %v7240
    %7432 = vst [vmem:[#allocation10 + $0x3c0] sm:$0xff] %v3373
    %7433 = vst [vmem:[#allocation10 + $0x3c8] sm:$0xff] %v4147
    %7434 = vst [vmem:[#allocation10 + $0x3d0] sm:$0xff] %v4921
    %7435 = vst [vmem:[#allocation10 + $0x3d8] sm:$0xff] %v5695
    %7436 = vst [vmem:[#allocation10 + $0x3e0] sm:$0xff] %v6469
    %7437 = vst [vmem:[#allocation10 + $0x3e8] sm:$0xff] %v7243
    %7438 = vst [vmem:[#allocation10 + $0x3f0] sm:$0xff] %v3375
    %7439 = vst [vmem:[#allocation10 + $0x3f8] sm:$0xff] %v4149
    %7440 = vst [vmem:[#allocation10 + $0x400] sm:$0xff] %v4923
    %7441 = vst [vmem:[#allocation10 + $0x408] sm:$0xff] %v5697
    %7442 = vst [vmem:[#allocation10 + $0x410] sm:$0xff] %v6471
    %7443 = vst [vmem:[#allocation10 + $0x418] sm:$0xff] %v7245
    %7444 = vst [vmem:[#allocation10 + $0x420] sm:$0xff] %v3378
    %7445 = vst [vmem:[#allocation10 + $0x428] sm:$0xff] %v4152
    %7446 = vst [vmem:[#allocation10 + $0x430] sm:$0xff] %v4926
    %7447 = vst [vmem:[#allocation10 + $0x438] sm:$0xff] %v5700
    %7448 = vst [vmem:[#allocation10 + $0x440] sm:$0xff] %v6474
    %7449 = vst [vmem:[#allocation10 + $0x448] sm:$0xff] %v7248
    %7450 = vst [vmem:[#allocation10 + $0x450] sm:$0xff] %v3380
    %7451 = vst [vmem:[#allocation10 + $0x458] sm:$0xff] %v4154
    %7452 = vst [vmem:[#allocation10 + $0x460] sm:$0xff] %v4928
    %7453 = vst [vmem:[#allocation10 + $0x468] sm:$0xff] %v5702
    %7454 = vst [vmem:[#allocation10 + $0x470] sm:$0xff] %v6476
    %7455 = vst [vmem:[#allocation10 + $0x478] sm:$0xff] %v7250
    %7456 = vst [vmem:[#allocation10 + $0x480] sm:$0xff] %v3383
    %7457 = vst [vmem:[#allocation10 + $0x488] sm:$0xff] %v4157
    %7458 = vst [vmem:[#allocation10 + $0x490] sm:$0xff] %v4931
    %7459 = vst [vmem:[#allocation10 + $0x498] sm:$0xff] %v5705
    %7460 = vst [vmem:[#allocation10 + $0x4a0] sm:$0xff] %v6479
    %7461 = vst [vmem:[#allocation10 + $0x4a8] sm:$0xff] %v7253
    %7462 = vst [vmem:[#allocation10 + $0x4b0] sm:$0xff] %v3385
    %7463 = vst [vmem:[#allocation10 + $0x4b8] sm:$0xff] %v4159
    %7464 = vst [vmem:[#allocation10 + $0x4c0] sm:$0xff] %v4933
    %7465 = vst [vmem:[#allocation10 + $0x4c8] sm:$0xff] %v5707
    %7466 = vst [vmem:[#allocation10 + $0x4d0] sm:$0xff] %v6481
    %7467 = vst [vmem:[#allocation10 + $0x4d8] sm:$0xff] %v7255
    %7468 = vst [vmem:[#allocation10 + $0x4e0] sm:$0xff] %v3388
    %7469 = vst [vmem:[#allocation10 + $0x4e8] sm:$0xff] %v4162
    %7470 = vst [vmem:[#allocation10 + $0x4f0] sm:$0xff] %v4936
    %7471 = vst [vmem:[#allocation10 + $0x4f8] sm:$0xff] %v5710
    %7472 = vst [vmem:[#allocation10 + $0x500] sm:$0xff] %v6484
    %7473 = vst [vmem:[#allocation10 + $0x508] sm:$0xff] %v7258
    %7474 = vst [vmem:[#allocation10 + $0x510] sm:$0xff] %v3390
    %7475 = vst [vmem:[#allocation10 + $0x518] sm:$0xff] %v4164
    %7476 = vst [vmem:[#allocation10 + $0x520] sm:$0xff] %v4938
    %7477 = vst [vmem:[#allocation10 + $0x528] sm:$0xff] %v5712
    %7478 = vst [vmem:[#allocation10 + $0x530] sm:$0xff] %v6486
    %7479 = vst [vmem:[#allocation10 + $0x538] sm:$0xff] %v7260
    %7480 = vst [vmem:[#allocation10 + $0x540] sm:$0xff] %v3393
    %7481 = vst [vmem:[#allocation10 + $0x548] sm:$0xff] %v4167
    %7482 = vst [vmem:[#allocation10 + $0x550] sm:$0xff] %v4941
    %7483 = vst [vmem:[#allocation10 + $0x558] sm:$0xff] %v5715
    %7484 = vst [vmem:[#allocation10 + $0x560] sm:$0xff] %v6489
    %7485 = vst [vmem:[#allocation10 + $0x568] sm:$0xff] %v7263
    %7486 = vst [vmem:[#allocation10 + $0x570] sm:$0xff] %v3395
    %7487 = vst [vmem:[#allocation10 + $0x578] sm:$0xff] %v4169
    %7488 = vst [vmem:[#allocation10 + $0x580] sm:$0xff] %v4943
    %7489 = vst [vmem:[#allocation10 + $0x588] sm:$0xff] %v5717
    %7490 = vst [vmem:[#allocation10 + $0x590] sm:$0xff] %v6491
    %7491 = vst [vmem:[#allocation10 + $0x598] sm:$0xff] %v7265
    %7492 = vst [vmem:[#allocation10 + $0x5a0] sm:$0xff] %v3398
    %7493 = vst [vmem:[#allocation10 + $0x5a8] sm:$0xff] %v4172
    %7494 = vst [vmem:[#allocation10 + $0x5b0] sm:$0xff] %v4946
    %7495 = vst [vmem:[#allocation10 + $0x5b8] sm:$0xff] %v5720
    %7496 = vst [vmem:[#allocation10 + $0x5c0] sm:$0xff] %v6494
    %7497 = vst [vmem:[#allocation10 + $0x5c8] sm:$0xff] %v7268
    %7498 = vst [vmem:[#allocation10 + $0x5d0] sm:$0xff] %v3400
    %7499 = vst [vmem:[#allocation10 + $0x5d8] sm:$0xff] %v4174
    %7500 = vst [vmem:[#allocation10 + $0x5e0] sm:$0xff] %v4948
    %7501 = vst [vmem:[#allocation10 + $0x5e8] sm:$0xff] %v5722
    %7502 = vst [vmem:[#allocation10 + $0x5f0] sm:$0xff] %v6496
    %7503 = vst [vmem:[#allocation10 + $0x5f8] sm:$0xff] %v7270
    %7504 = vst [vmem:[#allocation10 + $0x600] sm:$0xff] %v3403
    %7505 = vst [vmem:[#allocation10 + $0x608] sm:$0xff] %v4177
    %7506 = vst [vmem:[#allocation10 + $0x610] sm:$0xff] %v4951
    %7507 = vst [vmem:[#allocation10 + $0x618] sm:$0xff] %v5725
    %7508 = vst [vmem:[#allocation10 + $0x620] sm:$0xff] %v6499
    %7509 = vst [vmem:[#allocation10 + $0x628] sm:$0xff] %v7273
    %7510 = vst [vmem:[#allocation10 + $0x630] sm:$0xff] %v3405
    %7511 = vst [vmem:[#allocation10 + $0x638] sm:$0xff] %v4179
    %7512 = vst [vmem:[#allocation10 + $0x640] sm:$0xff] %v4953
    %7513 = vst [vmem:[#allocation10 + $0x648] sm:$0xff] %v5727
    %7514 = vst [vmem:[#allocation10 + $0x650] sm:$0xff] %v6501
    %7515 = vst [vmem:[#allocation10 + $0x658] sm:$0xff] %v7275
    %7516 = vst [vmem:[#allocation10 + $0x660] sm:$0xff] %v3408
    %7517 = vst [vmem:[#allocation10 + $0x668] sm:$0xff] %v4182
    %7518 = vst [vmem:[#allocation10 + $0x670] sm:$0xff] %v4956
    %7519 = vst [vmem:[#allocation10 + $0x678] sm:$0xff] %v5730
    %7520 = vst [vmem:[#allocation10 + $0x680] sm:$0xff] %v6504
    %7521 = vst [vmem:[#allocation10 + $0x688] sm:$0xff] %v7278
    %7522 = vst [vmem:[#allocation10 + $0x690] sm:$0xff] %v3410
    %7523 = vst [vmem:[#allocation10 + $0x698] sm:$0xff] %v4184
    %7524 = vst [vmem:[#allocation10 + $0x6a0] sm:$0xff] %v4958
    %7525 = vst [vmem:[#allocation10 + $0x6a8] sm:$0xff] %v5732
    %7526 = vst [vmem:[#allocation10 + $0x6b0] sm:$0xff] %v6506
    %7527 = vst [vmem:[#allocation10 + $0x6b8] sm:$0xff] %v7280
    %7528 = vst [vmem:[#allocation10 + $0x6c0] sm:$0xff] %v3413
    %7529 = vst [vmem:[#allocation10 + $0x6c8] sm:$0xff] %v4187
    %7530 = vst [vmem:[#allocation10 + $0x6d0] sm:$0xff] %v4961
    %7531 = vst [vmem:[#allocation10 + $0x6d8] sm:$0xff] %v5735
    %7532 = vst [vmem:[#allocation10 + $0x6e0] sm:$0xff] %v6509
    %7533 = vst [vmem:[#allocation10 + $0x6e8] sm:$0xff] %v7283
    %7534 = vst [vmem:[#allocation10 + $0x6f0] sm:$0xff] %v3415
    %7535 = vst [vmem:[#allocation10 + $0x6f8] sm:$0xff] %v4189
    %7536 = vst [vmem:[#allocation10 + $0x700] sm:$0xff] %v4963
    %7537 = vst [vmem:[#allocation10 + $0x708] sm:$0xff] %v5737
    %7538 = vst [vmem:[#allocation10 + $0x710] sm:$0xff] %v6511
    %7539 = vst [vmem:[#allocation10 + $0x718] sm:$0xff] %v7285
    %7540 = vst [vmem:[#allocation10 + $0x720] sm:$0xff] %v3418
    %7541 = vst [vmem:[#allocation10 + $0x728] sm:$0xff] %v4192
    %7542 = vst [vmem:[#allocation10 + $0x730] sm:$0xff] %v4966
    %7543 = vst [vmem:[#allocation10 + $0x738] sm:$0xff] %v5740
    %7544 = vst [vmem:[#allocation10 + $0x740] sm:$0xff] %v6514
    %7545 = vst [vmem:[#allocation10 + $0x748] sm:$0xff] %v7288
    %7546 = vst [vmem:[#allocation10 + $0x750] sm:$0xff] %v3420
    %7547 = vst [vmem:[#allocation10 + $0x758] sm:$0xff] %v4194
    %7548 = vst [vmem:[#allocation10 + $0x760] sm:$0xff] %v4968
    %7549 = vst [vmem:[#allocation10 + $0x768] sm:$0xff] %v5742
    %7550 = vst [vmem:[#allocation10 + $0x770] sm:$0xff] %v6516
    %7551 = vst [vmem:[#allocation10 + $0x778] sm:$0xff] %v7290
    %7552 = vst [vmem:[#allocation10 + $0x780] sm:$0xff] %v3423
    %7553 = vst [vmem:[#allocation10 + $0x788] sm:$0xff] %v4197
    %7554 = vst [vmem:[#allocation10 + $0x790] sm:$0xff] %v4971
    %7555 = vst [vmem:[#allocation10 + $0x798] sm:$0xff] %v5745
    %7556 = vst [vmem:[#allocation10 + $0x7a0] sm:$0xff] %v6519
    %7557 = vst [vmem:[#allocation10 + $0x7a8] sm:$0xff] %v7293
    %7558 = vst [vmem:[#allocation10 + $0x7b0] sm:$0xff] %v3425
    %7559 = vst [vmem:[#allocation10 + $0x7b8] sm:$0xff] %v4199
    %7560 = vst [vmem:[#allocation10 + $0x7c0] sm:$0xff] %v4973
    %7561 = vst [vmem:[#allocation10 + $0x7c8] sm:$0xff] %v5747
    %7562 = vst [vmem:[#allocation10 + $0x7d0] sm:$0xff] %v6521
    %7563 = vst [vmem:[#allocation10 + $0x7d8] sm:$0xff] %v7295
    %7564 = vst [vmem:[#allocation10 + $0x7e0] sm:$0xff] %v3428
    %7565 = vst [vmem:[#allocation10 + $0x7e8] sm:$0xff] %v4202
    %7566 = vst [vmem:[#allocation10 + $0x7f0] sm:$0xff] %v4976
    %7567 = vst [vmem:[#allocation10 + $0x7f8] sm:$0xff] %v5750
    %7568 = vst [vmem:[#allocation10 + $0x800] sm:$0xff] %v6524
    %7569 = vst [vmem:[#allocation10 + $0x808] sm:$0xff] %v7298
    %7570 = vst [vmem:[#allocation10 + $0x810] sm:$0xff] %v3430
    %7571 = vst [vmem:[#allocation10 + $0x818] sm:$0xff] %v4204
    %7572 = vst [vmem:[#allocation10 + $0x820] sm:$0xff] %v4978
    %7573 = vst [vmem:[#allocation10 + $0x828] sm:$0xff] %v5752
    %7574 = vst [vmem:[#allocation10 + $0x830] sm:$0xff] %v6526
    %7575 = vst [vmem:[#allocation10 + $0x838] sm:$0xff] %v7300
    %7576 = vst [vmem:[#allocation10 + $0x840] sm:$0xff] %v3433
    %7577 = vst [vmem:[#allocation10 + $0x848] sm:$0xff] %v4207
    %7578 = vst [vmem:[#allocation10 + $0x850] sm:$0xff] %v4981
    %7579 = vst [vmem:[#allocation10 + $0x858] sm:$0xff] %v5755
    %7580 = vst [vmem:[#allocation10 + $0x860] sm:$0xff] %v6529
    %7581 = vst [vmem:[#allocation10 + $0x868] sm:$0xff] %v7303
    %7582 = vst [vmem:[#allocation10 + $0x870] sm:$0xff] %v3435
    %7583 = vst [vmem:[#allocation10 + $0x878] sm:$0xff] %v4209
    %7584 = vst [vmem:[#allocation10 + $0x880] sm:$0xff] %v4983
    %7585 = vst [vmem:[#allocation10 + $0x888] sm:$0xff] %v5757
    %7586 = vst [vmem:[#allocation10 + $0x890] sm:$0xff] %v6531
    %7587 = vst [vmem:[#allocation10 + $0x898] sm:$0xff] %v7305
    %7588 = vst [vmem:[#allocation10 + $0x8a0] sm:$0xff] %v3438
    %7589 = vst [vmem:[#allocation10 + $0x8a8] sm:$0xff] %v4212
    %7590 = vst [vmem:[#allocation10 + $0x8b0] sm:$0xff] %v4986
    %7591 = vst [vmem:[#allocation10 + $0x8b8] sm:$0xff] %v5760
    %7592 = vst [vmem:[#allocation10 + $0x8c0] sm:$0xff] %v6534
    %7593 = vst [vmem:[#allocation10 + $0x8c8] sm:$0xff] %v7308
    %7594 = vst [vmem:[#allocation10 + $0x8d0] sm:$0xff] %v3440
    %7595 = vst [vmem:[#allocation10 + $0x8d8] sm:$0xff] %v4214
    %7596 = vst [vmem:[#allocation10 + $0x8e0] sm:$0xff] %v4988
    %7597 = vst [vmem:[#allocation10 + $0x8e8] sm:$0xff] %v5762
    %7598 = vst [vmem:[#allocation10 + $0x8f0] sm:$0xff] %v6536
    %7599 = vst [vmem:[#allocation10 + $0x8f8] sm:$0xff] %v7310
    // Predicated region
    $region26: #{tpu_custom_call.1} parent=1 // pred_check
      _
    $region27: #{tpu_custom_call.1} parent=1 // pred_check_branch
      %7601 = sbr.rel (0) target = $region29
    $region28: #{tpu_custom_call.1} parent=1 // pred_region
      %7603 = vsyncadd [#allocation6], 0
      %s7604 = sshll.u32 [#allocation10], 4
      %s7605 = int_to_ptr.vmem [resolvable:$true] %s7604
      %s7606 = sshll.u32 %s4, 4
      %s7607 = int_to_ptr.hbm [resolvable:$true] %s7606
      %7612 = dma.vmem_to_hbm [thread:$0]  %s7605, 36864, %s7607, [#allocation6], 768, 768, 48
    $region29: #{tpu_custom_call.1} parent=1 // pred_fallthru
      _
    // Predicated region
    $region30: #{tpu_custom_call.1} parent=1 // pred_check
      _
    $region31: #{tpu_custom_call.1} parent=1 // pred_check_branch
      %7614 = sbr.rel (0) target = $region33
    $region32: #{tpu_custom_call.1} parent=1 // pred_region
      %7616 = dma.done [#allocation6], 36864
    $region33: #{tpu_custom_call.1} parent=1 // pred_fallthru
      _
    %7617 = vsyncpa [#allocation5], 1
    %7618 = vsyncpa [#allocation8], 1
    %7619 = vsyncpa [#allocation6], 1

</llo_original>
